<compile_context>
chip_gen: v7x
topology: tpu7x:2x2x1
jax: 0.10.0
libtpu: 0.0.40
codegen_flags: <defaults>
</compile_context>

<pallas_src>
import functools

import jax
import jax.numpy as jnp
from jax import lax
from jax.experimental import pallas as pl
from jax.experimental.pallas import tpu as pltpu

EPS = 1e-5
NEG_SLOPE = 0.2
LANE = 128
_MB = 1024 * 1024


def _round_up(x, m):
    return (x + m - 1) // m * m


def _leaky(x):
    return jnp.where(x > 0, x, NEG_SLOPE * x)


def _vmem_capacity_bytes():
    try:
        return int(pltpu.get_tpu_info().vmem_capacity_bytes)
    except Exception:
        return 128 * _MB


def _step_footprint_bytes(TH, W, Cinp, Midp, Coutp):
    """Rough per-grid-step VMEM footprint (block buffers + scratch + f32 temps)."""
    bf, f4 = 2, 4
    p1 = ((TH + 4) * (W + 2) * Cinp * bf * 2            # x halo slab (double buffered)
          + 9 * Cinp * Midp * bf                        # w1 (single buffered)
          + (TH + 2) * W * Midp * (bf * 2 + f4))        # y1 slab out + f32 accum temp
    p2 = (TH * W * Cinp * bf * 2                        # x centre rows
          + (TH + 2) * W * Midp * (bf * 2 + f4)         # y1 slab in + f32 bn/lrelu temp
          + (Cinp + 9 * Midp) * Coutp * bf              # conv_expand + conv2 weights
          + TH * W * Coutp * (bf * 2 + f4)              # y2 out + f32 accum temp
          + (TH + 2) * (W + 2) * Midp * bf)             # hpad scratch
    p3 = TH * W * Coutp * (bf * 2 + f4 * 3)             # y2 in, out, temps
    return max(p1, p2, p3)


def _select_tiling(N, H, W, Cinp, Midp, Coutp):
    """Pick the row-tile height and the scoped-VMEM limit per generation."""
    cap = _vmem_capacity_bytes()
    budget = int(cap * 0.6)            # ~38 MiB on v7x, ~77 MiB on v5e/v6e
    cands = sorted(t for t in range(8, H + 1, 8) if H % t == 0) or [H]
    th = cands[0]
    for t in cands:                    # largest row tile that fits the budget
        if _step_footprint_bytes(t, W, Cinp, Midp, Coutp) <= budget:
            th = t
    # Prefer >= 4 grid steps so the auto-pipeline overlaps DMA with compute and
    # both v7x TensorCores get work even at small batch.
    while N * (H // th) < 4 and th > cands[0]:
        th = max(c for c in cands if c < th)
    fp = _step_footprint_bytes(th, W, Cinp, Midp, Coutp)
    vmem_limit = int(min(cap * 9 // 10, max(fp * 3 // 2, 48 * _MB)))
    return th, vmem_limit


def _invariant(block_shape, index_map):
    """Grid-invariant operand: a single VMEM buffer is enough (frees VMEM)."""
    try:
        return pl.BlockSpec(block_shape, index_map, pipeline_mode=pl.Buffered(1))
    except (AttributeError, TypeError):
        return pl.BlockSpec(block_shape, index_map)


# --------------------------------------------------------------------------
# Pass 1: conv1 (3x3, pad 1, no bias) on a row slab + BN1 partial stats
# --------------------------------------------------------------------------
def _conv1_kernel(xs_ref, w1_ref, y1_ref, s1_ref):
    # xs_ref : (1, 1, TH+4, W+2, Cinp) bf16  padded input rows (2-row halo)
    # w1_ref : (9, Cinp, Midp)         bf16  conv1 taps, k = 3*dy + dx
    # y1_ref : (1, 1, TH+2, W, Midp)   bf16  conv1 slab (centre TH rows + halo)
    # s1_ref : (1, 1, 2, Midp)         f32   [sum, sumsq] over the centre rows
    _, _, rows, W, Midp = y1_ref.shape          # rows = TH + 2
    Cinp = xs_ref.shape[-1]

    acc = None
    for dy in range(3):
        for dx in range(3):
            k = 3 * dy + dx
            tap = xs_ref[:, :, dy:dy + rows, dx:dx + W, :].reshape(rows * W, Cinp)
            part = jnp.dot(tap, w1_ref[k], preferred_element_type=jnp.float32)
            acc = part if acc is None else acc + part   # expression accumulation

    y1_ref[...] = acc.reshape(1, 1, rows, W, Midp).astype(y1_ref.dtype)
    centre = acc[W:(rows - 1) * W, :]                   # halo rows excluded from stats
    s1_ref[:, :, 0:1, :] = jnp.sum(
        centre, axis=0, keepdims=True).reshape(1, 1, 1, Midp)
    s1_ref[:, :, 1:2, :] = jnp.sum(
        centre * centre, axis=0, keepdims=True).reshape(1, 1, 1, Midp)


# --------------------------------------------------------------------------
# Pass 2: folded BN1 + LeakyReLU, conv2 (3x3, pad 1), + identity/conv_expand,
#         BN2 partial stats
# --------------------------------------------------------------------------
def _make_conv2_kernel(has_expand):
    def kernel(*refs):
        if has_expand:
            (xc_ref, y1_ref, we_ref, w2_ref, sc1_ref, bi1_ref,
             y2_ref, s2_ref, hpad_ref) = refs
        else:
            (xc_ref, y1_ref, w2_ref, sc1_ref, bi1_ref,
             y2_ref, s2_ref, hpad_ref) = refs
            we_ref = None

        _, TH, W, Coutp = y2_ref.shape
        Midp = y1_ref.shape[-1]
        Cinp = xc_ref.shape[-1]
        rows = TH + 2
        r = pl.program_id(1)
        num_r = pl.num_programs(1)

        # Folded BN1 + LeakyReLU(0.2) on the conv1 slab (centre + halo rows).
        h = y1_ref[...].reshape(rows * W, Midp).astype(jnp.float32)
        h = _leaky(h * sc1_ref[...] + bi1_ref[...])
        h = h.reshape(rows, W, Midp).astype(hpad_ref.dtype)

        # Build the zero-padded conv2 input: zero W halo columns, write the
        # data, zero the top/bottom halo rows only at the image boundary
        # (interior tiles keep the redundantly computed halo rows).
        zcol = jnp.zeros((rows, 1, Midp), hpad_ref.dtype)
        hpad_ref[:, 0:1, :] = zcol
        hpad_ref[:, W + 1:W + 2, :] = zcol
        hpad_ref[:, 1:W + 1, :] = h

        zrow = jnp.zeros((1, W, Midp), hpad_ref.dtype)

        @pl.when(r == 0)
        def _():
            hpad_ref[0:1, 1:W + 1, :] = zrow

        @pl.when(r == num_r - 1)
        def _():
            hpad_ref[rows - 1:rows, 1:W + 1, :] = zrow

        # Identity branch: conv_expand 1x1 if inc != outc, plain add otherwise.
        xc = xc_ref[...].reshape(TH * W, Cinp)
        if has_expand:
            acc = jnp.dot(xc, we_ref[...], preferred_element_type=jnp.float32)
        else:
            acc = xc.astype(jnp.float32)        # Cinp == Coutp in this configuration

        # conv2: 9 bf16 MXU taps summed as one expression (no scratch RMW).
        for dy in range(3):
            for dx in range(3):
                k = 3 * dy + dx
                tap = hpad_ref[dy:dy + TH, dx:dx + W, :].reshape(TH * W, Midp)
                acc = acc + jnp.dot(tap, w2_ref[k],
                                    preferred_element_type=jnp.float32)

        y2_ref[...] = acc.reshape(1, TH, W, Coutp).astype(y2_ref.dtype)
        s2_ref[:, :, 0:1, :] = jnp.sum(
            acc, axis=0, keepdims=True).reshape(1, 1, 1, Coutp)
        s2_ref[:, :, 1:2, :] = jnp.sum(
            acc * acc, axis=0, keepdims=True).reshape(1, 1, 1, Coutp)

    return kernel


# --------------------------------------------------------------------------
# Pass 3: folded BN2 + LeakyReLU (elementwise, lane-dense)
# --------------------------------------------------------------------------
def _bn_act_kernel(y2_ref, sc2_ref, bi2_ref, o_ref):
    _, TH, W, C = o_ref.shape
    y = y2_ref[...].reshape(TH * W, C).astype(jnp.float32)
    z = _leaky(y * sc2_ref[...] + bi2_ref[...])
    o_ref[...] = z.reshape(1, TH, W, C).astype(o_ref.dtype)


# --------------------------------------------------------------------------
# Host-side glue
# --------------------------------------------------------------------------
def _fold_bn(stats, gamma_p, beta_p, count):
    """(N, R, 2, C) partial [sum, sumsq] -> folded BN scale/bias (train mode)."""
    total = jnp.sum(stats.astype(jnp.float32), axis=(0, 1))     # (2, C)
    mean = total[0] / count
    var = jnp.maximum(total[1] / count - mean * mean, 0.0)      # biased variance
    scale = gamma_p * lax.rsqrt(var + EPS)
    bias = beta_p - mean * scale
    return scale.reshape(1, -1), bias.reshape(1, -1)


@functools.partial(jax.jit, static_argnames=("return_nhwc_bf16",))
def residual_block_forward(x_nchw, params, return_nhwc_bf16=False):
    """Forward of _Residual_Block.  x_nchw: (N, Cin, H, W) float32.

    params = (we, w1, g1, b1, w2, g2, b2); `we` is None when inc == outc
    (PyTorch's conv_expand=None), otherwise an (inc, outc) 1x1 weight.
    Conv weights are HWIO: w1 (3, 3, inc, midc), w2 (3, 3, midc, outc).
    """
    we, w1, g1, b1, w2, g2, b2 = params
    has_expand = we is not None
    N, Cin, H, W = x_nchw.shape
    Mid = w1.shape[-1]
    Cout = w2.shape[-1]
    if not has_expand and Cin != Cout:
        raise ValueError("conv_expand weight required when inc != outc")

    Cinp, Midp, Coutp = (_round_up(c, LANE) for c in (Cin, Mid, Cout))
    TH, vmem_limit = _select_tiling(N, H, W, Cinp, Midp, Coutp)
    R = H // TH

    # ---- layout prep (XLA): NCHW -> NHWC, lane-pad channels, and build the
    # overlapping row slabs consumed by pass 1 (2-row halo each side). --------
    x_nhwc = jnp.transpose(x_nchw, (0, 2, 3, 1))
    x_c = jnp.pad(x_nhwc, ((0, 0), (0, 0), (0, 0), (0, Cinp - Cin))
                  ).astype(jnp.bfloat16)                          # (N, H, W, Cinp)
    xp2 = jnp.pad(x_c, ((0, 0), (2, 2), (1, 1), (0, 0)))          # (N, H+4, W+2, Cinp)
    x_slab = jnp.stack(
        [lax.slice_in_dim(xp2, r * TH, r * TH + TH + 4, axis=1) for r in range(R)],
        axis=1)                                                   # (N, R, TH+4, W+2, Cinp)

    w1p = jnp.pad(w1, ((0, 0), (0, 0), (0, Cinp - Cin), (0, Midp - Mid))
                  ).reshape(9, Cinp, Midp).astype(jnp.bfloat16)
    w2p = jnp.pad(w2, ((0, 0), (0, 0), (0, Midp - Mid), (0, Coutp - Cout))
                  ).reshape(9, Midp, Coutp).astype(jnp.bfloat16)
    g1p = jnp.pad(g1, (0, Midp - Mid)).astype(jnp.float32)
    b1p = jnp.pad(b1, (0, Midp - Mid)).astype(jnp.float32)
    g2p = jnp.pad(g2, (0, Coutp - Cout)).astype(jnp.float32)
    b2p = jnp.pad(b2, (0, Coutp - Cout)).astype(jnp.float32)

    cparams = pltpu.CompilerParams(
        dimension_semantics=("parallel", "parallel"),
        vmem_limit_bytes=vmem_limit)
    grid = (N, R)

    # ---- pass 1: conv1 slabs (+1-row halo) and BN1 partial stats ------------
    y1s, s1 = pl.pallas_call(
        _conv1_kernel,
        out_shape=(jax.ShapeDtypeStruct((N, R, TH + 2, W, Midp), jnp.bfloat16),
                   jax.ShapeDtypeStruct((N, R, 2, Midp), jnp.float32)),
        grid=grid,
        in_specs=[
            pl.BlockSpec((1, 1, TH + 4, W + 2, Cinp),
                         lambda n, r: (n, r, 0, 0, 0)),
            _invariant((9, Cinp, Midp), lambda n, r: (0, 0, 0)),
        ],
        out_specs=(
            pl.BlockSpec((1, 1, TH + 2, W, Midp), lambda n, r: (n, r, 0, 0, 0)),
            pl.BlockSpec((1, 1, 2, Midp), lambda n, r: (n, r, 0, 0)),
        ),
        compiler_params=cparams,
    )(x_slab, w1p)

    sc1, bi1 = _fold_bn(s1, g1p, b1p, N * H * W)

    # ---- pass 2: BN1+LReLU, conv2, + identity / conv_expand, BN2 partials ---
    if has_expand:
        wep = jnp.pad(we, ((0, Cinp - Cin), (0, Coutp - Cout))).astype(jnp.bfloat16)
        extra_in = [wep]
        extra_specs = [_invariant((Cinp, Coutp), lambda n, r: (0, 0))]
    else:
        extra_in = []
        extra_specs = []

    y2, s2 = pl.pallas_call(
        _make_conv2_kernel(has_expand),
        out_shape=(jax.ShapeDtypeStruct((N, H, W, Coutp), jnp.bfloat16),
                   jax.ShapeDtypeStruct((N, R, 2, Coutp), jnp.float32)),
        grid=grid,
        in_specs=[
            pl.BlockSpec((1, TH, W, Cinp), lambda n, r: (n, r, 0, 0)),
            pl.BlockSpec((1, 1, TH + 2, W, Midp), lambda n, r: (n, r, 0, 0, 0)),
            *extra_specs,
            _invariant((9, Midp, Coutp), lambda n, r: (0, 0, 0)),
            _invariant((1, Midp), lambda n, r: (0, 0)),
            _invariant((1, Midp), lambda n, r: (0, 0)),
        ],
        out_specs=(
            pl.BlockSpec((1, TH, W, Coutp), lambda n, r: (n, r, 0, 0)),
            pl.BlockSpec((1, 1, 2, Coutp), lambda n, r: (n, r, 0, 0)),
        ),
        scratch_shapes=[pltpu.VMEM((TH + 2, W + 2, Midp), jnp.bfloat16)],
        compiler_params=cparams,
    )(x_c, y1s, *extra_in, w2p, sc1, bi1)

    sc2, bi2 = _fold_bn(s2, g2p, b2p, N * H * W)

    # ---- pass 3: folded BN2 + LeakyReLU --------------------------------------
    out_dtype = jnp.bfloat16 if return_nhwc_bf16 else jnp.float32
    out_p = pl.pallas_call(
        _bn_act_kernel,
        out_shape=jax.ShapeDtypeStruct((N, H, W, Coutp), out_dtype),
        grid=grid,
        in_specs=[
            pl.BlockSpec((1, TH, W, Coutp), lambda n, r: (n, r, 0, 0)),
            _invariant((1, Coutp), lambda n, r: (0, 0)),
            _invariant((1, Coutp), lambda n, r: (0, 0)),
        ],
        out_specs=pl.BlockSpec((1, TH, W, Coutp), lambda n, r: (n, r, 0, 0)),
        compiler_params=cparams,
    )(y2, sc2, bi2)

    out = out_p[..., :Cout]
    if return_nhwc_bf16:
        return out          # lane-dense NHWC bf16, no epilogue round trip
    # TODO(synk): the f32 NHWC->NCHW epilogue costs an extra HBM round trip;
    #             use return_nhwc_bf16=True when the consumer allows it.
    return jnp.transpose(out, (0, 3, 1, 2))


# --------------------------------------------------------------------------
# Parameter init + pure-JAX reference (numerical sanity check)
# --------------------------------------------------------------------------
def init_params(key, inc, outc, scale=1.0):
    """Synthetic parameters matching _Residual_Block shapes (HWIO conv weights)."""
    midc = int(outc * scale)
    k1, k2, k3, k4, k5, k6, k7 = jax.random.split(key, 7)
    we = (jax.random.normal(k1, (inc, outc), jnp.float32) * 0.1
          if inc != outc else None)                  # PyTorch: conv_expand = None
    w1 = jax.random.normal(k2, (3, 3, inc, midc), jnp.float32) * 0.1
    w2 = jax.random.normal(k3, (3, 3, midc, outc), jnp.float32) * 0.1
    g1 = 1.0 + 0.1 * jax.random.normal(k4, (midc,), jnp.float32)
    b1 = 0.1 * jax.random.normal(k5, (midc,), jnp.float32)
    g2 = 1.0 + 0.1 * jax.random.normal(k6, (outc,), jnp.float32)
    b2 = 0.1 * jax.random.normal(k7, (outc,), jnp.float32)
    return we, w1, g1, b1, w2, g2, b2


def _reference_forward(x_nchw, params):
    we, w1, g1, b1, w2, g2, b2 = params
    x = jnp.transpose(x_nchw, (0, 2, 3, 1)).astype(jnp.float32)
    dn = ("NHWC", "HWIO", "NHWC")
    hp = lax.Precision.HIGHEST

    def bn(y, g, b):
        m = jnp.mean(y, axis=(0, 1, 2))
        v = jnp.mean((y - m) ** 2, axis=(0, 1, 2))
        return (y - m) * lax.rsqrt(v + EPS) * g + b

    identity = (x if we is None
                else jnp.einsum("nhwi,io->nhwo", x, we, precision=hp))
    y1 = lax.conv_general_dilated(x, w1, (1, 1), ((1, 1), (1, 1)),
                                  dimension_numbers=dn, precision=hp)
    h = _leaky(bn(y1, g1, b1))
    y2 = lax.conv_general_dilated(h, w2, (1, 1), ((1, 1), (1, 1)),
                                  dimension_numbers=dn, precision=hp) + identity
    o = _leaky(bn(y2, g2, b2))
    return jnp.transpose(o, (0, 3, 1, 2))


if __name__ == "__main__":
    key = jax.random.PRNGKey(0)
    kx1, kp1, kx2, kp2 = jax.random.split(key, 4)

    # Case 1: inc != outc -> conv_expand (1x1) identity branch is active.
    N, INC, OUTC, H, W = 2, 4, 8, 16, 16
    x1 = jax.random.normal(kx1, (N, INC, H, W), jnp.float32)
    p1 = init_params(kp1, INC, OUTC, scale=1.0)
    out1 = jax.block_until_ready(residual_block_forward(x1, p1))
    assert out1.shape == (N, OUTC, H, W), out1.shape
    assert bool(jnp.all(jnp.isfinite(out1)))
    err1 = float(jnp.max(jnp.abs(out1 - _reference_forward(x1, p1))))
    assert err1 < 0.2, f"case 1 (conv_expand) max abs error {err1}"

    # Case 2: inc == outc -> conv_expand is None (plain identity add), midc != outc.
    x2 = jax.random.normal(kx2, (N, OUTC, H, W), jnp.float32)
    p2 = init_params(kp2, OUTC, OUTC, scale=0.5)
    out2 = jax.block_until_ready(residual_block_forward(x2, p2))
    assert out2.shape == (N, OUTC, H, W), out2.shape
    err2 = float(jnp.max(jnp.abs(out2 - _reference_forward(x2, p2))))
    assert err2 < 0.2, f"case 2 (identity) max abs error {err2}"

    # Fused-epilogue path: lane-dense bf16 NHWC output (no NCHW round trip).
    out3 = jax.block_until_ready(
        residual_block_forward(x1, p1, return_nhwc_bf16=True))
    assert out3.shape == (N, H, W, OUTC) and out3.dtype == jnp.bfloat16
    assert bool(jnp.all(jnp.isfinite(out3.astype(jnp.float32))))

    print("KERNEL_OK")
</pallas_src>

<mosaic_0001>
module attributes {stable_mosaic.version = 11 : i64} {
  func.func @_conv1_kernel(%arg0: i32, %arg1: i32, %arg2: memref<1x1x12x18x128xbf16, #tpu.memory_space<vmem>>, %arg3: memref<9x128x128xbf16, #tpu.memory_space<vmem>>, %arg4: memref<1x1x10x16x128xbf16, #tpu.memory_space<vmem>>, %arg5: memref<1x1x2x128xf32, #tpu.memory_space<vmem>>) attributes {dimension_semantics = [#tpu.dimension_semantics<parallel>, #tpu.dimension_semantics<parallel>], iteration_bounds = array<i64: 2, 2>, scalar_prefetch = 0 : i64, scratch_operands = 0 : i64, tpu.core_type = #tpu.core_type<tc>, window_params = [{transform_indices = @transform_0, window_bounds = array<i64: 1, 1, 12, 18, 128>}, {pipeline_mode = #tpu.pipeline_mode<synchronous>, transform_indices = @transform_1, window_bounds = array<i64: 9, 128, 128>}, {transform_indices = @transform_2, window_bounds = array<i64: 1, 1, 10, 16, 128>}, {transform_indices = @transform_3, window_bounds = array<i64: 1, 1, 2, 128>}]} {
    %c0 = arith.constant 0 : index
    %c0_0 = arith.constant 0 : index
    %c0_1 = arith.constant 0 : index
    %c0_2 = arith.constant 0 : index
    %c0_3 = arith.constant 0 : index
    %0 = vector.load %arg2[%c0, %c0_0, %c0_1, %c0_2, %c0_3] : memref<1x1x12x18x128xbf16, #tpu.memory_space<vmem>>, vector<1x1x10x16x128xbf16>
    %1 = vector.shape_cast %0 : vector<1x1x10x16x128xbf16> to vector<160x128xbf16>
    %c0_4 = arith.constant 0 : index
    %c0_5 = arith.constant 0 : index
    %c0_6 = arith.constant 0 : index
    %2 = vector.load %arg3[%c0_4, %c0_5, %c0_6] : memref<9x128x128xbf16, #tpu.memory_space<vmem>>, vector<1x128x128xbf16>
    %3 = vector.shape_cast %2 : vector<1x128x128xbf16> to vector<128x128xbf16>
    %cst = arith.constant dense<0.000000e+00> : vector<160x128xf32>
    %4 = tpu.matmul %1, %3, %cst {dimension_numbers = #tpu.dot_dimension_numbers<[1], [0], [0], [1], [0, 0, 1, 1], [], []>} : vector<160x128xbf16>, vector<128x128xbf16>, vector<160x128xf32> -> vector<160x128xf32>
    %c0_7 = arith.constant 0 : index
    %c0_8 = arith.constant 0 : index
    %c0_9 = arith.constant 0 : index
    %c1 = arith.constant 1 : index
    %c0_10 = arith.constant 0 : index
    %5 = vector.load %arg2[%c0_7, %c0_8, %c0_9, %c1, %c0_10] : memref<1x1x12x18x128xbf16, #tpu.memory_space<vmem>>, vector<1x1x10x16x128xbf16>
    %6 = vector.shape_cast %5 : vector<1x1x10x16x128xbf16> to vector<160x128xbf16>
    %c1_11 = arith.constant 1 : index
    %c0_12 = arith.constant 0 : index
    %c0_13 = arith.constant 0 : index
    %7 = vector.load %arg3[%c1_11, %c0_12, %c0_13] : memref<9x128x128xbf16, #tpu.memory_space<vmem>>, vector<1x128x128xbf16>
    %8 = vector.shape_cast %7 : vector<1x128x128xbf16> to vector<128x128xbf16>
    %cst_14 = arith.constant dense<0.000000e+00> : vector<160x128xf32>
    %9 = tpu.matmul %6, %8, %cst_14 {dimension_numbers = #tpu.dot_dimension_numbers<[1], [0], [0], [1], [0, 0, 1, 1], [], []>} : vector<160x128xbf16>, vector<128x128xbf16>, vector<160x128xf32> -> vector<160x128xf32>
    %10 = arith.addf %4, %9 : vector<160x128xf32>
    %c0_15 = arith.constant 0 : index
    %c0_16 = arith.constant 0 : index
    %c0_17 = arith.constant 0 : index
    %c2 = arith.constant 2 : index
    %c0_18 = arith.constant 0 : index
    %11 = vector.load %arg2[%c0_15, %c0_16, %c0_17, %c2, %c0_18] : memref<1x1x12x18x128xbf16, #tpu.memory_space<vmem>>, vector<1x1x10x16x128xbf16>
    %12 = vector.shape_cast %11 : vector<1x1x10x16x128xbf16> to vector<160x128xbf16>
    %c2_19 = arith.constant 2 : index
    %c0_20 = arith.constant 0 : index
    %c0_21 = arith.constant 0 : index
    %13 = vector.load %arg3[%c2_19, %c0_20, %c0_21] : memref<9x128x128xbf16, #tpu.memory_space<vmem>>, vector<1x128x128xbf16>
    %14 = vector.shape_cast %13 : vector<1x128x128xbf16> to vector<128x128xbf16>
    %cst_22 = arith.constant dense<0.000000e+00> : vector<160x128xf32>
    %15 = tpu.matmul %12, %14, %cst_22 {dimension_numbers = #tpu.dot_dimension_numbers<[1], [0], [0], [1], [0, 0, 1, 1], [], []>} : vector<160x128xbf16>, vector<128x128xbf16>, vector<160x128xf32> -> vector<160x128xf32>
    %16 = arith.addf %10, %15 : vector<160x128xf32>
    %c0_23 = arith.constant 0 : index
    %c0_24 = arith.constant 0 : index
    %c1_25 = arith.constant 1 : index
    %c0_26 = arith.constant 0 : index
    %c0_27 = arith.constant 0 : index
    %17 = vector.load %arg2[%c0_23, %c0_24, %c1_25, %c0_26, %c0_27] : memref<1x1x12x18x128xbf16, #tpu.memory_space<vmem>>, vector<1x1x10x16x128xbf16>
    %18 = vector.shape_cast %17 : vector<1x1x10x16x128xbf16> to vector<160x128xbf16>
    %c3 = arith.constant 3 : index
    %c0_28 = arith.constant 0 : index
    %c0_29 = arith.constant 0 : index
    %19 = vector.load %arg3[%c3, %c0_28, %c0_29] : memref<9x128x128xbf16, #tpu.memory_space<vmem>>, vector<1x128x128xbf16>
    %20 = vector.shape_cast %19 : vector<1x128x128xbf16> to vector<128x128xbf16>
    %cst_30 = arith.constant dense<0.000000e+00> : vector<160x128xf32>
    %21 = tpu.matmul %18, %20, %cst_30 {dimension_numbers = #tpu.dot_dimension_numbers<[1], [0], [0], [1], [0, 0, 1, 1], [], []>} : vector<160x128xbf16>, vector<128x128xbf16>, vector<160x128xf32> -> vector<160x128xf32>
    %22 = arith.addf %16, %21 : vector<160x128xf32>
    %c0_31 = arith.constant 0 : index
    %c0_32 = arith.constant 0 : index
    %c1_33 = arith.constant 1 : index
    %c1_34 = arith.constant 1 : index
    %c0_35 = arith.constant 0 : index
    %23 = vector.load %arg2[%c0_31, %c0_32, %c1_33, %c1_34, %c0_35] : memref<1x1x12x18x128xbf16, #tpu.memory_space<vmem>>, vector<1x1x10x16x128xbf16>
    %24 = vector.shape_cast %23 : vector<1x1x10x16x128xbf16> to vector<160x128xbf16>
    %c4 = arith.constant 4 : index
    %c0_36 = arith.constant 0 : index
    %c0_37 = arith.constant 0 : index
    %25 = vector.load %arg3[%c4, %c0_36, %c0_37] : memref<9x128x128xbf16, #tpu.memory_space<vmem>>, vector<1x128x128xbf16>
    %26 = vector.shape_cast %25 : vector<1x128x128xbf16> to vector<128x128xbf16>
    %cst_38 = arith.constant dense<0.000000e+00> : vector<160x128xf32>
    %27 = tpu.matmul %24, %26, %cst_38 {dimension_numbers = #tpu.dot_dimension_numbers<[1], [0], [0], [1], [0, 0, 1, 1], [], []>} : vector<160x128xbf16>, vector<128x128xbf16>, vector<160x128xf32> -> vector<160x128xf32>
    %28 = arith.addf %22, %27 : vector<160x128xf32>
    %c0_39 = arith.constant 0 : index
    %c0_40 = arith.constant 0 : index
    %c1_41 = arith.constant 1 : index
    %c2_42 = arith.constant 2 : index
    %c0_43 = arith.constant 0 : index
    %29 = vector.load %arg2[%c0_39, %c0_40, %c1_41, %c2_42, %c0_43] : memref<1x1x12x18x128xbf16, #tpu.memory_space<vmem>>, vector<1x1x10x16x128xbf16>
    %30 = vector.shape_cast %29 : vector<1x1x10x16x128xbf16> to vector<160x128xbf16>
    %c5 = arith.constant 5 : index
    %c0_44 = arith.constant 0 : index
    %c0_45 = arith.constant 0 : index
    %31 = vector.load %arg3[%c5, %c0_44, %c0_45] : memref<9x128x128xbf16, #tpu.memory_space<vmem>>, vector<1x128x128xbf16>
    %32 = vector.shape_cast %31 : vector<1x128x128xbf16> to vector<128x128xbf16>
    %cst_46 = arith.constant dense<0.000000e+00> : vector<160x128xf32>
    %33 = tpu.matmul %30, %32, %cst_46 {dimension_numbers = #tpu.dot_dimension_numbers<[1], [0], [0], [1], [0, 0, 1, 1], [], []>} : vector<160x128xbf16>, vector<128x128xbf16>, vector<160x128xf32> -> vector<160x128xf32>
    %34 = arith.addf %28, %33 : vector<160x128xf32>
    %c0_47 = arith.constant 0 : index
    %c0_48 = arith.constant 0 : index
    %c2_49 = arith.constant 2 : index
    %c0_50 = arith.constant 0 : index
    %c0_51 = arith.constant 0 : index
    %35 = vector.load %arg2[%c0_47, %c0_48, %c2_49, %c0_50, %c0_51] : memref<1x1x12x18x128xbf16, #tpu.memory_space<vmem>>, vector<1x1x10x16x128xbf16>
    %36 = vector.shape_cast %35 : vector<1x1x10x16x128xbf16> to vector<160x128xbf16>
    %c6 = arith.constant 6 : index
    %c0_52 = arith.constant 0 : index
    %c0_53 = arith.constant 0 : index
    %37 = vector.load %arg3[%c6, %c0_52, %c0_53] : memref<9x128x128xbf16, #tpu.memory_space<vmem>>, vector<1x128x128xbf16>
    %38 = vector.shape_cast %37 : vector<1x128x128xbf16> to vector<128x128xbf16>
    %cst_54 = arith.constant dense<0.000000e+00> : vector<160x128xf32>
    %39 = tpu.matmul %36, %38, %cst_54 {dimension_numbers = #tpu.dot_dimension_numbers<[1], [0], [0], [1], [0, 0, 1, 1], [], []>} : vector<160x128xbf16>, vector<128x128xbf16>, vector<160x128xf32> -> vector<160x128xf32>
    %40 = arith.addf %34, %39 : vector<160x128xf32>
    %c0_55 = arith.constant 0 : index
    %c0_56 = arith.constant 0 : index
    %c2_57 = arith.constant 2 : index
    %c1_58 = arith.constant 1 : index
    %c0_59 = arith.constant 0 : index
    %41 = vector.load %arg2[%c0_55, %c0_56, %c2_57, %c1_58, %c0_59] : memref<1x1x12x18x128xbf16, #tpu.memory_space<vmem>>, vector<1x1x10x16x128xbf16>
    %42 = vector.shape_cast %41 : vector<1x1x10x16x128xbf16> to vector<160x128xbf16>
    %c7 = arith.constant 7 : index
    %c0_60 = arith.constant 0 : index
    %c0_61 = arith.constant 0 : index
    %43 = vector.load %arg3[%c7, %c0_60, %c0_61] : memref<9x128x128xbf16, #tpu.memory_space<vmem>>, vector<1x128x128xbf16>
    %44 = vector.shape_cast %43 : vector<1x128x128xbf16> to vector<128x128xbf16>
    %cst_62 = arith.constant dense<0.000000e+00> : vector<160x128xf32>
    %45 = tpu.matmul %42, %44, %cst_62 {dimension_numbers = #tpu.dot_dimension_numbers<[1], [0], [0], [1], [0, 0, 1, 1], [], []>} : vector<160x128xbf16>, vector<128x128xbf16>, vector<160x128xf32> -> vector<160x128xf32>
    %46 = arith.addf %40, %45 : vector<160x128xf32>
    %c0_63 = arith.constant 0 : index
    %c0_64 = arith.constant 0 : index
    %c2_65 = arith.constant 2 : index
    %c2_66 = arith.constant 2 : index
    %c0_67 = arith.constant 0 : index
    %47 = vector.load %arg2[%c0_63, %c0_64, %c2_65, %c2_66, %c0_67] : memref<1x1x12x18x128xbf16, #tpu.memory_space<vmem>>, vector<1x1x10x16x128xbf16>
    %48 = vector.shape_cast %47 : vector<1x1x10x16x128xbf16> to vector<160x128xbf16>
    %c8 = arith.constant 8 : index
    %c0_68 = arith.constant 0 : index
    %c0_69 = arith.constant 0 : index
    %49 = vector.load %arg3[%c8, %c0_68, %c0_69] : memref<9x128x128xbf16, #tpu.memory_space<vmem>>, vector<1x128x128xbf16>
    %50 = vector.shape_cast %49 : vector<1x128x128xbf16> to vector<128x128xbf16>
    %cst_70 = arith.constant dense<0.000000e+00> : vector<160x128xf32>
    %51 = tpu.matmul %48, %50, %cst_70 {dimension_numbers = #tpu.dot_dimension_numbers<[1], [0], [0], [1], [0, 0, 1, 1], [], []>} : vector<160x128xbf16>, vector<128x128xbf16>, vector<160x128xf32> -> vector<160x128xf32>
    %52 = arith.addf %46, %51 : vector<160x128xf32>
    %53 = vector.shape_cast %52 : vector<160x128xf32> to vector<1x1x10x16x128xf32>
    %54 = arith.truncf %53 : vector<1x1x10x16x128xf32> to vector<1x1x10x16x128xbf16>
    %c0_71 = arith.constant 0 : index
    %c0_72 = arith.constant 0 : index
    %c0_73 = arith.constant 0 : index
    %c0_74 = arith.constant 0 : index
    %c0_75 = arith.constant 0 : index
    %55 = vector.load %arg4[%c0_71, %c0_72, %c0_73, %c0_74, %c0_75] : memref<1x1x10x16x128xbf16, #tpu.memory_space<vmem>>, vector<1x1x10x16x128xbf16>
    tpu.vector_store %arg4[%c0_71, %c0_72, %c0_73, %c0_74, %c0_75], %54 {strides = array<i32>} : memref<1x1x10x16x128xbf16, #tpu.memory_space<vmem>>, vector<1x1x10x16x128xbf16>,
    %56 = vector.extract_strided_slice %52 {offsets = [16, 0], sizes = [128, 128], strides = [1, 1]} : vector<160x128xf32> to vector<128x128xf32>
    %cst_76 = arith.constant dense<0.000000e+00> : vector<128xf32>
    %57 = vector.multi_reduction <add>, %56, %cst_76 [0] : vector<128x128xf32> to vector<128xf32>
    %58 = vector.shape_cast %57 : vector<128xf32> to vector<1x128xf32>
    %59 = vector.shape_cast %58 : vector<1x128xf32> to vector<1x1x1x128xf32>
    %c0_77 = arith.constant 0 : index
    %c0_78 = arith.constant 0 : index
    %c0_79 = arith.constant 0 : index
    %c0_80 = arith.constant 0 : index
    %60 = vector.load %arg5[%c0_77, %c0_78, %c0_79, %c0_80] : memref<1x1x2x128xf32, #tpu.memory_space<vmem>>, vector<1x1x1x128xf32>
    tpu.vector_store %arg5[%c0_77, %c0_78, %c0_79, %c0_80], %59 {strides = array<i32>} : memref<1x1x2x128xf32, #tpu.memory_space<vmem>>, vector<1x1x1x128xf32>,
    %61 = arith.mulf %56, %56 : vector<128x128xf32>
    %cst_81 = arith.constant dense<0.000000e+00> : vector<128xf32>
    %62 = vector.multi_reduction <add>, %61, %cst_81 [0] : vector<128x128xf32> to vector<128xf32>
    %63 = vector.shape_cast %62 : vector<128xf32> to vector<1x128xf32>
    %64 = vector.shape_cast %63 : vector<1x128xf32> to vector<1x1x1x128xf32>
    %c0_82 = arith.constant 0 : index
    %c0_83 = arith.constant 0 : index
    %c1_84 = arith.constant 1 : index
    %c0_85 = arith.constant 0 : index
    %65 = vector.load %arg5[%c0_82, %c0_83, %c1_84, %c0_85] : memref<1x1x2x128xf32, #tpu.memory_space<vmem>>, vector<1x1x1x128xf32>
    tpu.vector_store %arg5[%c0_82, %c0_83, %c1_84, %c0_85], %64 {strides = array<i32>} : memref<1x1x2x128xf32, #tpu.memory_space<vmem>>, vector<1x1x1x128xf32>,
    return
  }
  func.func @transform_0(%arg0: i32, %arg1: i32) -> (i32, i32, i32, i32, i32) {
    %c0_i32 = arith.constant 0 : i32
    %c0_i32_0 = arith.constant 0 : i32
    %c0_i32_1 = arith.constant 0 : i32
    %c0_i32_2 = arith.constant 0 : i32
    return %arg0, %arg1, %c0_i32, %c0_i32_0, %c0_i32_1 : i32, i32, i32, i32, i32
  }
  func.func @transform_1(%arg0: i32, %arg1: i32) -> (i32, i32, i32) {
    %c0_i32 = arith.constant 0 : i32
    %c0_i32_0 = arith.constant 0 : i32
    %c0_i32_1 = arith.constant 0 : i32
    %c0_i32_2 = arith.constant 0 : i32
    return %c0_i32, %c0_i32_0, %c0_i32_1 : i32, i32, i32
  }
  func.func @transform_2(%arg0: i32, %arg1: i32) -> (i32, i32, i32, i32, i32) {
    %c0_i32 = arith.constant 0 : i32
    %c0_i32_0 = arith.constant 0 : i32
    %c0_i32_1 = arith.constant 0 : i32
    %c0_i32_2 = arith.constant 0 : i32
    return %arg0, %arg1, %c0_i32, %c0_i32_0, %c0_i32_1 : i32, i32, i32, i32, i32
  }
  func.func @transform_3(%arg0: i32, %arg1: i32) -> (i32, i32, i32, i32) {
    %c0_i32 = arith.constant 0 : i32
    %c0_i32_0 = arith.constant 0 : i32
    %c0_i32_1 = arith.constant 0 : i32
    return %arg0, %arg1, %c0_i32, %c0_i32_0 : i32, i32, i32, i32
  }
}

module attributes {stable_mosaic.version = 11 : i64} {
  func.func @_bn_act_kernel(%arg0: i32, %arg1: i32, %arg2: memref<1x8x16x128xbf16, #tpu.memory_space<vmem>>, %arg3: memref<1x128xf32, #tpu.memory_space<vmem>>, %arg4: memref<1x128xf32, #tpu.memory_space<vmem>>, %arg5: memref<1x8x16x128xf32, #tpu.memory_space<vmem>>) attributes {dimension_semantics = [#tpu.dimension_semantics<parallel>, #tpu.dimension_semantics<parallel>], iteration_bounds = array<i64: 2, 2>, scalar_prefetch = 0 : i64, scratch_operands = 0 : i64, tpu.core_type = #tpu.core_type<tc>, window_params = [{transform_indices = @transform_0, window_bounds = array<i64: 1, 8, 16, 128>}, {pipeline_mode = #tpu.pipeline_mode<synchronous>, transform_indices = @transform_1, window_bounds = array<i64: 1, 128>}, {pipeline_mode = #tpu.pipeline_mode<synchronous>, transform_indices = @transform_2, window_bounds = array<i64: 1, 128>}, {transform_indices = @transform_3, window_bounds = array<i64: 1, 8, 16, 128>}]} {
    %c0 = arith.constant 0 : index
    %c0_0 = arith.constant 0 : index
    %c0_1 = arith.constant 0 : index
    %c0_2 = arith.constant 0 : index
    %0 = vector.load %arg2[%c0, %c0_0, %c0_1, %c0_2] : memref<1x8x16x128xbf16, #tpu.memory_space<vmem>>, vector<1x8x16x128xbf16>
    %1 = vector.shape_cast %0 : vector<1x8x16x128xbf16> to vector<128x128xbf16>
    %2 = arith.extf %1 : vector<128x128xbf16> to vector<128x128xf32>
    %c0_3 = arith.constant 0 : index
    %c0_4 = arith.constant 0 : index
    %3 = vector.load %arg3[%c0_3, %c0_4] : memref<1x128xf32, #tpu.memory_space<vmem>>, vector<1x128xf32>
    %4 = vector.broadcast %3 : vector<1x128xf32> to vector<128x128xf32>
    %5 = arith.mulf %2, %4 : vector<128x128xf32>
    %c0_5 = arith.constant 0 : index
    %c0_6 = arith.constant 0 : index
    %6 = vector.load %arg4[%c0_5, %c0_6] : memref<1x128xf32, #tpu.memory_space<vmem>>, vector<1x128xf32>
    %7 = vector.broadcast %6 : vector<1x128xf32> to vector<128x128xf32>
    %8 = arith.addf %5, %7 : vector<128x128xf32>
    %cst = arith.constant 0.000000e+00 : f32
    %9 = vector.broadcast %cst : f32 to vector<128x128xf32>
    %10 = arith.cmpf ogt, %8, %9 : vector<128x128xf32>
    %cst_7 = arith.constant 2.000000e-01 : f32
    %11 = vector.broadcast %cst_7 : f32 to vector<128x128xf32>
    %12 = arith.mulf %11, %8 : vector<128x128xf32>
    %13 = arith.select %10, %8, %12 : vector<128x128xi1>, vector<128x128xf32>
    %14 = vector.shape_cast %13 : vector<128x128xf32> to vector<1x8x16x128xf32>
    %c0_8 = arith.constant 0 : index
    %c0_9 = arith.constant 0 : index
    %c0_10 = arith.constant 0 : index
    %c0_11 = arith.constant 0 : index
    %15 = vector.load %arg5[%c0_8, %c0_9, %c0_10, %c0_11] : memref<1x8x16x128xf32, #tpu.memory_space<vmem>>, vector<1x8x16x128xf32>
    tpu.vector_store %arg5[%c0_8, %c0_9, %c0_10, %c0_11], %14 {strides = array<i32>} : memref<1x8x16x128xf32, #tpu.memory_space<vmem>>, vector<1x8x16x128xf32>,
    return
  }
  func.func @transform_0(%arg0: i32, %arg1: i32) -> (i32, i32, i32, i32) {
    %c0_i32 = arith.constant 0 : i32
    %c0_i32_0 = arith.constant 0 : i32
    %c0_i32_1 = arith.constant 0 : i32
    return %arg0, %arg1, %c0_i32, %c0_i32_0 : i32, i32, i32, i32
  }
  func.func @transform_1(%arg0: i32, %arg1: i32) -> (i32, i32) {
    %c0_i32 = arith.constant 0 : i32
    %c0_i32_0 = arith.constant 0 : i32
    %c0_i32_1 = arith.constant 0 : i32
    return %c0_i32, %c0_i32_0 : i32, i32
  }
  func.func @transform_2(%arg0: i32, %arg1: i32) -> (i32, i32) {
    %c0_i32 = arith.constant 0 : i32
    %c0_i32_0 = arith.constant 0 : i32
    %c0_i32_1 = arith.constant 0 : i32
    return %c0_i32, %c0_i32_0 : i32, i32
  }
  func.func @transform_3(%arg0: i32, %arg1: i32) -> (i32, i32, i32, i32) {
    %c0_i32 = arith.constant 0 : i32
    %c0_i32_0 = arith.constant 0 : i32
    %c0_i32_1 = arith.constant 0 : i32
    return %arg0, %arg1, %c0_i32, %c0_i32_0 : i32, i32, i32, i32
  }
}

module attributes {stable_mosaic.version = 11 : i64} {
  func.func @kernel(%arg0: i32, %arg1: i32, %arg2: memref<1x8x16x128xbf16, #tpu.memory_space<vmem>>, %arg3: memref<1x1x10x16x128xbf16, #tpu.memory_space<vmem>>, %arg4: memref<128x128xbf16, #tpu.memory_space<vmem>>, %arg5: memref<9x128x128xbf16, #tpu.memory_space<vmem>>, %arg6: memref<1x128xf32, #tpu.memory_space<vmem>>, %arg7: memref<1x128xf32, #tpu.memory_space<vmem>>, %arg8: memref<1x8x16x128xbf16, #tpu.memory_space<vmem>>, %arg9: memref<1x1x2x128xf32, #tpu.memory_space<vmem>>, %arg10: memref<10x18x128xbf16, #tpu.memory_space<vmem>>) attributes {dimension_semantics = [#tpu.dimension_semantics<parallel>, #tpu.dimension_semantics<parallel>], iteration_bounds = array<i64: 2, 2>, scalar_prefetch = 0 : i64, scratch_operands = 1 : i64, tpu.core_type = #tpu.core_type<tc>, window_params = [{transform_indices = @transform_0, window_bounds = array<i64: 1, 8, 16, 128>}, {transform_indices = @transform_1, window_bounds = array<i64: 1, 1, 10, 16, 128>}, {pipeline_mode = #tpu.pipeline_mode<synchronous>, transform_indices = @transform_2, window_bounds = array<i64: 128, 128>}, {pipeline_mode = #tpu.pipeline_mode<synchronous>, transform_indices = @transform_3, window_bounds = array<i64: 9, 128, 128>}, {pipeline_mode = #tpu.pipeline_mode<synchronous>, transform_indices = @transform_4, window_bounds = array<i64: 1, 128>}, {pipeline_mode = #tpu.pipeline_mode<synchronous>, transform_indices = @transform_5, window_bounds = array<i64: 1, 128>}, {transform_indices = @transform_6, window_bounds = array<i64: 1, 8, 16, 128>}, {transform_indices = @transform_7, window_bounds = array<i64: 1, 1, 2, 128>}]} {
    %c0 = arith.constant 0 : index
    %c0_0 = arith.constant 0 : index
    %c0_1 = arith.constant 0 : index
    %c0_2 = arith.constant 0 : index
    %c0_3 = arith.constant 0 : index
    %0 = vector.load %arg3[%c0, %c0_0, %c0_1, %c0_2, %c0_3] : memref<1x1x10x16x128xbf16, #tpu.memory_space<vmem>>, vector<1x1x10x16x128xbf16>
    %1 = vector.shape_cast %0 : vector<1x1x10x16x128xbf16> to vector<160x128xbf16>
    %2 = arith.extf %1 : vector<160x128xbf16> to vector<160x128xf32>
    %c0_4 = arith.constant 0 : index
    %c0_5 = arith.constant 0 : index
    %3 = vector.load %arg6[%c0_4, %c0_5] : memref<1x128xf32, #tpu.memory_space<vmem>>, vector<1x128xf32>
    %4 = vector.broadcast %3 : vector<1x128xf32> to vector<160x128xf32>
    %5 = arith.mulf %2, %4 : vector<160x128xf32>
    %c0_6 = arith.constant 0 : index
    %c0_7 = arith.constant 0 : index
    %6 = vector.load %arg7[%c0_6, %c0_7] : memref<1x128xf32, #tpu.memory_space<vmem>>, vector<1x128xf32>
    %7 = vector.broadcast %6 : vector<1x128xf32> to vector<160x128xf32>
    %8 = arith.addf %5, %7 : vector<160x128xf32>
    %cst = arith.constant 0.000000e+00 : f32
    %9 = vector.broadcast %cst : f32 to vector<160x128xf32>
    %10 = arith.cmpf ogt, %8, %9 : vector<160x128xf32>
    %cst_8 = arith.constant 2.000000e-01 : f32
    %11 = vector.broadcast %cst_8 : f32 to vector<160x128xf32>
    %12 = arith.mulf %11, %8 : vector<160x128xf32>
    %13 = arith.select %10, %8, %12 : vector<160x128xi1>, vector<160x128xf32>
    %14 = vector.shape_cast %13 : vector<160x128xf32> to vector<10x16x128xf32>
    %15 = arith.truncf %14 : vector<10x16x128xf32> to vector<10x16x128xbf16>
    %cst_9 = arith.constant 0.000000e+00 : bf16
    %16 = vector.broadcast %cst_9 : bf16 to vector<10x1x128xbf16>
    %c0_10 = arith.constant 0 : index
    %c0_11 = arith.constant 0 : index
    %c0_12 = arith.constant 0 : index
    %17 = vector.load %arg10[%c0_10, %c0_11, %c0_12] : memref<10x18x128xbf16, #tpu.memory_space<vmem>>, vector<10x1x128xbf16>
    tpu.vector_store %arg10[%c0_10, %c0_11, %c0_12], %16 {strides = array<i32>} : memref<10x18x128xbf16, #tpu.memory_space<vmem>>, vector<10x1x128xbf16>,
    %c0_13 = arith.constant 0 : index
    %c17 = arith.constant 17 : index
    %c0_14 = arith.constant 0 : index
    %18 = vector.load %arg10[%c0_13, %c17, %c0_14] : memref<10x18x128xbf16, #tpu.memory_space<vmem>>, vector<10x1x128xbf16>
    tpu.vector_store %arg10[%c0_13, %c17, %c0_14], %16 {strides = array<i32>} : memref<10x18x128xbf16, #tpu.memory_space<vmem>>, vector<10x1x128xbf16>,
    %c0_15 = arith.constant 0 : index
    %c1 = arith.constant 1 : index
    %c0_16 = arith.constant 0 : index
    %19 = vector.load %arg10[%c0_15, %c1, %c0_16] : memref<10x18x128xbf16, #tpu.memory_space<vmem>>, vector<10x16x128xbf16>
    tpu.vector_store %arg10[%c0_15, %c1, %c0_16], %15 {strides = array<i32>} : memref<10x18x128xbf16, #tpu.memory_space<vmem>>, vector<10x16x128xbf16>,
    %cst_17 = arith.constant 0.000000e+00 : bf16
    %20 = vector.broadcast %cst_17 : bf16 to vector<1x16x128xbf16>
    %c0_i32 = arith.constant 0 : i32
    %21 = arith.cmpi eq, %arg1, %c0_i32 : i32
    %22 = arith.extui %21 : i1 to i32
    %c0_i32_18 = arith.constant 0 : i32
    %23 = arith.cmpi ne, %22, %c0_i32_18 : i32
    scf.if %23 {
      %c0_97 = arith.constant 0 : index
      %c1_98 = arith.constant 1 : index
      %c0_99 = arith.constant 0 : index
      %97 = vector.load %arg10[%c0_97, %c1_98, %c0_99] : memref<10x18x128xbf16, #tpu.memory_space<vmem>>, vector<1x16x128xbf16>
      tpu.vector_store %arg10[%c0_97, %c1_98, %c0_99], %20 {strides = array<i32>} : memref<10x18x128xbf16, #tpu.memory_space<vmem>>, vector<1x16x128xbf16>,
    } else {
    }
    %c1_i32 = arith.constant 1 : i32
    %24 = arith.cmpi eq, %arg1, %c1_i32 : i32
    %25 = arith.extui %24 : i1 to i32
    %c0_i32_19 = arith.constant 0 : i32
    %26 = arith.cmpi ne, %25, %c0_i32_19 : i32
    scf.if %26 {
      %c9 = arith.constant 9 : index
      %c1_97 = arith.constant 1 : index
      %c0_98 = arith.constant 0 : index
      %97 = vector.load %arg10[%c9, %c1_97, %c0_98] : memref<10x18x128xbf16, #tpu.memory_space<vmem>>, vector<1x16x128xbf16>
      tpu.vector_store %arg10[%c9, %c1_97, %c0_98], %20 {strides = array<i32>} : memref<10x18x128xbf16, #tpu.memory_space<vmem>>, vector<1x16x128xbf16>,
    } else {
    }
    %c0_20 = arith.constant 0 : index
    %c0_21 = arith.constant 0 : index
    %c0_22 = arith.constant 0 : index
    %c0_23 = arith.constant 0 : index
    %27 = vector.load %arg2[%c0_20, %c0_21, %c0_22, %c0_23] : memref<1x8x16x128xbf16, #tpu.memory_space<vmem>>, vector<1x8x16x128xbf16>
    %28 = vector.shape_cast %27 : vector<1x8x16x128xbf16> to vector<128x128xbf16>
    %c0_24 = arith.constant 0 : index
    %c0_25 = arith.constant 0 : index
    %29 = vector.load %arg4[%c0_24, %c0_25] : memref<128x128xbf16, #tpu.memory_space<vmem>>, vector<128x128xbf16>
    %cst_26 = arith.constant dense<0.000000e+00> : vector<128x128xf32>
    %30 = tpu.matmul %28, %29, %cst_26 {dimension_numbers = #tpu.dot_dimension_numbers<[1], [0], [0], [1], [0, 0, 1, 1], [], []>} : vector<128x128xbf16>, vector<128x128xbf16>, vector<128x128xf32> -> vector<128x128xf32>
    %c0_27 = arith.constant 0 : index
    %c0_28 = arith.constant 0 : index
    %c0_29 = arith.constant 0 : index
    %31 = vector.load %arg10[%c0_27, %c0_28, %c0_29] : memref<10x18x128xbf16, #tpu.memory_space<vmem>>, vector<8x16x128xbf16>
    %32 = vector.shape_cast %31 : vector<8x16x128xbf16> to vector<128x128xbf16>
    %c0_30 = arith.constant 0 : index
    %c0_31 = arith.constant 0 : index
    %c0_32 = arith.constant 0 : index
    %33 = vector.load %arg5[%c0_30, %c0_31, %c0_32] : memref<9x128x128xbf16, #tpu.memory_space<vmem>>, vector<1x128x128xbf16>
    %34 = vector.shape_cast %33 : vector<1x128x128xbf16> to vector<128x128xbf16>
    %cst_33 = arith.constant dense<0.000000e+00> : vector<128x128xf32>
    %35 = tpu.matmul %32, %34, %cst_33 {dimension_numbers = #tpu.dot_dimension_numbers<[1], [0], [0], [1], [0, 0, 1, 1], [], []>} : vector<128x128xbf16>, vector<128x128xbf16>, vector<128x128xf32> -> vector<128x128xf32>
    %36 = arith.addf %30, %35 : vector<128x128xf32>
    %c0_34 = arith.constant 0 : index
    %c1_35 = arith.constant 1 : index
    %c0_36 = arith.constant 0 : index
    %37 = vector.load %arg10[%c0_34, %c1_35, %c0_36] : memref<10x18x128xbf16, #tpu.memory_space<vmem>>, vector<8x16x128xbf16>
    %38 = vector.shape_cast %37 : vector<8x16x128xbf16> to vector<128x128xbf16>
    %c1_37 = arith.constant 1 : index
    %c0_38 = arith.constant 0 : index
    %c0_39 = arith.constant 0 : index
    %39 = vector.load %arg5[%c1_37, %c0_38, %c0_39] : memref<9x128x128xbf16, #tpu.memory_space<vmem>>, vector<1x128x128xbf16>
    %40 = vector.shape_cast %39 : vector<1x128x128xbf16> to vector<128x128xbf16>
    %cst_40 = arith.constant dense<0.000000e+00> : vector<128x128xf32>
    %41 = tpu.matmul %38, %40, %cst_40 {dimension_numbers = #tpu.dot_dimension_numbers<[1], [0], [0], [1], [0, 0, 1, 1], [], []>} : vector<128x128xbf16>, vector<128x128xbf16>, vector<128x128xf32> -> vector<128x128xf32>
    %42 = arith.addf %36, %41 : vector<128x128xf32>
    %c0_41 = arith.constant 0 : index
    %c2 = arith.constant 2 : index
    %c0_42 = arith.constant 0 : index
    %43 = vector.load %arg10[%c0_41, %c2, %c0_42] : memref<10x18x128xbf16, #tpu.memory_space<vmem>>, vector<8x16x128xbf16>
    %44 = vector.shape_cast %43 : vector<8x16x128xbf16> to vector<128x128xbf16>
    %c2_43 = arith.constant 2 : index
    %c0_44 = arith.constant 0 : index
    %c0_45 = arith.constant 0 : index
    %45 = vector.load %arg5[%c2_43, %c0_44, %c0_45] : memref<9x128x128xbf16, #tpu.memory_space<vmem>>, vector<1x128x128xbf16>
    %46 = vector.shape_cast %45 : vector<1x128x128xbf16> to vector<128x128xbf16>
    %cst_46 = arith.constant dense<0.000000e+00> : vector<128x128xf32>
    %47 = tpu.matmul %44, %46, %cst_46 {dimension_numbers = #tpu.dot_dimension_numbers<[1], [0], [0], [1], [0, 0, 1, 1], [], []>} : vector<128x128xbf16>, vector<128x128xbf16>, vector<128x128xf32> -> vector<128x128xf32>
    %48 = arith.addf %42, %47 : vector<128x128xf32>
    %c1_47 = arith.constant 1 : index
    %c0_48 = arith.constant 0 : index
    %c0_49 = arith.constant 0 : index
    %49 = vector.load %arg10[%c1_47, %c0_48, %c0_49] : memref<10x18x128xbf16, #tpu.memory_space<vmem>>, vector<8x16x128xbf16>
    %50 = vector.shape_cast %49 : vector<8x16x128xbf16> to vector<128x128xbf16>
    %c3 = arith.constant 3 : index
    %c0_50 = arith.constant 0 : index
    %c0_51 = arith.constant 0 : index
    %51 = vector.load %arg5[%c3, %c0_50, %c0_51] : memref<9x128x128xbf16, #tpu.memory_space<vmem>>, vector<1x128x128xbf16>
    %52 = vector.shape_cast %51 : vector<1x128x128xbf16> to vector<128x128xbf16>
    %cst_52 = arith.constant dense<0.000000e+00> : vector<128x128xf32>
    %53 = tpu.matmul %50, %52, %cst_52 {dimension_numbers = #tpu.dot_dimension_numbers<[1], [0], [0], [1], [0, 0, 1, 1], [], []>} : vector<128x128xbf16>, vector<128x128xbf16>, vector<128x128xf32> -> vector<128x128xf32>
    %54 = arith.addf %48, %53 : vector<128x128xf32>
    %c1_53 = arith.constant 1 : index
    %c1_54 = arith.constant 1 : index
    %c0_55 = arith.constant 0 : index
    %55 = vector.load %arg10[%c1_53, %c1_54, %c0_55] : memref<10x18x128xbf16, #tpu.memory_space<vmem>>, vector<8x16x128xbf16>
    %56 = vector.shape_cast %55 : vector<8x16x128xbf16> to vector<128x128xbf16>
    %c4 = arith.constant 4 : index
    %c0_56 = arith.constant 0 : index
    %c0_57 = arith.constant 0 : index
    %57 = vector.load %arg5[%c4, %c0_56, %c0_57] : memref<9x128x128xbf16, #tpu.memory_space<vmem>>, vector<1x128x128xbf16>
    %58 = vector.shape_cast %57 : vector<1x128x128xbf16> to vector<128x128xbf16>
    %cst_58 = arith.constant dense<0.000000e+00> : vector<128x128xf32>
    %59 = tpu.matmul %56, %58, %cst_58 {dimension_numbers = #tpu.dot_dimension_numbers<[1], [0], [0], [1], [0, 0, 1, 1], [], []>} : vector<128x128xbf16>, vector<128x128xbf16>, vector<128x128xf32> -> vector<128x128xf32>
    %60 = arith.addf %54, %59 : vector<128x128xf32>
    %c1_59 = arith.constant 1 : index
    %c2_60 = arith.constant 2 : index
    %c0_61 = arith.constant 0 : index
    %61 = vector.load %arg10[%c1_59, %c2_60, %c0_61] : memref<10x18x128xbf16, #tpu.memory_space<vmem>>, vector<8x16x128xbf16>
    %62 = vector.shape_cast %61 : vector<8x16x128xbf16> to vector<128x128xbf16>
    %c5 = arith.constant 5 : index
    %c0_62 = arith.constant 0 : index
    %c0_63 = arith.constant 0 : index
    %63 = vector.load %arg5[%c5, %c0_62, %c0_63] : memref<9x128x128xbf16, #tpu.memory_space<vmem>>, vector<1x128x128xbf16>
    %64 = vector.shape_cast %63 : vector<1x128x128xbf16> to vector<128x128xbf16>
    %cst_64 = arith.constant dense<0.000000e+00> : vector<128x128xf32>
    %65 = tpu.matmul %62, %64, %cst_64 {dimension_numbers = #tpu.dot_dimension_numbers<[1], [0], [0], [1], [0, 0, 1, 1], [], []>} : vector<128x128xbf16>, vector<128x128xbf16>, vector<128x128xf32> -> vector<128x128xf32>
    %66 = arith.addf %60, %65 : vector<128x128xf32>
    %c2_65 = arith.constant 2 : index
    %c0_66 = arith.constant 0 : index
    %c0_67 = arith.constant 0 : index
    %67 = vector.load %arg10[%c2_65, %c0_66, %c0_67] : memref<10x18x128xbf16, #tpu.memory_space<vmem>>, vector<8x16x128xbf16>
    %68 = vector.shape_cast %67 : vector<8x16x128xbf16> to vector<128x128xbf16>
    %c6 = arith.constant 6 : index
    %c0_68 = arith.constant 0 : index
    %c0_69 = arith.constant 0 : index
    %69 = vector.load %arg5[%c6, %c0_68, %c0_69] : memref<9x128x128xbf16, #tpu.memory_space<vmem>>, vector<1x128x128xbf16>
    %70 = vector.shape_cast %69 : vector<1x128x128xbf16> to vector<128x128xbf16>
    %cst_70 = arith.constant dense<0.000000e+00> : vector<128x128xf32>
    %71 = tpu.matmul %68, %70, %cst_70 {dimension_numbers = #tpu.dot_dimension_numbers<[1], [0], [0], [1], [0, 0, 1, 1], [], []>} : vector<128x128xbf16>, vector<128x128xbf16>, vector<128x128xf32> -> vector<128x128xf32>
    %72 = arith.addf %66, %71 : vector<128x128xf32>
    %c2_71 = arith.constant 2 : index
    %c1_72 = arith.constant 1 : index
    %c0_73 = arith.constant 0 : index
    %73 = vector.load %arg10[%c2_71, %c1_72, %c0_73] : memref<10x18x128xbf16, #tpu.memory_space<vmem>>, vector<8x16x128xbf16>
    %74 = vector.shape_cast %73 : vector<8x16x128xbf16> to vector<128x128xbf16>
    %c7 = arith.constant 7 : index
    %c0_74 = arith.constant 0 : index
    %c0_75 = arith.constant 0 : index
    %75 = vector.load %arg5[%c7, %c0_74, %c0_75] : memref<9x128x128xbf16, #tpu.memory_space<vmem>>, vector<1x128x128xbf16>
    %76 = vector.shape_cast %75 : vector<1x128x128xbf16> to vector<128x128xbf16>
    %cst_76 = arith.constant dense<0.000000e+00> : vector<128x128xf32>
    %77 = tpu.matmul %74, %76, %cst_76 {dimension_numbers = #tpu.dot_dimension_numbers<[1], [0], [0], [1], [0, 0, 1, 1], [], []>} : vector<128x128xbf16>, vector<128x128xbf16>, vector<128x128xf32> -> vector<128x128xf32>
    %78 = arith.addf %72, %77 : vector<128x128xf32>
    %c2_77 = arith.constant 2 : index
    %c2_78 = arith.constant 2 : index
    %c0_79 = arith.constant 0 : index
    %79 = vector.load %arg10[%c2_77, %c2_78, %c0_79] : memref<10x18x128xbf16, #tpu.memory_space<vmem>>, vector<8x16x128xbf16>
    %80 = vector.shape_cast %79 : vector<8x16x128xbf16> to vector<128x128xbf16>
    %c8 = arith.constant 8 : index
    %c0_80 = arith.constant 0 : index
    %c0_81 = arith.constant 0 : index
    %81 = vector.load %arg5[%c8, %c0_80, %c0_81] : memref<9x128x128xbf16, #tpu.memory_space<vmem>>, vector<1x128x128xbf16>
    %82 = vector.shape_cast %81 : vector<1x128x128xbf16> to vector<128x128xbf16>
    %cst_82 = arith.constant dense<0.000000e+00> : vector<128x128xf32>
    %83 = tpu.matmul %80, %82, %cst_82 {dimension_numbers = #tpu.dot_dimension_numbers<[1], [0], [0], [1], [0, 0, 1, 1], [], []>} : vector<128x128xbf16>, vector<128x128xbf16>, vector<128x128xf32> -> vector<128x128xf32>
    %84 = arith.addf %78, %83 : vector<128x128xf32>
    %85 = vector.shape_cast %84 : vector<128x128xf32> to vector<1x8x16x128xf32>
    %86 = arith.truncf %85 : vector<1x8x16x128xf32> to vector<1x8x16x128xbf16>
    %c0_83 = arith.constant 0 : index
    %c0_84 = arith.constant 0 : index
    %c0_85 = arith.constant 0 : index
    %c0_86 = arith.constant 0 : index
    %87 = vector.load %arg8[%c0_83, %c0_84, %c0_85, %c0_86] : memref<1x8x16x128xbf16, #tpu.memory_space<vmem>>, vector<1x8x16x128xbf16>
    tpu.vector_store %arg8[%c0_83, %c0_84, %c0_85, %c0_86], %86 {strides = array<i32>} : memref<1x8x16x128xbf16, #tpu.memory_space<vmem>>, vector<1x8x16x128xbf16>,
    %cst_87 = arith.constant dense<0.000000e+00> : vector<128xf32>
    %88 = vector.multi_reduction <add>, %84, %cst_87 [0] : vector<128x128xf32> to vector<128xf32>
    %89 = vector.shape_cast %88 : vector<128xf32> to vector<1x128xf32>
    %90 = vector.shape_cast %89 : vector<1x128xf32> to vector<1x1x1x128xf32>
    %c0_88 = arith.constant 0 : index
    %c0_89 = arith.constant 0 : index
    %c0_90 = arith.constant 0 : index
    %c0_91 = arith.constant 0 : index
    %91 = vector.load %arg9[%c0_88, %c0_89, %c0_90, %c0_91] : memref<1x1x2x128xf32, #tpu.memory_space<vmem>>, vector<1x1x1x128xf32>
    tpu.vector_store %arg9[%c0_88, %c0_89, %c0_90, %c0_91], %90 {strides = array<i32>} : memref<1x1x2x128xf32, #tpu.memory_space<vmem>>, vector<1x1x1x128xf32>,
    %92 = arith.mulf %84, %84 : vector<128x128xf32>
    %cst_92 = arith.constant dense<0.000000e+00> : vector<128xf32>
    %93 = vector.multi_reduction <add>, %92, %cst_92 [0] : vector<128x128xf32> to vector<128xf32>
    %94 = vector.shape_cast %93 : vector<128xf32> to vector<1x128xf32>
    %95 = vector.shape_cast %94 : vector<1x128xf32> to vector<1x1x1x128xf32>
    %c0_93 = arith.constant 0 : index
    %c0_94 = arith.constant 0 : index
    %c1_95 = arith.constant 1 : index
    %c0_96 = arith.constant 0 : index
    %96 = vector.load %arg9[%c0_93, %c0_94, %c1_95, %c0_96] : memref<1x1x2x128xf32, #tpu.memory_space<vmem>>, vector<1x1x1x128xf32>
    tpu.vector_store %arg9[%c0_93, %c0_94, %c1_95, %c0_96], %95 {strides = array<i32>} : memref<1x1x2x128xf32, #tpu.memory_space<vmem>>, vector<1x1x1x128xf32>,
    return
  }
  func.func @transform_0(%arg0: i32, %arg1: i32) -> (i32, i32, i32, i32) {
    %c0_i32 = arith.constant 0 : i32
    %c0_i32_0 = arith.constant 0 : i32
    %c0_i32_1 = arith.constant 0 : i32
    return %arg0, %arg1, %c0_i32, %c0_i32_0 : i32, i32, i32, i32
  }
  func.func @transform_1(%arg0: i32, %arg1: i32) -> (i32, i32, i32, i32, i32) {
    %c0_i32 = arith.constant 0 : i32
    %c0_i32_0 = arith.constant 0 : i32
    %c0_i32_1 = arith.constant 0 : i32
    %c0_i32_2 = arith.constant 0 : i32
    return %arg0, %arg1, %c0_i32, %c0_i32_0, %c0_i32_1 : i32, i32, i32, i32, i32
  }
  func.func @transform_2(%arg0: i32, %arg1: i32) -> (i32, i32) {
    %c0_i32 = arith.constant 0 : i32
    %c0_i32_0 = arith.constant 0 : i32
    %c0_i32_1 = arith.constant 0 : i32
    return %c0_i32, %c0_i32_0 : i32, i32
  }
  func.func @transform_3(%arg0: i32, %arg1: i32) -> (i32, i32, i32) {
    %c0_i32 = arith.constant 0 : i32
    %c0_i32_0 = arith.constant 0 : i32
    %c0_i32_1 = arith.constant 0 : i32
    %c0_i32_2 = arith.constant 0 : i32
    return %c0_i32, %c0_i32_0, %c0_i32_1 : i32, i32, i32
  }
  func.func @transform_4(%arg0: i32, %arg1: i32) -> (i32, i32) {
    %c0_i32 = arith.constant 0 : i32
    %c0_i32_0 = arith.constant 0 : i32
    %c0_i32_1 = arith.constant 0 : i32
    return %c0_i32, %c0_i32_0 : i32, i32
  }
  func.func @transform_5(%arg0: i32, %arg1: i32) -> (i32, i32) {
    %c0_i32 = arith.constant 0 : i32
    %c0_i32_0 = arith.constant 0 : i32
    %c0_i32_1 = arith.constant 0 : i32
    return %c0_i32, %c0_i32_0 : i32, i32
  }
  func.func @transform_6(%arg0: i32, %arg1: i32) -> (i32, i32, i32, i32) {
    %c0_i32 = arith.constant 0 : i32
    %c0_i32_0 = arith.constant 0 : i32
    %c0_i32_1 = arith.constant 0 : i32
    return %arg0, %arg1, %c0_i32, %c0_i32_0 : i32, i32, i32, i32
  }
  func.func @transform_7(%arg0: i32, %arg1: i32) -> (i32, i32, i32, i32) {
    %c0_i32 = arith.constant 0 : i32
    %c0_i32_0 = arith.constant 0 : i32
    %c0_i32_1 = arith.constant 0 : i32
    return %arg0, %arg1, %c0_i32, %c0_i32_0 : i32, i32, i32, i32
  }
}

</mosaic_0001>

<llo_original>
// kernel: residual_block_forward.5
$region0: #{residual_block_forward.5}
  #allocation0 [shape = 'u32[]', space=smem, size = 0x4, offset = 0x4, fixed_abs, tag = 'smem constant byte address 0x4 - core index']
  #allocation1 [shape = 'u32[144,128]{1,0:T(1,128)}', space=vmem, size = 0x12000, scoped, tag = 'internal scratch']
  %s0 = inlined_call_operand.vmem [shape: bf16[2,16,16,128], index: 0, kind: input, shape index: {}]
  %s1 = inlined_call_operand.vmem [shape: f32[1,128], index: 1, kind: input, shape index: {}]
  %s2 = inlined_call_operand.vmem [shape: f32[1,128], index: 2, kind: input, shape index: {}]
  %s3 = inlined_call_operand.vmem [shape: f32[2,16,16,128], index: 3, kind: output, shape index: {}]
  %s4 = sld [smem:[#allocation0]]
  $region45: #{residual_block_forward.5} parent=0
    _
  %s6 = ssub.s32 1, %s4
  %s7 = scalar_select 0, %s6, %s4
  loop: start=0, step=1, limit=6
  $region2: #{residual_block_forward.5} parent=0 // loop_pre_header
    _
  $region3: #{residual_block_forward.5} parent=0 // loop_header
    %s9 = sphi 0, %s13
    %p10 = scmp.ge.s32.totalorder %s9, 6
    %s16 = sphi 0, %s28
    %s17 = sphi 0, %s24
    %s18 = sphi 0, %s16
    %s19 = sphi 0, %s17
    %s20 = sphi 0, %s18
    %s21 = sphi 0, %s19
    %s33 = sphi 0, %s35
    %s36 = sphi 0, %s33
    %s37 = sphi 0, %s36
    %s53 = sphi 0, %s37
    %s57 = sphi 0, %s57
    %s59 = sphi 0, %s57
    %s60 = sphi 0, %s59
    %s74 = sphi 0, %s60
    %s78 = sphi 0, %s78
    %s80 = sphi 0, %s78
    %s81 = sphi 0, %s80
    %s95 = sphi 0, %s81
    %s103 = sphi 0, %s105
    %s106 = sphi 0, %s103
    %s107 = sphi 0, %s106
    %s123 = sphi 0, %s107
  $region4: #{residual_block_forward.5} parent=0 // loop_header_branch
    %12 = sbr.rel (%p10) target = $region8
  $region5: #{residual_block_forward.5} parent=0 // loop_body
    %s14 = ssub.s32 %s9, 1
    %s15 = ssub.s32 %s9, 2
    %s22 = sadd.s32 1, %s17
    %p23 = scmp.ge.s32.totalorder %s22, 2
    %s24 = scalar_select %p23, 0, %s22
    %s25 = sadd.s32 1, %s16
    %s26 = scalar_select %p23, %s25, %s16
    %p27 = scmp.ge.s32.totalorder %s26, 2
    %s28 = scalar_select %p27, 0, %s26
    %s29 = ssub.s32 %s16, %s28
    %s30 = ssub.s32 %s17, %s24
    %s31 = sor.u32 %s29, %s30
    %p32 = scmp.eq.s32.totalorder %s31, 0
    %s34 = sadd.s32 %s33, 1
    %s35 = scalar_select %p32, %s33, %s34
    %p38 = pneg %p32
    %p39 = scmp.eq.s32.totalorder %s9, 3
    %p40 = por %p38, %p39
    %p41 = scmp.ne.s32.totalorder %s33, %s36
    %p42 = scmp.eq.s32.totalorder %s9, 0
    %p43 = por %p41, %p42
    %p44 = scmp.ne.s32.totalorder %s33, %s36
    %p45 = scmp.eq.s32.totalorder %s14, 3
    %p46 = por %p44, %p45
    %p47 = scmp.ne.s32.totalorder %s36, %s37
    %p48 = scmp.eq.s32.totalorder %s14, 0
    %p49 = por %p47, %p48
    %p50 = scmp.ne.s32.totalorder %s36, %s37
    %p51 = scmp.eq.s32.totalorder %s15, 3
    %p52 = por %p50, %p51
    %p54 = scmp.ne.s32.totalorder %s37, %s53
    %p55 = scmp.eq.s32.totalorder %s15, 0
    %p56 = por %p54, %p55
    %s58 = sadd.s32 %s57, 1
    %p61 = scmp.eq.s32.totalorder %s9, 3
    %p62 = scmp.ne.s32.totalorder %s57, %s59
    %p63 = scmp.eq.s32.totalorder %s9, 0
    %p64 = por %p62, %p63
    %p65 = scmp.ne.s32.totalorder %s57, %s59
    %p66 = scmp.eq.s32.totalorder %s14, 3
    %p67 = por %p65, %p66
    %p68 = scmp.ne.s32.totalorder %s59, %s60
    %p69 = scmp.eq.s32.totalorder %s14, 0
    %p70 = por %p68, %p69
    %p71 = scmp.ne.s32.totalorder %s59, %s60
    %p72 = scmp.eq.s32.totalorder %s15, 3
    %p73 = por %p71, %p72
    %p75 = scmp.ne.s32.totalorder %s60, %s74
    %p76 = scmp.eq.s32.totalorder %s15, 0
    %p77 = por %p75, %p76
    %s79 = sadd.s32 %s78, 1
    %p82 = scmp.eq.s32.totalorder %s9, 3
    %p83 = scmp.ne.s32.totalorder %s78, %s80
    %p84 = scmp.eq.s32.totalorder %s9, 0
    %p85 = por %p83, %p84
    %p86 = scmp.ne.s32.totalorder %s78, %s80
    %p87 = scmp.eq.s32.totalorder %s14, 3
    %p88 = por %p86, %p87
    %p89 = scmp.ne.s32.totalorder %s80, %s81
    %p90 = scmp.eq.s32.totalorder %s14, 0
    %p91 = por %p89, %p90
    %p92 = scmp.ne.s32.totalorder %s80, %s81
    %p93 = scmp.eq.s32.totalorder %s15, 3
    %p94 = por %p92, %p93
    %p96 = scmp.ne.s32.totalorder %s81, %s95
    %p97 = scmp.eq.s32.totalorder %s15, 0
    %p98 = por %p96, %p97
    %s99 = ssub.s32 %s16, %s28
    %s100 = ssub.s32 %s17, %s24
    %s101 = sor.u32 %s99, %s100
    %p102 = scmp.eq.s32.totalorder %s101, 0
    %s104 = sadd.s32 %s103, 1
    %s105 = scalar_select %p102, %s103, %s104
    %p108 = pneg %p102
    %p109 = scmp.eq.s32.totalorder %s9, 3
    %p110 = por %p108, %p109
    %p111 = scmp.ne.s32.totalorder %s103, %s106
    %p112 = scmp.eq.s32.totalorder %s9, 0
    %p113 = por %p111, %p112
    %p114 = scmp.ne.s32.totalorder %s103, %s106
    %p115 = scmp.eq.s32.totalorder %s14, 3
    %p116 = por %p114, %p115
    %p117 = scmp.ne.s32.totalorder %s106, %s107
    %p118 = scmp.eq.s32.totalorder %s14, 0
    %p119 = por %p117, %p118
    %p120 = scmp.ne.s32.totalorder %s106, %s107
    %p121 = scmp.eq.s32.totalorder %s15, 3
    %p122 = por %p120, %p121
    %p124 = scmp.ne.s32.totalorder %s107, %s123
    %p125 = scmp.eq.s32.totalorder %s15, 0
    %p126 = por %p124, %p125
    %p127 = scmp.le.s32.totalorder 1, %s9
    %p128 = scmp.lt.s32.totalorder %s9, 5
    %p129 = pnand %p127, %p128
    %p130 = pneg %p129
    // Predicated region
    $region9: #{residual_block_forward.5} parent=5 // pred_check
      _
    $region10: #{residual_block_forward.5} parent=5 // pred_check_branch
      %132 = sbr.rel (%p129) target = $region12
    $region11: #{residual_block_forward.5} parent=5 // pred_region
      %s133 = ssub.s32 %s9, 1
      // Predicated region
      $region13: #{residual_block_forward.5} parent=11 // pred_check
        %p134 = pneg %p70
      $region14: #{residual_block_forward.5} parent=11 // pred_check_branch
        %136 = sbr.rel (%p134) target = $region16
      $region15: #{residual_block_forward.5} parent=11 // pred_region
        _
      $region16: #{residual_block_forward.5} parent=11 // pred_fallthru
        _
      // Predicated region
      $region17: #{residual_block_forward.5} parent=11 // pred_check
        %p137 = pneg %p91
      $region18: #{residual_block_forward.5} parent=11 // pred_check_branch
        %139 = sbr.rel (%p137) target = $region20
      $region19: #{residual_block_forward.5} parent=11 // pred_region
        _
      $region20: #{residual_block_forward.5} parent=11 // pred_fallthru
        _
    $region12: #{residual_block_forward.5} parent=5 // pred_fallthru
      _
    %p140 = scmp.lt.s32.totalorder %s9, 4
    // Predicated region
    $region21: #{residual_block_forward.5} parent=5 // pred_check
      %p141 = pneg %p140
    $region22: #{residual_block_forward.5} parent=5 // pred_check_branch
      %143 = sbr.rel (%p141) target = $region24
    $region23: #{residual_block_forward.5} parent=5 // pred_region
      // Predicated region
      $region25: #{residual_block_forward.5} parent=23 // pred_check
        %p144 = pneg %p43
      $region26: #{residual_block_forward.5} parent=23 // pred_check_branch
        %146 = sbr.rel (%p144) target = $region28
      $region27: #{residual_block_forward.5} parent=23 // pred_region
        %s147 = smul.u32 8, %s17
        %p148 = scmp.lt.s32.totalorder %s16, 1
        %s149 = scalar_select %p148, %s16, 1
        %p150 = scmp.lt.s32.totalorder %s147, 15
        %s151 = scalar_select %p150, %s147, 15
        %s152 = smul.addr %s151, 2
        %s153 = smul.addr %s149, 32
        %s154 = sadd.s32 %s152, %s153
        %s155 = smul.addr %s154, 4
        %s156 = scalar_lea.vmem %s0, %s155
        %s157 = smul.u32 8, %s17
      $region28: #{residual_block_forward.5} parent=23 // pred_fallthru
        _
    $region24: #{residual_block_forward.5} parent=5 // pred_fallthru
      _
    %p158 = scmp.le.s32.totalorder 1, %s9
    %p159 = scmp.lt.s32.totalorder %s9, 5
    %p160 = pnand %p158, %p159
    %p161 = pneg %p160
    // Predicated region
    $region29: #{residual_block_forward.5} parent=5 // pred_check
      _
    $region30: #{residual_block_forward.5} parent=5 // pred_check_branch
      %163 = sbr.rel (%p160) target = $region32
    $region31: #{residual_block_forward.5} parent=5 // pred_region
      %s164 = ssub.s32 %s9, 1
      %s165 = smul.u32 8, %s19
      %p166 = scmp.lt.s32.totalorder %s18, 1
      %s167 = scalar_select %p166, %s18, 1
      %p168 = scmp.lt.s32.totalorder %s165, 15
      %s169 = scalar_select %p168, %s165, 15
      %s170 = smul.addr %s169, 2
      %s171 = smul.addr %s167, 32
      %s172 = sadd.s32 %s170, %s171
      %s173 = smul.addr %s172, 4
      %s174 = scalar_lea.vmem %s0, %s173
      %p175 = pneg %p49
      %p176 = pneg %p46
      %p177 = pneg %p70
      %p178 = pneg %p67
      %p179 = pneg %p91
      %p180 = pneg %p88
      %p181 = pneg %p119
      %p182 = pneg %p116
      %s183 = smul.u32 8, %s19
      %p184 = scmp.lt.s32.totalorder %s18, 1
      %s185 = scalar_select %p184, %s18, 1
      %p186 = scmp.lt.s32.totalorder %s183, 15
      %s187 = scalar_select %p186, %s183, 15
      %s188 = smul.addr %s187, 2
      %s189 = smul.addr %s185, 32
      %s190 = sadd.s32 %s188, %s189
      %s191 = smul.addr %s190, 8
      %s192 = scalar_lea.vmem %s3, %s191
      %s193 = smul.u32 8, %s19
      %p194 = scmp.lt.s32.totalorder %s18, 1
      %s195 = scalar_select %p194, %s18, 1
      %p196 = scmp.lt.s32.totalorder %s193, 15
      %s197 = scalar_select %p196, %s193, 15
      %s198 = smul.addr %s197, 2
      %s199 = smul.addr %s195, 32
      %s200 = sadd.s32 %s198, %s199
      %s201 = smul.addr %s200, 4
      %s202 = scalar_lea.vmem %s0, %s201
      %s203 = smul.u32 8, %s19
      %s204 = smul.u32 8, %s19
      %p205 = scmp.lt.s32.totalorder %s18, 1
      %s206 = scalar_select %p205, %s18, 1
      %p207 = scmp.lt.s32.totalorder %s204, 15
      %s208 = scalar_select %p207, %s204, 15
      %s209 = smul.addr %s208, 2
      %s210 = smul.addr %s206, 32
      %s211 = sadd.s32 %s209, %s210
      %s212 = smul.addr %s211, 8
      %s213 = scalar_lea.vmem %s3, %s212
      %s214 = smul.u32 8, %s19
      %v215 = vld [vmem:[%s202] sm:$0xf]
      %v216 = vld [vmem:[%s202 + $0x4] sm:$0xf]
      %v217 = vld [vmem:[%s202 + $0x8] sm:$0xf]
      %v218 = vld [vmem:[%s202 + $0xc] sm:$0xf]
      %v219 = vld [vmem:[%s202 + $0x10] sm:$0xf]
      %v220 = vld [vmem:[%s202 + $0x14] sm:$0xf]
      %v221 = vld [vmem:[%s202 + $0x18] sm:$0xf]
      %v222 = vld [vmem:[%s202 + $0x1c] sm:$0xf]
      %v223 = vld [vmem:[%s202 + $0x20] sm:$0xf]
      %v224 = vld [vmem:[%s202 + $0x24] sm:$0xf]
      %v225 = vld [vmem:[%s202 + $0x28] sm:$0xf]
      %v226 = vld [vmem:[%s202 + $0x2c] sm:$0xf]
      %v227 = vld [vmem:[%s202 + $0x30] sm:$0xf]
      %v228 = vld [vmem:[%s202 + $0x34] sm:$0xf]
      %v229 = vld [vmem:[%s202 + $0x38] sm:$0xf]
      %v230 = vld [vmem:[%s202 + $0x3c] sm:$0xf]
      %v231 = vunpack.c.l.bf16 %v215
      %v232 = vunpack.c.l.bf16 %v216
      %v233 = vunpack.c.l.bf16 %v217
      %v234 = vunpack.c.l.bf16 %v218
      %v235 = vunpack.c.l.bf16 %v219
      %v236 = vunpack.c.l.bf16 %v220
      %v237 = vunpack.c.l.bf16 %v221
      %v238 = vunpack.c.l.bf16 %v222
      %v239 = vunpack.c.l.bf16 %v223
      %v240 = vunpack.c.l.bf16 %v224
      %v241 = vunpack.c.l.bf16 %v225
      %v242 = vunpack.c.l.bf16 %v226
      %v243 = vunpack.c.l.bf16 %v227
      %v244 = vunpack.c.l.bf16 %v228
      %v245 = vunpack.c.l.bf16 %v229
      %v246 = vunpack.c.l.bf16 %v230
      %v247 = vld [vmem:[%s1] sm:$0x1]
      %v249 = vlaneseq
      %v250 = vshrl.u32 %v249, 7
      %v251 = vsub.s32 0, %v250
      %v252 = vrot.slane %v247, %v251
      %v254 = vmul.f32 %v231, %v252
      %v255 = vmul.f32 %v232, %v252
      %v256 = vmul.f32 %v233, %v252
      %v257 = vmul.f32 %v234, %v252
      %v258 = vmul.f32 %v235, %v252
      %v259 = vmul.f32 %v236, %v252
      %v260 = vmul.f32 %v237, %v252
      %v261 = vmul.f32 %v238, %v252
      %v262 = vmul.f32 %v239, %v252
      %v263 = vmul.f32 %v240, %v252
      %v264 = vmul.f32 %v241, %v252
      %v265 = vmul.f32 %v242, %v252
      %v266 = vmul.f32 %v243, %v252
      %v267 = vmul.f32 %v244, %v252
      %v268 = vmul.f32 %v245, %v252
      %v269 = vmul.f32 %v246, %v252
      %v270 = vld [vmem:[%s2] sm:$0x1]
      %v272 = vlaneseq
      %v273 = vshrl.u32 %v272, 7
      %v274 = vsub.s32 0, %v273
      %v275 = vrot.slane %v270, %v274
      %v277 = vadd.f32 %v254, %v275
      %v278 = vadd.f32 %v255, %v275
      %v279 = vadd.f32 %v256, %v275
      %v280 = vadd.f32 %v257, %v275
      %v281 = vadd.f32 %v258, %v275
      %v282 = vadd.f32 %v259, %v275
      %v283 = vadd.f32 %v260, %v275
      %v284 = vadd.f32 %v261, %v275
      %v285 = vadd.f32 %v262, %v275
      %v286 = vadd.f32 %v263, %v275
      %v287 = vadd.f32 %v264, %v275
      %v288 = vadd.f32 %v265, %v275
      %v289 = vadd.f32 %v266, %v275
      %v290 = vadd.f32 %v267, %v275
      %v291 = vadd.f32 %v268, %v275
      %v292 = vadd.f32 %v269, %v275
      %vm293 = vcmp.gt.f32.partialorder %v277, 0.0
      %vm294 = vcmp.gt.f32.partialorder %v278, 0.0
      %vm295 = vcmp.gt.f32.partialorder %v279, 0.0
      %vm296 = vcmp.gt.f32.partialorder %v280, 0.0
      %vm297 = vcmp.gt.f32.partialorder %v281, 0.0
      %vm298 = vcmp.gt.f32.partialorder %v282, 0.0
      %vm299 = vcmp.gt.f32.partialorder %v283, 0.0
      %vm300 = vcmp.gt.f32.partialorder %v284, 0.0
      %vm301 = vcmp.gt.f32.partialorder %v285, 0.0
      %vm302 = vcmp.gt.f32.partialorder %v286, 0.0
      %vm303 = vcmp.gt.f32.partialorder %v287, 0.0
      %vm304 = vcmp.gt.f32.partialorder %v288, 0.0
      %vm305 = vcmp.gt.f32.partialorder %v289, 0.0
      %vm306 = vcmp.gt.f32.partialorder %v290, 0.0
      %vm307 = vcmp.gt.f32.partialorder %v291, 0.0
      %vm308 = vcmp.gt.f32.partialorder %v292, 0.0
      %v309 = vmul.f32 %v277, 0.2
      %v310 = vmul.f32 %v278, 0.2
      %v311 = vmul.f32 %v279, 0.2
      %v312 = vmul.f32 %v280, 0.2
      %v313 = vmul.f32 %v281, 0.2
      %v314 = vmul.f32 %v282, 0.2
      %v315 = vmul.f32 %v283, 0.2
      %v316 = vmul.f32 %v284, 0.2
      %v317 = vmul.f32 %v285, 0.2
      %v318 = vmul.f32 %v286, 0.2
      %v319 = vmul.f32 %v287, 0.2
      %v320 = vmul.f32 %v288, 0.2
      %v321 = vmul.f32 %v289, 0.2
      %v322 = vmul.f32 %v290, 0.2
      %v323 = vmul.f32 %v291, 0.2
      %v324 = vmul.f32 %v292, 0.2
      %v325 = vsel %vm293, %v277, %v309
      %v326 = vsel %vm294, %v278, %v310
      %v327 = vsel %vm295, %v279, %v311
      %v328 = vsel %vm296, %v280, %v312
      %v329 = vsel %vm297, %v281, %v313
      %v330 = vsel %vm298, %v282, %v314
      %v331 = vsel %vm299, %v283, %v315
      %v332 = vsel %vm300, %v284, %v316
      %v333 = vsel %vm301, %v285, %v317
      %v334 = vsel %vm302, %v286, %v318
      %v335 = vsel %vm303, %v287, %v319
      %v336 = vsel %vm304, %v288, %v320
      %v337 = vsel %vm305, %v289, %v321
      %v338 = vsel %vm306, %v290, %v322
      %v339 = vsel %vm307, %v291, %v323
      %v340 = vsel %vm308, %v292, %v324
      %341 = vst [vmem:[%s213] sm:$0xff] %v325
      %342 = vst [vmem:[%s213 + $0x8] sm:$0xff] %v326
      %343 = vst [vmem:[%s213 + $0x10] sm:$0xff] %v327
      %344 = vst [vmem:[%s213 + $0x18] sm:$0xff] %v328
      %345 = vst [vmem:[%s213 + $0x20] sm:$0xff] %v329
      %346 = vst [vmem:[%s213 + $0x28] sm:$0xff] %v330
      %347 = vst [vmem:[%s213 + $0x30] sm:$0xff] %v331
      %348 = vst [vmem:[%s213 + $0x38] sm:$0xff] %v332
      %349 = vst [vmem:[%s213 + $0x40] sm:$0xff] %v333
      %350 = vst [vmem:[%s213 + $0x48] sm:$0xff] %v334
      %351 = vst [vmem:[%s213 + $0x50] sm:$0xff] %v335
      %352 = vst [vmem:[%s213 + $0x58] sm:$0xff] %v336
      %353 = vst [vmem:[%s213 + $0x60] sm:$0xff] %v337
      %354 = vst [vmem:[%s213 + $0x68] sm:$0xff] %v338
      %355 = vst [vmem:[%s213 + $0x70] sm:$0xff] %v339
      %356 = vst [vmem:[%s213 + $0x78] sm:$0xff] %v340
      %s357 = smul.u32 8, %s19
      %p358 = scmp.lt.s32.totalorder %s18, 1
      %s359 = scalar_select %p358, %s18, 1
      %p360 = scmp.lt.s32.totalorder %s357, 15
      %s361 = scalar_select %p360, %s357, 15
      %s362 = smul.addr %s361, 2
      %s363 = smul.addr %s359, 32
      %s364 = sadd.s32 %s362, %s363
      %s365 = smul.addr %s364, 8
      %s366 = scalar_lea.vmem %s3, %s365
      // Predicated region
      $region33: #{residual_block_forward.5} parent=31 // pred_check
        %p367 = pneg %p116
      $region34: #{residual_block_forward.5} parent=31 // pred_check_branch
        %369 = sbr.rel (%p367) target = $region36
      $region35: #{residual_block_forward.5} parent=31 // pred_region
        %s370 = smul.u32 8, %s19
      $region36: #{residual_block_forward.5} parent=31 // pred_fallthru
        _
    $region32: #{residual_block_forward.5} parent=5 // pred_fallthru
      _
    %p371 = scmp.le.s32.totalorder 2, %s9
    // Predicated region
    $region37: #{residual_block_forward.5} parent=5 // pred_check
      %p372 = pneg %p371
    $region38: #{residual_block_forward.5} parent=5 // pred_check_branch
      %374 = sbr.rel (%p372) target = $region40
    $region39: #{residual_block_forward.5} parent=5 // pred_region
      %s375 = ssub.s32 %s9, 2
      // Predicated region
      $region41: #{residual_block_forward.5} parent=39 // pred_check
        %p376 = pneg %p122
      $region42: #{residual_block_forward.5} parent=39 // pred_check_branch
        %378 = sbr.rel (%p376) target = $region44
      $region43: #{residual_block_forward.5} parent=39 // pred_region
        %s379 = smul.u32 8, %s21
        %p380 = scmp.lt.s32.totalorder %s20, 1
        %s381 = scalar_select %p380, %s20, 1
        %p382 = scmp.lt.s32.totalorder %s379, 15
        %s383 = scalar_select %p382, %s379, 15
        %s384 = smul.addr %s383, 2
        %s385 = smul.addr %s381, 32
        %s386 = sadd.s32 %s384, %s385
        %s387 = smul.addr %s386, 8
        %s388 = scalar_lea.vmem %s3, %s387
      $region44: #{residual_block_forward.5} parent=39 // pred_fallthru
        _
    $region40: #{residual_block_forward.5} parent=5 // pred_fallthru
      _
  $region6: #{residual_block_forward.5} parent=0 // loop_footer
    %s13 = sadd.s32 1, %s9
  $region7: #{residual_block_forward.5} parent=0 // loop_footer_branch
    %8 = sbr.rel target = $region3
  $region8: #{residual_block_forward.5} parent=0 // loop_exit
    _

// kernel: residual_block_forward.3
$region0: #{residual_block_forward.3}
  #allocation0 [shape = 'u32[]', space=smem, size = 0x4, offset = 0x4, fixed_abs, tag = 'smem constant byte address 0x4 - core index']
  #allocation1 [shape = 'u32[144,128]{1,0:T(1,128)}', space=vmem, size = 0x12000, scoped, tag = 'internal scratch']
  %s0 = inlined_call_operand.vmem [shape: bf16[2,2,12,18,128], index: 0, kind: input, shape index: {}]
  %s1 = inlined_call_operand.vmem [shape: bf16[9,128,128], index: 1, kind: input, shape index: {}]
  %s2 = inlined_call_operand.vmem [shape: bf16[2,2,10,16,128], index: 2, kind: output, shape index: {0}]
  %s3 = inlined_call_operand.vmem [shape: f32[2,2,2,128], index: 3, kind: output, shape index: {1}]
  %4 = xla_tuple %s2, %s3
  %s5 = sld [smem:[#allocation0]]
  $region49: #{residual_block_forward.3} parent=0
    _
  %s7 = ssub.s32 1, %s5
  %s8 = scalar_select 0, %s7, %s5
  loop: start=0, step=1, limit=6
  $region2: #{residual_block_forward.3} parent=0 // loop_pre_header
    _
  $region3: #{residual_block_forward.3} parent=0 // loop_header
    %s10 = sphi 0, %s14
    %p11 = scmp.ge.s32.totalorder %s10, 6
    %s17 = sphi 0, %s29
    %s18 = sphi 0, %s25
    %s19 = sphi 0, %s17
    %s20 = sphi 0, %s18
    %s21 = sphi 0, %s19
    %s22 = sphi 0, %s20
    %s34 = sphi 0, %s36
    %s37 = sphi 0, %s34
    %s38 = sphi 0, %s37
    %s54 = sphi 0, %s38
    %s58 = sphi 0, %s58
    %s60 = sphi 0, %s58
    %s61 = sphi 0, %s60
    %s75 = sphi 0, %s61
    %s83 = sphi 0, %s85
    %s86 = sphi 0, %s83
    %s87 = sphi 0, %s86
    %s103 = sphi 0, %s87
    %s111 = sphi 0, %s113
    %s114 = sphi 0, %s111
    %s115 = sphi 0, %s114
    %s131 = sphi 0, %s115
  $region4: #{residual_block_forward.3} parent=0 // loop_header_branch
    %13 = sbr.rel (%p11) target = $region8
  $region5: #{residual_block_forward.3} parent=0 // loop_body
    %s15 = ssub.s32 %s10, 1
    %s16 = ssub.s32 %s10, 2
    %s23 = sadd.s32 1, %s18
    %p24 = scmp.ge.s32.totalorder %s23, 2
    %s25 = scalar_select %p24, 0, %s23
    %s26 = sadd.s32 1, %s17
    %s27 = scalar_select %p24, %s26, %s17
    %p28 = scmp.ge.s32.totalorder %s27, 2
    %s29 = scalar_select %p28, 0, %s27
    %s30 = ssub.s32 %s17, %s29
    %s31 = ssub.s32 %s18, %s25
    %s32 = sor.u32 %s30, %s31
    %p33 = scmp.eq.s32.totalorder %s32, 0
    %s35 = sadd.s32 %s34, 1
    %s36 = scalar_select %p33, %s34, %s35
    %p39 = pneg %p33
    %p40 = scmp.eq.s32.totalorder %s10, 3
    %p41 = por %p39, %p40
    %p42 = scmp.ne.s32.totalorder %s34, %s37
    %p43 = scmp.eq.s32.totalorder %s10, 0
    %p44 = por %p42, %p43
    %p45 = scmp.ne.s32.totalorder %s34, %s37
    %p46 = scmp.eq.s32.totalorder %s15, 3
    %p47 = por %p45, %p46
    %p48 = scmp.ne.s32.totalorder %s37, %s38
    %p49 = scmp.eq.s32.totalorder %s15, 0
    %p50 = por %p48, %p49
    %p51 = scmp.ne.s32.totalorder %s37, %s38
    %p52 = scmp.eq.s32.totalorder %s16, 3
    %p53 = por %p51, %p52
    %p55 = scmp.ne.s32.totalorder %s38, %s54
    %p56 = scmp.eq.s32.totalorder %s16, 0
    %p57 = por %p55, %p56
    %s59 = sadd.s32 %s58, 1
    %p62 = scmp.eq.s32.totalorder %s10, 3
    %p63 = scmp.ne.s32.totalorder %s58, %s60
    %p64 = scmp.eq.s32.totalorder %s10, 0
    %p65 = por %p63, %p64
    %p66 = scmp.ne.s32.totalorder %s58, %s60
    %p67 = scmp.eq.s32.totalorder %s15, 3
    %p68 = por %p66, %p67
    %p69 = scmp.ne.s32.totalorder %s60, %s61
    %p70 = scmp.eq.s32.totalorder %s15, 0
    %p71 = por %p69, %p70
    %p72 = scmp.ne.s32.totalorder %s60, %s61
    %p73 = scmp.eq.s32.totalorder %s16, 3
    %p74 = por %p72, %p73
    %p76 = scmp.ne.s32.totalorder %s61, %s75
    %p77 = scmp.eq.s32.totalorder %s16, 0
    %p78 = por %p76, %p77
    %s79 = ssub.s32 %s17, %s29
    %s80 = ssub.s32 %s18, %s25
    %s81 = sor.u32 %s79, %s80
    %p82 = scmp.eq.s32.totalorder %s81, 0
    %s84 = sadd.s32 %s83, 1
    %s85 = scalar_select %p82, %s83, %s84
    %p88 = pneg %p82
    %p89 = scmp.eq.s32.totalorder %s10, 3
    %p90 = por %p88, %p89
    %p91 = scmp.ne.s32.totalorder %s83, %s86
    %p92 = scmp.eq.s32.totalorder %s10, 0
    %p93 = por %p91, %p92
    %p94 = scmp.ne.s32.totalorder %s83, %s86
    %p95 = scmp.eq.s32.totalorder %s15, 3
    %p96 = por %p94, %p95
    %p97 = scmp.ne.s32.totalorder %s86, %s87
    %p98 = scmp.eq.s32.totalorder %s15, 0
    %p99 = por %p97, %p98
    %p100 = scmp.ne.s32.totalorder %s86, %s87
    %p101 = scmp.eq.s32.totalorder %s16, 3
    %p102 = por %p100, %p101
    %p104 = scmp.ne.s32.totalorder %s87, %s103
    %p105 = scmp.eq.s32.totalorder %s16, 0
    %p106 = por %p104, %p105
    %s107 = ssub.s32 %s17, %s29
    %s108 = ssub.s32 %s18, %s25
    %s109 = sor.u32 %s107, %s108
    %p110 = scmp.eq.s32.totalorder %s109, 0
    %s112 = sadd.s32 %s111, 1
    %s113 = scalar_select %p110, %s111, %s112
    %p116 = pneg %p110
    %p117 = scmp.eq.s32.totalorder %s10, 3
    %p118 = por %p116, %p117
    %p119 = scmp.ne.s32.totalorder %s111, %s114
    %p120 = scmp.eq.s32.totalorder %s10, 0
    %p121 = por %p119, %p120
    %p122 = scmp.ne.s32.totalorder %s111, %s114
    %p123 = scmp.eq.s32.totalorder %s15, 3
    %p124 = por %p122, %p123
    %p125 = scmp.ne.s32.totalorder %s114, %s115
    %p126 = scmp.eq.s32.totalorder %s15, 0
    %p127 = por %p125, %p126
    %p128 = scmp.ne.s32.totalorder %s114, %s115
    %p129 = scmp.eq.s32.totalorder %s16, 3
    %p130 = por %p128, %p129
    %p132 = scmp.ne.s32.totalorder %s115, %s131
    %p133 = scmp.eq.s32.totalorder %s16, 0
    %p134 = por %p132, %p133
    %p135 = scmp.le.s32.totalorder 1, %s10
    %p136 = scmp.lt.s32.totalorder %s10, 5
    %p137 = pnand %p135, %p136
    %p138 = pneg %p137
    // Predicated region
    $region9: #{residual_block_forward.3} parent=5 // pred_check
      _
    $region10: #{residual_block_forward.3} parent=5 // pred_check_branch
      %140 = sbr.rel (%p137) target = $region12
    $region11: #{residual_block_forward.3} parent=5 // pred_region
      %s141 = ssub.s32 %s10, 1
      // Predicated region
      $region13: #{residual_block_forward.3} parent=11 // pred_check
        %p142 = pneg %p71
      $region14: #{residual_block_forward.3} parent=11 // pred_check_branch
        %144 = sbr.rel (%p142) target = $region16
      $region15: #{residual_block_forward.3} parent=11 // pred_region
        _
      $region16: #{residual_block_forward.3} parent=11 // pred_fallthru
        _
    $region12: #{residual_block_forward.3} parent=5 // pred_fallthru
      _
    %p145 = scmp.lt.s32.totalorder %s10, 4
    // Predicated region
    $region17: #{residual_block_forward.3} parent=5 // pred_check
      %p146 = pneg %p145
    $region18: #{residual_block_forward.3} parent=5 // pred_check_branch
      %148 = sbr.rel (%p146) target = $region20
    $region19: #{residual_block_forward.3} parent=5 // pred_region
      // Predicated region
      $region21: #{residual_block_forward.3} parent=19 // pred_check
        %p149 = pneg %p44
      $region22: #{residual_block_forward.3} parent=19 // pred_check_branch
        %151 = sbr.rel (%p149) target = $region24
      $region23: #{residual_block_forward.3} parent=19 // pred_region
        %p152 = scmp.lt.s32.totalorder %s17, 1
        %s153 = scalar_select %p152, %s17, 1
        %p154 = scmp.lt.s32.totalorder %s18, 1
        %s155 = scalar_select %p154, %s18, 1
        %s156 = smul.addr %s155, 36
        %s157 = smul.addr %s153, 72
        %s158 = sadd.s32 %s156, %s157
        %s159 = smul.addr %s158, 4
        %s160 = scalar_lea.vmem %s0, %s159
      $region24: #{residual_block_forward.3} parent=19 // pred_fallthru
        _
    $region20: #{residual_block_forward.3} parent=5 // pred_fallthru
      _
    %p161 = scmp.le.s32.totalorder 1, %s10
    %p162 = scmp.lt.s32.totalorder %s10, 5
    %p163 = pnand %p161, %p162
    %p164 = pneg %p163
    // Predicated region
    $region25: #{residual_block_forward.3} parent=5 // pred_check
      _
    $region26: #{residual_block_forward.3} parent=5 // pred_check_branch
      %166 = sbr.rel (%p163) target = $region28
    $region27: #{residual_block_forward.3} parent=5 // pred_region
      %s167 = ssub.s32 %s10, 1
      %p168 = scmp.lt.s32.totalorder %s19, 1
      %s169 = scalar_select %p168, %s19, 1
      %p170 = scmp.lt.s32.totalorder %s20, 1
      %s171 = scalar_select %p170, %s20, 1
      %s172 = smul.addr %s171, 36
      %s173 = smul.addr %s169, 72
      %s174 = sadd.s32 %s172, %s173
      %s175 = smul.addr %s174, 4
      %s176 = scalar_lea.vmem %s0, %s175
      %p177 = pneg %p50
      %p178 = pneg %p47
      %p179 = pneg %p71
      %p180 = pneg %p68
      %p181 = pneg %p99
      %p182 = pneg %p96
      %p183 = scmp.lt.s32.totalorder %s19, 1
      %s184 = scalar_select %p183, %s19, 1
      %p185 = scmp.lt.s32.totalorder %s20, 1
      %s186 = scalar_select %p185, %s20, 1
      %s187 = smul.addr %s186, 20
      %s188 = smul.addr %s184, 40
      %s189 = sadd.s32 %s187, %s188
      %s190 = smul.addr %s189, 4
      %s191 = scalar_lea.vmem %s2, %s190
      %p192 = pneg %p127
      %p193 = pneg %p124
      %p194 = scmp.lt.s32.totalorder %s19, 1
      %s195 = scalar_select %p194, %s19, 1
      %p196 = scmp.lt.s32.totalorder %s20, 1
      %s197 = scalar_select %p196, %s20, 1
      %s198 = smul.addr %s195, 2
      %s199 = sadd.s32 %s197, %s198
      %s200 = smul.addr %s199, 2
      %s201 = scalar_lea.vmem %s3, %s200
      %p202 = scmp.lt.s32.totalorder %s19, 1
      %s203 = scalar_select %p202, %s19, 1
      %p204 = scmp.lt.s32.totalorder %s20, 1
      %s205 = scalar_select %p204, %s20, 1
      %s206 = smul.addr %s205, 36
      %s207 = smul.addr %s203, 72
      %s208 = sadd.s32 %s206, %s207
      %s209 = smul.addr %s208, 4
      %s210 = scalar_lea.vmem %s0, %s209
      %p211 = scmp.lt.s32.totalorder %s19, 1
      %s212 = scalar_select %p211, %s19, 1
      %p213 = scmp.lt.s32.totalorder %s20, 1
      %s214 = scalar_select %p213, %s20, 1
      %s215 = smul.addr %s214, 20
      %s216 = smul.addr %s212, 40
      %s217 = sadd.s32 %s215, %s216
      %s218 = smul.addr %s217, 4
      %s219 = scalar_lea.vmem %s2, %s218
      %p220 = scmp.lt.s32.totalorder %s19, 1
      %s221 = scalar_select %p220, %s19, 1
      %p222 = scmp.lt.s32.totalorder %s20, 1
      %s223 = scalar_select %p222, %s20, 1
      %s224 = smul.addr %s221, 2
      %s225 = sadd.s32 %s223, %s224
      %s226 = smul.addr %s225, 2
      %s227 = scalar_lea.vmem %s3, %s226
      %v229 = vld [vmem:[%s210] sm:$0xf]
      %v230 = vld [vmem:[%s210 + $0x4] sm:$0xf]
      %v231 = vld [vmem:[%s210 + $0xc] sm:$0xf]
      %v232 = vld [vmem:[%s210 + $0x10] sm:$0xf]
      %v233 = vld [vmem:[%s210 + $0x18] sm:$0xf]
      %v234 = vld [vmem:[%s210 + $0x1c] sm:$0xf]
      %v235 = vld [vmem:[%s210 + $0x24] sm:$0xf]
      %v236 = vld [vmem:[%s210 + $0x28] sm:$0xf]
      %v237 = vld [vmem:[%s210 + $0x30] sm:$0xf]
      %v238 = vld [vmem:[%s210 + $0x34] sm:$0xf]
      %v239 = vld [vmem:[%s210 + $0x3c] sm:$0xf]
      %v240 = vld [vmem:[%s210 + $0x40] sm:$0xf]
      %v241 = vld [vmem:[%s210 + $0x48] sm:$0xf]
      %v242 = vld [vmem:[%s210 + $0x4c] sm:$0xf]
      %v243 = vld [vmem:[%s210 + $0x54] sm:$0xf]
      %v244 = vld [vmem:[%s210 + $0x58] sm:$0xf]
      %v245 = vld [vmem:[%s210 + $0x60] sm:$0xf]
      %v246 = vld [vmem:[%s210 + $0x64] sm:$0xf]
      %v247 = vld [vmem:[%s210 + $0x6c] sm:$0xf]
      %v248 = vld [vmem:[%s210 + $0x70] sm:$0xf]
      %v249 = vld [vmem:[%s1] sm:$0xf]
      %v250 = vld [vmem:[%s1 + $0x4] sm:$0xf]
      %v251 = vld [vmem:[%s1 + $0x8] sm:$0xf]
      %v252 = vld [vmem:[%s1 + $0xc] sm:$0xf]
      %v253 = vld [vmem:[%s1 + $0x10] sm:$0xf]
      %v254 = vld [vmem:[%s1 + $0x14] sm:$0xf]
      %v255 = vld [vmem:[%s1 + $0x18] sm:$0xf]
      %v256 = vld [vmem:[%s1 + $0x1c] sm:$0xf]
      %v257 = vld [vmem:[%s1 + $0x20] sm:$0xf]
      %v258 = vld [vmem:[%s1 + $0x24] sm:$0xf]
      %v259 = vld [vmem:[%s1 + $0x28] sm:$0xf]
      %v260 = vld [vmem:[%s1 + $0x2c] sm:$0xf]
      %v261 = vld [vmem:[%s1 + $0x30] sm:$0xf]
      %v262 = vld [vmem:[%s1 + $0x34] sm:$0xf]
      %v263 = vld [vmem:[%s1 + $0x38] sm:$0xf]
      %v264 = vld [vmem:[%s1 + $0x3c] sm:$0xf]
      %v265 = vld [vmem:[%s210 + $0x8] sm:$0x1]
      %v266 = vld [vmem:[%s210 + $0x14] sm:$0x1]
      %v267 = vld [vmem:[%s210 + $0x20] sm:$0x1]
      %v268 = vld [vmem:[%s210 + $0x2c] sm:$0x1]
      %v269 = vld [vmem:[%s210 + $0x38] sm:$0x1]
      %v270 = vld [vmem:[%s210 + $0x44] sm:$0x1]
      %v271 = vld [vmem:[%s210 + $0x50] sm:$0x1]
      %v272 = vld [vmem:[%s210 + $0x5c] sm:$0x1]
      %v273 = vld [vmem:[%s210 + $0x68] sm:$0x1]
      %v274 = vld [vmem:[%s210 + $0x74] sm:$0x1]
      %vm275 = vsmask.f32 3328
      %vm276 = vsmask.f32 7440
      %vm277 = vmor %vm275, %vm276
      %v279 = vshrl.u32 %v229, 16
      %v281 = vrot.slane %v279, 4
      %v282 = vshll.u32 %v229, 16
      %v284 = vrot.slane %v282, 5
      %v285 = vor.u32 %v281, %v284
      %v286 = vrot.slane %v285, 4
      %v288 = vshll.u32 %v230, 16
      %v290 = vrot.slane %v288, 5
      %v291 = vsel %vm277, %v286, %v290
      %v292 = vshrl.u32 %v230, 16
      %v294 = vrot.slane %v292, 4
      %v295 = vor.u32 %v294, %v290
      %v296 = vrot.slane %v295, 4
      %v298 = vshll.u32 %v265, 16
      %v300 = vrot.slane %v298, 5
      %v301 = vsel %vm277, %v296, %v300
      %v303 = vshrl.u32 %v231, 16
      %v305 = vrot.slane %v303, 4
      %v306 = vshll.u32 %v231, 16
      %v308 = vrot.slane %v306, 5
      %v309 = vor.u32 %v305, %v308
      %v310 = vrot.slane %v309, 4
      %v312 = vshll.u32 %v232, 16
      %v314 = vrot.slane %v312, 5
      %v315 = vsel %vm277, %v310, %v314
      %v316 = vshrl.u32 %v232, 16
      %v318 = vrot.slane %v316, 4
      %v319 = vor.u32 %v318, %v314
      %v320 = vrot.slane %v319, 4
      %v322 = vshll.u32 %v266, 16
      %v324 = vrot.slane %v322, 5
      %v325 = vsel %vm277, %v320, %v324
      %v327 = vshrl.u32 %v233, 16
      %v329 = vrot.slane %v327, 4
      %v330 = vshll.u32 %v233, 16
      %v332 = vrot.slane %v330, 5
      %v333 = vor.u32 %v329, %v332
      %v334 = vrot.slane %v333, 4
      %v336 = vshll.u32 %v234, 16
      %v338 = vrot.slane %v336, 5
      %v339 = vsel %vm277, %v334, %v338
      %v340 = vshrl.u32 %v234, 16
      %v342 = vrot.slane %v340, 4
      %v343 = vor.u32 %v342, %v338
      %v344 = vrot.slane %v343, 4
      %v346 = vshll.u32 %v267, 16
      %v348 = vrot.slane %v346, 5
      %v349 = vsel %vm277, %v344, %v348
      %v351 = vshrl.u32 %v235, 16
      %v353 = vrot.slane %v351, 4
      %v354 = vshll.u32 %v235, 16
      %v356 = vrot.slane %v354, 5
      %v357 = vor.u32 %v353, %v356
      %v358 = vrot.slane %v357, 4
      %v360 = vshll.u32 %v236, 16
      %v362 = vrot.slane %v360, 5
      %v363 = vsel %vm277, %v358, %v362
      %v364 = vshrl.u32 %v236, 16
      %v366 = vrot.slane %v364, 4
      %v367 = vor.u32 %v366, %v362
      %v368 = vrot.slane %v367, 4
      %v370 = vshll.u32 %v268, 16
      %v372 = vrot.slane %v370, 5
      %v373 = vsel %vm277, %v368, %v372
      %v375 = vshrl.u32 %v237, 16
      %v377 = vrot.slane %v375, 4
      %v378 = vshll.u32 %v237, 16
      %v380 = vrot.slane %v378, 5
      %v381 = vor.u32 %v377, %v380
      %v382 = vrot.slane %v381, 4
      %v384 = vshll.u32 %v238, 16
      %v386 = vrot.slane %v384, 5
      %v387 = vsel %vm277, %v382, %v386
      %v388 = vshrl.u32 %v238, 16
      %v390 = vrot.slane %v388, 4
      %v391 = vor.u32 %v390, %v386
      %v392 = vrot.slane %v391, 4
      %v394 = vshll.u32 %v269, 16
      %v396 = vrot.slane %v394, 5
      %v397 = vsel %vm277, %v392, %v396
      %v399 = vshrl.u32 %v239, 16
      %v401 = vrot.slane %v399, 4
      %v402 = vshll.u32 %v239, 16
      %v404 = vrot.slane %v402, 5
      %v405 = vor.u32 %v401, %v404
      %v406 = vrot.slane %v405, 4
      %v408 = vshll.u32 %v240, 16
      %v410 = vrot.slane %v408, 5
      %v411 = vsel %vm277, %v406, %v410
      %v412 = vshrl.u32 %v240, 16
      %v414 = vrot.slane %v412, 4
      %v415 = vor.u32 %v414, %v410
      %v416 = vrot.slane %v415, 4
      %v418 = vshll.u32 %v270, 16
      %v420 = vrot.slane %v418, 5
      %v421 = vsel %vm277, %v416, %v420
      %v423 = vshrl.u32 %v241, 16
      %v425 = vrot.slane %v423, 4
      %v426 = vshll.u32 %v241, 16
      %v428 = vrot.slane %v426, 5
      %v429 = vor.u32 %v425, %v428
      %v430 = vrot.slane %v429, 4
      %v432 = vshll.u32 %v242, 16
      %v434 = vrot.slane %v432, 5
      %v435 = vsel %vm277, %v430, %v434
      %v436 = vshrl.u32 %v242, 16
      %v438 = vrot.slane %v436, 4
      %v439 = vor.u32 %v438, %v434
      %v440 = vrot.slane %v439, 4
      %v442 = vshll.u32 %v271, 16
      %v444 = vrot.slane %v442, 5
      %v445 = vsel %vm277, %v440, %v444
      %v447 = vshrl.u32 %v243, 16
      %v449 = vrot.slane %v447, 4
      %v450 = vshll.u32 %v243, 16
      %v452 = vrot.slane %v450, 5
      %v453 = vor.u32 %v449, %v452
      %v454 = vrot.slane %v453, 4
      %v456 = vshll.u32 %v244, 16
      %v458 = vrot.slane %v456, 5
      %v459 = vsel %vm277, %v454, %v458
      %v460 = vshrl.u32 %v244, 16
      %v462 = vrot.slane %v460, 4
      %v463 = vor.u32 %v462, %v458
      %v464 = vrot.slane %v463, 4
      %v466 = vshll.u32 %v272, 16
      %v468 = vrot.slane %v466, 5
      %v469 = vsel %vm277, %v464, %v468
      %v471 = vshrl.u32 %v245, 16
      %v473 = vrot.slane %v471, 4
      %v474 = vshll.u32 %v245, 16
      %v476 = vrot.slane %v474, 5
      %v477 = vor.u32 %v473, %v476
      %v478 = vrot.slane %v477, 4
      %v480 = vshll.u32 %v246, 16
      %v482 = vrot.slane %v480, 5
      %v483 = vsel %vm277, %v478, %v482
      %v484 = vshrl.u32 %v246, 16
      %v486 = vrot.slane %v484, 4
      %v487 = vor.u32 %v486, %v482
      %v488 = vrot.slane %v487, 4
      %v490 = vshll.u32 %v273, 16
      %v492 = vrot.slane %v490, 5
      %v493 = vsel %vm277, %v488, %v492
      %v495 = vshrl.u32 %v247, 16
      %v497 = vrot.slane %v495, 4
      %v498 = vshll.u32 %v247, 16
      %v500 = vrot.slane %v498, 5
      %v501 = vor.u32 %v497, %v500
      %v502 = vrot.slane %v501, 4
      %v504 = vshll.u32 %v248, 16
      %v506 = vrot.slane %v504, 5
      %v507 = vsel %vm277, %v502, %v506
      %v508 = vshrl.u32 %v248, 16
      %v510 = vrot.slane %v508, 4
      %v511 = vor.u32 %v510, %v506
      %v512 = vrot.slane %v511, 4
      %v514 = vshll.u32 %v274, 16
      %v516 = vrot.slane %v514, 5
      %v517 = vsel %vm277, %v512, %v516
      %s518 = scalar_lea.vmem %s1, 64
      %v519 = vld [vmem:[%s518] sm:$0xf]
      %v520 = vld [vmem:[%s518 + $0x4] sm:$0xf]
      %v521 = vld [vmem:[%s518 + $0x8] sm:$0xf]
      %v522 = vld [vmem:[%s518 + $0xc] sm:$0xf]
      %v523 = vld [vmem:[%s518 + $0x10] sm:$0xf]
      %v524 = vld [vmem:[%s518 + $0x14] sm:$0xf]
      %v525 = vld [vmem:[%s518 + $0x18] sm:$0xf]
      %v526 = vld [vmem:[%s518 + $0x1c] sm:$0xf]
      %v527 = vld [vmem:[%s518 + $0x20] sm:$0xf]
      %v528 = vld [vmem:[%s518 + $0x24] sm:$0xf]
      %v529 = vld [vmem:[%s518 + $0x28] sm:$0xf]
      %v530 = vld [vmem:[%s518 + $0x2c] sm:$0xf]
      %v531 = vld [vmem:[%s518 + $0x30] sm:$0xf]
      %v532 = vld [vmem:[%s518 + $0x34] sm:$0xf]
      %v533 = vld [vmem:[%s518 + $0x38] sm:$0xf]
      %v534 = vld [vmem:[%s518 + $0x3c] sm:$0xf]
      %v535 = vunpack.c.l.b16 %v291
      %v536 = vunpack.c.l.b16 %v301
      %v537 = vunpack.c.l.b16 %v315
      %v538 = vunpack.c.l.b16 %v325
      %v539 = vunpack.c.l.b16 %v339
      %v540 = vunpack.c.l.b16 %v349
      %v541 = vunpack.c.l.b16 %v363
      %v542 = vunpack.c.l.b16 %v373
      %v543 = vunpack.c.l.b16 %v387
      %v544 = vunpack.c.l.b16 %v397
      %v545 = vunpack.c.l.b16 %v411
      %v546 = vunpack.c.l.b16 %v421
      %v547 = vunpack.c.l.b16 %v435
      %v548 = vunpack.c.l.b16 %v445
      %v549 = vunpack.c.l.b16 %v459
      %v550 = vunpack.c.l.b16 %v469
      %v551 = vunpack.c.l.b16 %v483
      %v552 = vunpack.c.l.b16 %v493
      %v553 = vunpack.c.l.b16 %v507
      %v554 = vunpack.c.l.b16 %v517
      %v555 = vpack.c.b16 %v536, %v535
      %v556 = vpack.c.b16 %v538, %v537
      %v557 = vpack.c.b16 %v540, %v539
      %v558 = vpack.c.b16 %v542, %v541
      %v559 = vpack.c.b16 %v544, %v543
      %v560 = vpack.c.b16 %v546, %v545
      %v561 = vpack.c.b16 %v548, %v547
      %v562 = vpack.c.b16 %v550, %v549
      %v563 = vpack.c.b16 %v552, %v551
      %v564 = vpack.c.b16 %v554, %v553
      %v591 = vunpack.c.l.b16 %v519
      %v592 = vunpack.c.l.b16 %v520
      %v593 = vunpack.c.l.b16 %v521
      %v594 = vunpack.c.l.b16 %v522
      %v595 = vunpack.c.l.b16 %v523
      %v596 = vunpack.c.l.b16 %v524
      %v597 = vunpack.c.l.b16 %v525
      %v598 = vunpack.c.l.b16 %v526
      %v599 = vunpack.c.l.b16 %v527
      %v600 = vunpack.c.l.b16 %v528
      %v601 = vunpack.c.l.b16 %v529
      %v602 = vunpack.c.l.b16 %v530
      %v603 = vunpack.c.l.b16 %v531
      %v604 = vunpack.c.l.b16 %v532
      %v605 = vunpack.c.l.b16 %v533
      %v606 = vunpack.c.l.b16 %v534
      %v607 = vpack.c.b16 %v592, %v591
      %v608 = vpack.c.b16 %v594, %v593
      %v609 = vpack.c.b16 %v596, %v595
      %v610 = vpack.c.b16 %v598, %v597
      %v611 = vpack.c.b16 %v600, %v599
      %v612 = vpack.c.b16 %v602, %v601
      %v613 = vpack.c.b16 %v604, %v603
      %v614 = vpack.c.b16 %v606, %v605
      %623 = vmatprep.subr.bf16.mxu0 0
      %624 = vmatpush1.bf16.msra.mxu0 %v607
      %625 = vmatprep.subr.bf16.mxu0 0
      %626 = vmatpush1.bf16.msra.mxu0 %v608
      %627 = vmatprep.subr.bf16.mxu0 0
      %628 = vmatpush1.bf16.msra.mxu0 %v609
      %629 = vmatprep.subr.bf16.mxu0 0
      %630 = vmatpush1.bf16.msra.mxu0 %v610
      %631 = vmatprep.subr.bf16.mxu0 0
      %632 = vmatpush1.bf16.msra.mxu0 %v611
      %633 = vmatprep.subr.bf16.mxu0 0
      %634 = vmatpush1.bf16.msra.mxu0 %v612
      %635 = vmatprep.subr.bf16.mxu0 0
      %636 = vmatpush1.bf16.msra.mxu0 %v613
      %637 = vmatprep.subr.bf16.mxu0 0
      %638 = vmatpush1.bf16.msra.mxu0 %v614
      %639 = vmatprep.subr.bf16.mxu0 0
      %640 = vmatpush1.bf16.msra.mxu0 0
      %641 = vmatprep.subr.bf16.mxu0 0
      %642 = vmatpush1.bf16.msra.mxu0 0
      %643 = vmatprep.subr.bf16.mxu0 0
      %644 = vmatpush1.bf16.msra.mxu0 0
      %645 = vmatprep.subr.bf16.mxu0 0
      %646 = vmatpush1.bf16.msra.mxu0 0
      %647 = vmatprep.subr.bf16.mxu0 0
      %648 = vmatpush1.bf16.msra.mxu0 0
      %649 = vmatprep.subr.bf16.mxu0 0
      %650 = vmatpush1.bf16.msra.mxu0 0
      %651 = vmatprep.subr.bf16.mxu0 0
      %652 = vmatpush1.bf16.msra.mxu0 0
      %653 = vmatprep.subr.bf16.mxu0 0
      %654 = vmatpush1.bf16.msra.mxu0 0
      %655 = vmatprep.mubr.bf16.mxu0 0
      %656 = vmatmul.mubr.bf16.gmra.mrb[0].mxu0 %v555
      %v657 = vpop.f32.mrb[0].mxu0
      %v658 = vadd.f32 0.0, %v657
      %v659 = vpop.f32.mrb[0].mxu0
      %v660 = vpop.f32.mrb[0].mxu0
      %v661 = vadd.f32 0.0, %v660
      %v662 = vpop.f32.mrb[0].mxu0
      %663 = vmatprep.mubr.bf16.mxu0 0
      %664 = vmatmul.mubr.bf16.gmra.mrb[0].mxu0 %v556
      %v665 = vpop.f32.mrb[0].mxu0
      %v666 = vadd.f32 0.0, %v665
      %v667 = vpop.f32.mrb[0].mxu0
      %v668 = vpop.f32.mrb[0].mxu0
      %v669 = vadd.f32 0.0, %v668
      %v670 = vpop.f32.mrb[0].mxu0
      %671 = vmatprep.mubr.bf16.mxu0 0
      %672 = vmatmul.mubr.bf16.gmra.mrb[0].mxu0 %v557
      %v673 = vpop.f32.mrb[0].mxu0
      %v674 = vadd.f32 0.0, %v673
      %v675 = vpop.f32.mrb[0].mxu0
      %v676 = vpop.f32.mrb[0].mxu0
      %v677 = vadd.f32 0.0, %v676
      %v678 = vpop.f32.mrb[0].mxu0
      %679 = vmatprep.mubr.bf16.mxu0 0
      %680 = vmatmul.mubr.bf16.gmra.mrb[0].mxu0 %v558
      %v681 = vpop.f32.mrb[0].mxu0
      %v682 = vadd.f32 0.0, %v681
      %v683 = vpop.f32.mrb[0].mxu0
      %v684 = vpop.f32.mrb[0].mxu0
      %v685 = vadd.f32 0.0, %v684
      %v686 = vpop.f32.mrb[0].mxu0
      %687 = vmatprep.mubr.bf16.mxu0 0
      %688 = vmatmul.mubr.bf16.gmra.mrb[0].mxu0 %v559
      %v689 = vpop.f32.mrb[0].mxu0
      %v690 = vadd.f32 0.0, %v689
      %v691 = vpop.f32.mrb[0].mxu0
      %v692 = vpop.f32.mrb[0].mxu0
      %v693 = vadd.f32 0.0, %v692
      %v694 = vpop.f32.mrb[0].mxu0
      %695 = vmatprep.mubr.bf16.mxu0 0
      %696 = vmatmul.mubr.bf16.gmra.mrb[0].mxu0 %v560
      %v697 = vpop.f32.mrb[0].mxu0
      %v698 = vadd.f32 0.0, %v697
      %v699 = vpop.f32.mrb[0].mxu0
      %v700 = vpop.f32.mrb[0].mxu0
      %v701 = vadd.f32 0.0, %v700
      %v702 = vpop.f32.mrb[0].mxu0
      %703 = vmatprep.mubr.bf16.mxu0 0
      %704 = vmatmul.mubr.bf16.gmra.mrb[0].mxu0 %v561
      %v705 = vpop.f32.mrb[0].mxu0
      %v706 = vadd.f32 0.0, %v705
      %v707 = vpop.f32.mrb[0].mxu0
      %v708 = vpop.f32.mrb[0].mxu0
      %v709 = vadd.f32 0.0, %v708
      %v710 = vpop.f32.mrb[0].mxu0
      %711 = vmatprep.mubr.bf16.mxu0 0
      %712 = vmatmul.mubr.bf16.gmra.mrb[0].mxu0 %v562
      %v713 = vpop.f32.mrb[0].mxu0
      %v714 = vadd.f32 0.0, %v713
      %v715 = vpop.f32.mrb[0].mxu0
      %v716 = vpop.f32.mrb[0].mxu0
      %v717 = vadd.f32 0.0, %v716
      %v718 = vpop.f32.mrb[0].mxu0
      %719 = vmatprep.mubr.bf16.mxu0 0
      %720 = vmatmul.mubr.bf16.gmra.mrb[0].mxu0 %v563
      %v721 = vpop.f32.mrb[0].mxu0
      %v722 = vadd.f32 0.0, %v721
      %v723 = vpop.f32.mrb[0].mxu0
      %v724 = vpop.f32.mrb[0].mxu0
      %v725 = vadd.f32 0.0, %v724
      %v726 = vpop.f32.mrb[0].mxu0
      %727 = vmatprep.mubr.bf16.mxu0 0
      %728 = vmatmul.mubr.bf16.gmra.mrb[0].mxu0 %v564
      %v729 = vpop.f32.mrb[0].mxu0
      %v730 = vadd.f32 0.0, %v729
      %v731 = vpop.f32.mrb[0].mxu0
      %v732 = vpop.f32.mrb[0].mxu0
      %v733 = vadd.f32 0.0, %v732
      %v734 = vpop.f32.mrb[0].mxu0
      %735 = vdwg.mxu0
      %v756 = vunpack.c.l.b16 %v229
      %v757 = vunpack.c.l.b16 %v230
      %v758 = vunpack.c.l.b16 %v231
      %v759 = vunpack.c.l.b16 %v232
      %v760 = vunpack.c.l.b16 %v233
      %v761 = vunpack.c.l.b16 %v234
      %v762 = vunpack.c.l.b16 %v235
      %v763 = vunpack.c.l.b16 %v236
      %v764 = vunpack.c.l.b16 %v237
      %v765 = vunpack.c.l.b16 %v238
      %v766 = vunpack.c.l.b16 %v239
      %v767 = vunpack.c.l.b16 %v240
      %v768 = vunpack.c.l.b16 %v241
      %v769 = vunpack.c.l.b16 %v242
      %v770 = vunpack.c.l.b16 %v243
      %v771 = vunpack.c.l.b16 %v244
      %v772 = vunpack.c.l.b16 %v245
      %v773 = vunpack.c.l.b16 %v246
      %v774 = vunpack.c.l.b16 %v247
      %v775 = vunpack.c.l.b16 %v248
      %v776 = vpack.c.b16 %v757, %v756
      %v777 = vpack.c.b16 %v759, %v758
      %v778 = vpack.c.b16 %v761, %v760
      %v779 = vpack.c.b16 %v763, %v762
      %v780 = vpack.c.b16 %v765, %v764
      %v781 = vpack.c.b16 %v767, %v766
      %v782 = vpack.c.b16 %v769, %v768
      %v783 = vpack.c.b16 %v771, %v770
      %v784 = vpack.c.b16 %v773, %v772
      %v785 = vpack.c.b16 %v775, %v774
      %v812 = vunpack.c.l.b16 %v249
      %v813 = vunpack.c.l.b16 %v250
      %v814 = vunpack.c.l.b16 %v251
      %v815 = vunpack.c.l.b16 %v252
      %v816 = vunpack.c.l.b16 %v253
      %v817 = vunpack.c.l.b16 %v254
      %v818 = vunpack.c.l.b16 %v255
      %v819 = vunpack.c.l.b16 %v256
      %v820 = vunpack.c.l.b16 %v257
      %v821 = vunpack.c.l.b16 %v258
      %v822 = vunpack.c.l.b16 %v259
      %v823 = vunpack.c.l.b16 %v260
      %v824 = vunpack.c.l.b16 %v261
      %v825 = vunpack.c.l.b16 %v262
      %v826 = vunpack.c.l.b16 %v263
      %v827 = vunpack.c.l.b16 %v264
      %v828 = vpack.c.b16 %v813, %v812
      %v829 = vpack.c.b16 %v815, %v814
      %v830 = vpack.c.b16 %v817, %v816
      %v831 = vpack.c.b16 %v819, %v818
      %v832 = vpack.c.b16 %v821, %v820
      %v833 = vpack.c.b16 %v823, %v822
      %v834 = vpack.c.b16 %v825, %v824
      %v835 = vpack.c.b16 %v827, %v826
      %844 = vmatprep.subr.bf16.mxu0 0
      %845 = vmatpush1.bf16.msra.mxu0 %v828
      %846 = vmatprep.subr.bf16.mxu0 0
      %847 = vmatpush1.bf16.msra.mxu0 %v829
      %848 = vmatprep.subr.bf16.mxu0 0
      %849 = vmatpush1.bf16.msra.mxu0 %v830
      %850 = vmatprep.subr.bf16.mxu0 0
      %851 = vmatpush1.bf16.msra.mxu0 %v831
      %852 = vmatprep.subr.bf16.mxu0 0
      %853 = vmatpush1.bf16.msra.mxu0 %v832
      %854 = vmatprep.subr.bf16.mxu0 0
      %855 = vmatpush1.bf16.msra.mxu0 %v833
      %856 = vmatprep.subr.bf16.mxu0 0
      %857 = vmatpush1.bf16.msra.mxu0 %v834
      %858 = vmatprep.subr.bf16.mxu0 0
      %859 = vmatpush1.bf16.msra.mxu0 %v835
      %860 = vmatprep.subr.bf16.mxu0 0
      %861 = vmatpush1.bf16.msra.mxu0 0
      %862 = vmatprep.subr.bf16.mxu0 0
      %863 = vmatpush1.bf16.msra.mxu0 0
      %864 = vmatprep.subr.bf16.mxu0 0
      %865 = vmatpush1.bf16.msra.mxu0 0
      %866 = vmatprep.subr.bf16.mxu0 0
      %867 = vmatpush1.bf16.msra.mxu0 0
      %868 = vmatprep.subr.bf16.mxu0 0
      %869 = vmatpush1.bf16.msra.mxu0 0
      %870 = vmatprep.subr.bf16.mxu0 0
      %871 = vmatpush1.bf16.msra.mxu0 0
      %872 = vmatprep.subr.bf16.mxu0 0
      %873 = vmatpush1.bf16.msra.mxu0 0
      %874 = vmatprep.subr.bf16.mxu0 0
      %875 = vmatpush1.bf16.msra.mxu0 0
      %876 = vmatprep.mubr.bf16.mxu0 0
      %877 = vmatmul.mubr.bf16.gmra.mrb[0].mxu0 %v776
      %v878 = vpop.f32.mrb[0].mxu0
      %v879 = vadd.f32 %v658, %v878
      %v880 = vpop.f32.mrb[0].mxu0
      %v881 = vpop.f32.mrb[0].mxu0
      %v882 = vadd.f32 %v661, %v881
      %v883 = vpop.f32.mrb[0].mxu0
      %884 = vmatprep.mubr.bf16.mxu0 0
      %885 = vmatmul.mubr.bf16.gmra.mrb[0].mxu0 %v777
      %v886 = vpop.f32.mrb[0].mxu0
      %v887 = vadd.f32 %v666, %v886
      %v888 = vpop.f32.mrb[0].mxu0
      %v889 = vpop.f32.mrb[0].mxu0
      %v890 = vadd.f32 %v669, %v889
      %v891 = vpop.f32.mrb[0].mxu0
      %892 = vmatprep.mubr.bf16.mxu0 0
      %893 = vmatmul.mubr.bf16.gmra.mrb[0].mxu0 %v778
      %v894 = vpop.f32.mrb[0].mxu0
      %v895 = vadd.f32 %v674, %v894
      %v896 = vpop.f32.mrb[0].mxu0
      %v897 = vpop.f32.mrb[0].mxu0
      %v898 = vadd.f32 %v677, %v897
      %v899 = vpop.f32.mrb[0].mxu0
      %900 = vmatprep.mubr.bf16.mxu0 0
      %901 = vmatmul.mubr.bf16.gmra.mrb[0].mxu0 %v779
      %v902 = vpop.f32.mrb[0].mxu0
      %v903 = vadd.f32 %v682, %v902
      %v904 = vpop.f32.mrb[0].mxu0
      %v905 = vpop.f32.mrb[0].mxu0
      %v906 = vadd.f32 %v685, %v905
      %v907 = vpop.f32.mrb[0].mxu0
      %908 = vmatprep.mubr.bf16.mxu0 0
      %909 = vmatmul.mubr.bf16.gmra.mrb[0].mxu0 %v780
      %v910 = vpop.f32.mrb[0].mxu0
      %v911 = vadd.f32 %v690, %v910
      %v912 = vpop.f32.mrb[0].mxu0
      %v913 = vpop.f32.mrb[0].mxu0
      %v914 = vadd.f32 %v693, %v913
      %v915 = vpop.f32.mrb[0].mxu0
      %916 = vmatprep.mubr.bf16.mxu0 0
      %917 = vmatmul.mubr.bf16.gmra.mrb[0].mxu0 %v781
      %v918 = vpop.f32.mrb[0].mxu0
      %v919 = vadd.f32 %v698, %v918
      %v920 = vpop.f32.mrb[0].mxu0
      %v921 = vpop.f32.mrb[0].mxu0
      %v922 = vadd.f32 %v701, %v921
      %v923 = vpop.f32.mrb[0].mxu0
      %924 = vmatprep.mubr.bf16.mxu0 0
      %925 = vmatmul.mubr.bf16.gmra.mrb[0].mxu0 %v782
      %v926 = vpop.f32.mrb[0].mxu0
      %v927 = vadd.f32 %v706, %v926
      %v928 = vpop.f32.mrb[0].mxu0
      %v929 = vpop.f32.mrb[0].mxu0
      %v930 = vadd.f32 %v709, %v929
      %v931 = vpop.f32.mrb[0].mxu0
      %932 = vmatprep.mubr.bf16.mxu0 0
      %933 = vmatmul.mubr.bf16.gmra.mrb[0].mxu0 %v783
      %v934 = vpop.f32.mrb[0].mxu0
      %v935 = vadd.f32 %v714, %v934
      %v936 = vpop.f32.mrb[0].mxu0
      %v937 = vpop.f32.mrb[0].mxu0
      %v938 = vadd.f32 %v717, %v937
      %v939 = vpop.f32.mrb[0].mxu0
      %940 = vmatprep.mubr.bf16.mxu0 0
      %941 = vmatmul.mubr.bf16.gmra.mrb[0].mxu0 %v784
      %v942 = vpop.f32.mrb[0].mxu0
      %v943 = vadd.f32 %v722, %v942
      %v944 = vpop.f32.mrb[0].mxu0
      %v945 = vpop.f32.mrb[0].mxu0
      %v946 = vadd.f32 %v725, %v945
      %v947 = vpop.f32.mrb[0].mxu0
      %948 = vmatprep.mubr.bf16.mxu0 0
      %949 = vmatmul.mubr.bf16.gmra.mrb[0].mxu0 %v785
      %v950 = vpop.f32.mrb[0].mxu0
      %v951 = vadd.f32 %v730, %v950
      %v952 = vpop.f32.mrb[0].mxu0
      %v953 = vpop.f32.mrb[0].mxu0
      %v954 = vadd.f32 %v733, %v953
      %v955 = vpop.f32.mrb[0].mxu0
      %956 = vdwg.mxu0
      %v957 = vld [vmem:[%s210] sm:$0xe]
      %v958 = vld [vmem:[%s210 + $0xc] sm:$0xe]
      %v959 = vld [vmem:[%s210 + $0x18] sm:$0xe]
      %v960 = vld [vmem:[%s210 + $0x24] sm:$0xe]
      %v961 = vld [vmem:[%s210 + $0x30] sm:$0xe]
      %v962 = vld [vmem:[%s210 + $0x3c] sm:$0xe]
      %v963 = vld [vmem:[%s210 + $0x48] sm:$0xe]
      %v964 = vld [vmem:[%s210 + $0x54] sm:$0xe]
      %v965 = vld [vmem:[%s210 + $0x60] sm:$0xe]
      %v966 = vld [vmem:[%s210 + $0x6c] sm:$0xe]
      %vm987 = vcmask 1042432
      %vm988 = vcmask 1046532
      %vm989 = vmor %vm987, %vm988
      %v990 = vrot.slane %v957, 5
      %v991 = vrot.slane %v990, 4
      %v992 = vrot.slane %v230, 5
      %v993 = vsel %vm989, %v991, %v992
      %v994 = vrot.slane %v992, 4
      %v995 = vrot.slane %v265, 5
      %v996 = vsel %vm989, %v994, %v995
      %v997 = vrot.slane %v958, 5
      %v998 = vrot.slane %v997, 4
      %v999 = vrot.slane %v232, 5
      %v1000 = vsel %vm989, %v998, %v999
      %v1001 = vrot.slane %v999, 4
      %v1002 = vrot.slane %v266, 5
      %v1003 = vsel %vm989, %v1001, %v1002
      %v1004 = vrot.slane %v959, 5
      %v1005 = vrot.slane %v1004, 4
      %v1006 = vrot.slane %v234, 5
      %v1007 = vsel %vm989, %v1005, %v1006
      %v1008 = vrot.slane %v1006, 4
      %v1009 = vrot.slane %v267, 5
      %v1010 = vsel %vm989, %v1008, %v1009
      %v1011 = vrot.slane %v960, 5
      %v1012 = vrot.slane %v1011, 4
      %v1013 = vrot.slane %v236, 5
      %v1014 = vsel %vm989, %v1012, %v1013
      %v1015 = vrot.slane %v1013, 4
      %v1016 = vrot.slane %v268, 5
      %v1017 = vsel %vm989, %v1015, %v1016
      %v1018 = vrot.slane %v961, 5
      %v1019 = vrot.slane %v1018, 4
      %v1020 = vrot.slane %v238, 5
      %v1021 = vsel %vm989, %v1019, %v1020
      %v1022 = vrot.slane %v1020, 4
      %v1023 = vrot.slane %v269, 5
      %v1024 = vsel %vm989, %v1022, %v1023
      %v1025 = vrot.slane %v962, 5
      %v1026 = vrot.slane %v1025, 4
      %v1027 = vrot.slane %v240, 5
      %v1028 = vsel %vm989, %v1026, %v1027
      %v1029 = vrot.slane %v1027, 4
      %v1030 = vrot.slane %v270, 5
      %v1031 = vsel %vm989, %v1029, %v1030
      %v1032 = vrot.slane %v963, 5
      %v1033 = vrot.slane %v1032, 4
      %v1034 = vrot.slane %v242, 5
      %v1035 = vsel %vm989, %v1033, %v1034
      %v1036 = vrot.slane %v1034, 4
      %v1037 = vrot.slane %v271, 5
      %v1038 = vsel %vm989, %v1036, %v1037
      %v1039 = vrot.slane %v964, 5
      %v1040 = vrot.slane %v1039, 4
      %v1041 = vrot.slane %v244, 5
      %v1042 = vsel %vm989, %v1040, %v1041
      %v1043 = vrot.slane %v1041, 4
      %v1044 = vrot.slane %v272, 5
      %v1045 = vsel %vm989, %v1043, %v1044
      %v1046 = vrot.slane %v965, 5
      %v1047 = vrot.slane %v1046, 4
      %v1048 = vrot.slane %v246, 5
      %v1049 = vsel %vm989, %v1047, %v1048
      %v1050 = vrot.slane %v1048, 4
      %v1051 = vrot.slane %v273, 5
      %v1052 = vsel %vm989, %v1050, %v1051
      %v1053 = vrot.slane %v966, 5
      %v1054 = vrot.slane %v1053, 4
      %v1055 = vrot.slane %v248, 5
      %v1056 = vsel %vm989, %v1054, %v1055
      %v1057 = vrot.slane %v1055, 4
      %v1058 = vrot.slane %v274, 5
      %v1059 = vsel %vm989, %v1057, %v1058
      %s1060 = scalar_lea.vmem %s1, 128
      %v1061 = vld [vmem:[%s1060] sm:$0xf]
      %v1062 = vld [vmem:[%s1060 + $0x4] sm:$0xf]
      %v1063 = vld [vmem:[%s1060 + $0x8] sm:$0xf]
      %v1064 = vld [vmem:[%s1060 + $0xc] sm:$0xf]
      %v1065 = vld [vmem:[%s1060 + $0x10] sm:$0xf]
      %v1066 = vld [vmem:[%s1060 + $0x14] sm:$0xf]
      %v1067 = vld [vmem:[%s1060 + $0x18] sm:$0xf]
      %v1068 = vld [vmem:[%s1060 + $0x1c] sm:$0xf]
      %v1069 = vld [vmem:[%s1060 + $0x20] sm:$0xf]
      %v1070 = vld [vmem:[%s1060 + $0x24] sm:$0xf]
      %v1071 = vld [vmem:[%s1060 + $0x28] sm:$0xf]
      %v1072 = vld [vmem:[%s1060 + $0x2c] sm:$0xf]
      %v1073 = vld [vmem:[%s1060 + $0x30] sm:$0xf]
      %v1074 = vld [vmem:[%s1060 + $0x34] sm:$0xf]
      %v1075 = vld [vmem:[%s1060 + $0x38] sm:$0xf]
      %v1076 = vld [vmem:[%s1060 + $0x3c] sm:$0xf]
      %v1077 = vunpack.c.l.b16 %v993
      %v1078 = vunpack.c.l.b16 %v996
      %v1079 = vunpack.c.l.b16 %v1000
      %v1080 = vunpack.c.l.b16 %v1003
      %v1081 = vunpack.c.l.b16 %v1007
      %v1082 = vunpack.c.l.b16 %v1010
      %v1083 = vunpack.c.l.b16 %v1014
      %v1084 = vunpack.c.l.b16 %v1017
      %v1085 = vunpack.c.l.b16 %v1021
      %v1086 = vunpack.c.l.b16 %v1024
      %v1087 = vunpack.c.l.b16 %v1028
      %v1088 = vunpack.c.l.b16 %v1031
      %v1089 = vunpack.c.l.b16 %v1035
      %v1090 = vunpack.c.l.b16 %v1038
      %v1091 = vunpack.c.l.b16 %v1042
      %v1092 = vunpack.c.l.b16 %v1045
      %v1093 = vunpack.c.l.b16 %v1049
      %v1094 = vunpack.c.l.b16 %v1052
      %v1095 = vunpack.c.l.b16 %v1056
      %v1096 = vunpack.c.l.b16 %v1059
      %v1097 = vpack.c.b16 %v1078, %v1077
      %v1098 = vpack.c.b16 %v1080, %v1079
      %v1099 = vpack.c.b16 %v1082, %v1081
      %v1100 = vpack.c.b16 %v1084, %v1083
      %v1101 = vpack.c.b16 %v1086, %v1085
      %v1102 = vpack.c.b16 %v1088, %v1087
      %v1103 = vpack.c.b16 %v1090, %v1089
      %v1104 = vpack.c.b16 %v1092, %v1091
      %v1105 = vpack.c.b16 %v1094, %v1093
      %v1106 = vpack.c.b16 %v1096, %v1095
      %v1133 = vunpack.c.l.b16 %v1061
      %v1134 = vunpack.c.l.b16 %v1062
      %v1135 = vunpack.c.l.b16 %v1063
      %v1136 = vunpack.c.l.b16 %v1064
      %v1137 = vunpack.c.l.b16 %v1065
      %v1138 = vunpack.c.l.b16 %v1066
      %v1139 = vunpack.c.l.b16 %v1067
      %v1140 = vunpack.c.l.b16 %v1068
      %v1141 = vunpack.c.l.b16 %v1069
      %v1142 = vunpack.c.l.b16 %v1070
      %v1143 = vunpack.c.l.b16 %v1071
      %v1144 = vunpack.c.l.b16 %v1072
      %v1145 = vunpack.c.l.b16 %v1073
      %v1146 = vunpack.c.l.b16 %v1074
      %v1147 = vunpack.c.l.b16 %v1075
      %v1148 = vunpack.c.l.b16 %v1076
      %v1149 = vpack.c.b16 %v1134, %v1133
      %v1150 = vpack.c.b16 %v1136, %v1135
      %v1151 = vpack.c.b16 %v1138, %v1137
      %v1152 = vpack.c.b16 %v1140, %v1139
      %v1153 = vpack.c.b16 %v1142, %v1141
      %v1154 = vpack.c.b16 %v1144, %v1143
      %v1155 = vpack.c.b16 %v1146, %v1145
      %v1156 = vpack.c.b16 %v1148, %v1147
      %1165 = vmatprep.subr.bf16.mxu0 0
      %1166 = vmatpush1.bf16.msra.mxu0 %v1149
      %1167 = vmatprep.subr.bf16.mxu0 0
      %1168 = vmatpush1.bf16.msra.mxu0 %v1150
      %1169 = vmatprep.subr.bf16.mxu0 0
      %1170 = vmatpush1.bf16.msra.mxu0 %v1151
      %1171 = vmatprep.subr.bf16.mxu0 0
      %1172 = vmatpush1.bf16.msra.mxu0 %v1152
      %1173 = vmatprep.subr.bf16.mxu0 0
      %1174 = vmatpush1.bf16.msra.mxu0 %v1153
      %1175 = vmatprep.subr.bf16.mxu0 0
      %1176 = vmatpush1.bf16.msra.mxu0 %v1154
      %1177 = vmatprep.subr.bf16.mxu0 0
      %1178 = vmatpush1.bf16.msra.mxu0 %v1155
      %1179 = vmatprep.subr.bf16.mxu0 0
      %1180 = vmatpush1.bf16.msra.mxu0 %v1156
      %1181 = vmatprep.subr.bf16.mxu0 0
      %1182 = vmatpush1.bf16.msra.mxu0 0
      %1183 = vmatprep.subr.bf16.mxu0 0
      %1184 = vmatpush1.bf16.msra.mxu0 0
      %1185 = vmatprep.subr.bf16.mxu0 0
      %1186 = vmatpush1.bf16.msra.mxu0 0
      %1187 = vmatprep.subr.bf16.mxu0 0
      %1188 = vmatpush1.bf16.msra.mxu0 0
      %1189 = vmatprep.subr.bf16.mxu0 0
      %1190 = vmatpush1.bf16.msra.mxu0 0
      %1191 = vmatprep.subr.bf16.mxu0 0
      %1192 = vmatpush1.bf16.msra.mxu0 0
      %1193 = vmatprep.subr.bf16.mxu0 0
      %1194 = vmatpush1.bf16.msra.mxu0 0
      %1195 = vmatprep.subr.bf16.mxu0 0
      %1196 = vmatpush1.bf16.msra.mxu0 0
      %1197 = vmatprep.mubr.bf16.mxu0 0
      %1198 = vmatmul.mubr.bf16.gmra.mrb[0].mxu0 %v1097
      %v1199 = vpop.f32.mrb[0].mxu0
      %v1200 = vadd.f32 0.0, %v1199
      %v1201 = vpop.f32.mrb[0].mxu0
      %v1202 = vpop.f32.mrb[0].mxu0
      %v1203 = vadd.f32 0.0, %v1202
      %v1204 = vpop.f32.mrb[0].mxu0
      %1205 = vmatprep.mubr.bf16.mxu0 0
      %1206 = vmatmul.mubr.bf16.gmra.mrb[0].mxu0 %v1098
      %v1207 = vpop.f32.mrb[0].mxu0
      %v1208 = vadd.f32 0.0, %v1207
      %v1209 = vpop.f32.mrb[0].mxu0
      %v1210 = vpop.f32.mrb[0].mxu0
      %v1211 = vadd.f32 0.0, %v1210
      %v1212 = vpop.f32.mrb[0].mxu0
      %1213 = vmatprep.mubr.bf16.mxu0 0
      %1214 = vmatmul.mubr.bf16.gmra.mrb[0].mxu0 %v1099
      %v1215 = vpop.f32.mrb[0].mxu0
      %v1216 = vadd.f32 0.0, %v1215
      %v1217 = vpop.f32.mrb[0].mxu0
      %v1218 = vpop.f32.mrb[0].mxu0
      %v1219 = vadd.f32 0.0, %v1218
      %v1220 = vpop.f32.mrb[0].mxu0
      %1221 = vmatprep.mubr.bf16.mxu0 0
      %1222 = vmatmul.mubr.bf16.gmra.mrb[0].mxu0 %v1100
      %v1223 = vpop.f32.mrb[0].mxu0
      %v1224 = vadd.f32 0.0, %v1223
      %v1225 = vpop.f32.mrb[0].mxu0
      %v1226 = vpop.f32.mrb[0].mxu0
      %v1227 = vadd.f32 0.0, %v1226
      %v1228 = vpop.f32.mrb[0].mxu0
      %1229 = vmatprep.mubr.bf16.mxu0 0
      %1230 = vmatmul.mubr.bf16.gmra.mrb[0].mxu0 %v1101
      %v1231 = vpop.f32.mrb[0].mxu0
      %v1232 = vadd.f32 0.0, %v1231
      %v1233 = vpop.f32.mrb[0].mxu0
      %v1234 = vpop.f32.mrb[0].mxu0
      %v1235 = vadd.f32 0.0, %v1234
      %v1236 = vpop.f32.mrb[0].mxu0
      %1237 = vmatprep.mubr.bf16.mxu0 0
      %1238 = vmatmul.mubr.bf16.gmra.mrb[0].mxu0 %v1102
      %v1239 = vpop.f32.mrb[0].mxu0
      %v1240 = vadd.f32 0.0, %v1239
      %v1241 = vpop.f32.mrb[0].mxu0
      %v1242 = vpop.f32.mrb[0].mxu0
      %v1243 = vadd.f32 0.0, %v1242
      %v1244 = vpop.f32.mrb[0].mxu0
      %1245 = vmatprep.mubr.bf16.mxu0 0
      %1246 = vmatmul.mubr.bf16.gmra.mrb[0].mxu0 %v1103
      %v1247 = vpop.f32.mrb[0].mxu0
      %v1248 = vadd.f32 0.0, %v1247
      %v1249 = vpop.f32.mrb[0].mxu0
      %v1250 = vpop.f32.mrb[0].mxu0
      %v1251 = vadd.f32 0.0, %v1250
      %v1252 = vpop.f32.mrb[0].mxu0
      %1253 = vmatprep.mubr.bf16.mxu0 0
      %1254 = vmatmul.mubr.bf16.gmra.mrb[0].mxu0 %v1104
      %v1255 = vpop.f32.mrb[0].mxu0
      %v1256 = vadd.f32 0.0, %v1255
      %v1257 = vpop.f32.mrb[0].mxu0
      %v1258 = vpop.f32.mrb[0].mxu0
      %v1259 = vadd.f32 0.0, %v1258
      %v1260 = vpop.f32.mrb[0].mxu0
      %1261 = vmatprep.mubr.bf16.mxu0 0
      %1262 = vmatmul.mubr.bf16.gmra.mrb[0].mxu0 %v1105
      %v1263 = vpop.f32.mrb[0].mxu0
      %v1264 = vadd.f32 0.0, %v1263
      %v1265 = vpop.f32.mrb[0].mxu0
      %v1266 = vpop.f32.mrb[0].mxu0
      %v1267 = vadd.f32 0.0, %v1266
      %v1268 = vpop.f32.mrb[0].mxu0
      %1269 = vmatprep.mubr.bf16.mxu0 0
      %1270 = vmatmul.mubr.bf16.gmra.mrb[0].mxu0 %v1106
      %v1271 = vpop.f32.mrb[0].mxu0
      %v1272 = vadd.f32 0.0, %v1271
      %v1273 = vpop.f32.mrb[0].mxu0
      %v1274 = vpop.f32.mrb[0].mxu0
      %v1275 = vadd.f32 0.0, %v1274
      %v1276 = vpop.f32.mrb[0].mxu0
      %1277 = vdwg.mxu0
      %v1278 = vadd.f32 %v879, %v1200
      %v1279 = vadd.f32 %v882, %v1203
      %v1280 = vadd.f32 %v887, %v1208
      %v1281 = vadd.f32 %v890, %v1211
      %v1282 = vadd.f32 %v895, %v1216
      %v1283 = vadd.f32 %v898, %v1219
      %v1284 = vadd.f32 %v903, %v1224
      %v1285 = vadd.f32 %v906, %v1227
      %v1286 = vadd.f32 %v911, %v1232
      %v1287 = vadd.f32 %v914, %v1235
      %v1288 = vadd.f32 %v919, %v1240
      %v1289 = vadd.f32 %v922, %v1243
      %v1290 = vadd.f32 %v927, %v1248
      %v1291 = vadd.f32 %v930, %v1251
      %v1292 = vadd.f32 %v935, %v1256
      %v1293 = vadd.f32 %v938, %v1259
      %v1294 = vadd.f32 %v943, %v1264
      %v1295 = vadd.f32 %v946, %v1267
      %v1296 = vadd.f32 %v951, %v1272
      %v1297 = vadd.f32 %v954, %v1275
      %s1298 = scalar_lea.vmem %s210, 12
      %v1299 = vld [vmem:[%s1298] sm:$0xf]
      %v1300 = vld [vmem:[%s1298 + $0x4] sm:$0xf]
      %v1301 = vld [vmem:[%s1298 + $0xc] sm:$0xf]
      %v1302 = vld [vmem:[%s1298 + $0x10] sm:$0xf]
      %v1303 = vld [vmem:[%s1298 + $0x18] sm:$0xf]
      %v1304 = vld [vmem:[%s1298 + $0x1c] sm:$0xf]
      %v1305 = vld [vmem:[%s1298 + $0x24] sm:$0xf]
      %v1306 = vld [vmem:[%s1298 + $0x28] sm:$0xf]
      %v1307 = vld [vmem:[%s1298 + $0x30] sm:$0xf]
      %v1308 = vld [vmem:[%s1298 + $0x34] sm:$0xf]
      %v1309 = vld [vmem:[%s1298 + $0x3c] sm:$0xf]
      %v1310 = vld [vmem:[%s1298 + $0x40] sm:$0xf]
      %v1311 = vld [vmem:[%s1298 + $0x48] sm:$0xf]
      %v1312 = vld [vmem:[%s1298 + $0x4c] sm:$0xf]
      %v1313 = vld [vmem:[%s1298 + $0x54] sm:$0xf]
      %v1314 = vld [vmem:[%s1298 + $0x58] sm:$0xf]
      %v1315 = vld [vmem:[%s1298 + $0x60] sm:$0xf]
      %v1316 = vld [vmem:[%s1298 + $0x64] sm:$0xf]
      %v1317 = vld [vmem:[%s1298 + $0x6c] sm:$0xf]
      %v1318 = vld [vmem:[%s1298 + $0x70] sm:$0xf]
      %s1319 = scalar_lea.vmem %s1, 192
      %v1320 = vld [vmem:[%s1319] sm:$0xf]
      %v1321 = vld [vmem:[%s1319 + $0x4] sm:$0xf]
      %v1322 = vld [vmem:[%s1319 + $0x8] sm:$0xf]
      %v1323 = vld [vmem:[%s1319 + $0xc] sm:$0xf]
      %v1324 = vld [vmem:[%s1319 + $0x10] sm:$0xf]
      %v1325 = vld [vmem:[%s1319 + $0x14] sm:$0xf]
      %v1326 = vld [vmem:[%s1319 + $0x18] sm:$0xf]
      %v1327 = vld [vmem:[%s1319 + $0x1c] sm:$0xf]
      %v1328 = vld [vmem:[%s1319 + $0x20] sm:$0xf]
      %v1329 = vld [vmem:[%s1319 + $0x24] sm:$0xf]
      %v1330 = vld [vmem:[%s1319 + $0x28] sm:$0xf]
      %v1331 = vld [vmem:[%s1319 + $0x2c] sm:$0xf]
      %v1332 = vld [vmem:[%s1319 + $0x30] sm:$0xf]
      %v1333 = vld [vmem:[%s1319 + $0x34] sm:$0xf]
      %v1334 = vld [vmem:[%s1319 + $0x38] sm:$0xf]
      %v1335 = vld [vmem:[%s1319 + $0x3c] sm:$0xf]
      %v1356 = vunpack.c.l.b16 %v1299
      %v1357 = vunpack.c.l.b16 %v1300
      %v1358 = vunpack.c.l.b16 %v1301
      %v1359 = vunpack.c.l.b16 %v1302
      %v1360 = vunpack.c.l.b16 %v1303
      %v1361 = vunpack.c.l.b16 %v1304
      %v1362 = vunpack.c.l.b16 %v1305
      %v1363 = vunpack.c.l.b16 %v1306
      %v1364 = vunpack.c.l.b16 %v1307
      %v1365 = vunpack.c.l.b16 %v1308
      %v1366 = vunpack.c.l.b16 %v1309
      %v1367 = vunpack.c.l.b16 %v1310
      %v1368 = vunpack.c.l.b16 %v1311
      %v1369 = vunpack.c.l.b16 %v1312
      %v1370 = vunpack.c.l.b16 %v1313
      %v1371 = vunpack.c.l.b16 %v1314
      %v1372 = vunpack.c.l.b16 %v1315
      %v1373 = vunpack.c.l.b16 %v1316
      %v1374 = vunpack.c.l.b16 %v1317
      %v1375 = vunpack.c.l.b16 %v1318
      %v1376 = vpack.c.b16 %v1357, %v1356
      %v1377 = vpack.c.b16 %v1359, %v1358
      %v1378 = vpack.c.b16 %v1361, %v1360
      %v1379 = vpack.c.b16 %v1363, %v1362
      %v1380 = vpack.c.b16 %v1365, %v1364
      %v1381 = vpack.c.b16 %v1367, %v1366
      %v1382 = vpack.c.b16 %v1369, %v1368
      %v1383 = vpack.c.b16 %v1371, %v1370
      %v1384 = vpack.c.b16 %v1373, %v1372
      %v1385 = vpack.c.b16 %v1375, %v1374
      %v1412 = vunpack.c.l.b16 %v1320
      %v1413 = vunpack.c.l.b16 %v1321
      %v1414 = vunpack.c.l.b16 %v1322
      %v1415 = vunpack.c.l.b16 %v1323
      %v1416 = vunpack.c.l.b16 %v1324
      %v1417 = vunpack.c.l.b16 %v1325
      %v1418 = vunpack.c.l.b16 %v1326
      %v1419 = vunpack.c.l.b16 %v1327
      %v1420 = vunpack.c.l.b16 %v1328
      %v1421 = vunpack.c.l.b16 %v1329
      %v1422 = vunpack.c.l.b16 %v1330
      %v1423 = vunpack.c.l.b16 %v1331
      %v1424 = vunpack.c.l.b16 %v1332
      %v1425 = vunpack.c.l.b16 %v1333
      %v1426 = vunpack.c.l.b16 %v1334
      %v1427 = vunpack.c.l.b16 %v1335
      %v1428 = vpack.c.b16 %v1413, %v1412
      %v1429 = vpack.c.b16 %v1415, %v1414
      %v1430 = vpack.c.b16 %v1417, %v1416
      %v1431 = vpack.c.b16 %v1419, %v1418
      %v1432 = vpack.c.b16 %v1421, %v1420
      %v1433 = vpack.c.b16 %v1423, %v1422
      %v1434 = vpack.c.b16 %v1425, %v1424
      %v1435 = vpack.c.b16 %v1427, %v1426
      %1444 = vmatprep.subr.bf16.mxu0 0
      %1445 = vmatpush1.bf16.msra.mxu0 %v1428
      %1446 = vmatprep.subr.bf16.mxu0 0
      %1447 = vmatpush1.bf16.msra.mxu0 %v1429
      %1448 = vmatprep.subr.bf16.mxu0 0
      %1449 = vmatpush1.bf16.msra.mxu0 %v1430
      %1450 = vmatprep.subr.bf16.mxu0 0
      %1451 = vmatpush1.bf16.msra.mxu0 %v1431
      %1452 = vmatprep.subr.bf16.mxu0 0
      %1453 = vmatpush1.bf16.msra.mxu0 %v1432
      %1454 = vmatprep.subr.bf16.mxu0 0
      %1455 = vmatpush1.bf16.msra.mxu0 %v1433
      %1456 = vmatprep.subr.bf16.mxu0 0
      %1457 = vmatpush1.bf16.msra.mxu0 %v1434
      %1458 = vmatprep.subr.bf16.mxu0 0
      %1459 = vmatpush1.bf16.msra.mxu0 %v1435
      %1460 = vmatprep.subr.bf16.mxu0 0
      %1461 = vmatpush1.bf16.msra.mxu0 0
      %1462 = vmatprep.subr.bf16.mxu0 0
      %1463 = vmatpush1.bf16.msra.mxu0 0
      %1464 = vmatprep.subr.bf16.mxu0 0
      %1465 = vmatpush1.bf16.msra.mxu0 0
      %1466 = vmatprep.subr.bf16.mxu0 0
      %1467 = vmatpush1.bf16.msra.mxu0 0
      %1468 = vmatprep.subr.bf16.mxu0 0
      %1469 = vmatpush1.bf16.msra.mxu0 0
      %1470 = vmatprep.subr.bf16.mxu0 0
      %1471 = vmatpush1.bf16.msra.mxu0 0
      %1472 = vmatprep.subr.bf16.mxu0 0
      %1473 = vmatpush1.bf16.msra.mxu0 0
      %1474 = vmatprep.subr.bf16.mxu0 0
      %1475 = vmatpush1.bf16.msra.mxu0 0
      %1476 = vmatprep.mubr.bf16.mxu0 0
      %1477 = vmatmul.mubr.bf16.gmra.mrb[0].mxu0 %v1376
      %v1478 = vpop.f32.mrb[0].mxu0
      %v1479 = vadd.f32 0.0, %v1478
      %v1480 = vpop.f32.mrb[0].mxu0
      %v1481 = vpop.f32.mrb[0].mxu0
      %v1482 = vadd.f32 0.0, %v1481
      %v1483 = vpop.f32.mrb[0].mxu0
      %1484 = vmatprep.mubr.bf16.mxu0 0
      %1485 = vmatmul.mubr.bf16.gmra.mrb[0].mxu0 %v1377
      %v1486 = vpop.f32.mrb[0].mxu0
      %v1487 = vadd.f32 0.0, %v1486
      %v1488 = vpop.f32.mrb[0].mxu0
      %v1489 = vpop.f32.mrb[0].mxu0
      %v1490 = vadd.f32 0.0, %v1489
      %v1491 = vpop.f32.mrb[0].mxu0
      %1492 = vmatprep.mubr.bf16.mxu0 0
      %1493 = vmatmul.mubr.bf16.gmra.mrb[0].mxu0 %v1378
      %v1494 = vpop.f32.mrb[0].mxu0
      %v1495 = vadd.f32 0.0, %v1494
      %v1496 = vpop.f32.mrb[0].mxu0
      %v1497 = vpop.f32.mrb[0].mxu0
      %v1498 = vadd.f32 0.0, %v1497
      %v1499 = vpop.f32.mrb[0].mxu0
      %1500 = vmatprep.mubr.bf16.mxu0 0
      %1501 = vmatmul.mubr.bf16.gmra.mrb[0].mxu0 %v1379
      %v1502 = vpop.f32.mrb[0].mxu0
      %v1503 = vadd.f32 0.0, %v1502
      %v1504 = vpop.f32.mrb[0].mxu0
      %v1505 = vpop.f32.mrb[0].mxu0
      %v1506 = vadd.f32 0.0, %v1505
      %v1507 = vpop.f32.mrb[0].mxu0
      %1508 = vmatprep.mubr.bf16.mxu0 0
      %1509 = vmatmul.mubr.bf16.gmra.mrb[0].mxu0 %v1380
      %v1510 = vpop.f32.mrb[0].mxu0
      %v1511 = vadd.f32 0.0, %v1510
      %v1512 = vpop.f32.mrb[0].mxu0
      %v1513 = vpop.f32.mrb[0].mxu0
      %v1514 = vadd.f32 0.0, %v1513
      %v1515 = vpop.f32.mrb[0].mxu0
      %1516 = vmatprep.mubr.bf16.mxu0 0
      %1517 = vmatmul.mubr.bf16.gmra.mrb[0].mxu0 %v1381
      %v1518 = vpop.f32.mrb[0].mxu0
      %v1519 = vadd.f32 0.0, %v1518
      %v1520 = vpop.f32.mrb[0].mxu0
      %v1521 = vpop.f32.mrb[0].mxu0
      %v1522 = vadd.f32 0.0, %v1521
      %v1523 = vpop.f32.mrb[0].mxu0
      %1524 = vmatprep.mubr.bf16.mxu0 0
      %1525 = vmatmul.mubr.bf16.gmra.mrb[0].mxu0 %v1382
      %v1526 = vpop.f32.mrb[0].mxu0
      %v1527 = vadd.f32 0.0, %v1526
      %v1528 = vpop.f32.mrb[0].mxu0
      %v1529 = vpop.f32.mrb[0].mxu0
      %v1530 = vadd.f32 0.0, %v1529
      %v1531 = vpop.f32.mrb[0].mxu0
      %1532 = vmatprep.mubr.bf16.mxu0 0
      %1533 = vmatmul.mubr.bf16.gmra.mrb[0].mxu0 %v1383
      %v1534 = vpop.f32.mrb[0].mxu0
      %v1535 = vadd.f32 0.0, %v1534
      %v1536 = vpop.f32.mrb[0].mxu0
      %v1537 = vpop.f32.mrb[0].mxu0
      %v1538 = vadd.f32 0.0, %v1537
      %v1539 = vpop.f32.mrb[0].mxu0
      %1540 = vmatprep.mubr.bf16.mxu0 0
      %1541 = vmatmul.mubr.bf16.gmra.mrb[0].mxu0 %v1384
      %v1542 = vpop.f32.mrb[0].mxu0
      %v1543 = vadd.f32 0.0, %v1542
      %v1544 = vpop.f32.mrb[0].mxu0
      %v1545 = vpop.f32.mrb[0].mxu0
      %v1546 = vadd.f32 0.0, %v1545
      %v1547 = vpop.f32.mrb[0].mxu0
      %1548 = vmatprep.mubr.bf16.mxu0 0
      %1549 = vmatmul.mubr.bf16.gmra.mrb[0].mxu0 %v1385
      %v1550 = vpop.f32.mrb[0].mxu0
      %v1551 = vadd.f32 0.0, %v1550
      %v1552 = vpop.f32.mrb[0].mxu0
      %v1553 = vpop.f32.mrb[0].mxu0
      %v1554 = vadd.f32 0.0, %v1553
      %v1555 = vpop.f32.mrb[0].mxu0
      %1556 = vdwg.mxu0
      %v1557 = vadd.f32 %v1278, %v1479
      %v1558 = vadd.f32 %v1279, %v1482
      %v1559 = vadd.f32 %v1280, %v1487
      %v1560 = vadd.f32 %v1281, %v1490
      %v1561 = vadd.f32 %v1282, %v1495
      %v1562 = vadd.f32 %v1283, %v1498
      %v1563 = vadd.f32 %v1284, %v1503
      %v1564 = vadd.f32 %v1285, %v1506
      %v1565 = vadd.f32 %v1286, %v1511
      %v1566 = vadd.f32 %v1287, %v1514
      %v1567 = vadd.f32 %v1288, %v1519
      %v1568 = vadd.f32 %v1289, %v1522
      %v1569 = vadd.f32 %v1290, %v1527
      %v1570 = vadd.f32 %v1291, %v1530
      %v1571 = vadd.f32 %v1292, %v1535
      %v1572 = vadd.f32 %v1293, %v1538
      %v1573 = vadd.f32 %v1294, %v1543
      %v1574 = vadd.f32 %v1295, %v1546
      %v1575 = vadd.f32 %v1296, %v1551
      %v1576 = vadd.f32 %v1297, %v1554
      %v1577 = vld [vmem:[%s1298] sm:$0xf]
      %v1578 = vld [vmem:[%s1298 + $0x4] sm:$0xf]
      %v1579 = vld [vmem:[%s1298 + $0x8] sm:$0x1]
      %v1580 = vld [vmem:[%s1298 + $0xc] sm:$0xf]
      %v1581 = vld [vmem:[%s1298 + $0x10] sm:$0xf]
      %v1582 = vld [vmem:[%s1298 + $0x14] sm:$0x1]
      %v1583 = vld [vmem:[%s1298 + $0x18] sm:$0xf]
      %v1584 = vld [vmem:[%s1298 + $0x1c] sm:$0xf]
      %v1585 = vld [vmem:[%s1298 + $0x20] sm:$0x1]
      %v1586 = vld [vmem:[%s1298 + $0x24] sm:$0xf]
      %v1587 = vld [vmem:[%s1298 + $0x28] sm:$0xf]
      %v1588 = vld [vmem:[%s1298 + $0x2c] sm:$0x1]
      %v1589 = vld [vmem:[%s1298 + $0x30] sm:$0xf]
      %v1590 = vld [vmem:[%s1298 + $0x34] sm:$0xf]
      %v1591 = vld [vmem:[%s1298 + $0x38] sm:$0x1]
      %v1592 = vld [vmem:[%s1298 + $0x3c] sm:$0xf]
      %v1593 = vld [vmem:[%s1298 + $0x40] sm:$0xf]
      %v1594 = vld [vmem:[%s1298 + $0x44] sm:$0x1]
      %v1595 = vld [vmem:[%s1298 + $0x48] sm:$0xf]
      %v1596 = vld [vmem:[%s1298 + $0x4c] sm:$0xf]
      %v1597 = vld [vmem:[%s1298 + $0x50] sm:$0x1]
      %v1598 = vld [vmem:[%s1298 + $0x54] sm:$0xf]
      %v1599 = vld [vmem:[%s1298 + $0x58] sm:$0xf]
      %v1600 = vld [vmem:[%s1298 + $0x5c] sm:$0x1]
      %v1601 = vld [vmem:[%s1298 + $0x60] sm:$0xf]
      %v1602 = vld [vmem:[%s1298 + $0x64] sm:$0xf]
      %v1603 = vld [vmem:[%s1298 + $0x68] sm:$0x1]
      %v1604 = vld [vmem:[%s1298 + $0x6c] sm:$0xf]
      %v1605 = vld [vmem:[%s1298 + $0x70] sm:$0xf]
      %v1606 = vld [vmem:[%s1298 + $0x74] sm:$0x1]
      %v1608 = vshrl.u32 %v1577, 16
      %v1610 = vrot.slane %v1608, 4
      %v1611 = vshll.u32 %v1577, 16
      %v1613 = vrot.slane %v1611, 5
      %v1614 = vor.u32 %v1610, %v1613
      %v1615 = vrot.slane %v1614, 4
      %v1617 = vshll.u32 %v1578, 16
      %v1619 = vrot.slane %v1617, 5
      %v1620 = vsel %vm277, %v1615, %v1619
      %v1621 = vshrl.u32 %v1578, 16
      %v1623 = vrot.slane %v1621, 4
      %v1624 = vor.u32 %v1623, %v1619
      %v1625 = vrot.slane %v1624, 4
      %v1627 = vshll.u32 %v1579, 16
      %v1629 = vrot.slane %v1627, 5
      %v1630 = vsel %vm277, %v1625, %v1629
      %v1632 = vshrl.u32 %v1580, 16
      %v1634 = vrot.slane %v1632, 4
      %v1635 = vshll.u32 %v1580, 16
      %v1637 = vrot.slane %v1635, 5
      %v1638 = vor.u32 %v1634, %v1637
      %v1639 = vrot.slane %v1638, 4
      %v1641 = vshll.u32 %v1581, 16
      %v1643 = vrot.slane %v1641, 5
      %v1644 = vsel %vm277, %v1639, %v1643
      %v1645 = vshrl.u32 %v1581, 16
      %v1647 = vrot.slane %v1645, 4
      %v1648 = vor.u32 %v1647, %v1643
      %v1649 = vrot.slane %v1648, 4
      %v1651 = vshll.u32 %v1582, 16
      %v1653 = vrot.slane %v1651, 5
      %v1654 = vsel %vm277, %v1649, %v1653
      %v1656 = vshrl.u32 %v1583, 16
      %v1658 = vrot.slane %v1656, 4
      %v1659 = vshll.u32 %v1583, 16
      %v1661 = vrot.slane %v1659, 5
      %v1662 = vor.u32 %v1658, %v1661
      %v1663 = vrot.slane %v1662, 4
      %v1665 = vshll.u32 %v1584, 16
      %v1667 = vrot.slane %v1665, 5
      %v1668 = vsel %vm277, %v1663, %v1667
      %v1669 = vshrl.u32 %v1584, 16
      %v1671 = vrot.slane %v1669, 4
      %v1672 = vor.u32 %v1671, %v1667
      %v1673 = vrot.slane %v1672, 4
      %v1675 = vshll.u32 %v1585, 16
      %v1677 = vrot.slane %v1675, 5
      %v1678 = vsel %vm277, %v1673, %v1677
      %v1680 = vshrl.u32 %v1586, 16
      %v1682 = vrot.slane %v1680, 4
      %v1683 = vshll.u32 %v1586, 16
      %v1685 = vrot.slane %v1683, 5
      %v1686 = vor.u32 %v1682, %v1685
      %v1687 = vrot.slane %v1686, 4
      %v1689 = vshll.u32 %v1587, 16
      %v1691 = vrot.slane %v1689, 5
      %v1692 = vsel %vm277, %v1687, %v1691
      %v1693 = vshrl.u32 %v1587, 16
      %v1695 = vrot.slane %v1693, 4
      %v1696 = vor.u32 %v1695, %v1691
      %v1697 = vrot.slane %v1696, 4
      %v1699 = vshll.u32 %v1588, 16
      %v1701 = vrot.slane %v1699, 5
      %v1702 = vsel %vm277, %v1697, %v1701
      %v1704 = vshrl.u32 %v1589, 16
      %v1706 = vrot.slane %v1704, 4
      %v1707 = vshll.u32 %v1589, 16
      %v1709 = vrot.slane %v1707, 5
      %v1710 = vor.u32 %v1706, %v1709
      %v1711 = vrot.slane %v1710, 4
      %v1713 = vshll.u32 %v1590, 16
      %v1715 = vrot.slane %v1713, 5
      %v1716 = vsel %vm277, %v1711, %v1715
      %v1717 = vshrl.u32 %v1590, 16
      %v1719 = vrot.slane %v1717, 4
      %v1720 = vor.u32 %v1719, %v1715
      %v1721 = vrot.slane %v1720, 4
      %v1723 = vshll.u32 %v1591, 16
      %v1725 = vrot.slane %v1723, 5
      %v1726 = vsel %vm277, %v1721, %v1725
      %v1728 = vshrl.u32 %v1592, 16
      %v1730 = vrot.slane %v1728, 4
      %v1731 = vshll.u32 %v1592, 16
      %v1733 = vrot.slane %v1731, 5
      %v1734 = vor.u32 %v1730, %v1733
      %v1735 = vrot.slane %v1734, 4
      %v1737 = vshll.u32 %v1593, 16
      %v1739 = vrot.slane %v1737, 5
      %v1740 = vsel %vm277, %v1735, %v1739
      %v1741 = vshrl.u32 %v1593, 16
      %v1743 = vrot.slane %v1741, 4
      %v1744 = vor.u32 %v1743, %v1739
      %v1745 = vrot.slane %v1744, 4
      %v1747 = vshll.u32 %v1594, 16
      %v1749 = vrot.slane %v1747, 5
      %v1750 = vsel %vm277, %v1745, %v1749
      %v1752 = vshrl.u32 %v1595, 16
      %v1754 = vrot.slane %v1752, 4
      %v1755 = vshll.u32 %v1595, 16
      %v1757 = vrot.slane %v1755, 5
      %v1758 = vor.u32 %v1754, %v1757
      %v1759 = vrot.slane %v1758, 4
      %v1761 = vshll.u32 %v1596, 16
      %v1763 = vrot.slane %v1761, 5
      %v1764 = vsel %vm277, %v1759, %v1763
      %v1765 = vshrl.u32 %v1596, 16
      %v1767 = vrot.slane %v1765, 4
      %v1768 = vor.u32 %v1767, %v1763
      %v1769 = vrot.slane %v1768, 4
      %v1771 = vshll.u32 %v1597, 16
      %v1773 = vrot.slane %v1771, 5
      %v1774 = vsel %vm277, %v1769, %v1773
      %v1776 = vshrl.u32 %v1598, 16
      %v1778 = vrot.slane %v1776, 4
      %v1779 = vshll.u32 %v1598, 16
      %v1781 = vrot.slane %v1779, 5
      %v1782 = vor.u32 %v1778, %v1781
      %v1783 = vrot.slane %v1782, 4
      %v1785 = vshll.u32 %v1599, 16
      %v1787 = vrot.slane %v1785, 5
      %v1788 = vsel %vm277, %v1783, %v1787
      %v1789 = vshrl.u32 %v1599, 16
      %v1791 = vrot.slane %v1789, 4
      %v1792 = vor.u32 %v1791, %v1787
      %v1793 = vrot.slane %v1792, 4
      %v1795 = vshll.u32 %v1600, 16
      %v1797 = vrot.slane %v1795, 5
      %v1798 = vsel %vm277, %v1793, %v1797
      %v1800 = vshrl.u32 %v1601, 16
      %v1802 = vrot.slane %v1800, 4
      %v1803 = vshll.u32 %v1601, 16
      %v1805 = vrot.slane %v1803, 5
      %v1806 = vor.u32 %v1802, %v1805
      %v1807 = vrot.slane %v1806, 4
      %v1809 = vshll.u32 %v1602, 16
      %v1811 = vrot.slane %v1809, 5
      %v1812 = vsel %vm277, %v1807, %v1811
      %v1813 = vshrl.u32 %v1602, 16
      %v1815 = vrot.slane %v1813, 4
      %v1816 = vor.u32 %v1815, %v1811
      %v1817 = vrot.slane %v1816, 4
      %v1819 = vshll.u32 %v1603, 16
      %v1821 = vrot.slane %v1819, 5
      %v1822 = vsel %vm277, %v1817, %v1821
      %v1824 = vshrl.u32 %v1604, 16
      %v1826 = vrot.slane %v1824, 4
      %v1827 = vshll.u32 %v1604, 16
      %v1829 = vrot.slane %v1827, 5
      %v1830 = vor.u32 %v1826, %v1829
      %v1831 = vrot.slane %v1830, 4
      %v1833 = vshll.u32 %v1605, 16
      %v1835 = vrot.slane %v1833, 5
      %v1836 = vsel %vm277, %v1831, %v1835
      %v1837 = vshrl.u32 %v1605, 16
      %v1839 = vrot.slane %v1837, 4
      %v1840 = vor.u32 %v1839, %v1835
      %v1841 = vrot.slane %v1840, 4
      %v1843 = vshll.u32 %v1606, 16
      %v1845 = vrot.slane %v1843, 5
      %v1846 = vsel %vm277, %v1841, %v1845
      %s1847 = scalar_lea.vmem %s1, 256
      %v1848 = vld [vmem:[%s1847] sm:$0xf]
      %v1849 = vld [vmem:[%s1847 + $0x4] sm:$0xf]
      %v1850 = vld [vmem:[%s1847 + $0x8] sm:$0xf]
      %v1851 = vld [vmem:[%s1847 + $0xc] sm:$0xf]
      %v1852 = vld [vmem:[%s1847 + $0x10] sm:$0xf]
      %v1853 = vld [vmem:[%s1847 + $0x14] sm:$0xf]
      %v1854 = vld [vmem:[%s1847 + $0x18] sm:$0xf]
      %v1855 = vld [vmem:[%s1847 + $0x1c] sm:$0xf]
      %v1856 = vld [vmem:[%s1847 + $0x20] sm:$0xf]
      %v1857 = vld [vmem:[%s1847 + $0x24] sm:$0xf]
      %v1858 = vld [vmem:[%s1847 + $0x28] sm:$0xf]
      %v1859 = vld [vmem:[%s1847 + $0x2c] sm:$0xf]
      %v1860 = vld [vmem:[%s1847 + $0x30] sm:$0xf]
      %v1861 = vld [vmem:[%s1847 + $0x34] sm:$0xf]
      %v1862 = vld [vmem:[%s1847 + $0x38] sm:$0xf]
      %v1863 = vld [vmem:[%s1847 + $0x3c] sm:$0xf]
      %v1864 = vunpack.c.l.b16 %v1620
      %v1865 = vunpack.c.l.b16 %v1630
      %v1866 = vunpack.c.l.b16 %v1644
      %v1867 = vunpack.c.l.b16 %v1654
      %v1868 = vunpack.c.l.b16 %v1668
      %v1869 = vunpack.c.l.b16 %v1678
      %v1870 = vunpack.c.l.b16 %v1692
      %v1871 = vunpack.c.l.b16 %v1702
      %v1872 = vunpack.c.l.b16 %v1716
      %v1873 = vunpack.c.l.b16 %v1726
      %v1874 = vunpack.c.l.b16 %v1740
      %v1875 = vunpack.c.l.b16 %v1750
      %v1876 = vunpack.c.l.b16 %v1764
      %v1877 = vunpack.c.l.b16 %v1774
      %v1878 = vunpack.c.l.b16 %v1788
      %v1879 = vunpack.c.l.b16 %v1798
      %v1880 = vunpack.c.l.b16 %v1812
      %v1881 = vunpack.c.l.b16 %v1822
      %v1882 = vunpack.c.l.b16 %v1836
      %v1883 = vunpack.c.l.b16 %v1846
      %v1884 = vpack.c.b16 %v1865, %v1864
      %v1885 = vpack.c.b16 %v1867, %v1866
      %v1886 = vpack.c.b16 %v1869, %v1868
      %v1887 = vpack.c.b16 %v1871, %v1870
      %v1888 = vpack.c.b16 %v1873, %v1872
      %v1889 = vpack.c.b16 %v1875, %v1874
      %v1890 = vpack.c.b16 %v1877, %v1876
      %v1891 = vpack.c.b16 %v1879, %v1878
      %v1892 = vpack.c.b16 %v1881, %v1880
      %v1893 = vpack.c.b16 %v1883, %v1882
      %v1920 = vunpack.c.l.b16 %v1848
      %v1921 = vunpack.c.l.b16 %v1849
      %v1922 = vunpack.c.l.b16 %v1850
      %v1923 = vunpack.c.l.b16 %v1851
      %v1924 = vunpack.c.l.b16 %v1852
      %v1925 = vunpack.c.l.b16 %v1853
      %v1926 = vunpack.c.l.b16 %v1854
      %v1927 = vunpack.c.l.b16 %v1855
      %v1928 = vunpack.c.l.b16 %v1856
      %v1929 = vunpack.c.l.b16 %v1857
      %v1930 = vunpack.c.l.b16 %v1858
      %v1931 = vunpack.c.l.b16 %v1859
      %v1932 = vunpack.c.l.b16 %v1860
      %v1933 = vunpack.c.l.b16 %v1861
      %v1934 = vunpack.c.l.b16 %v1862
      %v1935 = vunpack.c.l.b16 %v1863
      %v1936 = vpack.c.b16 %v1921, %v1920
      %v1937 = vpack.c.b16 %v1923, %v1922
      %v1938 = vpack.c.b16 %v1925, %v1924
      %v1939 = vpack.c.b16 %v1927, %v1926
      %v1940 = vpack.c.b16 %v1929, %v1928
      %v1941 = vpack.c.b16 %v1931, %v1930
      %v1942 = vpack.c.b16 %v1933, %v1932
      %v1943 = vpack.c.b16 %v1935, %v1934
      %1952 = vmatprep.subr.bf16.mxu0 0
      %1953 = vmatpush1.bf16.msra.mxu0 %v1936
      %1954 = vmatprep.subr.bf16.mxu0 0
      %1955 = vmatpush1.bf16.msra.mxu0 %v1937
      %1956 = vmatprep.subr.bf16.mxu0 0
      %1957 = vmatpush1.bf16.msra.mxu0 %v1938
      %1958 = vmatprep.subr.bf16.mxu0 0
      %1959 = vmatpush1.bf16.msra.mxu0 %v1939
      %1960 = vmatprep.subr.bf16.mxu0 0
      %1961 = vmatpush1.bf16.msra.mxu0 %v1940
      %1962 = vmatprep.subr.bf16.mxu0 0
      %1963 = vmatpush1.bf16.msra.mxu0 %v1941
      %1964 = vmatprep.subr.bf16.mxu0 0
      %1965 = vmatpush1.bf16.msra.mxu0 %v1942
      %1966 = vmatprep.subr.bf16.mxu0 0
      %1967 = vmatpush1.bf16.msra.mxu0 %v1943
      %1968 = vmatprep.subr.bf16.mxu0 0
      %1969 = vmatpush1.bf16.msra.mxu0 0
      %1970 = vmatprep.subr.bf16.mxu0 0
      %1971 = vmatpush1.bf16.msra.mxu0 0
      %1972 = vmatprep.subr.bf16.mxu0 0
      %1973 = vmatpush1.bf16.msra.mxu0 0
      %1974 = vmatprep.subr.bf16.mxu0 0
      %1975 = vmatpush1.bf16.msra.mxu0 0
      %1976 = vmatprep.subr.bf16.mxu0 0
      %1977 = vmatpush1.bf16.msra.mxu0 0
      %1978 = vmatprep.subr.bf16.mxu0 0
      %1979 = vmatpush1.bf16.msra.mxu0 0
      %1980 = vmatprep.subr.bf16.mxu0 0
      %1981 = vmatpush1.bf16.msra.mxu0 0
      %1982 = vmatprep.subr.bf16.mxu0 0
      %1983 = vmatpush1.bf16.msra.mxu0 0
      %1984 = vmatprep.mubr.bf16.mxu0 0
      %1985 = vmatmul.mubr.bf16.gmra.mrb[0].mxu0 %v1884
      %v1986 = vpop.f32.mrb[0].mxu0
      %v1987 = vadd.f32 0.0, %v1986
      %v1988 = vpop.f32.mrb[0].mxu0
      %v1989 = vpop.f32.mrb[0].mxu0
      %v1990 = vadd.f32 0.0, %v1989
      %v1991 = vpop.f32.mrb[0].mxu0
      %1992 = vmatprep.mubr.bf16.mxu0 0
      %1993 = vmatmul.mubr.bf16.gmra.mrb[0].mxu0 %v1885
      %v1994 = vpop.f32.mrb[0].mxu0
      %v1995 = vadd.f32 0.0, %v1994
      %v1996 = vpop.f32.mrb[0].mxu0
      %v1997 = vpop.f32.mrb[0].mxu0
      %v1998 = vadd.f32 0.0, %v1997
      %v1999 = vpop.f32.mrb[0].mxu0
      %2000 = vmatprep.mubr.bf16.mxu0 0
      %2001 = vmatmul.mubr.bf16.gmra.mrb[0].mxu0 %v1886
      %v2002 = vpop.f32.mrb[0].mxu0
      %v2003 = vadd.f32 0.0, %v2002
      %v2004 = vpop.f32.mrb[0].mxu0
      %v2005 = vpop.f32.mrb[0].mxu0
      %v2006 = vadd.f32 0.0, %v2005
      %v2007 = vpop.f32.mrb[0].mxu0
      %2008 = vmatprep.mubr.bf16.mxu0 0
      %2009 = vmatmul.mubr.bf16.gmra.mrb[0].mxu0 %v1887
      %v2010 = vpop.f32.mrb[0].mxu0
      %v2011 = vadd.f32 0.0, %v2010
      %v2012 = vpop.f32.mrb[0].mxu0
      %v2013 = vpop.f32.mrb[0].mxu0
      %v2014 = vadd.f32 0.0, %v2013
      %v2015 = vpop.f32.mrb[0].mxu0
      %2016 = vmatprep.mubr.bf16.mxu0 0
      %2017 = vmatmul.mubr.bf16.gmra.mrb[0].mxu0 %v1888
      %v2018 = vpop.f32.mrb[0].mxu0
      %v2019 = vadd.f32 0.0, %v2018
      %v2020 = vpop.f32.mrb[0].mxu0
      %v2021 = vpop.f32.mrb[0].mxu0
      %v2022 = vadd.f32 0.0, %v2021
      %v2023 = vpop.f32.mrb[0].mxu0
      %2024 = vmatprep.mubr.bf16.mxu0 0
      %2025 = vmatmul.mubr.bf16.gmra.mrb[0].mxu0 %v1889
      %v2026 = vpop.f32.mrb[0].mxu0
      %v2027 = vadd.f32 0.0, %v2026
      %v2028 = vpop.f32.mrb[0].mxu0
      %v2029 = vpop.f32.mrb[0].mxu0
      %v2030 = vadd.f32 0.0, %v2029
      %v2031 = vpop.f32.mrb[0].mxu0
      %2032 = vmatprep.mubr.bf16.mxu0 0
      %2033 = vmatmul.mubr.bf16.gmra.mrb[0].mxu0 %v1890
      %v2034 = vpop.f32.mrb[0].mxu0
      %v2035 = vadd.f32 0.0, %v2034
      %v2036 = vpop.f32.mrb[0].mxu0
      %v2037 = vpop.f32.mrb[0].mxu0
      %v2038 = vadd.f32 0.0, %v2037
      %v2039 = vpop.f32.mrb[0].mxu0
      %2040 = vmatprep.mubr.bf16.mxu0 0
      %2041 = vmatmul.mubr.bf16.gmra.mrb[0].mxu0 %v1891
      %v2042 = vpop.f32.mrb[0].mxu0
      %v2043 = vadd.f32 0.0, %v2042
      %v2044 = vpop.f32.mrb[0].mxu0
      %v2045 = vpop.f32.mrb[0].mxu0
      %v2046 = vadd.f32 0.0, %v2045
      %v2047 = vpop.f32.mrb[0].mxu0
      %2048 = vmatprep.mubr.bf16.mxu0 0
      %2049 = vmatmul.mubr.bf16.gmra.mrb[0].mxu0 %v1892
      %v2050 = vpop.f32.mrb[0].mxu0
      %v2051 = vadd.f32 0.0, %v2050
      %v2052 = vpop.f32.mrb[0].mxu0
      %v2053 = vpop.f32.mrb[0].mxu0
      %v2054 = vadd.f32 0.0, %v2053
      %v2055 = vpop.f32.mrb[0].mxu0
      %2056 = vmatprep.mubr.bf16.mxu0 0
      %2057 = vmatmul.mubr.bf16.gmra.mrb[0].mxu0 %v1893
      %v2058 = vpop.f32.mrb[0].mxu0
      %v2059 = vadd.f32 0.0, %v2058
      %v2060 = vpop.f32.mrb[0].mxu0
      %v2061 = vpop.f32.mrb[0].mxu0
      %v2062 = vadd.f32 0.0, %v2061
      %v2063 = vpop.f32.mrb[0].mxu0
      %2064 = vdwg.mxu0
      %v2065 = vadd.f32 %v1557, %v1987
      %v2066 = vadd.f32 %v1558, %v1990
      %v2067 = vadd.f32 %v1559, %v1995
      %v2068 = vadd.f32 %v1560, %v1998
      %v2069 = vadd.f32 %v1561, %v2003
      %v2070 = vadd.f32 %v1562, %v2006
      %v2071 = vadd.f32 %v1563, %v2011
      %v2072 = vadd.f32 %v1564, %v2014
      %v2073 = vadd.f32 %v1565, %v2019
      %v2074 = vadd.f32 %v1566, %v2022
      %v2075 = vadd.f32 %v1567, %v2027
      %v2076 = vadd.f32 %v1568, %v2030
      %v2077 = vadd.f32 %v1569, %v2035
      %v2078 = vadd.f32 %v1570, %v2038
      %v2079 = vadd.f32 %v1571, %v2043
      %v2080 = vadd.f32 %v1572, %v2046
      %v2081 = vadd.f32 %v1573, %v2051
      %v2082 = vadd.f32 %v1574, %v2054
      %v2083 = vadd.f32 %v1575, %v2059
      %v2084 = vadd.f32 %v1576, %v2062
      %v2085 = vld [vmem:[%s1298] sm:$0xe]
      %v2086 = vld [vmem:[%s1298 + $0xc] sm:$0xe]
      %v2087 = vld [vmem:[%s1298 + $0x18] sm:$0xe]
      %v2088 = vld [vmem:[%s1298 + $0x24] sm:$0xe]
      %v2089 = vld [vmem:[%s1298 + $0x30] sm:$0xe]
      %v2090 = vld [vmem:[%s1298 + $0x3c] sm:$0xe]
      %v2091 = vld [vmem:[%s1298 + $0x48] sm:$0xe]
      %v2092 = vld [vmem:[%s1298 + $0x54] sm:$0xe]
      %v2093 = vld [vmem:[%s1298 + $0x60] sm:$0xe]
      %v2094 = vld [vmem:[%s1298 + $0x6c] sm:$0xe]
      %v2125 = vrot.slane %v2085, 5
      %v2126 = vrot.slane %v2125, 4
      %v2127 = vrot.slane %v1578, 5
      %v2128 = vsel %vm989, %v2126, %v2127
      %v2129 = vrot.slane %v2127, 4
      %v2130 = vrot.slane %v1579, 5
      %v2131 = vsel %vm989, %v2129, %v2130
      %v2132 = vrot.slane %v2086, 5
      %v2133 = vrot.slane %v2132, 4
      %v2134 = vrot.slane %v1581, 5
      %v2135 = vsel %vm989, %v2133, %v2134
      %v2136 = vrot.slane %v2134, 4
      %v2137 = vrot.slane %v1582, 5
      %v2138 = vsel %vm989, %v2136, %v2137
      %v2139 = vrot.slane %v2087, 5
      %v2140 = vrot.slane %v2139, 4
      %v2141 = vrot.slane %v1584, 5
      %v2142 = vsel %vm989, %v2140, %v2141
      %v2143 = vrot.slane %v2141, 4
      %v2144 = vrot.slane %v1585, 5
      %v2145 = vsel %vm989, %v2143, %v2144
      %v2146 = vrot.slane %v2088, 5
      %v2147 = vrot.slane %v2146, 4
      %v2148 = vrot.slane %v1587, 5
      %v2149 = vsel %vm989, %v2147, %v2148
      %v2150 = vrot.slane %v2148, 4
      %v2151 = vrot.slane %v1588, 5
      %v2152 = vsel %vm989, %v2150, %v2151
      %v2153 = vrot.slane %v2089, 5
      %v2154 = vrot.slane %v2153, 4
      %v2155 = vrot.slane %v1590, 5
      %v2156 = vsel %vm989, %v2154, %v2155
      %v2157 = vrot.slane %v2155, 4
      %v2158 = vrot.slane %v1591, 5
      %v2159 = vsel %vm989, %v2157, %v2158
      %v2160 = vrot.slane %v2090, 5
      %v2161 = vrot.slane %v2160, 4
      %v2162 = vrot.slane %v1593, 5
      %v2163 = vsel %vm989, %v2161, %v2162
      %v2164 = vrot.slane %v2162, 4
      %v2165 = vrot.slane %v1594, 5
      %v2166 = vsel %vm989, %v2164, %v2165
      %v2167 = vrot.slane %v2091, 5
      %v2168 = vrot.slane %v2167, 4
      %v2169 = vrot.slane %v1596, 5
      %v2170 = vsel %vm989, %v2168, %v2169
      %v2171 = vrot.slane %v2169, 4
      %v2172 = vrot.slane %v1597, 5
      %v2173 = vsel %vm989, %v2171, %v2172
      %v2174 = vrot.slane %v2092, 5
      %v2175 = vrot.slane %v2174, 4
      %v2176 = vrot.slane %v1599, 5
      %v2177 = vsel %vm989, %v2175, %v2176
      %v2178 = vrot.slane %v2176, 4
      %v2179 = vrot.slane %v1600, 5
      %v2180 = vsel %vm989, %v2178, %v2179
      %v2181 = vrot.slane %v2093, 5
      %v2182 = vrot.slane %v2181, 4
      %v2183 = vrot.slane %v1602, 5
      %v2184 = vsel %vm989, %v2182, %v2183
      %v2185 = vrot.slane %v2183, 4
      %v2186 = vrot.slane %v1603, 5
      %v2187 = vsel %vm989, %v2185, %v2186
      %v2188 = vrot.slane %v2094, 5
      %v2189 = vrot.slane %v2188, 4
      %v2190 = vrot.slane %v1605, 5
      %v2191 = vsel %vm989, %v2189, %v2190
      %v2192 = vrot.slane %v2190, 4
      %v2193 = vrot.slane %v1606, 5
      %v2194 = vsel %vm989, %v2192, %v2193
      %s2195 = scalar_lea.vmem %s1, 320
      %v2196 = vld [vmem:[%s2195] sm:$0xf]
      %v2197 = vld [vmem:[%s2195 + $0x4] sm:$0xf]
      %v2198 = vld [vmem:[%s2195 + $0x8] sm:$0xf]
      %v2199 = vld [vmem:[%s2195 + $0xc] sm:$0xf]
      %v2200 = vld [vmem:[%s2195 + $0x10] sm:$0xf]
      %v2201 = vld [vmem:[%s2195 + $0x14] sm:$0xf]
      %v2202 = vld [vmem:[%s2195 + $0x18] sm:$0xf]
      %v2203 = vld [vmem:[%s2195 + $0x1c] sm:$0xf]
      %v2204 = vld [vmem:[%s2195 + $0x20] sm:$0xf]
      %v2205 = vld [vmem:[%s2195 + $0x24] sm:$0xf]
      %v2206 = vld [vmem:[%s2195 + $0x28] sm:$0xf]
      %v2207 = vld [vmem:[%s2195 + $0x2c] sm:$0xf]
      %v2208 = vld [vmem:[%s2195 + $0x30] sm:$0xf]
      %v2209 = vld [vmem:[%s2195 + $0x34] sm:$0xf]
      %v2210 = vld [vmem:[%s2195 + $0x38] sm:$0xf]
      %v2211 = vld [vmem:[%s2195 + $0x3c] sm:$0xf]
      %v2212 = vunpack.c.l.b16 %v2128
      %v2213 = vunpack.c.l.b16 %v2131
      %v2214 = vunpack.c.l.b16 %v2135
      %v2215 = vunpack.c.l.b16 %v2138
      %v2216 = vunpack.c.l.b16 %v2142
      %v2217 = vunpack.c.l.b16 %v2145
      %v2218 = vunpack.c.l.b16 %v2149
      %v2219 = vunpack.c.l.b16 %v2152
      %v2220 = vunpack.c.l.b16 %v2156
      %v2221 = vunpack.c.l.b16 %v2159
      %v2222 = vunpack.c.l.b16 %v2163
      %v2223 = vunpack.c.l.b16 %v2166
      %v2224 = vunpack.c.l.b16 %v2170
      %v2225 = vunpack.c.l.b16 %v2173
      %v2226 = vunpack.c.l.b16 %v2177
      %v2227 = vunpack.c.l.b16 %v2180
      %v2228 = vunpack.c.l.b16 %v2184
      %v2229 = vunpack.c.l.b16 %v2187
      %v2230 = vunpack.c.l.b16 %v2191
      %v2231 = vunpack.c.l.b16 %v2194
      %v2232 = vpack.c.b16 %v2213, %v2212
      %v2233 = vpack.c.b16 %v2215, %v2214
      %v2234 = vpack.c.b16 %v2217, %v2216
      %v2235 = vpack.c.b16 %v2219, %v2218
      %v2236 = vpack.c.b16 %v2221, %v2220
      %v2237 = vpack.c.b16 %v2223, %v2222
      %v2238 = vpack.c.b16 %v2225, %v2224
      %v2239 = vpack.c.b16 %v2227, %v2226
      %v2240 = vpack.c.b16 %v2229, %v2228
      %v2241 = vpack.c.b16 %v2231, %v2230
      %v2268 = vunpack.c.l.b16 %v2196
      %v2269 = vunpack.c.l.b16 %v2197
      %v2270 = vunpack.c.l.b16 %v2198
      %v2271 = vunpack.c.l.b16 %v2199
      %v2272 = vunpack.c.l.b16 %v2200
      %v2273 = vunpack.c.l.b16 %v2201
      %v2274 = vunpack.c.l.b16 %v2202
      %v2275 = vunpack.c.l.b16 %v2203
      %v2276 = vunpack.c.l.b16 %v2204
      %v2277 = vunpack.c.l.b16 %v2205
      %v2278 = vunpack.c.l.b16 %v2206
      %v2279 = vunpack.c.l.b16 %v2207
      %v2280 = vunpack.c.l.b16 %v2208
      %v2281 = vunpack.c.l.b16 %v2209
      %v2282 = vunpack.c.l.b16 %v2210
      %v2283 = vunpack.c.l.b16 %v2211
      %v2284 = vpack.c.b16 %v2269, %v2268
      %v2285 = vpack.c.b16 %v2271, %v2270
      %v2286 = vpack.c.b16 %v2273, %v2272
      %v2287 = vpack.c.b16 %v2275, %v2274
      %v2288 = vpack.c.b16 %v2277, %v2276
      %v2289 = vpack.c.b16 %v2279, %v2278
      %v2290 = vpack.c.b16 %v2281, %v2280
      %v2291 = vpack.c.b16 %v2283, %v2282
      %2300 = vmatprep.subr.bf16.mxu0 0
      %2301 = vmatpush1.bf16.msra.mxu0 %v2284
      %2302 = vmatprep.subr.bf16.mxu0 0
      %2303 = vmatpush1.bf16.msra.mxu0 %v2285
      %2304 = vmatprep.subr.bf16.mxu0 0
      %2305 = vmatpush1.bf16.msra.mxu0 %v2286
      %2306 = vmatprep.subr.bf16.mxu0 0
      %2307 = vmatpush1.bf16.msra.mxu0 %v2287
      %2308 = vmatprep.subr.bf16.mxu0 0
      %2309 = vmatpush1.bf16.msra.mxu0 %v2288
      %2310 = vmatprep.subr.bf16.mxu0 0
      %2311 = vmatpush1.bf16.msra.mxu0 %v2289
      %2312 = vmatprep.subr.bf16.mxu0 0
      %2313 = vmatpush1.bf16.msra.mxu0 %v2290
      %2314 = vmatprep.subr.bf16.mxu0 0
      %2315 = vmatpush1.bf16.msra.mxu0 %v2291
      %2316 = vmatprep.subr.bf16.mxu0 0
      %2317 = vmatpush1.bf16.msra.mxu0 0
      %2318 = vmatprep.subr.bf16.mxu0 0
      %2319 = vmatpush1.bf16.msra.mxu0 0
      %2320 = vmatprep.subr.bf16.mxu0 0
      %2321 = vmatpush1.bf16.msra.mxu0 0
      %2322 = vmatprep.subr.bf16.mxu0 0
      %2323 = vmatpush1.bf16.msra.mxu0 0
      %2324 = vmatprep.subr.bf16.mxu0 0
      %2325 = vmatpush1.bf16.msra.mxu0 0
      %2326 = vmatprep.subr.bf16.mxu0 0
      %2327 = vmatpush1.bf16.msra.mxu0 0
      %2328 = vmatprep.subr.bf16.mxu0 0
      %2329 = vmatpush1.bf16.msra.mxu0 0
      %2330 = vmatprep.subr.bf16.mxu0 0
      %2331 = vmatpush1.bf16.msra.mxu0 0
      %2332 = vmatprep.mubr.bf16.mxu0 0
      %2333 = vmatmul.mubr.bf16.gmra.mrb[0].mxu0 %v2232
      %v2334 = vpop.f32.mrb[0].mxu0
      %v2335 = vadd.f32 0.0, %v2334
      %v2336 = vpop.f32.mrb[0].mxu0
      %v2337 = vpop.f32.mrb[0].mxu0
      %v2338 = vadd.f32 0.0, %v2337
      %v2339 = vpop.f32.mrb[0].mxu0
      %2340 = vmatprep.mubr.bf16.mxu0 0
      %2341 = vmatmul.mubr.bf16.gmra.mrb[0].mxu0 %v2233
      %v2342 = vpop.f32.mrb[0].mxu0
      %v2343 = vadd.f32 0.0, %v2342
      %v2344 = vpop.f32.mrb[0].mxu0
      %v2345 = vpop.f32.mrb[0].mxu0
      %v2346 = vadd.f32 0.0, %v2345
      %v2347 = vpop.f32.mrb[0].mxu0
      %2348 = vmatprep.mubr.bf16.mxu0 0
      %2349 = vmatmul.mubr.bf16.gmra.mrb[0].mxu0 %v2234
      %v2350 = vpop.f32.mrb[0].mxu0
      %v2351 = vadd.f32 0.0, %v2350
      %v2352 = vpop.f32.mrb[0].mxu0
      %v2353 = vpop.f32.mrb[0].mxu0
      %v2354 = vadd.f32 0.0, %v2353
      %v2355 = vpop.f32.mrb[0].mxu0
      %2356 = vmatprep.mubr.bf16.mxu0 0
      %2357 = vmatmul.mubr.bf16.gmra.mrb[0].mxu0 %v2235
      %v2358 = vpop.f32.mrb[0].mxu0
      %v2359 = vadd.f32 0.0, %v2358
      %v2360 = vpop.f32.mrb[0].mxu0
      %v2361 = vpop.f32.mrb[0].mxu0
      %v2362 = vadd.f32 0.0, %v2361
      %v2363 = vpop.f32.mrb[0].mxu0
      %2364 = vmatprep.mubr.bf16.mxu0 0
      %2365 = vmatmul.mubr.bf16.gmra.mrb[0].mxu0 %v2236
      %v2366 = vpop.f32.mrb[0].mxu0
      %v2367 = vadd.f32 0.0, %v2366
      %v2368 = vpop.f32.mrb[0].mxu0
      %v2369 = vpop.f32.mrb[0].mxu0
      %v2370 = vadd.f32 0.0, %v2369
      %v2371 = vpop.f32.mrb[0].mxu0
      %2372 = vmatprep.mubr.bf16.mxu0 0
      %2373 = vmatmul.mubr.bf16.gmra.mrb[0].mxu0 %v2237
      %v2374 = vpop.f32.mrb[0].mxu0
      %v2375 = vadd.f32 0.0, %v2374
      %v2376 = vpop.f32.mrb[0].mxu0
      %v2377 = vpop.f32.mrb[0].mxu0
      %v2378 = vadd.f32 0.0, %v2377
      %v2379 = vpop.f32.mrb[0].mxu0
      %2380 = vmatprep.mubr.bf16.mxu0 0
      %2381 = vmatmul.mubr.bf16.gmra.mrb[0].mxu0 %v2238
      %v2382 = vpop.f32.mrb[0].mxu0
      %v2383 = vadd.f32 0.0, %v2382
      %v2384 = vpop.f32.mrb[0].mxu0
      %v2385 = vpop.f32.mrb[0].mxu0
      %v2386 = vadd.f32 0.0, %v2385
      %v2387 = vpop.f32.mrb[0].mxu0
      %2388 = vmatprep.mubr.bf16.mxu0 0
      %2389 = vmatmul.mubr.bf16.gmra.mrb[0].mxu0 %v2239
      %v2390 = vpop.f32.mrb[0].mxu0
      %v2391 = vadd.f32 0.0, %v2390
      %v2392 = vpop.f32.mrb[0].mxu0
      %v2393 = vpop.f32.mrb[0].mxu0
      %v2394 = vadd.f32 0.0, %v2393
      %v2395 = vpop.f32.mrb[0].mxu0
      %2396 = vmatprep.mubr.bf16.mxu0 0
      %2397 = vmatmul.mubr.bf16.gmra.mrb[0].mxu0 %v2240
      %v2398 = vpop.f32.mrb[0].mxu0
      %v2399 = vadd.f32 0.0, %v2398
      %v2400 = vpop.f32.mrb[0].mxu0
      %v2401 = vpop.f32.mrb[0].mxu0
      %v2402 = vadd.f32 0.0, %v2401
      %v2403 = vpop.f32.mrb[0].mxu0
      %2404 = vmatprep.mubr.bf16.mxu0 0
      %2405 = vmatmul.mubr.bf16.gmra.mrb[0].mxu0 %v2241
      %v2406 = vpop.f32.mrb[0].mxu0
      %v2407 = vadd.f32 0.0, %v2406
      %v2408 = vpop.f32.mrb[0].mxu0
      %v2409 = vpop.f32.mrb[0].mxu0
      %v2410 = vadd.f32 0.0, %v2409
      %v2411 = vpop.f32.mrb[0].mxu0
      %2412 = vdwg.mxu0
      %v2413 = vadd.f32 %v2065, %v2335
      %v2414 = vadd.f32 %v2066, %v2338
      %v2415 = vadd.f32 %v2067, %v2343
      %v2416 = vadd.f32 %v2068, %v2346
      %v2417 = vadd.f32 %v2069, %v2351
      %v2418 = vadd.f32 %v2070, %v2354
      %v2419 = vadd.f32 %v2071, %v2359
      %v2420 = vadd.f32 %v2072, %v2362
      %v2421 = vadd.f32 %v2073, %v2367
      %v2422 = vadd.f32 %v2074, %v2370
      %v2423 = vadd.f32 %v2075, %v2375
      %v2424 = vadd.f32 %v2076, %v2378
      %v2425 = vadd.f32 %v2077, %v2383
      %v2426 = vadd.f32 %v2078, %v2386
      %v2427 = vadd.f32 %v2079, %v2391
      %v2428 = vadd.f32 %v2080, %v2394
      %v2429 = vadd.f32 %v2081, %v2399
      %v2430 = vadd.f32 %v2082, %v2402
      %v2431 = vadd.f32 %v2083, %v2407
      %v2432 = vadd.f32 %v2084, %v2410
      %s2433 = scalar_lea.vmem %s210, 24
      %v2434 = vld [vmem:[%s2433] sm:$0xf]
      %v2435 = vld [vmem:[%s2433 + $0x4] sm:$0xf]
      %v2436 = vld [vmem:[%s2433 + $0xc] sm:$0xf]
      %v2437 = vld [vmem:[%s2433 + $0x10] sm:$0xf]
      %v2438 = vld [vmem:[%s2433 + $0x18] sm:$0xf]
      %v2439 = vld [vmem:[%s2433 + $0x1c] sm:$0xf]
      %v2440 = vld [vmem:[%s2433 + $0x24] sm:$0xf]
      %v2441 = vld [vmem:[%s2433 + $0x28] sm:$0xf]
      %v2442 = vld [vmem:[%s2433 + $0x30] sm:$0xf]
      %v2443 = vld [vmem:[%s2433 + $0x34] sm:$0xf]
      %v2444 = vld [vmem:[%s2433 + $0x3c] sm:$0xf]
      %v2445 = vld [vmem:[%s2433 + $0x40] sm:$0xf]
      %v2446 = vld [vmem:[%s2433 + $0x48] sm:$0xf]
      %v2447 = vld [vmem:[%s2433 + $0x4c] sm:$0xf]
      %v2448 = vld [vmem:[%s2433 + $0x54] sm:$0xf]
      %v2449 = vld [vmem:[%s2433 + $0x58] sm:$0xf]
      %v2450 = vld [vmem:[%s2433 + $0x60] sm:$0xf]
      %v2451 = vld [vmem:[%s2433 + $0x64] sm:$0xf]
      %v2452 = vld [vmem:[%s2433 + $0x6c] sm:$0xf]
      %v2453 = vld [vmem:[%s2433 + $0x70] sm:$0xf]
      %s2454 = scalar_lea.vmem %s1, 384
      %v2455 = vld [vmem:[%s2454] sm:$0xf]
      %v2456 = vld [vmem:[%s2454 + $0x4] sm:$0xf]
      %v2457 = vld [vmem:[%s2454 + $0x8] sm:$0xf]
      %v2458 = vld [vmem:[%s2454 + $0xc] sm:$0xf]
      %v2459 = vld [vmem:[%s2454 + $0x10] sm:$0xf]
      %v2460 = vld [vmem:[%s2454 + $0x14] sm:$0xf]
      %v2461 = vld [vmem:[%s2454 + $0x18] sm:$0xf]
      %v2462 = vld [vmem:[%s2454 + $0x1c] sm:$0xf]
      %v2463 = vld [vmem:[%s2454 + $0x20] sm:$0xf]
      %v2464 = vld [vmem:[%s2454 + $0x24] sm:$0xf]
      %v2465 = vld [vmem:[%s2454 + $0x28] sm:$0xf]
      %v2466 = vld [vmem:[%s2454 + $0x2c] sm:$0xf]
      %v2467 = vld [vmem:[%s2454 + $0x30] sm:$0xf]
      %v2468 = vld [vmem:[%s2454 + $0x34] sm:$0xf]
      %v2469 = vld [vmem:[%s2454 + $0x38] sm:$0xf]
      %v2470 = vld [vmem:[%s2454 + $0x3c] sm:$0xf]
      %v2491 = vunpack.c.l.b16 %v2434
      %v2492 = vunpack.c.l.b16 %v2435
      %v2493 = vunpack.c.l.b16 %v2436
      %v2494 = vunpack.c.l.b16 %v2437
      %v2495 = vunpack.c.l.b16 %v2438
      %v2496 = vunpack.c.l.b16 %v2439
      %v2497 = vunpack.c.l.b16 %v2440
      %v2498 = vunpack.c.l.b16 %v2441
      %v2499 = vunpack.c.l.b16 %v2442
      %v2500 = vunpack.c.l.b16 %v2443
      %v2501 = vunpack.c.l.b16 %v2444
      %v2502 = vunpack.c.l.b16 %v2445
      %v2503 = vunpack.c.l.b16 %v2446
      %v2504 = vunpack.c.l.b16 %v2447
      %v2505 = vunpack.c.l.b16 %v2448
      %v2506 = vunpack.c.l.b16 %v2449
      %v2507 = vunpack.c.l.b16 %v2450
      %v2508 = vunpack.c.l.b16 %v2451
      %v2509 = vunpack.c.l.b16 %v2452
      %v2510 = vunpack.c.l.b16 %v2453
      %v2511 = vpack.c.b16 %v2492, %v2491
      %v2512 = vpack.c.b16 %v2494, %v2493
      %v2513 = vpack.c.b16 %v2496, %v2495
      %v2514 = vpack.c.b16 %v2498, %v2497
      %v2515 = vpack.c.b16 %v2500, %v2499
      %v2516 = vpack.c.b16 %v2502, %v2501
      %v2517 = vpack.c.b16 %v2504, %v2503
      %v2518 = vpack.c.b16 %v2506, %v2505
      %v2519 = vpack.c.b16 %v2508, %v2507
      %v2520 = vpack.c.b16 %v2510, %v2509
      %v2547 = vunpack.c.l.b16 %v2455
      %v2548 = vunpack.c.l.b16 %v2456
      %v2549 = vunpack.c.l.b16 %v2457
      %v2550 = vunpack.c.l.b16 %v2458
      %v2551 = vunpack.c.l.b16 %v2459
      %v2552 = vunpack.c.l.b16 %v2460
      %v2553 = vunpack.c.l.b16 %v2461
      %v2554 = vunpack.c.l.b16 %v2462
      %v2555 = vunpack.c.l.b16 %v2463
      %v2556 = vunpack.c.l.b16 %v2464
      %v2557 = vunpack.c.l.b16 %v2465
      %v2558 = vunpack.c.l.b16 %v2466
      %v2559 = vunpack.c.l.b16 %v2467
      %v2560 = vunpack.c.l.b16 %v2468
      %v2561 = vunpack.c.l.b16 %v2469
      %v2562 = vunpack.c.l.b16 %v2470
      %v2563 = vpack.c.b16 %v2548, %v2547
      %v2564 = vpack.c.b16 %v2550, %v2549
      %v2565 = vpack.c.b16 %v2552, %v2551
      %v2566 = vpack.c.b16 %v2554, %v2553
      %v2567 = vpack.c.b16 %v2556, %v2555
      %v2568 = vpack.c.b16 %v2558, %v2557
      %v2569 = vpack.c.b16 %v2560, %v2559
      %v2570 = vpack.c.b16 %v2562, %v2561
      %2579 = vmatprep.subr.bf16.mxu0 0
      %2580 = vmatpush1.bf16.msra.mxu0 %v2563
      %2581 = vmatprep.subr.bf16.mxu0 0
      %2582 = vmatpush1.bf16.msra.mxu0 %v2564
      %2583 = vmatprep.subr.bf16.mxu0 0
      %2584 = vmatpush1.bf16.msra.mxu0 %v2565
      %2585 = vmatprep.subr.bf16.mxu0 0
      %2586 = vmatpush1.bf16.msra.mxu0 %v2566
      %2587 = vmatprep.subr.bf16.mxu0 0
      %2588 = vmatpush1.bf16.msra.mxu0 %v2567
      %2589 = vmatprep.subr.bf16.mxu0 0
      %2590 = vmatpush1.bf16.msra.mxu0 %v2568
      %2591 = vmatprep.subr.bf16.mxu0 0
      %2592 = vmatpush1.bf16.msra.mxu0 %v2569
      %2593 = vmatprep.subr.bf16.mxu0 0
      %2594 = vmatpush1.bf16.msra.mxu0 %v2570
      %2595 = vmatprep.subr.bf16.mxu0 0
      %2596 = vmatpush1.bf16.msra.mxu0 0
      %2597 = vmatprep.subr.bf16.mxu0 0
      %2598 = vmatpush1.bf16.msra.mxu0 0
      %2599 = vmatprep.subr.bf16.mxu0 0
      %2600 = vmatpush1.bf16.msra.mxu0 0
      %2601 = vmatprep.subr.bf16.mxu0 0
      %2602 = vmatpush1.bf16.msra.mxu0 0
      %2603 = vmatprep.subr.bf16.mxu0 0
      %2604 = vmatpush1.bf16.msra.mxu0 0
      %2605 = vmatprep.subr.bf16.mxu0 0
      %2606 = vmatpush1.bf16.msra.mxu0 0
      %2607 = vmatprep.subr.bf16.mxu0 0
      %2608 = vmatpush1.bf16.msra.mxu0 0
      %2609 = vmatprep.subr.bf16.mxu0 0
      %2610 = vmatpush1.bf16.msra.mxu0 0
      %2611 = vmatprep.mubr.bf16.mxu0 0
      %2612 = vmatmul.mubr.bf16.gmra.mrb[0].mxu0 %v2511
      %v2613 = vpop.f32.mrb[0].mxu0
      %v2614 = vadd.f32 0.0, %v2613
      %v2615 = vpop.f32.mrb[0].mxu0
      %v2616 = vpop.f32.mrb[0].mxu0
      %v2617 = vadd.f32 0.0, %v2616
      %v2618 = vpop.f32.mrb[0].mxu0
      %2619 = vmatprep.mubr.bf16.mxu0 0
      %2620 = vmatmul.mubr.bf16.gmra.mrb[0].mxu0 %v2512
      %v2621 = vpop.f32.mrb[0].mxu0
      %v2622 = vadd.f32 0.0, %v2621
      %v2623 = vpop.f32.mrb[0].mxu0
      %v2624 = vpop.f32.mrb[0].mxu0
      %v2625 = vadd.f32 0.0, %v2624
      %v2626 = vpop.f32.mrb[0].mxu0
      %2627 = vmatprep.mubr.bf16.mxu0 0
      %2628 = vmatmul.mubr.bf16.gmra.mrb[0].mxu0 %v2513
      %v2629 = vpop.f32.mrb[0].mxu0
      %v2630 = vadd.f32 0.0, %v2629
      %v2631 = vpop.f32.mrb[0].mxu0
      %v2632 = vpop.f32.mrb[0].mxu0
      %v2633 = vadd.f32 0.0, %v2632
      %v2634 = vpop.f32.mrb[0].mxu0
      %2635 = vmatprep.mubr.bf16.mxu0 0
      %2636 = vmatmul.mubr.bf16.gmra.mrb[0].mxu0 %v2514
      %v2637 = vpop.f32.mrb[0].mxu0
      %v2638 = vadd.f32 0.0, %v2637
      %v2639 = vpop.f32.mrb[0].mxu0
      %v2640 = vpop.f32.mrb[0].mxu0
      %v2641 = vadd.f32 0.0, %v2640
      %v2642 = vpop.f32.mrb[0].mxu0
      %2643 = vmatprep.mubr.bf16.mxu0 0
      %2644 = vmatmul.mubr.bf16.gmra.mrb[0].mxu0 %v2515
      %v2645 = vpop.f32.mrb[0].mxu0
      %v2646 = vadd.f32 0.0, %v2645
      %v2647 = vpop.f32.mrb[0].mxu0
      %v2648 = vpop.f32.mrb[0].mxu0
      %v2649 = vadd.f32 0.0, %v2648
      %v2650 = vpop.f32.mrb[0].mxu0
      %2651 = vmatprep.mubr.bf16.mxu0 0
      %2652 = vmatmul.mubr.bf16.gmra.mrb[0].mxu0 %v2516
      %v2653 = vpop.f32.mrb[0].mxu0
      %v2654 = vadd.f32 0.0, %v2653
      %v2655 = vpop.f32.mrb[0].mxu0
      %v2656 = vpop.f32.mrb[0].mxu0
      %v2657 = vadd.f32 0.0, %v2656
      %v2658 = vpop.f32.mrb[0].mxu0
      %2659 = vmatprep.mubr.bf16.mxu0 0
      %2660 = vmatmul.mubr.bf16.gmra.mrb[0].mxu0 %v2517
      %v2661 = vpop.f32.mrb[0].mxu0
      %v2662 = vadd.f32 0.0, %v2661
      %v2663 = vpop.f32.mrb[0].mxu0
      %v2664 = vpop.f32.mrb[0].mxu0
      %v2665 = vadd.f32 0.0, %v2664
      %v2666 = vpop.f32.mrb[0].mxu0
      %2667 = vmatprep.mubr.bf16.mxu0 0
      %2668 = vmatmul.mubr.bf16.gmra.mrb[0].mxu0 %v2518
      %v2669 = vpop.f32.mrb[0].mxu0
      %v2670 = vadd.f32 0.0, %v2669
      %v2671 = vpop.f32.mrb[0].mxu0
      %v2672 = vpop.f32.mrb[0].mxu0
      %v2673 = vadd.f32 0.0, %v2672
      %v2674 = vpop.f32.mrb[0].mxu0
      %2675 = vmatprep.mubr.bf16.mxu0 0
      %2676 = vmatmul.mubr.bf16.gmra.mrb[0].mxu0 %v2519
      %v2677 = vpop.f32.mrb[0].mxu0
      %v2678 = vadd.f32 0.0, %v2677
      %v2679 = vpop.f32.mrb[0].mxu0
      %v2680 = vpop.f32.mrb[0].mxu0
      %v2681 = vadd.f32 0.0, %v2680
      %v2682 = vpop.f32.mrb[0].mxu0
      %2683 = vmatprep.mubr.bf16.mxu0 0
      %2684 = vmatmul.mubr.bf16.gmra.mrb[0].mxu0 %v2520
      %v2685 = vpop.f32.mrb[0].mxu0
      %v2686 = vadd.f32 0.0, %v2685
      %v2687 = vpop.f32.mrb[0].mxu0
      %v2688 = vpop.f32.mrb[0].mxu0
      %v2689 = vadd.f32 0.0, %v2688
      %v2690 = vpop.f32.mrb[0].mxu0
      %2691 = vdwg.mxu0
      %v2692 = vadd.f32 %v2413, %v2614
      %v2693 = vadd.f32 %v2414, %v2617
      %v2694 = vadd.f32 %v2415, %v2622
      %v2695 = vadd.f32 %v2416, %v2625
      %v2696 = vadd.f32 %v2417, %v2630
      %v2697 = vadd.f32 %v2418, %v2633
      %v2698 = vadd.f32 %v2419, %v2638
      %v2699 = vadd.f32 %v2420, %v2641
      %v2700 = vadd.f32 %v2421, %v2646
      %v2701 = vadd.f32 %v2422, %v2649
      %v2702 = vadd.f32 %v2423, %v2654
      %v2703 = vadd.f32 %v2424, %v2657
      %v2704 = vadd.f32 %v2425, %v2662
      %v2705 = vadd.f32 %v2426, %v2665
      %v2706 = vadd.f32 %v2427, %v2670
      %v2707 = vadd.f32 %v2428, %v2673
      %v2708 = vadd.f32 %v2429, %v2678
      %v2709 = vadd.f32 %v2430, %v2681
      %v2710 = vadd.f32 %v2431, %v2686
      %v2711 = vadd.f32 %v2432, %v2689
      %v2712 = vld [vmem:[%s2433] sm:$0xf]
      %v2713 = vld [vmem:[%s2433 + $0x4] sm:$0xf]
      %v2714 = vld [vmem:[%s2433 + $0x8] sm:$0x1]
      %v2715 = vld [vmem:[%s2433 + $0xc] sm:$0xf]
      %v2716 = vld [vmem:[%s2433 + $0x10] sm:$0xf]
      %v2717 = vld [vmem:[%s2433 + $0x14] sm:$0x1]
      %v2718 = vld [vmem:[%s2433 + $0x18] sm:$0xf]
      %v2719 = vld [vmem:[%s2433 + $0x1c] sm:$0xf]
      %v2720 = vld [vmem:[%s2433 + $0x20] sm:$0x1]
      %v2721 = vld [vmem:[%s2433 + $0x24] sm:$0xf]
      %v2722 = vld [vmem:[%s2433 + $0x28] sm:$0xf]
      %v2723 = vld [vmem:[%s2433 + $0x2c] sm:$0x1]
      %v2724 = vld [vmem:[%s2433 + $0x30] sm:$0xf]
      %v2725 = vld [vmem:[%s2433 + $0x34] sm:$0xf]
      %v2726 = vld [vmem:[%s2433 + $0x38] sm:$0x1]
      %v2727 = vld [vmem:[%s2433 + $0x3c] sm:$0xf]
      %v2728 = vld [vmem:[%s2433 + $0x40] sm:$0xf]
      %v2729 = vld [vmem:[%s2433 + $0x44] sm:$0x1]
      %v2730 = vld [vmem:[%s2433 + $0x48] sm:$0xf]
      %v2731 = vld [vmem:[%s2433 + $0x4c] sm:$0xf]
      %v2732 = vld [vmem:[%s2433 + $0x50] sm:$0x1]
      %v2733 = vld [vmem:[%s2433 + $0x54] sm:$0xf]
      %v2734 = vld [vmem:[%s2433 + $0x58] sm:$0xf]
      %v2735 = vld [vmem:[%s2433 + $0x5c] sm:$0x1]
      %v2736 = vld [vmem:[%s2433 + $0x60] sm:$0xf]
      %v2737 = vld [vmem:[%s2433 + $0x64] sm:$0xf]
      %v2738 = vld [vmem:[%s2433 + $0x68] sm:$0x1]
      %v2739 = vld [vmem:[%s2433 + $0x6c] sm:$0xf]
      %v2740 = vld [vmem:[%s2433 + $0x70] sm:$0xf]
      %v2741 = vld [vmem:[%s2433 + $0x74] sm:$0x1]
      %v2743 = vshrl.u32 %v2712, 16
      %v2745 = vrot.slane %v2743, 4
      %v2746 = vshll.u32 %v2712, 16
      %v2748 = vrot.slane %v2746, 5
      %v2749 = vor.u32 %v2745, %v2748
      %v2750 = vrot.slane %v2749, 4
      %v2752 = vshll.u32 %v2713, 16
      %v2754 = vrot.slane %v2752, 5
      %v2755 = vsel %vm277, %v2750, %v2754
      %v2756 = vshrl.u32 %v2713, 16
      %v2758 = vrot.slane %v2756, 4
      %v2759 = vor.u32 %v2758, %v2754
      %v2760 = vrot.slane %v2759, 4
      %v2762 = vshll.u32 %v2714, 16
      %v2764 = vrot.slane %v2762, 5
      %v2765 = vsel %vm277, %v2760, %v2764
      %v2767 = vshrl.u32 %v2715, 16
      %v2769 = vrot.slane %v2767, 4
      %v2770 = vshll.u32 %v2715, 16
      %v2772 = vrot.slane %v2770, 5
      %v2773 = vor.u32 %v2769, %v2772
      %v2774 = vrot.slane %v2773, 4
      %v2776 = vshll.u32 %v2716, 16
      %v2778 = vrot.slane %v2776, 5
      %v2779 = vsel %vm277, %v2774, %v2778
      %v2780 = vshrl.u32 %v2716, 16
      %v2782 = vrot.slane %v2780, 4
      %v2783 = vor.u32 %v2782, %v2778
      %v2784 = vrot.slane %v2783, 4
      %v2786 = vshll.u32 %v2717, 16
      %v2788 = vrot.slane %v2786, 5
      %v2789 = vsel %vm277, %v2784, %v2788
      %v2791 = vshrl.u32 %v2718, 16
      %v2793 = vrot.slane %v2791, 4
      %v2794 = vshll.u32 %v2718, 16
      %v2796 = vrot.slane %v2794, 5
      %v2797 = vor.u32 %v2793, %v2796
      %v2798 = vrot.slane %v2797, 4
      %v2800 = vshll.u32 %v2719, 16
      %v2802 = vrot.slane %v2800, 5
      %v2803 = vsel %vm277, %v2798, %v2802
      %v2804 = vshrl.u32 %v2719, 16
      %v2806 = vrot.slane %v2804, 4
      %v2807 = vor.u32 %v2806, %v2802
      %v2808 = vrot.slane %v2807, 4
      %v2810 = vshll.u32 %v2720, 16
      %v2812 = vrot.slane %v2810, 5
      %v2813 = vsel %vm277, %v2808, %v2812
      %v2815 = vshrl.u32 %v2721, 16
      %v2817 = vrot.slane %v2815, 4
      %v2818 = vshll.u32 %v2721, 16
      %v2820 = vrot.slane %v2818, 5
      %v2821 = vor.u32 %v2817, %v2820
      %v2822 = vrot.slane %v2821, 4
      %v2824 = vshll.u32 %v2722, 16
      %v2826 = vrot.slane %v2824, 5
      %v2827 = vsel %vm277, %v2822, %v2826
      %v2828 = vshrl.u32 %v2722, 16
      %v2830 = vrot.slane %v2828, 4
      %v2831 = vor.u32 %v2830, %v2826
      %v2832 = vrot.slane %v2831, 4
      %v2834 = vshll.u32 %v2723, 16
      %v2836 = vrot.slane %v2834, 5
      %v2837 = vsel %vm277, %v2832, %v2836
      %v2839 = vshrl.u32 %v2724, 16
      %v2841 = vrot.slane %v2839, 4
      %v2842 = vshll.u32 %v2724, 16
      %v2844 = vrot.slane %v2842, 5
      %v2845 = vor.u32 %v2841, %v2844
      %v2846 = vrot.slane %v2845, 4
      %v2848 = vshll.u32 %v2725, 16
      %v2850 = vrot.slane %v2848, 5
      %v2851 = vsel %vm277, %v2846, %v2850
      %v2852 = vshrl.u32 %v2725, 16
      %v2854 = vrot.slane %v2852, 4
      %v2855 = vor.u32 %v2854, %v2850
      %v2856 = vrot.slane %v2855, 4
      %v2858 = vshll.u32 %v2726, 16
      %v2860 = vrot.slane %v2858, 5
      %v2861 = vsel %vm277, %v2856, %v2860
      %v2863 = vshrl.u32 %v2727, 16
      %v2865 = vrot.slane %v2863, 4
      %v2866 = vshll.u32 %v2727, 16
      %v2868 = vrot.slane %v2866, 5
      %v2869 = vor.u32 %v2865, %v2868
      %v2870 = vrot.slane %v2869, 4
      %v2872 = vshll.u32 %v2728, 16
      %v2874 = vrot.slane %v2872, 5
      %v2875 = vsel %vm277, %v2870, %v2874
      %v2876 = vshrl.u32 %v2728, 16
      %v2878 = vrot.slane %v2876, 4
      %v2879 = vor.u32 %v2878, %v2874
      %v2880 = vrot.slane %v2879, 4
      %v2882 = vshll.u32 %v2729, 16
      %v2884 = vrot.slane %v2882, 5
      %v2885 = vsel %vm277, %v2880, %v2884
      %v2887 = vshrl.u32 %v2730, 16
      %v2889 = vrot.slane %v2887, 4
      %v2890 = vshll.u32 %v2730, 16
      %v2892 = vrot.slane %v2890, 5
      %v2893 = vor.u32 %v2889, %v2892
      %v2894 = vrot.slane %v2893, 4
      %v2896 = vshll.u32 %v2731, 16
      %v2898 = vrot.slane %v2896, 5
      %v2899 = vsel %vm277, %v2894, %v2898
      %v2900 = vshrl.u32 %v2731, 16
      %v2902 = vrot.slane %v2900, 4
      %v2903 = vor.u32 %v2902, %v2898
      %v2904 = vrot.slane %v2903, 4
      %v2906 = vshll.u32 %v2732, 16
      %v2908 = vrot.slane %v2906, 5
      %v2909 = vsel %vm277, %v2904, %v2908
      %v2911 = vshrl.u32 %v2733, 16
      %v2913 = vrot.slane %v2911, 4
      %v2914 = vshll.u32 %v2733, 16
      %v2916 = vrot.slane %v2914, 5
      %v2917 = vor.u32 %v2913, %v2916
      %v2918 = vrot.slane %v2917, 4
      %v2920 = vshll.u32 %v2734, 16
      %v2922 = vrot.slane %v2920, 5
      %v2923 = vsel %vm277, %v2918, %v2922
      %v2924 = vshrl.u32 %v2734, 16
      %v2926 = vrot.slane %v2924, 4
      %v2927 = vor.u32 %v2926, %v2922
      %v2928 = vrot.slane %v2927, 4
      %v2930 = vshll.u32 %v2735, 16
      %v2932 = vrot.slane %v2930, 5
      %v2933 = vsel %vm277, %v2928, %v2932
      %v2935 = vshrl.u32 %v2736, 16
      %v2937 = vrot.slane %v2935, 4
      %v2938 = vshll.u32 %v2736, 16
      %v2940 = vrot.slane %v2938, 5
      %v2941 = vor.u32 %v2937, %v2940
      %v2942 = vrot.slane %v2941, 4
      %v2944 = vshll.u32 %v2737, 16
      %v2946 = vrot.slane %v2944, 5
      %v2947 = vsel %vm277, %v2942, %v2946
      %v2948 = vshrl.u32 %v2737, 16
      %v2950 = vrot.slane %v2948, 4
      %v2951 = vor.u32 %v2950, %v2946
      %v2952 = vrot.slane %v2951, 4
      %v2954 = vshll.u32 %v2738, 16
      %v2956 = vrot.slane %v2954, 5
      %v2957 = vsel %vm277, %v2952, %v2956
      %v2959 = vshrl.u32 %v2739, 16
      %v2961 = vrot.slane %v2959, 4
      %v2962 = vshll.u32 %v2739, 16
      %v2964 = vrot.slane %v2962, 5
      %v2965 = vor.u32 %v2961, %v2964
      %v2966 = vrot.slane %v2965, 4
      %v2968 = vshll.u32 %v2740, 16
      %v2970 = vrot.slane %v2968, 5
      %v2971 = vsel %vm277, %v2966, %v2970
      %v2972 = vshrl.u32 %v2740, 16
      %v2974 = vrot.slane %v2972, 4
      %v2975 = vor.u32 %v2974, %v2970
      %v2976 = vrot.slane %v2975, 4
      %v2978 = vshll.u32 %v2741, 16
      %v2980 = vrot.slane %v2978, 5
      %v2981 = vsel %vm277, %v2976, %v2980
      %s2982 = scalar_lea.vmem %s1, 448
      %v2983 = vld [vmem:[%s2982] sm:$0xf]
      %v2984 = vld [vmem:[%s2982 + $0x4] sm:$0xf]
      %v2985 = vld [vmem:[%s2982 + $0x8] sm:$0xf]
      %v2986 = vld [vmem:[%s2982 + $0xc] sm:$0xf]
      %v2987 = vld [vmem:[%s2982 + $0x10] sm:$0xf]
      %v2988 = vld [vmem:[%s2982 + $0x14] sm:$0xf]
      %v2989 = vld [vmem:[%s2982 + $0x18] sm:$0xf]
      %v2990 = vld [vmem:[%s2982 + $0x1c] sm:$0xf]
      %v2991 = vld [vmem:[%s2982 + $0x20] sm:$0xf]
      %v2992 = vld [vmem:[%s2982 + $0x24] sm:$0xf]
      %v2993 = vld [vmem:[%s2982 + $0x28] sm:$0xf]
      %v2994 = vld [vmem:[%s2982 + $0x2c] sm:$0xf]
      %v2995 = vld [vmem:[%s2982 + $0x30] sm:$0xf]
      %v2996 = vld [vmem:[%s2982 + $0x34] sm:$0xf]
      %v2997 = vld [vmem:[%s2982 + $0x38] sm:$0xf]
      %v2998 = vld [vmem:[%s2982 + $0x3c] sm:$0xf]
      %v2999 = vunpack.c.l.b16 %v2755
      %v3000 = vunpack.c.l.b16 %v2765
      %v3001 = vunpack.c.l.b16 %v2779
      %v3002 = vunpack.c.l.b16 %v2789
      %v3003 = vunpack.c.l.b16 %v2803
      %v3004 = vunpack.c.l.b16 %v2813
      %v3005 = vunpack.c.l.b16 %v2827
      %v3006 = vunpack.c.l.b16 %v2837
      %v3007 = vunpack.c.l.b16 %v2851
      %v3008 = vunpack.c.l.b16 %v2861
      %v3009 = vunpack.c.l.b16 %v2875
      %v3010 = vunpack.c.l.b16 %v2885
      %v3011 = vunpack.c.l.b16 %v2899
      %v3012 = vunpack.c.l.b16 %v2909
      %v3013 = vunpack.c.l.b16 %v2923
      %v3014 = vunpack.c.l.b16 %v2933
      %v3015 = vunpack.c.l.b16 %v2947
      %v3016 = vunpack.c.l.b16 %v2957
      %v3017 = vunpack.c.l.b16 %v2971
      %v3018 = vunpack.c.l.b16 %v2981
      %v3019 = vpack.c.b16 %v3000, %v2999
      %v3020 = vpack.c.b16 %v3002, %v3001
      %v3021 = vpack.c.b16 %v3004, %v3003
      %v3022 = vpack.c.b16 %v3006, %v3005
      %v3023 = vpack.c.b16 %v3008, %v3007
      %v3024 = vpack.c.b16 %v3010, %v3009
      %v3025 = vpack.c.b16 %v3012, %v3011
      %v3026 = vpack.c.b16 %v3014, %v3013
      %v3027 = vpack.c.b16 %v3016, %v3015
      %v3028 = vpack.c.b16 %v3018, %v3017
      %v3055 = vunpack.c.l.b16 %v2983
      %v3056 = vunpack.c.l.b16 %v2984
      %v3057 = vunpack.c.l.b16 %v2985
      %v3058 = vunpack.c.l.b16 %v2986
      %v3059 = vunpack.c.l.b16 %v2987
      %v3060 = vunpack.c.l.b16 %v2988
      %v3061 = vunpack.c.l.b16 %v2989
      %v3062 = vunpack.c.l.b16 %v2990
      %v3063 = vunpack.c.l.b16 %v2991
      %v3064 = vunpack.c.l.b16 %v2992
      %v3065 = vunpack.c.l.b16 %v2993
      %v3066 = vunpack.c.l.b16 %v2994
      %v3067 = vunpack.c.l.b16 %v2995
      %v3068 = vunpack.c.l.b16 %v2996
      %v3069 = vunpack.c.l.b16 %v2997
      %v3070 = vunpack.c.l.b16 %v2998
      %v3071 = vpack.c.b16 %v3056, %v3055
      %v3072 = vpack.c.b16 %v3058, %v3057
      %v3073 = vpack.c.b16 %v3060, %v3059
      %v3074 = vpack.c.b16 %v3062, %v3061
      %v3075 = vpack.c.b16 %v3064, %v3063
      %v3076 = vpack.c.b16 %v3066, %v3065
      %v3077 = vpack.c.b16 %v3068, %v3067
      %v3078 = vpack.c.b16 %v3070, %v3069
      %3087 = vmatprep.subr.bf16.mxu0 0
      %3088 = vmatpush1.bf16.msra.mxu0 %v3071
      %3089 = vmatprep.subr.bf16.mxu0 0
      %3090 = vmatpush1.bf16.msra.mxu0 %v3072
      %3091 = vmatprep.subr.bf16.mxu0 0
      %3092 = vmatpush1.bf16.msra.mxu0 %v3073
      %3093 = vmatprep.subr.bf16.mxu0 0
      %3094 = vmatpush1.bf16.msra.mxu0 %v3074
      %3095 = vmatprep.subr.bf16.mxu0 0
      %3096 = vmatpush1.bf16.msra.mxu0 %v3075
      %3097 = vmatprep.subr.bf16.mxu0 0
      %3098 = vmatpush1.bf16.msra.mxu0 %v3076
      %3099 = vmatprep.subr.bf16.mxu0 0
      %3100 = vmatpush1.bf16.msra.mxu0 %v3077
      %3101 = vmatprep.subr.bf16.mxu0 0
      %3102 = vmatpush1.bf16.msra.mxu0 %v3078
      %3103 = vmatprep.subr.bf16.mxu0 0
      %3104 = vmatpush1.bf16.msra.mxu0 0
      %3105 = vmatprep.subr.bf16.mxu0 0
      %3106 = vmatpush1.bf16.msra.mxu0 0
      %3107 = vmatprep.subr.bf16.mxu0 0
      %3108 = vmatpush1.bf16.msra.mxu0 0
      %3109 = vmatprep.subr.bf16.mxu0 0
      %3110 = vmatpush1.bf16.msra.mxu0 0
      %3111 = vmatprep.subr.bf16.mxu0 0
      %3112 = vmatpush1.bf16.msra.mxu0 0
      %3113 = vmatprep.subr.bf16.mxu0 0
      %3114 = vmatpush1.bf16.msra.mxu0 0
      %3115 = vmatprep.subr.bf16.mxu0 0
      %3116 = vmatpush1.bf16.msra.mxu0 0
      %3117 = vmatprep.subr.bf16.mxu0 0
      %3118 = vmatpush1.bf16.msra.mxu0 0
      %3119 = vmatprep.mubr.bf16.mxu0 0
      %3120 = vmatmul.mubr.bf16.gmra.mrb[0].mxu0 %v3019
      %v3121 = vpop.f32.mrb[0].mxu0
      %v3122 = vadd.f32 0.0, %v3121
      %v3123 = vpop.f32.mrb[0].mxu0
      %v3124 = vpop.f32.mrb[0].mxu0
      %v3125 = vadd.f32 0.0, %v3124
      %v3126 = vpop.f32.mrb[0].mxu0
      %3127 = vmatprep.mubr.bf16.mxu0 0
      %3128 = vmatmul.mubr.bf16.gmra.mrb[0].mxu0 %v3020
      %v3129 = vpop.f32.mrb[0].mxu0
      %v3130 = vadd.f32 0.0, %v3129
      %v3131 = vpop.f32.mrb[0].mxu0
      %v3132 = vpop.f32.mrb[0].mxu0
      %v3133 = vadd.f32 0.0, %v3132
      %v3134 = vpop.f32.mrb[0].mxu0
      %3135 = vmatprep.mubr.bf16.mxu0 0
      %3136 = vmatmul.mubr.bf16.gmra.mrb[0].mxu0 %v3021
      %v3137 = vpop.f32.mrb[0].mxu0
      %v3138 = vadd.f32 0.0, %v3137
      %v3139 = vpop.f32.mrb[0].mxu0
      %v3140 = vpop.f32.mrb[0].mxu0
      %v3141 = vadd.f32 0.0, %v3140
      %v3142 = vpop.f32.mrb[0].mxu0
      %3143 = vmatprep.mubr.bf16.mxu0 0
      %3144 = vmatmul.mubr.bf16.gmra.mrb[0].mxu0 %v3022
      %v3145 = vpop.f32.mrb[0].mxu0
      %v3146 = vadd.f32 0.0, %v3145
      %v3147 = vpop.f32.mrb[0].mxu0
      %v3148 = vpop.f32.mrb[0].mxu0
      %v3149 = vadd.f32 0.0, %v3148
      %v3150 = vpop.f32.mrb[0].mxu0
      %3151 = vmatprep.mubr.bf16.mxu0 0
      %3152 = vmatmul.mubr.bf16.gmra.mrb[0].mxu0 %v3023
      %v3153 = vpop.f32.mrb[0].mxu0
      %v3154 = vadd.f32 0.0, %v3153
      %v3155 = vpop.f32.mrb[0].mxu0
      %v3156 = vpop.f32.mrb[0].mxu0
      %v3157 = vadd.f32 0.0, %v3156
      %v3158 = vpop.f32.mrb[0].mxu0
      %3159 = vmatprep.mubr.bf16.mxu0 0
      %3160 = vmatmul.mubr.bf16.gmra.mrb[0].mxu0 %v3024
      %v3161 = vpop.f32.mrb[0].mxu0
      %v3162 = vadd.f32 0.0, %v3161
      %v3163 = vpop.f32.mrb[0].mxu0
      %v3164 = vpop.f32.mrb[0].mxu0
      %v3165 = vadd.f32 0.0, %v3164
      %v3166 = vpop.f32.mrb[0].mxu0
      %3167 = vmatprep.mubr.bf16.mxu0 0
      %3168 = vmatmul.mubr.bf16.gmra.mrb[0].mxu0 %v3025
      %v3169 = vpop.f32.mrb[0].mxu0
      %v3170 = vadd.f32 0.0, %v3169
      %v3171 = vpop.f32.mrb[0].mxu0
      %v3172 = vpop.f32.mrb[0].mxu0
      %v3173 = vadd.f32 0.0, %v3172
      %v3174 = vpop.f32.mrb[0].mxu0
      %3175 = vmatprep.mubr.bf16.mxu0 0
      %3176 = vmatmul.mubr.bf16.gmra.mrb[0].mxu0 %v3026
      %v3177 = vpop.f32.mrb[0].mxu0
      %v3178 = vadd.f32 0.0, %v3177
      %v3179 = vpop.f32.mrb[0].mxu0
      %v3180 = vpop.f32.mrb[0].mxu0
      %v3181 = vadd.f32 0.0, %v3180
      %v3182 = vpop.f32.mrb[0].mxu0
      %3183 = vmatprep.mubr.bf16.mxu0 0
      %3184 = vmatmul.mubr.bf16.gmra.mrb[0].mxu0 %v3027
      %v3185 = vpop.f32.mrb[0].mxu0
      %v3186 = vadd.f32 0.0, %v3185
      %v3187 = vpop.f32.mrb[0].mxu0
      %v3188 = vpop.f32.mrb[0].mxu0
      %v3189 = vadd.f32 0.0, %v3188
      %v3190 = vpop.f32.mrb[0].mxu0
      %3191 = vmatprep.mubr.bf16.mxu0 0
      %3192 = vmatmul.mubr.bf16.gmra.mrb[0].mxu0 %v3028
      %v3193 = vpop.f32.mrb[0].mxu0
      %v3194 = vadd.f32 0.0, %v3193
      %v3195 = vpop.f32.mrb[0].mxu0
      %v3196 = vpop.f32.mrb[0].mxu0
      %v3197 = vadd.f32 0.0, %v3196
      %v3198 = vpop.f32.mrb[0].mxu0
      %3199 = vdwg.mxu0
      %v3200 = vadd.f32 %v2692, %v3122
      %v3201 = vadd.f32 %v2693, %v3125
      %v3202 = vadd.f32 %v2694, %v3130
      %v3203 = vadd.f32 %v2695, %v3133
      %v3204 = vadd.f32 %v2696, %v3138
      %v3205 = vadd.f32 %v2697, %v3141
      %v3206 = vadd.f32 %v2698, %v3146
      %v3207 = vadd.f32 %v2699, %v3149
      %v3208 = vadd.f32 %v2700, %v3154
      %v3209 = vadd.f32 %v2701, %v3157
      %v3210 = vadd.f32 %v2702, %v3162
      %v3211 = vadd.f32 %v2703, %v3165
      %v3212 = vadd.f32 %v2704, %v3170
      %v3213 = vadd.f32 %v2705, %v3173
      %v3214 = vadd.f32 %v2706, %v3178
      %v3215 = vadd.f32 %v2707, %v3181
      %v3216 = vadd.f32 %v2708, %v3186
      %v3217 = vadd.f32 %v2709, %v3189
      %v3218 = vadd.f32 %v2710, %v3194
      %v3219 = vadd.f32 %v2711, %v3197
      %v3220 = vld [vmem:[%s2433] sm:$0xe]
      %v3221 = vld [vmem:[%s2433 + $0xc] sm:$0xe]
      %v3222 = vld [vmem:[%s2433 + $0x18] sm:$0xe]
      %v3223 = vld [vmem:[%s2433 + $0x24] sm:$0xe]
      %v3224 = vld [vmem:[%s2433 + $0x30] sm:$0xe]
      %v3225 = vld [vmem:[%s2433 + $0x3c] sm:$0xe]
      %v3226 = vld [vmem:[%s2433 + $0x48] sm:$0xe]
      %v3227 = vld [vmem:[%s2433 + $0x54] sm:$0xe]
      %v3228 = vld [vmem:[%s2433 + $0x60] sm:$0xe]
      %v3229 = vld [vmem:[%s2433 + $0x6c] sm:$0xe]
      %v3260 = vrot.slane %v3220, 5
      %v3261 = vrot.slane %v3260, 4
      %v3262 = vrot.slane %v2713, 5
      %v3263 = vsel %vm989, %v3261, %v3262
      %v3264 = vrot.slane %v3262, 4
      %v3265 = vrot.slane %v2714, 5
      %v3266 = vsel %vm989, %v3264, %v3265
      %v3267 = vrot.slane %v3221, 5
      %v3268 = vrot.slane %v3267, 4
      %v3269 = vrot.slane %v2716, 5
      %v3270 = vsel %vm989, %v3268, %v3269
      %v3271 = vrot.slane %v3269, 4
      %v3272 = vrot.slane %v2717, 5
      %v3273 = vsel %vm989, %v3271, %v3272
      %v3274 = vrot.slane %v3222, 5
      %v3275 = vrot.slane %v3274, 4
      %v3276 = vrot.slane %v2719, 5
      %v3277 = vsel %vm989, %v3275, %v3276
      %v3278 = vrot.slane %v3276, 4
      %v3279 = vrot.slane %v2720, 5
      %v3280 = vsel %vm989, %v3278, %v3279
      %v3281 = vrot.slane %v3223, 5
      %v3282 = vrot.slane %v3281, 4
      %v3283 = vrot.slane %v2722, 5
      %v3284 = vsel %vm989, %v3282, %v3283
      %v3285 = vrot.slane %v3283, 4
      %v3286 = vrot.slane %v2723, 5
      %v3287 = vsel %vm989, %v3285, %v3286
      %v3288 = vrot.slane %v3224, 5
      %v3289 = vrot.slane %v3288, 4
      %v3290 = vrot.slane %v2725, 5
      %v3291 = vsel %vm989, %v3289, %v3290
      %v3292 = vrot.slane %v3290, 4
      %v3293 = vrot.slane %v2726, 5
      %v3294 = vsel %vm989, %v3292, %v3293
      %v3295 = vrot.slane %v3225, 5
      %v3296 = vrot.slane %v3295, 4
      %v3297 = vrot.slane %v2728, 5
      %v3298 = vsel %vm989, %v3296, %v3297
      %v3299 = vrot.slane %v3297, 4
      %v3300 = vrot.slane %v2729, 5
      %v3301 = vsel %vm989, %v3299, %v3300
      %v3302 = vrot.slane %v3226, 5
      %v3303 = vrot.slane %v3302, 4
      %v3304 = vrot.slane %v2731, 5
      %v3305 = vsel %vm989, %v3303, %v3304
      %v3306 = vrot.slane %v3304, 4
      %v3307 = vrot.slane %v2732, 5
      %v3308 = vsel %vm989, %v3306, %v3307
      %v3309 = vrot.slane %v3227, 5
      %v3310 = vrot.slane %v3309, 4
      %v3311 = vrot.slane %v2734, 5
      %v3312 = vsel %vm989, %v3310, %v3311
      %v3313 = vrot.slane %v3311, 4
      %v3314 = vrot.slane %v2735, 5
      %v3315 = vsel %vm989, %v3313, %v3314
      %v3316 = vrot.slane %v3228, 5
      %v3317 = vrot.slane %v3316, 4
      %v3318 = vrot.slane %v2737, 5
      %v3319 = vsel %vm989, %v3317, %v3318
      %v3320 = vrot.slane %v3318, 4
      %v3321 = vrot.slane %v2738, 5
      %v3322 = vsel %vm989, %v3320, %v3321
      %v3323 = vrot.slane %v3229, 5
      %v3324 = vrot.slane %v3323, 4
      %v3325 = vrot.slane %v2740, 5
      %v3326 = vsel %vm989, %v3324, %v3325
      %v3327 = vrot.slane %v3325, 4
      %v3328 = vrot.slane %v2741, 5
      %v3329 = vsel %vm989, %v3327, %v3328
      %s3330 = scalar_lea.vmem %s1, 512
      %v3331 = vld [vmem:[%s3330] sm:$0xf]
      %v3332 = vld [vmem:[%s3330 + $0x4] sm:$0xf]
      %v3333 = vld [vmem:[%s3330 + $0x8] sm:$0xf]
      %v3334 = vld [vmem:[%s3330 + $0xc] sm:$0xf]
      %v3335 = vld [vmem:[%s3330 + $0x10] sm:$0xf]
      %v3336 = vld [vmem:[%s3330 + $0x14] sm:$0xf]
      %v3337 = vld [vmem:[%s3330 + $0x18] sm:$0xf]
      %v3338 = vld [vmem:[%s3330 + $0x1c] sm:$0xf]
      %v3339 = vld [vmem:[%s3330 + $0x20] sm:$0xf]
      %v3340 = vld [vmem:[%s3330 + $0x24] sm:$0xf]
      %v3341 = vld [vmem:[%s3330 + $0x28] sm:$0xf]
      %v3342 = vld [vmem:[%s3330 + $0x2c] sm:$0xf]
      %v3343 = vld [vmem:[%s3330 + $0x30] sm:$0xf]
      %v3344 = vld [vmem:[%s3330 + $0x34] sm:$0xf]
      %v3345 = vld [vmem:[%s3330 + $0x38] sm:$0xf]
      %v3346 = vld [vmem:[%s3330 + $0x3c] sm:$0xf]
      %v3347 = vunpack.c.l.b16 %v3263
      %v3348 = vunpack.c.l.b16 %v3266
      %v3349 = vunpack.c.l.b16 %v3270
      %v3350 = vunpack.c.l.b16 %v3273
      %v3351 = vunpack.c.l.b16 %v3277
      %v3352 = vunpack.c.l.b16 %v3280
      %v3353 = vunpack.c.l.b16 %v3284
      %v3354 = vunpack.c.l.b16 %v3287
      %v3355 = vunpack.c.l.b16 %v3291
      %v3356 = vunpack.c.l.b16 %v3294
      %v3357 = vunpack.c.l.b16 %v3298
      %v3358 = vunpack.c.l.b16 %v3301
      %v3359 = vunpack.c.l.b16 %v3305
      %v3360 = vunpack.c.l.b16 %v3308
      %v3361 = vunpack.c.l.b16 %v3312
      %v3362 = vunpack.c.l.b16 %v3315
      %v3363 = vunpack.c.l.b16 %v3319
      %v3364 = vunpack.c.l.b16 %v3322
      %v3365 = vunpack.c.l.b16 %v3326
      %v3366 = vunpack.c.l.b16 %v3329
      %v3367 = vpack.c.b16 %v3348, %v3347
      %v3368 = vpack.c.b16 %v3350, %v3349
      %v3369 = vpack.c.b16 %v3352, %v3351
      %v3370 = vpack.c.b16 %v3354, %v3353
      %v3371 = vpack.c.b16 %v3356, %v3355
      %v3372 = vpack.c.b16 %v3358, %v3357
      %v3373 = vpack.c.b16 %v3360, %v3359
      %v3374 = vpack.c.b16 %v3362, %v3361
      %v3375 = vpack.c.b16 %v3364, %v3363
      %v3376 = vpack.c.b16 %v3366, %v3365
      %v3403 = vunpack.c.l.b16 %v3331
      %v3404 = vunpack.c.l.b16 %v3332
      %v3405 = vunpack.c.l.b16 %v3333
      %v3406 = vunpack.c.l.b16 %v3334
      %v3407 = vunpack.c.l.b16 %v3335
      %v3408 = vunpack.c.l.b16 %v3336
      %v3409 = vunpack.c.l.b16 %v3337
      %v3410 = vunpack.c.l.b16 %v3338
      %v3411 = vunpack.c.l.b16 %v3339
      %v3412 = vunpack.c.l.b16 %v3340
      %v3413 = vunpack.c.l.b16 %v3341
      %v3414 = vunpack.c.l.b16 %v3342
      %v3415 = vunpack.c.l.b16 %v3343
      %v3416 = vunpack.c.l.b16 %v3344
      %v3417 = vunpack.c.l.b16 %v3345
      %v3418 = vunpack.c.l.b16 %v3346
      %v3419 = vpack.c.b16 %v3404, %v3403
      %v3420 = vpack.c.b16 %v3406, %v3405
      %v3421 = vpack.c.b16 %v3408, %v3407
      %v3422 = vpack.c.b16 %v3410, %v3409
      %v3423 = vpack.c.b16 %v3412, %v3411
      %v3424 = vpack.c.b16 %v3414, %v3413
      %v3425 = vpack.c.b16 %v3416, %v3415
      %v3426 = vpack.c.b16 %v3418, %v3417
      %3435 = vmatprep.subr.bf16.mxu0 0
      %3436 = vmatpush1.bf16.msra.mxu0 %v3419
      %3437 = vmatprep.subr.bf16.mxu0 0
      %3438 = vmatpush1.bf16.msra.mxu0 %v3420
      %3439 = vmatprep.subr.bf16.mxu0 0
      %3440 = vmatpush1.bf16.msra.mxu0 %v3421
      %3441 = vmatprep.subr.bf16.mxu0 0
      %3442 = vmatpush1.bf16.msra.mxu0 %v3422
      %3443 = vmatprep.subr.bf16.mxu0 0
      %3444 = vmatpush1.bf16.msra.mxu0 %v3423
      %3445 = vmatprep.subr.bf16.mxu0 0
      %3446 = vmatpush1.bf16.msra.mxu0 %v3424
      %3447 = vmatprep.subr.bf16.mxu0 0
      %3448 = vmatpush1.bf16.msra.mxu0 %v3425
      %3449 = vmatprep.subr.bf16.mxu0 0
      %3450 = vmatpush1.bf16.msra.mxu0 %v3426
      %3451 = vmatprep.subr.bf16.mxu0 0
      %3452 = vmatpush1.bf16.msra.mxu0 0
      %3453 = vmatprep.subr.bf16.mxu0 0
      %3454 = vmatpush1.bf16.msra.mxu0 0
      %3455 = vmatprep.subr.bf16.mxu0 0
      %3456 = vmatpush1.bf16.msra.mxu0 0
      %3457 = vmatprep.subr.bf16.mxu0 0
      %3458 = vmatpush1.bf16.msra.mxu0 0
      %3459 = vmatprep.subr.bf16.mxu0 0
      %3460 = vmatpush1.bf16.msra.mxu0 0
      %3461 = vmatprep.subr.bf16.mxu0 0
      %3462 = vmatpush1.bf16.msra.mxu0 0
      %3463 = vmatprep.subr.bf16.mxu0 0
      %3464 = vmatpush1.bf16.msra.mxu0 0
      %3465 = vmatprep.subr.bf16.mxu0 0
      %3466 = vmatpush1.bf16.msra.mxu0 0
      %3467 = vmatprep.mubr.bf16.mxu0 0
      %3468 = vmatmul.mubr.bf16.gmra.mrb[0].mxu0 %v3367
      %v3469 = vpop.f32.mrb[0].mxu0
      %v3470 = vadd.f32 0.0, %v3469
      %v3471 = vpop.f32.mrb[0].mxu0
      %v3472 = vpop.f32.mrb[0].mxu0
      %v3473 = vadd.f32 0.0, %v3472
      %v3474 = vpop.f32.mrb[0].mxu0
      %3475 = vmatprep.mubr.bf16.mxu0 0
      %3476 = vmatmul.mubr.bf16.gmra.mrb[0].mxu0 %v3368
      %v3477 = vpop.f32.mrb[0].mxu0
      %v3478 = vadd.f32 0.0, %v3477
      %v3479 = vpop.f32.mrb[0].mxu0
      %v3480 = vpop.f32.mrb[0].mxu0
      %v3481 = vadd.f32 0.0, %v3480
      %v3482 = vpop.f32.mrb[0].mxu0
      %3483 = vmatprep.mubr.bf16.mxu0 0
      %3484 = vmatmul.mubr.bf16.gmra.mrb[0].mxu0 %v3369
      %v3485 = vpop.f32.mrb[0].mxu0
      %v3486 = vadd.f32 0.0, %v3485
      %v3487 = vpop.f32.mrb[0].mxu0
      %v3488 = vpop.f32.mrb[0].mxu0
      %v3489 = vadd.f32 0.0, %v3488
      %v3490 = vpop.f32.mrb[0].mxu0
      %3491 = vmatprep.mubr.bf16.mxu0 0
      %3492 = vmatmul.mubr.bf16.gmra.mrb[0].mxu0 %v3370
      %v3493 = vpop.f32.mrb[0].mxu0
      %v3494 = vadd.f32 0.0, %v3493
      %v3495 = vpop.f32.mrb[0].mxu0
      %v3496 = vpop.f32.mrb[0].mxu0
      %v3497 = vadd.f32 0.0, %v3496
      %v3498 = vpop.f32.mrb[0].mxu0
      %3499 = vmatprep.mubr.bf16.mxu0 0
      %3500 = vmatmul.mubr.bf16.gmra.mrb[0].mxu0 %v3371
      %v3501 = vpop.f32.mrb[0].mxu0
      %v3502 = vadd.f32 0.0, %v3501
      %v3503 = vpop.f32.mrb[0].mxu0
      %v3504 = vpop.f32.mrb[0].mxu0
      %v3505 = vadd.f32 0.0, %v3504
      %v3506 = vpop.f32.mrb[0].mxu0
      %3507 = vmatprep.mubr.bf16.mxu0 0
      %3508 = vmatmul.mubr.bf16.gmra.mrb[0].mxu0 %v3372
      %v3509 = vpop.f32.mrb[0].mxu0
      %v3510 = vadd.f32 0.0, %v3509
      %v3511 = vpop.f32.mrb[0].mxu0
      %v3512 = vpop.f32.mrb[0].mxu0
      %v3513 = vadd.f32 0.0, %v3512
      %v3514 = vpop.f32.mrb[0].mxu0
      %3515 = vmatprep.mubr.bf16.mxu0 0
      %3516 = vmatmul.mubr.bf16.gmra.mrb[0].mxu0 %v3373
      %v3517 = vpop.f32.mrb[0].mxu0
      %v3518 = vadd.f32 0.0, %v3517
      %v3519 = vpop.f32.mrb[0].mxu0
      %v3520 = vpop.f32.mrb[0].mxu0
      %v3521 = vadd.f32 0.0, %v3520
      %v3522 = vpop.f32.mrb[0].mxu0
      %3523 = vmatprep.mubr.bf16.mxu0 0
      %3524 = vmatmul.mubr.bf16.gmra.mrb[0].mxu0 %v3374
      %v3525 = vpop.f32.mrb[0].mxu0
      %v3526 = vadd.f32 0.0, %v3525
      %v3527 = vpop.f32.mrb[0].mxu0
      %v3528 = vpop.f32.mrb[0].mxu0
      %v3529 = vadd.f32 0.0, %v3528
      %v3530 = vpop.f32.mrb[0].mxu0
      %3531 = vmatprep.mubr.bf16.mxu0 0
      %3532 = vmatmul.mubr.bf16.gmra.mrb[0].mxu0 %v3375
      %v3533 = vpop.f32.mrb[0].mxu0
      %v3534 = vadd.f32 0.0, %v3533
      %v3535 = vpop.f32.mrb[0].mxu0
      %v3536 = vpop.f32.mrb[0].mxu0
      %v3537 = vadd.f32 0.0, %v3536
      %v3538 = vpop.f32.mrb[0].mxu0
      %3539 = vmatprep.mubr.bf16.mxu0 0
      %3540 = vmatmul.mubr.bf16.gmra.mrb[0].mxu0 %v3376
      %v3541 = vpop.f32.mrb[0].mxu0
      %v3542 = vadd.f32 0.0, %v3541
      %v3543 = vpop.f32.mrb[0].mxu0
      %v3544 = vpop.f32.mrb[0].mxu0
      %v3545 = vadd.f32 0.0, %v3544
      %v3546 = vpop.f32.mrb[0].mxu0
      %3547 = vdwg.mxu0
      %v3548 = vadd.f32 %v3200, %v3470
      %v3549 = vadd.f32 %v3201, %v3473
      %v3550 = vadd.f32 %v3202, %v3478
      %v3551 = vadd.f32 %v3203, %v3481
      %v3552 = vadd.f32 %v3204, %v3486
      %v3553 = vadd.f32 %v3205, %v3489
      %v3554 = vadd.f32 %v3206, %v3494
      %v3555 = vadd.f32 %v3207, %v3497
      %v3556 = vadd.f32 %v3208, %v3502
      %v3557 = vadd.f32 %v3209, %v3505
      %v3558 = vadd.f32 %v3210, %v3510
      %v3559 = vadd.f32 %v3211, %v3513
      %v3560 = vadd.f32 %v3212, %v3518
      %v3561 = vadd.f32 %v3213, %v3521
      %v3562 = vadd.f32 %v3214, %v3526
      %v3563 = vadd.f32 %v3215, %v3529
      %v3564 = vadd.f32 %v3216, %v3534
      %v3565 = vadd.f32 %v3217, %v3537
      %v3566 = vadd.f32 %v3218, %v3542
      %v3567 = vadd.f32 %v3219, %v3545
      %v3568 = vpack.c.bf16 %v3549, %v3548
      %v3569 = vpack.c.bf16 %v3551, %v3550
      %v3570 = vpack.c.bf16 %v3553, %v3552
      %v3571 = vpack.c.bf16 %v3555, %v3554
      %v3572 = vpack.c.bf16 %v3557, %v3556
      %v3573 = vpack.c.bf16 %v3559, %v3558
      %v3574 = vpack.c.bf16 %v3561, %v3560
      %v3575 = vpack.c.bf16 %v3563, %v3562
      %v3576 = vpack.c.bf16 %v3565, %v3564
      %v3577 = vpack.c.bf16 %v3567, %v3566
      %v3588 = vunpack.c.l.b16 %v3568
      %v3589 = vunpack.c.h.b16 %v3568
      %v3590 = vunpack.c.l.b16 %v3569
      %v3591 = vunpack.c.h.b16 %v3569
      %v3592 = vunpack.c.l.b16 %v3570
      %v3593 = vunpack.c.h.b16 %v3570
      %v3594 = vunpack.c.l.b16 %v3571
      %v3595 = vunpack.c.h.b16 %v3571
      %v3596 = vunpack.c.l.b16 %v3572
      %v3597 = vunpack.c.h.b16 %v3572
      %v3598 = vunpack.c.l.b16 %v3573
      %v3599 = vunpack.c.h.b16 %v3573
      %v3600 = vunpack.c.l.b16 %v3574
      %v3601 = vunpack.c.h.b16 %v3574
      %v3602 = vunpack.c.l.b16 %v3575
      %v3603 = vunpack.c.h.b16 %v3575
      %v3604 = vunpack.c.l.b16 %v3576
      %v3605 = vunpack.c.h.b16 %v3576
      %v3606 = vunpack.c.l.b16 %v3577
      %v3607 = vunpack.c.h.b16 %v3577
      %v3608 = vpack.c.b16 %v3588, %v3588
      %v3609 = vpack.c.b16 %v3589, %v3589
      %v3610 = vpack.c.b16 %v3590, %v3590
      %v3611 = vpack.c.b16 %v3591, %v3591
      %v3612 = vpack.c.b16 %v3592, %v3592
      %v3613 = vpack.c.b16 %v3593, %v3593
      %v3614 = vpack.c.b16 %v3594, %v3594
      %v3615 = vpack.c.b16 %v3595, %v3595
      %v3616 = vpack.c.b16 %v3596, %v3596
      %v3617 = vpack.c.b16 %v3597, %v3597
      %v3618 = vpack.c.b16 %v3598, %v3598
      %v3619 = vpack.c.b16 %v3599, %v3599
      %v3620 = vpack.c.b16 %v3600, %v3600
      %v3621 = vpack.c.b16 %v3601, %v3601
      %v3622 = vpack.c.b16 %v3602, %v3602
      %v3623 = vpack.c.b16 %v3603, %v3603
      %v3624 = vpack.c.b16 %v3604, %v3604
      %v3625 = vpack.c.b16 %v3605, %v3605
      %v3626 = vpack.c.b16 %v3606, %v3606
      %v3627 = vpack.c.b16 %v3607, %v3607
      %3648 = vst [vmem:[%s219] sm:$0xf] %v3608
      %3649 = vst [vmem:[%s219 + $0x4] sm:$0xf] %v3609
      %3650 = vst [vmem:[%s219 + $0x8] sm:$0xf] %v3610
      %3651 = vst [vmem:[%s219 + $0xc] sm:$0xf] %v3611
      %3652 = vst [vmem:[%s219 + $0x10] sm:$0xf] %v3612
      %3653 = vst [vmem:[%s219 + $0x14] sm:$0xf] %v3613
      %3654 = vst [vmem:[%s219 + $0x18] sm:$0xf] %v3614
      %3655 = vst [vmem:[%s219 + $0x1c] sm:$0xf] %v3615
      %3656 = vst [vmem:[%s219 + $0x20] sm:$0xf] %v3616
      %3657 = vst [vmem:[%s219 + $0x24] sm:$0xf] %v3617
      %3658 = vst [vmem:[%s219 + $0x28] sm:$0xf] %v3618
      %3659 = vst [vmem:[%s219 + $0x2c] sm:$0xf] %v3619
      %3660 = vst [vmem:[%s219 + $0x30] sm:$0xf] %v3620
      %3661 = vst [vmem:[%s219 + $0x34] sm:$0xf] %v3621
      %3662 = vst [vmem:[%s219 + $0x38] sm:$0xf] %v3622
      %3663 = vst [vmem:[%s219 + $0x3c] sm:$0xf] %v3623
      %3664 = vst [vmem:[%s219 + $0x40] sm:$0xf] %v3624
      %3665 = vst [vmem:[%s219 + $0x44] sm:$0xf] %v3625
      %3666 = vst [vmem:[%s219 + $0x48] sm:$0xf] %v3626
      %3667 = vst [vmem:[%s219 + $0x4c] sm:$0xf] %v3627
      %v3668 = vadd.f32 %v3550, %v3551
      %v3669 = vadd.f32 %v3668, %v3552
      %v3670 = vadd.f32 %v3669, %v3553
      %v3671 = vadd.f32 %v3670, %v3554
      %v3672 = vadd.f32 %v3671, %v3555
      %v3673 = vadd.f32 %v3672, %v3556
      %v3674 = vadd.f32 %v3673, %v3557
      %v3675 = vadd.f32 %v3674, %v3558
      %v3676 = vadd.f32 %v3675, %v3559
      %v3677 = vadd.f32 %v3676, %v3560
      %v3678 = vadd.f32 %v3677, %v3561
      %v3679 = vadd.f32 %v3678, %v3562
      %v3680 = vadd.f32 %v3679, %v3563
      %v3681 = vadd.f32 %v3680, %v3564
      %v3682 = vadd.f32 %v3681, %v3565
      %v3683 = vrot.slane %v3682, 4
      %v3684 = vadd.f32 %v3682, %v3683
      %v3685 = vrot.slane %v3684, 2
      %v3686 = vadd.f32 %v3684, %v3685
      %v3687 = vrot.slane %v3686, 1
      %v3688 = vadd.f32 %v3686, %v3687
      %3689 = vst [vmem:[%s227] sm:$0x1] %v3688
      %v3690 = vmul.f32 %v3550, %v3550
      %v3691 = vmul.f32 %v3551, %v3551
      %v3692 = vmul.f32 %v3552, %v3552
      %v3693 = vmul.f32 %v3553, %v3553
      %v3694 = vmul.f32 %v3554, %v3554
      %v3695 = vmul.f32 %v3555, %v3555
      %v3696 = vmul.f32 %v3556, %v3556
      %v3697 = vmul.f32 %v3557, %v3557
      %v3698 = vmul.f32 %v3558, %v3558
      %v3699 = vmul.f32 %v3559, %v3559
      %v3700 = vmul.f32 %v3560, %v3560
      %v3701 = vmul.f32 %v3561, %v3561
      %v3702 = vmul.f32 %v3562, %v3562
      %v3703 = vmul.f32 %v3563, %v3563
      %v3704 = vmul.f32 %v3564, %v3564
      %v3705 = vmul.f32 %v3565, %v3565
      %v3706 = vadd.f32 %v3690, %v3691
      %v3707 = vadd.f32 %v3706, %v3692
      %v3708 = vadd.f32 %v3707, %v3693
      %v3709 = vadd.f32 %v3708, %v3694
      %v3710 = vadd.f32 %v3709, %v3695
      %v3711 = vadd.f32 %v3710, %v3696
      %v3712 = vadd.f32 %v3711, %v3697
      %v3713 = vadd.f32 %v3712, %v3698
      %v3714 = vadd.f32 %v3713, %v3699
      %v3715 = vadd.f32 %v3714, %v3700
      %v3716 = vadd.f32 %v3715, %v3701
      %v3717 = vadd.f32 %v3716, %v3702
      %v3718 = vadd.f32 %v3717, %v3703
      %v3719 = vadd.f32 %v3718, %v3704
      %v3720 = vadd.f32 %v3719, %v3705
      %v3721 = vrot.slane %v3720, 4
      %v3722 = vadd.f32 %v3720, %v3721
      %v3723 = vrot.slane %v3722, 2
      %v3724 = vadd.f32 %v3722, %v3723
      %v3725 = vrot.slane %v3724, 1
      %v3726 = vadd.f32 %v3724, %v3725
      %3727 = vst [vmem:[%s227 + $0x1] sm:$0x1] %v3726
      %p3728 = scmp.lt.s32.totalorder %s19, 1
      %s3729 = scalar_select %p3728, %s19, 1
      %p3730 = scmp.lt.s32.totalorder %s20, 1
      %s3731 = scalar_select %p3730, %s20, 1
      %s3732 = smul.addr %s3731, 20
      %s3733 = smul.addr %s3729, 40
      %s3734 = sadd.s32 %s3732, %s3733
      %s3735 = smul.addr %s3734, 4
      %s3736 = scalar_lea.vmem %s2, %s3735
      %p3737 = scmp.lt.s32.totalorder %s19, 1
      %s3738 = scalar_select %p3737, %s19, 1
      %p3739 = scmp.lt.s32.totalorder %s20, 1
      %s3740 = scalar_select %p3739, %s20, 1
      %s3741 = smul.addr %s3738, 2
      %s3742 = sadd.s32 %s3740, %s3741
      %s3743 = smul.addr %s3742, 2
      %s3744 = scalar_lea.vmem %s3, %s3743
      // Predicated region
      $region29: #{residual_block_forward.3} parent=27 // pred_check
        %p3745 = pneg %p96
      $region30: #{residual_block_forward.3} parent=27 // pred_check_branch
        %3747 = sbr.rel (%p3745) target = $region32
      $region31: #{residual_block_forward.3} parent=27 // pred_region
        _
      $region32: #{residual_block_forward.3} parent=27 // pred_fallthru
        _
      // Predicated region
      $region33: #{residual_block_forward.3} parent=27 // pred_check
        %p3748 = pneg %p124
      $region34: #{residual_block_forward.3} parent=27 // pred_check_branch
        %3750 = sbr.rel (%p3748) target = $region36
      $region35: #{residual_block_forward.3} parent=27 // pred_region
        _
      $region36: #{residual_block_forward.3} parent=27 // pred_fallthru
        _
    $region28: #{residual_block_forward.3} parent=5 // pred_fallthru
      _
    %p3751 = scmp.le.s32.totalorder 2, %s10
    // Predicated region
    $region37: #{residual_block_forward.3} parent=5 // pred_check
      %p3752 = pneg %p3751
    $region38: #{residual_block_forward.3} parent=5 // pred_check_branch
      %3754 = sbr.rel (%p3752) target = $region40
    $region39: #{residual_block_forward.3} parent=5 // pred_region
      %s3755 = ssub.s32 %s10, 2
      // Predicated region
      $region41: #{residual_block_forward.3} parent=39 // pred_check
        %p3756 = pneg %p102
      $region42: #{residual_block_forward.3} parent=39 // pred_check_branch
        %3758 = sbr.rel (%p3756) target = $region44
      $region43: #{residual_block_forward.3} parent=39 // pred_region
        %p3759 = scmp.lt.s32.totalorder %s21, 1
        %s3760 = scalar_select %p3759, %s21, 1
        %p3761 = scmp.lt.s32.totalorder %s22, 1
        %s3762 = scalar_select %p3761, %s22, 1
        %s3763 = smul.addr %s3762, 20
        %s3764 = smul.addr %s3760, 40
        %s3765 = sadd.s32 %s3763, %s3764
        %s3766 = smul.addr %s3765, 4
        %s3767 = scalar_lea.vmem %s2, %s3766
      $region44: #{residual_block_forward.3} parent=39 // pred_fallthru
        _
      // Predicated region
      $region45: #{residual_block_forward.3} parent=39 // pred_check
        %p3768 = pneg %p130
      $region46: #{residual_block_forward.3} parent=39 // pred_check_branch
        %3770 = sbr.rel (%p3768) target = $region48
      $region47: #{residual_block_forward.3} parent=39 // pred_region
        %p3771 = scmp.lt.s32.totalorder %s21, 1
        %s3772 = scalar_select %p3771, %s21, 1
        %p3773 = scmp.lt.s32.totalorder %s22, 1
        %s3774 = scalar_select %p3773, %s22, 1
        %s3775 = smul.addr %s3772, 2
        %s3776 = sadd.s32 %s3774, %s3775
        %s3777 = smul.addr %s3776, 2
        %s3778 = scalar_lea.vmem %s3, %s3777
      $region48: #{residual_block_forward.3} parent=39 // pred_fallthru
        _
    $region40: #{residual_block_forward.3} parent=5 // pred_fallthru
      _
  $region6: #{residual_block_forward.3} parent=0 // loop_footer
    %s14 = sadd.s32 1, %s10
  $region7: #{residual_block_forward.3} parent=0 // loop_footer_branch
    %9 = sbr.rel target = $region3
  $region8: #{residual_block_forward.3} parent=0 // loop_exit
    _

// kernel: residual_block_forward.4
$region0: #{residual_block_forward.4}
  #allocation0 [shape = 'u32[]', space=smem, size = 0x4, offset = 0x4, fixed_abs, tag = 'smem constant byte address 0x4 - core index']
  #allocation1 [shape = 'u32[144,128]{1,0:T(1,128)}', space=vmem, size = 0x12000, scoped, tag = 'internal scratch']
  #allocation2 [shape = 'bf16[10,18,128]{2,1,0:T(8,128)(2,1)}', space=vmem, size = 0xf000, scoped, tag = 'scratch operand']
  %s0 = inlined_call_operand.vmem [shape: bf16[2,16,16,128], index: 0, kind: input, shape index: {}]
  %s1 = inlined_call_operand.vmem [shape: bf16[2,2,10,16,128], index: 1, kind: input, shape index: {}]
  %s2 = inlined_call_operand.vmem [shape: bf16[128,128], index: 2, kind: input, shape index: {}]
  %s3 = inlined_call_operand.vmem [shape: bf16[9,128,128], index: 3, kind: input, shape index: {}]
  %s4 = inlined_call_operand.vmem [shape: f32[1,128], index: 4, kind: input, shape index: {}]
  %s5 = inlined_call_operand.vmem [shape: f32[1,128], index: 5, kind: input, shape index: {}]
  %s6 = inlined_call_operand.vmem [shape: bf16[2,16,16,128], index: 6, kind: output, shape index: {0}]
  %s7 = inlined_call_operand.vmem [shape: f32[2,2,2,128], index: 7, kind: output, shape index: {1}]
  %8 = xla_tuple %s6, %s7
  %s9 = sld [smem:[#allocation0]]
  $region73: #{residual_block_forward.4} parent=0
    _
  %s11 = ssub.s32 1, %s9
  %s12 = scalar_select 0, %s11, %s9
  loop: start=0, step=1, limit=6
  $region2: #{residual_block_forward.4} parent=0 // loop_pre_header
    _
  $region3: #{residual_block_forward.4} parent=0 // loop_header
    %s14 = sphi 0, %s18
    %p15 = scmp.ge.s32.totalorder %s14, 6
    %s21 = sphi 0, %s33
    %s22 = sphi 0, %s29
    %s23 = sphi 0, %s21
    %s24 = sphi 0, %s22
    %s25 = sphi 0, %s23
    %s26 = sphi 0, %s24
    %s38 = sphi 0, %s40
    %s41 = sphi 0, %s38
    %s42 = sphi 0, %s41
    %s58 = sphi 0, %s42
    %s66 = sphi 0, %s68
    %s69 = sphi 0, %s66
    %s70 = sphi 0, %s69
    %s86 = sphi 0, %s70
    %s90 = sphi 0, %s90
    %s92 = sphi 0, %s90
    %s93 = sphi 0, %s92
    %s107 = sphi 0, %s93
    %s111 = sphi 0, %s111
    %s113 = sphi 0, %s111
    %s114 = sphi 0, %s113
    %s128 = sphi 0, %s114
    %s132 = sphi 0, %s132
    %s134 = sphi 0, %s132
    %s135 = sphi 0, %s134
    %s149 = sphi 0, %s135
    %s153 = sphi 0, %s153
    %s155 = sphi 0, %s153
    %s156 = sphi 0, %s155
    %s170 = sphi 0, %s156
    %s178 = sphi 0, %s180
    %s181 = sphi 0, %s178
    %s182 = sphi 0, %s181
    %s198 = sphi 0, %s182
    %s206 = sphi 0, %s208
    %s209 = sphi 0, %s206
    %s210 = sphi 0, %s209
    %s226 = sphi 0, %s210
  $region4: #{residual_block_forward.4} parent=0 // loop_header_branch
    %17 = sbr.rel (%p15) target = $region8
  $region5: #{residual_block_forward.4} parent=0 // loop_body
    %s19 = ssub.s32 %s14, 1
    %s20 = ssub.s32 %s14, 2
    %s27 = sadd.s32 1, %s22
    %p28 = scmp.ge.s32.totalorder %s27, 2
    %s29 = scalar_select %p28, 0, %s27
    %s30 = sadd.s32 1, %s21
    %s31 = scalar_select %p28, %s30, %s21
    %p32 = scmp.ge.s32.totalorder %s31, 2
    %s33 = scalar_select %p32, 0, %s31
    %s34 = ssub.s32 %s21, %s33
    %s35 = ssub.s32 %s22, %s29
    %s36 = sor.u32 %s34, %s35
    %p37 = scmp.eq.s32.totalorder %s36, 0
    %s39 = sadd.s32 %s38, 1
    %s40 = scalar_select %p37, %s38, %s39
    %p43 = pneg %p37
    %p44 = scmp.eq.s32.totalorder %s14, 3
    %p45 = por %p43, %p44
    %p46 = scmp.ne.s32.totalorder %s38, %s41
    %p47 = scmp.eq.s32.totalorder %s14, 0
    %p48 = por %p46, %p47
    %p49 = scmp.ne.s32.totalorder %s38, %s41
    %p50 = scmp.eq.s32.totalorder %s19, 3
    %p51 = por %p49, %p50
    %p52 = scmp.ne.s32.totalorder %s41, %s42
    %p53 = scmp.eq.s32.totalorder %s19, 0
    %p54 = por %p52, %p53
    %p55 = scmp.ne.s32.totalorder %s41, %s42
    %p56 = scmp.eq.s32.totalorder %s20, 3
    %p57 = por %p55, %p56
    %p59 = scmp.ne.s32.totalorder %s42, %s58
    %p60 = scmp.eq.s32.totalorder %s20, 0
    %p61 = por %p59, %p60
    %s62 = ssub.s32 %s21, %s33
    %s63 = ssub.s32 %s22, %s29
    %s64 = sor.u32 %s62, %s63
    %p65 = scmp.eq.s32.totalorder %s64, 0
    %s67 = sadd.s32 %s66, 1
    %s68 = scalar_select %p65, %s66, %s67
    %p71 = pneg %p65
    %p72 = scmp.eq.s32.totalorder %s14, 3
    %p73 = por %p71, %p72
    %p74 = scmp.ne.s32.totalorder %s66, %s69
    %p75 = scmp.eq.s32.totalorder %s14, 0
    %p76 = por %p74, %p75
    %p77 = scmp.ne.s32.totalorder %s66, %s69
    %p78 = scmp.eq.s32.totalorder %s19, 3
    %p79 = por %p77, %p78
    %p80 = scmp.ne.s32.totalorder %s69, %s70
    %p81 = scmp.eq.s32.totalorder %s19, 0
    %p82 = por %p80, %p81
    %p83 = scmp.ne.s32.totalorder %s69, %s70
    %p84 = scmp.eq.s32.totalorder %s20, 3
    %p85 = por %p83, %p84
    %p87 = scmp.ne.s32.totalorder %s70, %s86
    %p88 = scmp.eq.s32.totalorder %s20, 0
    %p89 = por %p87, %p88
    %s91 = sadd.s32 %s90, 1
    %p94 = scmp.eq.s32.totalorder %s14, 3
    %p95 = scmp.ne.s32.totalorder %s90, %s92
    %p96 = scmp.eq.s32.totalorder %s14, 0
    %p97 = por %p95, %p96
    %p98 = scmp.ne.s32.totalorder %s90, %s92
    %p99 = scmp.eq.s32.totalorder %s19, 3
    %p100 = por %p98, %p99
    %p101 = scmp.ne.s32.totalorder %s92, %s93
    %p102 = scmp.eq.s32.totalorder %s19, 0
    %p103 = por %p101, %p102
    %p104 = scmp.ne.s32.totalorder %s92, %s93
    %p105 = scmp.eq.s32.totalorder %s20, 3
    %p106 = por %p104, %p105
    %p108 = scmp.ne.s32.totalorder %s93, %s107
    %p109 = scmp.eq.s32.totalorder %s20, 0
    %p110 = por %p108, %p109
    %s112 = sadd.s32 %s111, 1
    %p115 = scmp.eq.s32.totalorder %s14, 3
    %p116 = scmp.ne.s32.totalorder %s111, %s113
    %p117 = scmp.eq.s32.totalorder %s14, 0
    %p118 = por %p116, %p117
    %p119 = scmp.ne.s32.totalorder %s111, %s113
    %p120 = scmp.eq.s32.totalorder %s19, 3
    %p121 = por %p119, %p120
    %p122 = scmp.ne.s32.totalorder %s113, %s114
    %p123 = scmp.eq.s32.totalorder %s19, 0
    %p124 = por %p122, %p123
    %p125 = scmp.ne.s32.totalorder %s113, %s114
    %p126 = scmp.eq.s32.totalorder %s20, 3
    %p127 = por %p125, %p126
    %p129 = scmp.ne.s32.totalorder %s114, %s128
    %p130 = scmp.eq.s32.totalorder %s20, 0
    %p131 = por %p129, %p130
    %s133 = sadd.s32 %s132, 1
    %p136 = scmp.eq.s32.totalorder %s14, 3
    %p137 = scmp.ne.s32.totalorder %s132, %s134
    %p138 = scmp.eq.s32.totalorder %s14, 0
    %p139 = por %p137, %p138
    %p140 = scmp.ne.s32.totalorder %s132, %s134
    %p141 = scmp.eq.s32.totalorder %s19, 3
    %p142 = por %p140, %p141
    %p143 = scmp.ne.s32.totalorder %s134, %s135
    %p144 = scmp.eq.s32.totalorder %s19, 0
    %p145 = por %p143, %p144
    %p146 = scmp.ne.s32.totalorder %s134, %s135
    %p147 = scmp.eq.s32.totalorder %s20, 3
    %p148 = por %p146, %p147
    %p150 = scmp.ne.s32.totalorder %s135, %s149
    %p151 = scmp.eq.s32.totalorder %s20, 0
    %p152 = por %p150, %p151
    %s154 = sadd.s32 %s153, 1
    %p157 = scmp.eq.s32.totalorder %s14, 3
    %p158 = scmp.ne.s32.totalorder %s153, %s155
    %p159 = scmp.eq.s32.totalorder %s14, 0
    %p160 = por %p158, %p159
    %p161 = scmp.ne.s32.totalorder %s153, %s155
    %p162 = scmp.eq.s32.totalorder %s19, 3
    %p163 = por %p161, %p162
    %p164 = scmp.ne.s32.totalorder %s155, %s156
    %p165 = scmp.eq.s32.totalorder %s19, 0
    %p166 = por %p164, %p165
    %p167 = scmp.ne.s32.totalorder %s155, %s156
    %p168 = scmp.eq.s32.totalorder %s20, 3
    %p169 = por %p167, %p168
    %p171 = scmp.ne.s32.totalorder %s156, %s170
    %p172 = scmp.eq.s32.totalorder %s20, 0
    %p173 = por %p171, %p172
    %s174 = ssub.s32 %s21, %s33
    %s175 = ssub.s32 %s22, %s29
    %s176 = sor.u32 %s174, %s175
    %p177 = scmp.eq.s32.totalorder %s176, 0
    %s179 = sadd.s32 %s178, 1
    %s180 = scalar_select %p177, %s178, %s179
    %p183 = pneg %p177
    %p184 = scmp.eq.s32.totalorder %s14, 3
    %p185 = por %p183, %p184
    %p186 = scmp.ne.s32.totalorder %s178, %s181
    %p187 = scmp.eq.s32.totalorder %s14, 0
    %p188 = por %p186, %p187
    %p189 = scmp.ne.s32.totalorder %s178, %s181
    %p190 = scmp.eq.s32.totalorder %s19, 3
    %p191 = por %p189, %p190
    %p192 = scmp.ne.s32.totalorder %s181, %s182
    %p193 = scmp.eq.s32.totalorder %s19, 0
    %p194 = por %p192, %p193
    %p195 = scmp.ne.s32.totalorder %s181, %s182
    %p196 = scmp.eq.s32.totalorder %s20, 3
    %p197 = por %p195, %p196
    %p199 = scmp.ne.s32.totalorder %s182, %s198
    %p200 = scmp.eq.s32.totalorder %s20, 0
    %p201 = por %p199, %p200
    %s202 = ssub.s32 %s21, %s33
    %s203 = ssub.s32 %s22, %s29
    %s204 = sor.u32 %s202, %s203
    %p205 = scmp.eq.s32.totalorder %s204, 0
    %s207 = sadd.s32 %s206, 1
    %s208 = scalar_select %p205, %s206, %s207
    %p211 = pneg %p205
    %p212 = scmp.eq.s32.totalorder %s14, 3
    %p213 = por %p211, %p212
    %p214 = scmp.ne.s32.totalorder %s206, %s209
    %p215 = scmp.eq.s32.totalorder %s14, 0
    %p216 = por %p214, %p215
    %p217 = scmp.ne.s32.totalorder %s206, %s209
    %p218 = scmp.eq.s32.totalorder %s19, 3
    %p219 = por %p217, %p218
    %p220 = scmp.ne.s32.totalorder %s209, %s210
    %p221 = scmp.eq.s32.totalorder %s19, 0
    %p222 = por %p220, %p221
    %p223 = scmp.ne.s32.totalorder %s209, %s210
    %p224 = scmp.eq.s32.totalorder %s20, 3
    %p225 = por %p223, %p224
    %p227 = scmp.ne.s32.totalorder %s210, %s226
    %p228 = scmp.eq.s32.totalorder %s20, 0
    %p229 = por %p227, %p228
    %p230 = scmp.le.s32.totalorder 1, %s14
    %p231 = scmp.lt.s32.totalorder %s14, 5
    %p232 = pnand %p230, %p231
    %p233 = pneg %p232
    // Predicated region
    $region9: #{residual_block_forward.4} parent=5 // pred_check
      _
    $region10: #{residual_block_forward.4} parent=5 // pred_check_branch
      %235 = sbr.rel (%p232) target = $region12
    $region11: #{residual_block_forward.4} parent=5 // pred_region
      %s236 = ssub.s32 %s14, 1
      // Predicated region
      $region13: #{residual_block_forward.4} parent=11 // pred_check
        %p237 = pneg %p103
      $region14: #{residual_block_forward.4} parent=11 // pred_check_branch
        %239 = sbr.rel (%p237) target = $region16
      $region15: #{residual_block_forward.4} parent=11 // pred_region
        _
      $region16: #{residual_block_forward.4} parent=11 // pred_fallthru
        _
      // Predicated region
      $region17: #{residual_block_forward.4} parent=11 // pred_check
        %p240 = pneg %p124
      $region18: #{residual_block_forward.4} parent=11 // pred_check_branch
        %242 = sbr.rel (%p240) target = $region20
      $region19: #{residual_block_forward.4} parent=11 // pred_region
        _
      $region20: #{residual_block_forward.4} parent=11 // pred_fallthru
        _
      // Predicated region
      $region21: #{residual_block_forward.4} parent=11 // pred_check
        %p243 = pneg %p145
      $region22: #{residual_block_forward.4} parent=11 // pred_check_branch
        %245 = sbr.rel (%p243) target = $region24
      $region23: #{residual_block_forward.4} parent=11 // pred_region
        _
      $region24: #{residual_block_forward.4} parent=11 // pred_fallthru
        _
      // Predicated region
      $region25: #{residual_block_forward.4} parent=11 // pred_check
        %p246 = pneg %p166
      $region26: #{residual_block_forward.4} parent=11 // pred_check_branch
        %248 = sbr.rel (%p246) target = $region28
      $region27: #{residual_block_forward.4} parent=11 // pred_region
        _
      $region28: #{residual_block_forward.4} parent=11 // pred_fallthru
        _
    $region12: #{residual_block_forward.4} parent=5 // pred_fallthru
      _
    %p249 = scmp.lt.s32.totalorder %s14, 4
    // Predicated region
    $region29: #{residual_block_forward.4} parent=5 // pred_check
      %p250 = pneg %p249
    $region30: #{residual_block_forward.4} parent=5 // pred_check_branch
      %252 = sbr.rel (%p250) target = $region32
    $region31: #{residual_block_forward.4} parent=5 // pred_region
      // Predicated region
      $region33: #{residual_block_forward.4} parent=31 // pred_check
        %p253 = pneg %p48
      $region34: #{residual_block_forward.4} parent=31 // pred_check_branch
        %255 = sbr.rel (%p253) target = $region36
      $region35: #{residual_block_forward.4} parent=31 // pred_region
        %s256 = smul.u32 8, %s22
        %p257 = scmp.lt.s32.totalorder %s21, 1
        %s258 = scalar_select %p257, %s21, 1
        %p259 = scmp.lt.s32.totalorder %s256, 15
        %s260 = scalar_select %p259, %s256, 15
        %s261 = smul.addr %s260, 2
        %s262 = smul.addr %s258, 32
        %s263 = sadd.s32 %s261, %s262
        %s264 = smul.addr %s263, 4
        %s265 = scalar_lea.vmem %s0, %s264
        %s266 = smul.u32 8, %s22
      $region36: #{residual_block_forward.4} parent=31 // pred_fallthru
        _
      // Predicated region
      $region37: #{residual_block_forward.4} parent=31 // pred_check
        %p267 = pneg %p76
      $region38: #{residual_block_forward.4} parent=31 // pred_check_branch
        %269 = sbr.rel (%p267) target = $region40
      $region39: #{residual_block_forward.4} parent=31 // pred_region
        %p270 = scmp.lt.s32.totalorder %s21, 1
        %s271 = scalar_select %p270, %s21, 1
        %p272 = scmp.lt.s32.totalorder %s22, 1
        %s273 = scalar_select %p272, %s22, 1
        %s274 = smul.addr %s273, 20
        %s275 = smul.addr %s271, 40
        %s276 = sadd.s32 %s274, %s275
        %s277 = smul.addr %s276, 4
        %s278 = scalar_lea.vmem %s1, %s277
      $region40: #{residual_block_forward.4} parent=31 // pred_fallthru
        _
    $region32: #{residual_block_forward.4} parent=5 // pred_fallthru
      _
    %p279 = scmp.le.s32.totalorder 1, %s14
    %p280 = scmp.lt.s32.totalorder %s14, 5
    %p281 = pnand %p279, %p280
    %p282 = pneg %p281
    // Predicated region
    $region41: #{residual_block_forward.4} parent=5 // pred_check
      _
    $region42: #{residual_block_forward.4} parent=5 // pred_check_branch
      %284 = sbr.rel (%p281) target = $region44
    $region43: #{residual_block_forward.4} parent=5 // pred_region
      %s285 = ssub.s32 %s14, 1
      %s286 = smul.u32 8, %s24
      %p287 = scmp.lt.s32.totalorder %s23, 1
      %s288 = scalar_select %p287, %s23, 1
      %p289 = scmp.lt.s32.totalorder %s286, 15
      %s290 = scalar_select %p289, %s286, 15
      %s291 = smul.addr %s290, 2
      %s292 = smul.addr %s288, 32
      %s293 = sadd.s32 %s291, %s292
      %s294 = smul.addr %s293, 4
      %s295 = scalar_lea.vmem %s0, %s294
      %p296 = pneg %p54
      %p297 = pneg %p51
      %p298 = scmp.lt.s32.totalorder %s23, 1
      %s299 = scalar_select %p298, %s23, 1
      %p300 = scmp.lt.s32.totalorder %s24, 1
      %s301 = scalar_select %p300, %s24, 1
      %s302 = smul.addr %s301, 20
      %s303 = smul.addr %s299, 40
      %s304 = sadd.s32 %s302, %s303
      %s305 = smul.addr %s304, 4
      %s306 = scalar_lea.vmem %s1, %s305
      %p307 = pneg %p82
      %p308 = pneg %p79
      %p309 = pneg %p103
      %p310 = pneg %p100
      %p311 = pneg %p124
      %p312 = pneg %p121
      %p313 = pneg %p145
      %p314 = pneg %p142
      %p315 = pneg %p166
      %p316 = pneg %p163
      %p317 = pneg %p194
      %p318 = pneg %p191
      %s319 = smul.u32 8, %s24
      %p320 = scmp.lt.s32.totalorder %s23, 1
      %s321 = scalar_select %p320, %s23, 1
      %p322 = scmp.lt.s32.totalorder %s319, 15
      %s323 = scalar_select %p322, %s319, 15
      %s324 = smul.addr %s323, 2
      %s325 = smul.addr %s321, 32
      %s326 = sadd.s32 %s324, %s325
      %s327 = smul.addr %s326, 4
      %s328 = scalar_lea.vmem %s6, %s327
      %p329 = pneg %p222
      %p330 = pneg %p219
      %p331 = scmp.lt.s32.totalorder %s23, 1
      %s332 = scalar_select %p331, %s23, 1
      %p333 = scmp.lt.s32.totalorder %s24, 1
      %s334 = scalar_select %p333, %s24, 1
      %s335 = smul.addr %s332, 2
      %s336 = sadd.s32 %s334, %s335
      %s337 = smul.addr %s336, 2
      %s338 = scalar_lea.vmem %s7, %s337
      %s339 = smul.u32 8, %s24
      %p340 = scmp.lt.s32.totalorder %s23, 1
      %s341 = scalar_select %p340, %s23, 1
      %p342 = scmp.lt.s32.totalorder %s339, 15
      %s343 = scalar_select %p342, %s339, 15
      %s344 = smul.addr %s343, 2
      %s345 = smul.addr %s341, 32
      %s346 = sadd.s32 %s344, %s345
      %s347 = smul.addr %s346, 4
      %s348 = scalar_lea.vmem %s0, %s347
      %s349 = smul.u32 8, %s24
      %p350 = scmp.lt.s32.totalorder %s23, 1
      %s351 = scalar_select %p350, %s23, 1
      %p352 = scmp.lt.s32.totalorder %s24, 1
      %s353 = scalar_select %p352, %s24, 1
      %s354 = smul.addr %s353, 20
      %s355 = smul.addr %s351, 40
      %s356 = sadd.s32 %s354, %s355
      %s357 = smul.addr %s356, 4
      %s358 = scalar_lea.vmem %s1, %s357
      %s359 = smul.u32 8, %s24
      %p360 = scmp.lt.s32.totalorder %s23, 1
      %s361 = scalar_select %p360, %s23, 1
      %p362 = scmp.lt.s32.totalorder %s359, 15
      %s363 = scalar_select %p362, %s359, 15
      %s364 = smul.addr %s363, 2
      %s365 = smul.addr %s361, 32
      %s366 = sadd.s32 %s364, %s365
      %s367 = smul.addr %s366, 4
      %s368 = scalar_lea.vmem %s6, %s367
      %s369 = smul.u32 8, %s24
      %p370 = scmp.lt.s32.totalorder %s23, 1
      %s371 = scalar_select %p370, %s23, 1
      %p372 = scmp.lt.s32.totalorder %s24, 1
      %s373 = scalar_select %p372, %s24, 1
      %s374 = smul.addr %s371, 2
      %s375 = sadd.s32 %s373, %s374
      %s376 = smul.addr %s375, 2
      %s377 = scalar_lea.vmem %s7, %s376
      %v379 = vld [vmem:[%s358] sm:$0xf]
      %v380 = vld [vmem:[%s358 + $0x4] sm:$0xf]
      %v381 = vld [vmem:[%s358 + $0x8] sm:$0xf]
      %v382 = vld [vmem:[%s358 + $0xc] sm:$0xf]
      %v383 = vld [vmem:[%s358 + $0x10] sm:$0xf]
      %v384 = vld [vmem:[%s358 + $0x14] sm:$0xf]
      %v385 = vld [vmem:[%s358 + $0x18] sm:$0xf]
      %v386 = vld [vmem:[%s358 + $0x1c] sm:$0xf]
      %v387 = vld [vmem:[%s358 + $0x20] sm:$0xf]
      %v388 = vld [vmem:[%s358 + $0x24] sm:$0xf]
      %v389 = vld [vmem:[%s358 + $0x28] sm:$0xf]
      %v390 = vld [vmem:[%s358 + $0x2c] sm:$0xf]
      %v391 = vld [vmem:[%s358 + $0x30] sm:$0xf]
      %v392 = vld [vmem:[%s358 + $0x34] sm:$0xf]
      %v393 = vld [vmem:[%s358 + $0x38] sm:$0xf]
      %v394 = vld [vmem:[%s358 + $0x3c] sm:$0xf]
      %v395 = vld [vmem:[%s358 + $0x40] sm:$0xf]
      %v396 = vld [vmem:[%s358 + $0x44] sm:$0xf]
      %v397 = vld [vmem:[%s358 + $0x48] sm:$0xf]
      %v398 = vld [vmem:[%s358 + $0x4c] sm:$0xf]
      %v399 = vunpack.c.l.bf16 %v379
      %v400 = vunpack.c.l.bf16 %v380
      %v401 = vunpack.c.l.bf16 %v381
      %v402 = vunpack.c.l.bf16 %v382
      %v403 = vunpack.c.l.bf16 %v383
      %v404 = vunpack.c.l.bf16 %v384
      %v405 = vunpack.c.l.bf16 %v385
      %v406 = vunpack.c.l.bf16 %v386
      %v407 = vunpack.c.l.bf16 %v387
      %v408 = vunpack.c.l.bf16 %v388
      %v409 = vunpack.c.l.bf16 %v389
      %v410 = vunpack.c.l.bf16 %v390
      %v411 = vunpack.c.l.bf16 %v391
      %v412 = vunpack.c.l.bf16 %v392
      %v413 = vunpack.c.l.bf16 %v393
      %v414 = vunpack.c.l.bf16 %v394
      %v415 = vunpack.c.l.bf16 %v395
      %v416 = vunpack.c.l.bf16 %v396
      %v417 = vunpack.c.l.bf16 %v397
      %v418 = vunpack.c.l.bf16 %v398
      %v419 = vld [vmem:[%s4] sm:$0x1]
      %v421 = vlaneseq
      %v422 = vshrl.u32 %v421, 7
      %v423 = vsub.s32 0, %v422
      %v424 = vrot.slane %v419, %v423
      %v426 = vmul.f32 %v399, %v424
      %v427 = vmul.f32 %v400, %v424
      %v428 = vmul.f32 %v401, %v424
      %v429 = vmul.f32 %v402, %v424
      %v430 = vmul.f32 %v403, %v424
      %v431 = vmul.f32 %v404, %v424
      %v432 = vmul.f32 %v405, %v424
      %v433 = vmul.f32 %v406, %v424
      %v434 = vmul.f32 %v407, %v424
      %v435 = vmul.f32 %v408, %v424
      %v436 = vmul.f32 %v409, %v424
      %v437 = vmul.f32 %v410, %v424
      %v438 = vmul.f32 %v411, %v424
      %v439 = vmul.f32 %v412, %v424
      %v440 = vmul.f32 %v413, %v424
      %v441 = vmul.f32 %v414, %v424
      %v442 = vmul.f32 %v415, %v424
      %v443 = vmul.f32 %v416, %v424
      %v444 = vmul.f32 %v417, %v424
      %v445 = vmul.f32 %v418, %v424
      %v446 = vld [vmem:[%s5] sm:$0x1]
      %v448 = vlaneseq
      %v449 = vshrl.u32 %v448, 7
      %v450 = vsub.s32 0, %v449
      %v451 = vrot.slane %v446, %v450
      %v453 = vadd.f32 %v426, %v451
      %v454 = vadd.f32 %v427, %v451
      %v455 = vadd.f32 %v428, %v451
      %v456 = vadd.f32 %v429, %v451
      %v457 = vadd.f32 %v430, %v451
      %v458 = vadd.f32 %v431, %v451
      %v459 = vadd.f32 %v432, %v451
      %v460 = vadd.f32 %v433, %v451
      %v461 = vadd.f32 %v434, %v451
      %v462 = vadd.f32 %v435, %v451
      %v463 = vadd.f32 %v436, %v451
      %v464 = vadd.f32 %v437, %v451
      %v465 = vadd.f32 %v438, %v451
      %v466 = vadd.f32 %v439, %v451
      %v467 = vadd.f32 %v440, %v451
      %v468 = vadd.f32 %v441, %v451
      %v469 = vadd.f32 %v442, %v451
      %v470 = vadd.f32 %v443, %v451
      %v471 = vadd.f32 %v444, %v451
      %v472 = vadd.f32 %v445, %v451
      %vm473 = vcmp.gt.f32.partialorder %v453, 0.0
      %vm474 = vcmp.gt.f32.partialorder %v454, 0.0
      %vm475 = vcmp.gt.f32.partialorder %v455, 0.0
      %vm476 = vcmp.gt.f32.partialorder %v456, 0.0
      %vm477 = vcmp.gt.f32.partialorder %v457, 0.0
      %vm478 = vcmp.gt.f32.partialorder %v458, 0.0
      %vm479 = vcmp.gt.f32.partialorder %v459, 0.0
      %vm480 = vcmp.gt.f32.partialorder %v460, 0.0
      %vm481 = vcmp.gt.f32.partialorder %v461, 0.0
      %vm482 = vcmp.gt.f32.partialorder %v462, 0.0
      %vm483 = vcmp.gt.f32.partialorder %v463, 0.0
      %vm484 = vcmp.gt.f32.partialorder %v464, 0.0
      %vm485 = vcmp.gt.f32.partialorder %v465, 0.0
      %vm486 = vcmp.gt.f32.partialorder %v466, 0.0
      %vm487 = vcmp.gt.f32.partialorder %v467, 0.0
      %vm488 = vcmp.gt.f32.partialorder %v468, 0.0
      %vm489 = vcmp.gt.f32.partialorder %v469, 0.0
      %vm490 = vcmp.gt.f32.partialorder %v470, 0.0
      %vm491 = vcmp.gt.f32.partialorder %v471, 0.0
      %vm492 = vcmp.gt.f32.partialorder %v472, 0.0
      %v493 = vmul.f32 %v453, 0.2
      %v494 = vmul.f32 %v454, 0.2
      %v495 = vmul.f32 %v455, 0.2
      %v496 = vmul.f32 %v456, 0.2
      %v497 = vmul.f32 %v457, 0.2
      %v498 = vmul.f32 %v458, 0.2
      %v499 = vmul.f32 %v459, 0.2
      %v500 = vmul.f32 %v460, 0.2
      %v501 = vmul.f32 %v461, 0.2
      %v502 = vmul.f32 %v462, 0.2
      %v503 = vmul.f32 %v463, 0.2
      %v504 = vmul.f32 %v464, 0.2
      %v505 = vmul.f32 %v465, 0.2
      %v506 = vmul.f32 %v466, 0.2
      %v507 = vmul.f32 %v467, 0.2
      %v508 = vmul.f32 %v468, 0.2
      %v509 = vmul.f32 %v469, 0.2
      %v510 = vmul.f32 %v470, 0.2
      %v511 = vmul.f32 %v471, 0.2
      %v512 = vmul.f32 %v472, 0.2
      %v513 = vsel %vm473, %v453, %v493
      %v514 = vsel %vm474, %v454, %v494
      %v515 = vsel %vm475, %v455, %v495
      %v516 = vsel %vm476, %v456, %v496
      %v517 = vsel %vm477, %v457, %v497
      %v518 = vsel %vm478, %v458, %v498
      %v519 = vsel %vm479, %v459, %v499
      %v520 = vsel %vm480, %v460, %v500
      %v521 = vsel %vm481, %v461, %v501
      %v522 = vsel %vm482, %v462, %v502
      %v523 = vsel %vm483, %v463, %v503
      %v524 = vsel %vm484, %v464, %v504
      %v525 = vsel %vm485, %v465, %v505
      %v526 = vsel %vm486, %v466, %v506
      %v527 = vsel %vm487, %v467, %v507
      %v528 = vsel %vm488, %v468, %v508
      %v529 = vsel %vm489, %v469, %v509
      %v530 = vsel %vm490, %v470, %v510
      %v531 = vsel %vm491, %v471, %v511
      %v532 = vsel %vm492, %v472, %v512
      %v533 = vpack.c.bf16 %v514, %v513
      %v534 = vpack.c.bf16 %v516, %v515
      %v535 = vpack.c.bf16 %v518, %v517
      %v536 = vpack.c.bf16 %v520, %v519
      %v537 = vpack.c.bf16 %v522, %v521
      %v538 = vpack.c.bf16 %v524, %v523
      %v539 = vpack.c.bf16 %v526, %v525
      %v540 = vpack.c.bf16 %v528, %v527
      %v541 = vpack.c.bf16 %v530, %v529
      %v542 = vpack.c.bf16 %v532, %v531
      %vm543 = vcmask 1040384
      %vm544 = vsmask.f32 256
      %vm545 = vmand %vm543, %vm544
      %v546 = vld [vmem:[#allocation2] sm:$0x1]
      %v547 = vsel %vm545, 0, %v546
      %548 = vst [vmem:[#allocation2] sm:$0x1] %v547
      %v549 = vld [vmem:[#allocation2 + $0xc] sm:$0x1]
      %v550 = vsel %vm545, 0, %v549
      %551 = vst [vmem:[#allocation2 + $0xc] sm:$0x1] %v550
      %v552 = vld [vmem:[#allocation2 + $0x18] sm:$0x1]
      %v553 = vsel %vm545, 0, %v552
      %554 = vst [vmem:[#allocation2 + $0x18] sm:$0x1] %v553
      %v555 = vld [vmem:[#allocation2 + $0x24] sm:$0x1]
      %v556 = vsel %vm545, 0, %v555
      %557 = vst [vmem:[#allocation2 + $0x24] sm:$0x1] %v556
      %v558 = vld [vmem:[#allocation2 + $0x30] sm:$0x1]
      %v559 = vsel %vm545, 0, %v558
      %560 = vst [vmem:[#allocation2 + $0x30] sm:$0x1] %v559
      %v561 = vld [vmem:[#allocation2 + $0x3c] sm:$0x1]
      %v562 = vsel %vm545, 0, %v561
      %563 = vst [vmem:[#allocation2 + $0x3c] sm:$0x1] %v562
      %v564 = vld [vmem:[#allocation2 + $0x48] sm:$0x1]
      %v565 = vsel %vm545, 0, %v564
      %566 = vst [vmem:[#allocation2 + $0x48] sm:$0x1] %v565
      %v567 = vld [vmem:[#allocation2 + $0x54] sm:$0x1]
      %v568 = vsel %vm545, 0, %v567
      %569 = vst [vmem:[#allocation2 + $0x54] sm:$0x1] %v568
      %v570 = vld [vmem:[#allocation2 + $0x60] sm:$0x1]
      %v571 = vsel %vm545, 0, %v570
      %572 = vst [vmem:[#allocation2 + $0x60] sm:$0x1] %v571
      %v573 = vld [vmem:[#allocation2 + $0x6c] sm:$0x1]
      %v574 = vsel %vm545, 0, %v573
      %575 = vst [vmem:[#allocation2 + $0x6c] sm:$0x1] %v574
      %vm576 = vsmask.f32 7938
      %vm577 = vmand %vm543, %vm576
      %v578 = vld [vmem:[#allocation2 + $0x8] sm:$0x1]
      %v579 = vsel %vm577, 0, %v578
      %580 = vst [vmem:[#allocation2 + $0x8] sm:$0x1] %v579
      %v581 = vld [vmem:[#allocation2 + $0x14] sm:$0x1]
      %v582 = vsel %vm577, 0, %v581
      %583 = vst [vmem:[#allocation2 + $0x14] sm:$0x1] %v582
      %v584 = vld [vmem:[#allocation2 + $0x20] sm:$0x1]
      %v585 = vsel %vm577, 0, %v584
      %586 = vst [vmem:[#allocation2 + $0x20] sm:$0x1] %v585
      %v587 = vld [vmem:[#allocation2 + $0x2c] sm:$0x1]
      %v588 = vsel %vm577, 0, %v587
      %589 = vst [vmem:[#allocation2 + $0x2c] sm:$0x1] %v588
      %v590 = vld [vmem:[#allocation2 + $0x38] sm:$0x1]
      %v591 = vsel %vm577, 0, %v590
      %592 = vst [vmem:[#allocation2 + $0x38] sm:$0x1] %v591
      %v593 = vld [vmem:[#allocation2 + $0x44] sm:$0x1]
      %v594 = vsel %vm577, 0, %v593
      %595 = vst [vmem:[#allocation2 + $0x44] sm:$0x1] %v594
      %v596 = vld [vmem:[#allocation2 + $0x50] sm:$0x1]
      %v597 = vsel %vm577, 0, %v596
      %598 = vst [vmem:[#allocation2 + $0x50] sm:$0x1] %v597
      %v599 = vld [vmem:[#allocation2 + $0x5c] sm:$0x1]
      %v600 = vsel %vm577, 0, %v599
      %601 = vst [vmem:[#allocation2 + $0x5c] sm:$0x1] %v600
      %v602 = vld [vmem:[#allocation2 + $0x68] sm:$0x1]
      %v603 = vsel %vm577, 0, %v602
      %604 = vst [vmem:[#allocation2 + $0x68] sm:$0x1] %v603
      %v605 = vld [vmem:[#allocation2 + $0x74] sm:$0x1]
      %v606 = vsel %vm577, 0, %v605
      %607 = vst [vmem:[#allocation2 + $0x74] sm:$0x1] %v606
      %v618 = vunpack.c.l.b16 %v533
      %v619 = vunpack.c.h.b16 %v533
      %v620 = vunpack.c.l.b16 %v534
      %v621 = vunpack.c.h.b16 %v534
      %v622 = vunpack.c.l.b16 %v535
      %v623 = vunpack.c.h.b16 %v535
      %v624 = vunpack.c.l.b16 %v536
      %v625 = vunpack.c.h.b16 %v536
      %v626 = vunpack.c.l.b16 %v537
      %v627 = vunpack.c.h.b16 %v537
      %v628 = vunpack.c.l.b16 %v538
      %v629 = vunpack.c.h.b16 %v538
      %v630 = vunpack.c.l.b16 %v539
      %v631 = vunpack.c.h.b16 %v539
      %v632 = vunpack.c.l.b16 %v540
      %v633 = vunpack.c.h.b16 %v540
      %v634 = vunpack.c.l.b16 %v541
      %v635 = vunpack.c.h.b16 %v541
      %v636 = vunpack.c.l.b16 %v542
      %v637 = vunpack.c.h.b16 %v542
      %v638 = vpack.c.b16 %v618, %v618
      %v639 = vpack.c.b16 %v619, %v619
      %v640 = vpack.c.b16 %v620, %v620
      %v641 = vpack.c.b16 %v621, %v621
      %v642 = vpack.c.b16 %v622, %v622
      %v643 = vpack.c.b16 %v623, %v623
      %v644 = vpack.c.b16 %v624, %v624
      %v645 = vpack.c.b16 %v625, %v625
      %v646 = vpack.c.b16 %v626, %v626
      %v647 = vpack.c.b16 %v627, %v627
      %v648 = vpack.c.b16 %v628, %v628
      %v649 = vpack.c.b16 %v629, %v629
      %v650 = vpack.c.b16 %v630, %v630
      %v651 = vpack.c.b16 %v631, %v631
      %v652 = vpack.c.b16 %v632, %v632
      %v653 = vpack.c.b16 %v633, %v633
      %v654 = vpack.c.b16 %v634, %v634
      %v655 = vpack.c.b16 %v635, %v635
      %v656 = vpack.c.b16 %v636, %v636
      %v657 = vpack.c.b16 %v637, %v637
      %vm658 = vsmask.f32 4368
      %vm659 = vmor %vm544, %vm658
      %v661 = vshrl.u32 %v638, 16
      %v663 = vrot.slane %v661, 7
      %v664 = vshll.u32 %v638, 16
      %v666 = vor.u32 %v663, %v664
      %v667 = vrot.slane %v663, 4
      %v669 = vshrl.u32 %v639, 16
      %v671 = vrot.slane %v669, 7
      %v672 = vshll.u32 %v639, 16
      %v674 = vor.u32 %v671, %v672
      %v675 = vsel %vm659, %v667, %v674
      %v676 = vrot.slane %v671, 4
      %v678 = vshrl.u32 %v640, 16
      %v680 = vrot.slane %v678, 7
      %v681 = vshll.u32 %v640, 16
      %v683 = vor.u32 %v680, %v681
      %v684 = vrot.slane %v680, 4
      %v686 = vshrl.u32 %v641, 16
      %v688 = vrot.slane %v686, 7
      %v689 = vshll.u32 %v641, 16
      %v691 = vor.u32 %v688, %v689
      %v692 = vsel %vm659, %v684, %v691
      %v693 = vrot.slane %v688, 4
      %v695 = vshrl.u32 %v642, 16
      %v697 = vrot.slane %v695, 7
      %v698 = vshll.u32 %v642, 16
      %v700 = vor.u32 %v697, %v698
      %v701 = vrot.slane %v697, 4
      %v703 = vshrl.u32 %v643, 16
      %v705 = vrot.slane %v703, 7
      %v706 = vshll.u32 %v643, 16
      %v708 = vor.u32 %v705, %v706
      %v709 = vsel %vm659, %v701, %v708
      %v710 = vrot.slane %v705, 4
      %v712 = vshrl.u32 %v644, 16
      %v714 = vrot.slane %v712, 7
      %v715 = vshll.u32 %v644, 16
      %v717 = vor.u32 %v714, %v715
      %v718 = vrot.slane %v714, 4
      %v720 = vshrl.u32 %v645, 16
      %v722 = vrot.slane %v720, 7
      %v723 = vshll.u32 %v645, 16
      %v725 = vor.u32 %v722, %v723
      %v726 = vsel %vm659, %v718, %v725
      %v727 = vrot.slane %v722, 4
      %v729 = vshrl.u32 %v646, 16
      %v731 = vrot.slane %v729, 7
      %v732 = vshll.u32 %v646, 16
      %v734 = vor.u32 %v731, %v732
      %v735 = vrot.slane %v731, 4
      %v737 = vshrl.u32 %v647, 16
      %v739 = vrot.slane %v737, 7
      %v740 = vshll.u32 %v647, 16
      %v742 = vor.u32 %v739, %v740
      %v743 = vsel %vm659, %v735, %v742
      %v744 = vrot.slane %v739, 4
      %v746 = vshrl.u32 %v648, 16
      %v748 = vrot.slane %v746, 7
      %v749 = vshll.u32 %v648, 16
      %v751 = vor.u32 %v748, %v749
      %v752 = vrot.slane %v748, 4
      %v754 = vshrl.u32 %v649, 16
      %v756 = vrot.slane %v754, 7
      %v757 = vshll.u32 %v649, 16
      %v759 = vor.u32 %v756, %v757
      %v760 = vsel %vm659, %v752, %v759
      %v761 = vrot.slane %v756, 4
      %v763 = vshrl.u32 %v650, 16
      %v765 = vrot.slane %v763, 7
      %v766 = vshll.u32 %v650, 16
      %v768 = vor.u32 %v765, %v766
      %v769 = vrot.slane %v765, 4
      %v771 = vshrl.u32 %v651, 16
      %v773 = vrot.slane %v771, 7
      %v774 = vshll.u32 %v651, 16
      %v776 = vor.u32 %v773, %v774
      %v777 = vsel %vm659, %v769, %v776
      %v778 = vrot.slane %v773, 4
      %v780 = vshrl.u32 %v652, 16
      %v782 = vrot.slane %v780, 7
      %v783 = vshll.u32 %v652, 16
      %v785 = vor.u32 %v782, %v783
      %v786 = vrot.slane %v782, 4
      %v788 = vshrl.u32 %v653, 16
      %v790 = vrot.slane %v788, 7
      %v791 = vshll.u32 %v653, 16
      %v793 = vor.u32 %v790, %v791
      %v794 = vsel %vm659, %v786, %v793
      %v795 = vrot.slane %v790, 4
      %v797 = vshrl.u32 %v654, 16
      %v799 = vrot.slane %v797, 7
      %v800 = vshll.u32 %v654, 16
      %v802 = vor.u32 %v799, %v800
      %v803 = vrot.slane %v799, 4
      %v805 = vshrl.u32 %v655, 16
      %v807 = vrot.slane %v805, 7
      %v808 = vshll.u32 %v655, 16
      %v810 = vor.u32 %v807, %v808
      %v811 = vsel %vm659, %v803, %v810
      %v812 = vrot.slane %v807, 4
      %v814 = vshrl.u32 %v656, 16
      %v816 = vrot.slane %v814, 7
      %v817 = vshll.u32 %v656, 16
      %v819 = vor.u32 %v816, %v817
      %v820 = vrot.slane %v816, 4
      %v822 = vshrl.u32 %v657, 16
      %v824 = vrot.slane %v822, 7
      %v825 = vshll.u32 %v657, 16
      %v827 = vor.u32 %v824, %v825
      %v828 = vsel %vm659, %v820, %v827
      %v829 = vrot.slane %v824, 4
      %vm860 = vcmask 1043456
      %vm861 = vmand %vm860, %vm576
      %v862 = vld [vmem:[#allocation2] sm:$0xf]
      %v863 = vsel %vm861, %v666, %v862
      %864 = vst [vmem:[#allocation2] sm:$0xf] %v863
      %865 = vst [vmem:[#allocation2 + $0x4] sm:$0xf] %v675
      %v866 = vld [vmem:[#allocation2 + $0x8] sm:$0x1]
      %v867 = vsel %vm545, %v676, %v866
      %868 = vst [vmem:[#allocation2 + $0x8] sm:$0x1] %v867
      %v869 = vld [vmem:[#allocation2 + $0xc] sm:$0xf]
      %v870 = vsel %vm861, %v683, %v869
      %871 = vst [vmem:[#allocation2 + $0xc] sm:$0xf] %v870
      %872 = vst [vmem:[#allocation2 + $0x10] sm:$0xf] %v692
      %v873 = vld [vmem:[#allocation2 + $0x14] sm:$0x1]
      %v874 = vsel %vm545, %v693, %v873
      %875 = vst [vmem:[#allocation2 + $0x14] sm:$0x1] %v874
      %v876 = vld [vmem:[#allocation2 + $0x18] sm:$0xf]
      %v877 = vsel %vm861, %v700, %v876
      %878 = vst [vmem:[#allocation2 + $0x18] sm:$0xf] %v877
      %879 = vst [vmem:[#allocation2 + $0x1c] sm:$0xf] %v709
      %v880 = vld [vmem:[#allocation2 + $0x20] sm:$0x1]
      %v881 = vsel %vm545, %v710, %v880
      %882 = vst [vmem:[#allocation2 + $0x20] sm:$0x1] %v881
      %v883 = vld [vmem:[#allocation2 + $0x24] sm:$0xf]
      %v884 = vsel %vm861, %v717, %v883
      %885 = vst [vmem:[#allocation2 + $0x24] sm:$0xf] %v884
      %886 = vst [vmem:[#allocation2 + $0x28] sm:$0xf] %v726
      %v887 = vld [vmem:[#allocation2 + $0x2c] sm:$0x1]
      %v888 = vsel %vm545, %v727, %v887
      %889 = vst [vmem:[#allocation2 + $0x2c] sm:$0x1] %v888
      %v890 = vld [vmem:[#allocation2 + $0x30] sm:$0xf]
      %v891 = vsel %vm861, %v734, %v890
      %892 = vst [vmem:[#allocation2 + $0x30] sm:$0xf] %v891
      %893 = vst [vmem:[#allocation2 + $0x34] sm:$0xf] %v743
      %v894 = vld [vmem:[#allocation2 + $0x38] sm:$0x1]
      %v895 = vsel %vm545, %v744, %v894
      %896 = vst [vmem:[#allocation2 + $0x38] sm:$0x1] %v895
      %v897 = vld [vmem:[#allocation2 + $0x3c] sm:$0xf]
      %v898 = vsel %vm861, %v751, %v897
      %899 = vst [vmem:[#allocation2 + $0x3c] sm:$0xf] %v898
      %900 = vst [vmem:[#allocation2 + $0x40] sm:$0xf] %v760
      %v901 = vld [vmem:[#allocation2 + $0x44] sm:$0x1]
      %v902 = vsel %vm545, %v761, %v901
      %903 = vst [vmem:[#allocation2 + $0x44] sm:$0x1] %v902
      %v904 = vld [vmem:[#allocation2 + $0x48] sm:$0xf]
      %v905 = vsel %vm861, %v768, %v904
      %906 = vst [vmem:[#allocation2 + $0x48] sm:$0xf] %v905
      %907 = vst [vmem:[#allocation2 + $0x4c] sm:$0xf] %v777
      %v908 = vld [vmem:[#allocation2 + $0x50] sm:$0x1]
      %v909 = vsel %vm545, %v778, %v908
      %910 = vst [vmem:[#allocation2 + $0x50] sm:$0x1] %v909
      %v911 = vld [vmem:[#allocation2 + $0x54] sm:$0xf]
      %v912 = vsel %vm861, %v785, %v911
      %913 = vst [vmem:[#allocation2 + $0x54] sm:$0xf] %v912
      %914 = vst [vmem:[#allocation2 + $0x58] sm:$0xf] %v794
      %v915 = vld [vmem:[#allocation2 + $0x5c] sm:$0x1]
      %v916 = vsel %vm545, %v795, %v915
      %917 = vst [vmem:[#allocation2 + $0x5c] sm:$0x1] %v916
      %v918 = vld [vmem:[#allocation2 + $0x60] sm:$0xf]
      %v919 = vsel %vm861, %v802, %v918
      %920 = vst [vmem:[#allocation2 + $0x60] sm:$0xf] %v919
      %921 = vst [vmem:[#allocation2 + $0x64] sm:$0xf] %v811
      %v922 = vld [vmem:[#allocation2 + $0x68] sm:$0x1]
      %v923 = vsel %vm545, %v812, %v922
      %924 = vst [vmem:[#allocation2 + $0x68] sm:$0x1] %v923
      %v925 = vld [vmem:[#allocation2 + $0x6c] sm:$0xf]
      %v926 = vsel %vm861, %v819, %v925
      %927 = vst [vmem:[#allocation2 + $0x6c] sm:$0xf] %v926
      %928 = vst [vmem:[#allocation2 + $0x70] sm:$0xf] %v828
      %v929 = vld [vmem:[#allocation2 + $0x74] sm:$0x1]
      %v930 = vsel %vm545, %v829, %v929
      %931 = vst [vmem:[#allocation2 + $0x74] sm:$0x1] %v930
      %p932 = scmp.eq.s32.totalorder %s24, 0
      // Predicated region
      $region45: #{residual_block_forward.4} parent=43 // pred_check
        %p933 = pneg %p932
      $region46: #{residual_block_forward.4} parent=43 // pred_check_branch
        %935 = sbr.rel (%p933) target = $region48
      $region47: #{residual_block_forward.4} parent=43 // pred_region
        %v936 = vld [vmem:[#allocation2] sm:$0xf]
        %v937 = vsel %vm861, 0, %v936
        %938 = vst [vmem:[#allocation2] sm:$0xf] %v937
        %939 = vst [vmem:[#allocation2 + $0x4] sm:$0xf] 0
        %v940 = vld [vmem:[#allocation2 + $0x8] sm:$0x1]
        %v941 = vsel %vm545, 0, %v940
        %942 = vst [vmem:[#allocation2 + $0x8] sm:$0x1] %v941
      $region48: #{residual_block_forward.4} parent=43 // pred_fallthru
        _
      %p943 = scmp.eq.s32.totalorder %s24, 1
      // Predicated region
      $region49: #{residual_block_forward.4} parent=43 // pred_check
        %p944 = pneg %p943
      $region50: #{residual_block_forward.4} parent=43 // pred_check_branch
        %946 = sbr.rel (%p944) target = $region52
      $region51: #{residual_block_forward.4} parent=43 // pred_region
        %s947 = scalar_lea.vmem [#allocation2], 108
        %v948 = vld [vmem:[%s947] sm:$0xf]
        %v949 = vsel %vm861, 0, %v948
        %950 = vst [vmem:[%s947] sm:$0xf] %v949
        %951 = vst [vmem:[%s947 + $0x4] sm:$0xf] 0
        %v952 = vld [vmem:[%s947 + $0x8] sm:$0x1]
        %v953 = vsel %vm545, 0, %v952
        %954 = vst [vmem:[%s947 + $0x8] sm:$0x1] %v953
      $region52: #{residual_block_forward.4} parent=43 // pred_fallthru
        _
      %v955 = vld [vmem:[%s348] sm:$0xf]
      %v956 = vld [vmem:[%s348 + $0x4] sm:$0xf]
      %v957 = vld [vmem:[%s348 + $0x8] sm:$0xf]
      %v958 = vld [vmem:[%s348 + $0xc] sm:$0xf]
      %v959 = vld [vmem:[%s348 + $0x10] sm:$0xf]
      %v960 = vld [vmem:[%s348 + $0x14] sm:$0xf]
      %v961 = vld [vmem:[%s348 + $0x18] sm:$0xf]
      %v962 = vld [vmem:[%s348 + $0x1c] sm:$0xf]
      %v963 = vld [vmem:[%s348 + $0x20] sm:$0xf]
      %v964 = vld [vmem:[%s348 + $0x24] sm:$0xf]
      %v965 = vld [vmem:[%s348 + $0x28] sm:$0xf]
      %v966 = vld [vmem:[%s348 + $0x2c] sm:$0xf]
      %v967 = vld [vmem:[%s348 + $0x30] sm:$0xf]
      %v968 = vld [vmem:[%s348 + $0x34] sm:$0xf]
      %v969 = vld [vmem:[%s348 + $0x38] sm:$0xf]
      %v970 = vld [vmem:[%s348 + $0x3c] sm:$0xf]
      %v971 = vld [vmem:[%s2] sm:$0xf]
      %v972 = vld [vmem:[%s2 + $0x4] sm:$0xf]
      %v973 = vld [vmem:[%s2 + $0x8] sm:$0xf]
      %v974 = vld [vmem:[%s2 + $0xc] sm:$0xf]
      %v975 = vld [vmem:[%s2 + $0x10] sm:$0xf]
      %v976 = vld [vmem:[%s2 + $0x14] sm:$0xf]
      %v977 = vld [vmem:[%s2 + $0x18] sm:$0xf]
      %v978 = vld [vmem:[%s2 + $0x1c] sm:$0xf]
      %v979 = vld [vmem:[%s2 + $0x20] sm:$0xf]
      %v980 = vld [vmem:[%s2 + $0x24] sm:$0xf]
      %v981 = vld [vmem:[%s2 + $0x28] sm:$0xf]
      %v982 = vld [vmem:[%s2 + $0x2c] sm:$0xf]
      %v983 = vld [vmem:[%s2 + $0x30] sm:$0xf]
      %v984 = vld [vmem:[%s2 + $0x34] sm:$0xf]
      %v985 = vld [vmem:[%s2 + $0x38] sm:$0xf]
      %v986 = vld [vmem:[%s2 + $0x3c] sm:$0xf]
      %v987 = vld [vmem:[#allocation2] sm:$0xf]
      %v988 = vld [vmem:[#allocation2 + $0x4] sm:$0xf]
      %v989 = vld [vmem:[#allocation2 + $0xc] sm:$0xf]
      %v990 = vld [vmem:[#allocation2 + $0x10] sm:$0xf]
      %v991 = vld [vmem:[#allocation2 + $0x18] sm:$0xf]
      %v992 = vld [vmem:[#allocation2 + $0x1c] sm:$0xf]
      %v993 = vld [vmem:[#allocation2 + $0x24] sm:$0xf]
      %v994 = vld [vmem:[#allocation2 + $0x28] sm:$0xf]
      %v995 = vld [vmem:[#allocation2 + $0x30] sm:$0xf]
      %v996 = vld [vmem:[#allocation2 + $0x34] sm:$0xf]
      %v997 = vld [vmem:[#allocation2 + $0x3c] sm:$0xf]
      %v998 = vld [vmem:[#allocation2 + $0x40] sm:$0xf]
      %v999 = vld [vmem:[#allocation2 + $0x48] sm:$0xf]
      %v1000 = vld [vmem:[#allocation2 + $0x4c] sm:$0xf]
      %v1001 = vld [vmem:[#allocation2 + $0x54] sm:$0xf]
      %v1002 = vld [vmem:[#allocation2 + $0x58] sm:$0xf]
      %v1003 = vld [vmem:[%s3] sm:$0xf]
      %v1004 = vld [vmem:[%s3 + $0x4] sm:$0xf]
      %v1005 = vld [vmem:[%s3 + $0x8] sm:$0xf]
      %v1006 = vld [vmem:[%s3 + $0xc] sm:$0xf]
      %v1007 = vld [vmem:[%s3 + $0x10] sm:$0xf]
      %v1008 = vld [vmem:[%s3 + $0x14] sm:$0xf]
      %v1009 = vld [vmem:[%s3 + $0x18] sm:$0xf]
      %v1010 = vld [vmem:[%s3 + $0x1c] sm:$0xf]
      %v1011 = vld [vmem:[%s3 + $0x20] sm:$0xf]
      %v1012 = vld [vmem:[%s3 + $0x24] sm:$0xf]
      %v1013 = vld [vmem:[%s3 + $0x28] sm:$0xf]
      %v1014 = vld [vmem:[%s3 + $0x2c] sm:$0xf]
      %v1015 = vld [vmem:[%s3 + $0x30] sm:$0xf]
      %v1016 = vld [vmem:[%s3 + $0x34] sm:$0xf]
      %v1017 = vld [vmem:[%s3 + $0x38] sm:$0xf]
      %v1018 = vld [vmem:[%s3 + $0x3c] sm:$0xf]
      %v1035 = vunpack.c.l.b16 %v987
      %v1036 = vunpack.c.l.b16 %v988
      %v1037 = vunpack.c.l.b16 %v989
      %v1038 = vunpack.c.l.b16 %v990
      %v1039 = vunpack.c.l.b16 %v991
      %v1040 = vunpack.c.l.b16 %v992
      %v1041 = vunpack.c.l.b16 %v993
      %v1042 = vunpack.c.l.b16 %v994
      %v1043 = vunpack.c.l.b16 %v995
      %v1044 = vunpack.c.l.b16 %v996
      %v1045 = vunpack.c.l.b16 %v997
      %v1046 = vunpack.c.l.b16 %v998
      %v1047 = vunpack.c.l.b16 %v999
      %v1048 = vunpack.c.l.b16 %v1000
      %v1049 = vunpack.c.l.b16 %v1001
      %v1050 = vunpack.c.l.b16 %v1002
      %v1051 = vpack.c.b16 %v1036, %v1035
      %v1052 = vpack.c.b16 %v1038, %v1037
      %v1053 = vpack.c.b16 %v1040, %v1039
      %v1054 = vpack.c.b16 %v1042, %v1041
      %v1055 = vpack.c.b16 %v1044, %v1043
      %v1056 = vpack.c.b16 %v1046, %v1045
      %v1057 = vpack.c.b16 %v1048, %v1047
      %v1058 = vpack.c.b16 %v1050, %v1049
      %v1083 = vunpack.c.l.b16 %v1003
      %v1084 = vunpack.c.l.b16 %v1004
      %v1085 = vunpack.c.l.b16 %v1005
      %v1086 = vunpack.c.l.b16 %v1006
      %v1087 = vunpack.c.l.b16 %v1007
      %v1088 = vunpack.c.l.b16 %v1008
      %v1089 = vunpack.c.l.b16 %v1009
      %v1090 = vunpack.c.l.b16 %v1010
      %v1091 = vunpack.c.l.b16 %v1011
      %v1092 = vunpack.c.l.b16 %v1012
      %v1093 = vunpack.c.l.b16 %v1013
      %v1094 = vunpack.c.l.b16 %v1014
      %v1095 = vunpack.c.l.b16 %v1015
      %v1096 = vunpack.c.l.b16 %v1016
      %v1097 = vunpack.c.l.b16 %v1017
      %v1098 = vunpack.c.l.b16 %v1018
      %v1099 = vpack.c.b16 %v1084, %v1083
      %v1100 = vpack.c.b16 %v1086, %v1085
      %v1101 = vpack.c.b16 %v1088, %v1087
      %v1102 = vpack.c.b16 %v1090, %v1089
      %v1103 = vpack.c.b16 %v1092, %v1091
      %v1104 = vpack.c.b16 %v1094, %v1093
      %v1105 = vpack.c.b16 %v1096, %v1095
      %v1106 = vpack.c.b16 %v1098, %v1097
      %1115 = vmatprep.subr.bf16.mxu0 0
      %1116 = vmatpush1.bf16.msra.mxu0 %v1099
      %1117 = vmatprep.subr.bf16.mxu0 0
      %1118 = vmatpush1.bf16.msra.mxu0 %v1100
      %1119 = vmatprep.subr.bf16.mxu0 0
      %1120 = vmatpush1.bf16.msra.mxu0 %v1101
      %1121 = vmatprep.subr.bf16.mxu0 0
      %1122 = vmatpush1.bf16.msra.mxu0 %v1102
      %1123 = vmatprep.subr.bf16.mxu0 0
      %1124 = vmatpush1.bf16.msra.mxu0 %v1103
      %1125 = vmatprep.subr.bf16.mxu0 0
      %1126 = vmatpush1.bf16.msra.mxu0 %v1104
      %1127 = vmatprep.subr.bf16.mxu0 0
      %1128 = vmatpush1.bf16.msra.mxu0 %v1105
      %1129 = vmatprep.subr.bf16.mxu0 0
      %1130 = vmatpush1.bf16.msra.mxu0 %v1106
      %1131 = vmatprep.subr.bf16.mxu0 0
      %1132 = vmatpush1.bf16.msra.mxu0 0
      %1133 = vmatprep.subr.bf16.mxu0 0
      %1134 = vmatpush1.bf16.msra.mxu0 0
      %1135 = vmatprep.subr.bf16.mxu0 0
      %1136 = vmatpush1.bf16.msra.mxu0 0
      %1137 = vmatprep.subr.bf16.mxu0 0
      %1138 = vmatpush1.bf16.msra.mxu0 0
      %1139 = vmatprep.subr.bf16.mxu0 0
      %1140 = vmatpush1.bf16.msra.mxu0 0
      %1141 = vmatprep.subr.bf16.mxu0 0
      %1142 = vmatpush1.bf16.msra.mxu0 0
      %1143 = vmatprep.subr.bf16.mxu0 0
      %1144 = vmatpush1.bf16.msra.mxu0 0
      %1145 = vmatprep.subr.bf16.mxu0 0
      %1146 = vmatpush1.bf16.msra.mxu0 0
      %1147 = vmatprep.mubr.bf16.mxu0 0
      %1148 = vmatmul.mubr.bf16.gmra.mrb[0].mxu0 %v1051
      %v1149 = vpop.f32.mrb[0].mxu0
      %v1150 = vadd.f32 0.0, %v1149
      %v1151 = vpop.f32.mrb[0].mxu0
      %v1152 = vpop.f32.mrb[0].mxu0
      %v1153 = vadd.f32 0.0, %v1152
      %v1154 = vpop.f32.mrb[0].mxu0
      %1155 = vmatprep.mubr.bf16.mxu0 0
      %1156 = vmatmul.mubr.bf16.gmra.mrb[0].mxu0 %v1052
      %v1157 = vpop.f32.mrb[0].mxu0
      %v1158 = vadd.f32 0.0, %v1157
      %v1159 = vpop.f32.mrb[0].mxu0
      %v1160 = vpop.f32.mrb[0].mxu0
      %v1161 = vadd.f32 0.0, %v1160
      %v1162 = vpop.f32.mrb[0].mxu0
      %1163 = vmatprep.mubr.bf16.mxu0 0
      %1164 = vmatmul.mubr.bf16.gmra.mrb[0].mxu0 %v1053
      %v1165 = vpop.f32.mrb[0].mxu0
      %v1166 = vadd.f32 0.0, %v1165
      %v1167 = vpop.f32.mrb[0].mxu0
      %v1168 = vpop.f32.mrb[0].mxu0
      %v1169 = vadd.f32 0.0, %v1168
      %v1170 = vpop.f32.mrb[0].mxu0
      %1171 = vmatprep.mubr.bf16.mxu0 0
      %1172 = vmatmul.mubr.bf16.gmra.mrb[0].mxu0 %v1054
      %v1173 = vpop.f32.mrb[0].mxu0
      %v1174 = vadd.f32 0.0, %v1173
      %v1175 = vpop.f32.mrb[0].mxu0
      %v1176 = vpop.f32.mrb[0].mxu0
      %v1177 = vadd.f32 0.0, %v1176
      %v1178 = vpop.f32.mrb[0].mxu0
      %1179 = vmatprep.mubr.bf16.mxu0 0
      %1180 = vmatmul.mubr.bf16.gmra.mrb[0].mxu0 %v1055
      %v1181 = vpop.f32.mrb[0].mxu0
      %v1182 = vadd.f32 0.0, %v1181
      %v1183 = vpop.f32.mrb[0].mxu0
      %v1184 = vpop.f32.mrb[0].mxu0
      %v1185 = vadd.f32 0.0, %v1184
      %v1186 = vpop.f32.mrb[0].mxu0
      %1187 = vmatprep.mubr.bf16.mxu0 0
      %1188 = vmatmul.mubr.bf16.gmra.mrb[0].mxu0 %v1056
      %v1189 = vpop.f32.mrb[0].mxu0
      %v1190 = vadd.f32 0.0, %v1189
      %v1191 = vpop.f32.mrb[0].mxu0
      %v1192 = vpop.f32.mrb[0].mxu0
      %v1193 = vadd.f32 0.0, %v1192
      %v1194 = vpop.f32.mrb[0].mxu0
      %1195 = vmatprep.mubr.bf16.mxu0 0
      %1196 = vmatmul.mubr.bf16.gmra.mrb[0].mxu0 %v1057
      %v1197 = vpop.f32.mrb[0].mxu0
      %v1198 = vadd.f32 0.0, %v1197
      %v1199 = vpop.f32.mrb[0].mxu0
      %v1200 = vpop.f32.mrb[0].mxu0
      %v1201 = vadd.f32 0.0, %v1200
      %v1202 = vpop.f32.mrb[0].mxu0
      %1203 = vmatprep.mubr.bf16.mxu0 0
      %1204 = vmatmul.mubr.bf16.gmra.mrb[0].mxu0 %v1058
      %v1205 = vpop.f32.mrb[0].mxu0
      %v1206 = vadd.f32 0.0, %v1205
      %v1207 = vpop.f32.mrb[0].mxu0
      %v1208 = vpop.f32.mrb[0].mxu0
      %v1209 = vadd.f32 0.0, %v1208
      %v1210 = vpop.f32.mrb[0].mxu0
      %1211 = vdwg.mxu0
      %v1228 = vunpack.c.l.b16 %v955
      %v1229 = vunpack.c.l.b16 %v956
      %v1230 = vunpack.c.l.b16 %v957
      %v1231 = vunpack.c.l.b16 %v958
      %v1232 = vunpack.c.l.b16 %v959
      %v1233 = vunpack.c.l.b16 %v960
      %v1234 = vunpack.c.l.b16 %v961
      %v1235 = vunpack.c.l.b16 %v962
      %v1236 = vunpack.c.l.b16 %v963
      %v1237 = vunpack.c.l.b16 %v964
      %v1238 = vunpack.c.l.b16 %v965
      %v1239 = vunpack.c.l.b16 %v966
      %v1240 = vunpack.c.l.b16 %v967
      %v1241 = vunpack.c.l.b16 %v968
      %v1242 = vunpack.c.l.b16 %v969
      %v1243 = vunpack.c.l.b16 %v970
      %v1244 = vpack.c.b16 %v1229, %v1228
      %v1245 = vpack.c.b16 %v1231, %v1230
      %v1246 = vpack.c.b16 %v1233, %v1232
      %v1247 = vpack.c.b16 %v1235, %v1234
      %v1248 = vpack.c.b16 %v1237, %v1236
      %v1249 = vpack.c.b16 %v1239, %v1238
      %v1250 = vpack.c.b16 %v1241, %v1240
      %v1251 = vpack.c.b16 %v1243, %v1242
      %v1276 = vunpack.c.l.b16 %v971
      %v1277 = vunpack.c.l.b16 %v972
      %v1278 = vunpack.c.l.b16 %v973
      %v1279 = vunpack.c.l.b16 %v974
      %v1280 = vunpack.c.l.b16 %v975
      %v1281 = vunpack.c.l.b16 %v976
      %v1282 = vunpack.c.l.b16 %v977
      %v1283 = vunpack.c.l.b16 %v978
      %v1284 = vunpack.c.l.b16 %v979
      %v1285 = vunpack.c.l.b16 %v980
      %v1286 = vunpack.c.l.b16 %v981
      %v1287 = vunpack.c.l.b16 %v982
      %v1288 = vunpack.c.l.b16 %v983
      %v1289 = vunpack.c.l.b16 %v984
      %v1290 = vunpack.c.l.b16 %v985
      %v1291 = vunpack.c.l.b16 %v986
      %v1292 = vpack.c.b16 %v1277, %v1276
      %v1293 = vpack.c.b16 %v1279, %v1278
      %v1294 = vpack.c.b16 %v1281, %v1280
      %v1295 = vpack.c.b16 %v1283, %v1282
      %v1296 = vpack.c.b16 %v1285, %v1284
      %v1297 = vpack.c.b16 %v1287, %v1286
      %v1298 = vpack.c.b16 %v1289, %v1288
      %v1299 = vpack.c.b16 %v1291, %v1290
      %1308 = vmatprep.subr.bf16.mxu0 0
      %1309 = vmatpush1.bf16.msra.mxu0 %v1292
      %1310 = vmatprep.subr.bf16.mxu0 0
      %1311 = vmatpush1.bf16.msra.mxu0 %v1293
      %1312 = vmatprep.subr.bf16.mxu0 0
      %1313 = vmatpush1.bf16.msra.mxu0 %v1294
      %1314 = vmatprep.subr.bf16.mxu0 0
      %1315 = vmatpush1.bf16.msra.mxu0 %v1295
      %1316 = vmatprep.subr.bf16.mxu0 0
      %1317 = vmatpush1.bf16.msra.mxu0 %v1296
      %1318 = vmatprep.subr.bf16.mxu0 0
      %1319 = vmatpush1.bf16.msra.mxu0 %v1297
      %1320 = vmatprep.subr.bf16.mxu0 0
      %1321 = vmatpush1.bf16.msra.mxu0 %v1298
      %1322 = vmatprep.subr.bf16.mxu0 0
      %1323 = vmatpush1.bf16.msra.mxu0 %v1299
      %1324 = vmatprep.subr.bf16.mxu0 0
      %1325 = vmatpush1.bf16.msra.mxu0 0
      %1326 = vmatprep.subr.bf16.mxu0 0
      %1327 = vmatpush1.bf16.msra.mxu0 0
      %1328 = vmatprep.subr.bf16.mxu0 0
      %1329 = vmatpush1.bf16.msra.mxu0 0
      %1330 = vmatprep.subr.bf16.mxu0 0
      %1331 = vmatpush1.bf16.msra.mxu0 0
      %1332 = vmatprep.subr.bf16.mxu0 0
      %1333 = vmatpush1.bf16.msra.mxu0 0
      %1334 = vmatprep.subr.bf16.mxu0 0
      %1335 = vmatpush1.bf16.msra.mxu0 0
      %1336 = vmatprep.subr.bf16.mxu0 0
      %1337 = vmatpush1.bf16.msra.mxu0 0
      %1338 = vmatprep.subr.bf16.mxu0 0
      %1339 = vmatpush1.bf16.msra.mxu0 0
      %1340 = vmatprep.mubr.bf16.mxu0 0
      %1341 = vmatmul.mubr.bf16.gmra.mrb[0].mxu0 %v1244
      %v1342 = vpop.f32.mrb[0].mxu0
      %v1343 = vadd.f32 %v1150, %v1342
      %v1344 = vpop.f32.mrb[0].mxu0
      %v1345 = vpop.f32.mrb[0].mxu0
      %v1346 = vadd.f32 %v1153, %v1345
      %v1347 = vpop.f32.mrb[0].mxu0
      %1348 = vmatprep.mubr.bf16.mxu0 0
      %1349 = vmatmul.mubr.bf16.gmra.mrb[0].mxu0 %v1245
      %v1350 = vpop.f32.mrb[0].mxu0
      %v1351 = vadd.f32 %v1158, %v1350
      %v1352 = vpop.f32.mrb[0].mxu0
      %v1353 = vpop.f32.mrb[0].mxu0
      %v1354 = vadd.f32 %v1161, %v1353
      %v1355 = vpop.f32.mrb[0].mxu0
      %1356 = vmatprep.mubr.bf16.mxu0 0
      %1357 = vmatmul.mubr.bf16.gmra.mrb[0].mxu0 %v1246
      %v1358 = vpop.f32.mrb[0].mxu0
      %v1359 = vadd.f32 %v1166, %v1358
      %v1360 = vpop.f32.mrb[0].mxu0
      %v1361 = vpop.f32.mrb[0].mxu0
      %v1362 = vadd.f32 %v1169, %v1361
      %v1363 = vpop.f32.mrb[0].mxu0
      %1364 = vmatprep.mubr.bf16.mxu0 0
      %1365 = vmatmul.mubr.bf16.gmra.mrb[0].mxu0 %v1247
      %v1366 = vpop.f32.mrb[0].mxu0
      %v1367 = vadd.f32 %v1174, %v1366
      %v1368 = vpop.f32.mrb[0].mxu0
      %v1369 = vpop.f32.mrb[0].mxu0
      %v1370 = vadd.f32 %v1177, %v1369
      %v1371 = vpop.f32.mrb[0].mxu0
      %1372 = vmatprep.mubr.bf16.mxu0 0
      %1373 = vmatmul.mubr.bf16.gmra.mrb[0].mxu0 %v1248
      %v1374 = vpop.f32.mrb[0].mxu0
      %v1375 = vadd.f32 %v1182, %v1374
      %v1376 = vpop.f32.mrb[0].mxu0
      %v1377 = vpop.f32.mrb[0].mxu0
      %v1378 = vadd.f32 %v1185, %v1377
      %v1379 = vpop.f32.mrb[0].mxu0
      %1380 = vmatprep.mubr.bf16.mxu0 0
      %1381 = vmatmul.mubr.bf16.gmra.mrb[0].mxu0 %v1249
      %v1382 = vpop.f32.mrb[0].mxu0
      %v1383 = vadd.f32 %v1190, %v1382
      %v1384 = vpop.f32.mrb[0].mxu0
      %v1385 = vpop.f32.mrb[0].mxu0
      %v1386 = vadd.f32 %v1193, %v1385
      %v1387 = vpop.f32.mrb[0].mxu0
      %1388 = vmatprep.mubr.bf16.mxu0 0
      %1389 = vmatmul.mubr.bf16.gmra.mrb[0].mxu0 %v1250
      %v1390 = vpop.f32.mrb[0].mxu0
      %v1391 = vadd.f32 %v1198, %v1390
      %v1392 = vpop.f32.mrb[0].mxu0
      %v1393 = vpop.f32.mrb[0].mxu0
      %v1394 = vadd.f32 %v1201, %v1393
      %v1395 = vpop.f32.mrb[0].mxu0
      %1396 = vmatprep.mubr.bf16.mxu0 0
      %1397 = vmatmul.mubr.bf16.gmra.mrb[0].mxu0 %v1251
      %v1398 = vpop.f32.mrb[0].mxu0
      %v1399 = vadd.f32 %v1206, %v1398
      %v1400 = vpop.f32.mrb[0].mxu0
      %v1401 = vpop.f32.mrb[0].mxu0
      %v1402 = vadd.f32 %v1209, %v1401
      %v1403 = vpop.f32.mrb[0].mxu0
      %1404 = vdwg.mxu0
      %v1405 = vld [vmem:[#allocation2] sm:$0xf]
      %v1406 = vld [vmem:[#allocation2 + $0x4] sm:$0xf]
      %v1407 = vld [vmem:[#allocation2 + $0x8] sm:$0x1]
      %v1408 = vld [vmem:[#allocation2 + $0xc] sm:$0xf]
      %v1409 = vld [vmem:[#allocation2 + $0x10] sm:$0xf]
      %v1410 = vld [vmem:[#allocation2 + $0x14] sm:$0x1]
      %v1411 = vld [vmem:[#allocation2 + $0x18] sm:$0xf]
      %v1412 = vld [vmem:[#allocation2 + $0x1c] sm:$0xf]
      %v1413 = vld [vmem:[#allocation2 + $0x20] sm:$0x1]
      %v1414 = vld [vmem:[#allocation2 + $0x24] sm:$0xf]
      %v1415 = vld [vmem:[#allocation2 + $0x28] sm:$0xf]
      %v1416 = vld [vmem:[#allocation2 + $0x2c] sm:$0x1]
      %v1417 = vld [vmem:[#allocation2 + $0x30] sm:$0xf]
      %v1418 = vld [vmem:[#allocation2 + $0x34] sm:$0xf]
      %v1419 = vld [vmem:[#allocation2 + $0x38] sm:$0x1]
      %v1420 = vld [vmem:[#allocation2 + $0x3c] sm:$0xf]
      %v1421 = vld [vmem:[#allocation2 + $0x40] sm:$0xf]
      %v1422 = vld [vmem:[#allocation2 + $0x44] sm:$0x1]
      %v1423 = vld [vmem:[#allocation2 + $0x48] sm:$0xf]
      %v1424 = vld [vmem:[#allocation2 + $0x4c] sm:$0xf]
      %v1425 = vld [vmem:[#allocation2 + $0x50] sm:$0x1]
      %v1426 = vld [vmem:[#allocation2 + $0x54] sm:$0xf]
      %v1427 = vld [vmem:[#allocation2 + $0x58] sm:$0xf]
      %v1428 = vld [vmem:[#allocation2 + $0x5c] sm:$0x1]
      %vm1429 = vsmask.f32 3328
      %vm1430 = vsmask.f32 7440
      %vm1431 = vmor %vm1429, %vm1430
      %v1433 = vshrl.u32 %v1405, 16
      %v1435 = vrot.slane %v1433, 4
      %v1436 = vshll.u32 %v1405, 16
      %v1438 = vrot.slane %v1436, 5
      %v1439 = vor.u32 %v1435, %v1438
      %v1440 = vrot.slane %v1439, 4
      %v1442 = vshll.u32 %v1406, 16
      %v1444 = vrot.slane %v1442, 5
      %v1445 = vsel %vm1431, %v1440, %v1444
      %v1446 = vshrl.u32 %v1406, 16
      %v1448 = vrot.slane %v1446, 4
      %v1449 = vor.u32 %v1448, %v1444
      %v1450 = vrot.slane %v1449, 4
      %v1452 = vshll.u32 %v1407, 16
      %v1454 = vrot.slane %v1452, 5
      %v1455 = vsel %vm1431, %v1450, %v1454
      %v1457 = vshrl.u32 %v1408, 16
      %v1459 = vrot.slane %v1457, 4
      %v1460 = vshll.u32 %v1408, 16
      %v1462 = vrot.slane %v1460, 5
      %v1463 = vor.u32 %v1459, %v1462
      %v1464 = vrot.slane %v1463, 4
      %v1466 = vshll.u32 %v1409, 16
      %v1468 = vrot.slane %v1466, 5
      %v1469 = vsel %vm1431, %v1464, %v1468
      %v1470 = vshrl.u32 %v1409, 16
      %v1472 = vrot.slane %v1470, 4
      %v1473 = vor.u32 %v1472, %v1468
      %v1474 = vrot.slane %v1473, 4
      %v1476 = vshll.u32 %v1410, 16
      %v1478 = vrot.slane %v1476, 5
      %v1479 = vsel %vm1431, %v1474, %v1478
      %v1481 = vshrl.u32 %v1411, 16
      %v1483 = vrot.slane %v1481, 4
      %v1484 = vshll.u32 %v1411, 16
      %v1486 = vrot.slane %v1484, 5
      %v1487 = vor.u32 %v1483, %v1486
      %v1488 = vrot.slane %v1487, 4
      %v1490 = vshll.u32 %v1412, 16
      %v1492 = vrot.slane %v1490, 5
      %v1493 = vsel %vm1431, %v1488, %v1492
      %v1494 = vshrl.u32 %v1412, 16
      %v1496 = vrot.slane %v1494, 4
      %v1497 = vor.u32 %v1496, %v1492
      %v1498 = vrot.slane %v1497, 4
      %v1500 = vshll.u32 %v1413, 16
      %v1502 = vrot.slane %v1500, 5
      %v1503 = vsel %vm1431, %v1498, %v1502
      %v1505 = vshrl.u32 %v1414, 16
      %v1507 = vrot.slane %v1505, 4
      %v1508 = vshll.u32 %v1414, 16
      %v1510 = vrot.slane %v1508, 5
      %v1511 = vor.u32 %v1507, %v1510
      %v1512 = vrot.slane %v1511, 4
      %v1514 = vshll.u32 %v1415, 16
      %v1516 = vrot.slane %v1514, 5
      %v1517 = vsel %vm1431, %v1512, %v1516
      %v1518 = vshrl.u32 %v1415, 16
      %v1520 = vrot.slane %v1518, 4
      %v1521 = vor.u32 %v1520, %v1516
      %v1522 = vrot.slane %v1521, 4
      %v1524 = vshll.u32 %v1416, 16
      %v1526 = vrot.slane %v1524, 5
      %v1527 = vsel %vm1431, %v1522, %v1526
      %v1529 = vshrl.u32 %v1417, 16
      %v1531 = vrot.slane %v1529, 4
      %v1532 = vshll.u32 %v1417, 16
      %v1534 = vrot.slane %v1532, 5
      %v1535 = vor.u32 %v1531, %v1534
      %v1536 = vrot.slane %v1535, 4
      %v1538 = vshll.u32 %v1418, 16
      %v1540 = vrot.slane %v1538, 5
      %v1541 = vsel %vm1431, %v1536, %v1540
      %v1542 = vshrl.u32 %v1418, 16
      %v1544 = vrot.slane %v1542, 4
      %v1545 = vor.u32 %v1544, %v1540
      %v1546 = vrot.slane %v1545, 4
      %v1548 = vshll.u32 %v1419, 16
      %v1550 = vrot.slane %v1548, 5
      %v1551 = vsel %vm1431, %v1546, %v1550
      %v1553 = vshrl.u32 %v1420, 16
      %v1555 = vrot.slane %v1553, 4
      %v1556 = vshll.u32 %v1420, 16
      %v1558 = vrot.slane %v1556, 5
      %v1559 = vor.u32 %v1555, %v1558
      %v1560 = vrot.slane %v1559, 4
      %v1562 = vshll.u32 %v1421, 16
      %v1564 = vrot.slane %v1562, 5
      %v1565 = vsel %vm1431, %v1560, %v1564
      %v1566 = vshrl.u32 %v1421, 16
      %v1568 = vrot.slane %v1566, 4
      %v1569 = vor.u32 %v1568, %v1564
      %v1570 = vrot.slane %v1569, 4
      %v1572 = vshll.u32 %v1422, 16
      %v1574 = vrot.slane %v1572, 5
      %v1575 = vsel %vm1431, %v1570, %v1574
      %v1577 = vshrl.u32 %v1423, 16
      %v1579 = vrot.slane %v1577, 4
      %v1580 = vshll.u32 %v1423, 16
      %v1582 = vrot.slane %v1580, 5
      %v1583 = vor.u32 %v1579, %v1582
      %v1584 = vrot.slane %v1583, 4
      %v1586 = vshll.u32 %v1424, 16
      %v1588 = vrot.slane %v1586, 5
      %v1589 = vsel %vm1431, %v1584, %v1588
      %v1590 = vshrl.u32 %v1424, 16
      %v1592 = vrot.slane %v1590, 4
      %v1593 = vor.u32 %v1592, %v1588
      %v1594 = vrot.slane %v1593, 4
      %v1596 = vshll.u32 %v1425, 16
      %v1598 = vrot.slane %v1596, 5
      %v1599 = vsel %vm1431, %v1594, %v1598
      %v1601 = vshrl.u32 %v1426, 16
      %v1603 = vrot.slane %v1601, 4
      %v1604 = vshll.u32 %v1426, 16
      %v1606 = vrot.slane %v1604, 5
      %v1607 = vor.u32 %v1603, %v1606
      %v1608 = vrot.slane %v1607, 4
      %v1610 = vshll.u32 %v1427, 16
      %v1612 = vrot.slane %v1610, 5
      %v1613 = vsel %vm1431, %v1608, %v1612
      %v1614 = vshrl.u32 %v1427, 16
      %v1616 = vrot.slane %v1614, 4
      %v1617 = vor.u32 %v1616, %v1612
      %v1618 = vrot.slane %v1617, 4
      %v1620 = vshll.u32 %v1428, 16
      %v1622 = vrot.slane %v1620, 5
      %v1623 = vsel %vm1431, %v1618, %v1622
      %s1624 = scalar_lea.vmem %s3, 64
      %v1625 = vld [vmem:[%s1624] sm:$0xf]
      %v1626 = vld [vmem:[%s1624 + $0x4] sm:$0xf]
      %v1627 = vld [vmem:[%s1624 + $0x8] sm:$0xf]
      %v1628 = vld [vmem:[%s1624 + $0xc] sm:$0xf]
      %v1629 = vld [vmem:[%s1624 + $0x10] sm:$0xf]
      %v1630 = vld [vmem:[%s1624 + $0x14] sm:$0xf]
      %v1631 = vld [vmem:[%s1624 + $0x18] sm:$0xf]
      %v1632 = vld [vmem:[%s1624 + $0x1c] sm:$0xf]
      %v1633 = vld [vmem:[%s1624 + $0x20] sm:$0xf]
      %v1634 = vld [vmem:[%s1624 + $0x24] sm:$0xf]
      %v1635 = vld [vmem:[%s1624 + $0x28] sm:$0xf]
      %v1636 = vld [vmem:[%s1624 + $0x2c] sm:$0xf]
      %v1637 = vld [vmem:[%s1624 + $0x30] sm:$0xf]
      %v1638 = vld [vmem:[%s1624 + $0x34] sm:$0xf]
      %v1639 = vld [vmem:[%s1624 + $0x38] sm:$0xf]
      %v1640 = vld [vmem:[%s1624 + $0x3c] sm:$0xf]
      %v1641 = vunpack.c.l.b16 %v1445
      %v1642 = vunpack.c.l.b16 %v1455
      %v1643 = vunpack.c.l.b16 %v1469
      %v1644 = vunpack.c.l.b16 %v1479
      %v1645 = vunpack.c.l.b16 %v1493
      %v1646 = vunpack.c.l.b16 %v1503
      %v1647 = vunpack.c.l.b16 %v1517
      %v1648 = vunpack.c.l.b16 %v1527
      %v1649 = vunpack.c.l.b16 %v1541
      %v1650 = vunpack.c.l.b16 %v1551
      %v1651 = vunpack.c.l.b16 %v1565
      %v1652 = vunpack.c.l.b16 %v1575
      %v1653 = vunpack.c.l.b16 %v1589
      %v1654 = vunpack.c.l.b16 %v1599
      %v1655 = vunpack.c.l.b16 %v1613
      %v1656 = vunpack.c.l.b16 %v1623
      %v1657 = vpack.c.b16 %v1642, %v1641
      %v1658 = vpack.c.b16 %v1644, %v1643
      %v1659 = vpack.c.b16 %v1646, %v1645
      %v1660 = vpack.c.b16 %v1648, %v1647
      %v1661 = vpack.c.b16 %v1650, %v1649
      %v1662 = vpack.c.b16 %v1652, %v1651
      %v1663 = vpack.c.b16 %v1654, %v1653
      %v1664 = vpack.c.b16 %v1656, %v1655
      %v1689 = vunpack.c.l.b16 %v1625
      %v1690 = vunpack.c.l.b16 %v1626
      %v1691 = vunpack.c.l.b16 %v1627
      %v1692 = vunpack.c.l.b16 %v1628
      %v1693 = vunpack.c.l.b16 %v1629
      %v1694 = vunpack.c.l.b16 %v1630
      %v1695 = vunpack.c.l.b16 %v1631
      %v1696 = vunpack.c.l.b16 %v1632
      %v1697 = vunpack.c.l.b16 %v1633
      %v1698 = vunpack.c.l.b16 %v1634
      %v1699 = vunpack.c.l.b16 %v1635
      %v1700 = vunpack.c.l.b16 %v1636
      %v1701 = vunpack.c.l.b16 %v1637
      %v1702 = vunpack.c.l.b16 %v1638
      %v1703 = vunpack.c.l.b16 %v1639
      %v1704 = vunpack.c.l.b16 %v1640
      %v1705 = vpack.c.b16 %v1690, %v1689
      %v1706 = vpack.c.b16 %v1692, %v1691
      %v1707 = vpack.c.b16 %v1694, %v1693
      %v1708 = vpack.c.b16 %v1696, %v1695
      %v1709 = vpack.c.b16 %v1698, %v1697
      %v1710 = vpack.c.b16 %v1700, %v1699
      %v1711 = vpack.c.b16 %v1702, %v1701
      %v1712 = vpack.c.b16 %v1704, %v1703
      %1721 = vmatprep.subr.bf16.mxu0 0
      %1722 = vmatpush1.bf16.msra.mxu0 %v1705
      %1723 = vmatprep.subr.bf16.mxu0 0
      %1724 = vmatpush1.bf16.msra.mxu0 %v1706
      %1725 = vmatprep.subr.bf16.mxu0 0
      %1726 = vmatpush1.bf16.msra.mxu0 %v1707
      %1727 = vmatprep.subr.bf16.mxu0 0
      %1728 = vmatpush1.bf16.msra.mxu0 %v1708
      %1729 = vmatprep.subr.bf16.mxu0 0
      %1730 = vmatpush1.bf16.msra.mxu0 %v1709
      %1731 = vmatprep.subr.bf16.mxu0 0
      %1732 = vmatpush1.bf16.msra.mxu0 %v1710
      %1733 = vmatprep.subr.bf16.mxu0 0
      %1734 = vmatpush1.bf16.msra.mxu0 %v1711
      %1735 = vmatprep.subr.bf16.mxu0 0
      %1736 = vmatpush1.bf16.msra.mxu0 %v1712
      %1737 = vmatprep.subr.bf16.mxu0 0
      %1738 = vmatpush1.bf16.msra.mxu0 0
      %1739 = vmatprep.subr.bf16.mxu0 0
      %1740 = vmatpush1.bf16.msra.mxu0 0
      %1741 = vmatprep.subr.bf16.mxu0 0
      %1742 = vmatpush1.bf16.msra.mxu0 0
      %1743 = vmatprep.subr.bf16.mxu0 0
      %1744 = vmatpush1.bf16.msra.mxu0 0
      %1745 = vmatprep.subr.bf16.mxu0 0
      %1746 = vmatpush1.bf16.msra.mxu0 0
      %1747 = vmatprep.subr.bf16.mxu0 0
      %1748 = vmatpush1.bf16.msra.mxu0 0
      %1749 = vmatprep.subr.bf16.mxu0 0
      %1750 = vmatpush1.bf16.msra.mxu0 0
      %1751 = vmatprep.subr.bf16.mxu0 0
      %1752 = vmatpush1.bf16.msra.mxu0 0
      %1753 = vmatprep.mubr.bf16.mxu0 0
      %1754 = vmatmul.mubr.bf16.gmra.mrb[0].mxu0 %v1657
      %v1755 = vpop.f32.mrb[0].mxu0
      %v1756 = vadd.f32 0.0, %v1755
      %v1757 = vpop.f32.mrb[0].mxu0
      %v1758 = vpop.f32.mrb[0].mxu0
      %v1759 = vadd.f32 0.0, %v1758
      %v1760 = vpop.f32.mrb[0].mxu0
      %1761 = vmatprep.mubr.bf16.mxu0 0
      %1762 = vmatmul.mubr.bf16.gmra.mrb[0].mxu0 %v1658
      %v1763 = vpop.f32.mrb[0].mxu0
      %v1764 = vadd.f32 0.0, %v1763
      %v1765 = vpop.f32.mrb[0].mxu0
      %v1766 = vpop.f32.mrb[0].mxu0
      %v1767 = vadd.f32 0.0, %v1766
      %v1768 = vpop.f32.mrb[0].mxu0
      %1769 = vmatprep.mubr.bf16.mxu0 0
      %1770 = vmatmul.mubr.bf16.gmra.mrb[0].mxu0 %v1659
      %v1771 = vpop.f32.mrb[0].mxu0
      %v1772 = vadd.f32 0.0, %v1771
      %v1773 = vpop.f32.mrb[0].mxu0
      %v1774 = vpop.f32.mrb[0].mxu0
      %v1775 = vadd.f32 0.0, %v1774
      %v1776 = vpop.f32.mrb[0].mxu0
      %1777 = vmatprep.mubr.bf16.mxu0 0
      %1778 = vmatmul.mubr.bf16.gmra.mrb[0].mxu0 %v1660
      %v1779 = vpop.f32.mrb[0].mxu0
      %v1780 = vadd.f32 0.0, %v1779
      %v1781 = vpop.f32.mrb[0].mxu0
      %v1782 = vpop.f32.mrb[0].mxu0
      %v1783 = vadd.f32 0.0, %v1782
      %v1784 = vpop.f32.mrb[0].mxu0
      %1785 = vmatprep.mubr.bf16.mxu0 0
      %1786 = vmatmul.mubr.bf16.gmra.mrb[0].mxu0 %v1661
      %v1787 = vpop.f32.mrb[0].mxu0
      %v1788 = vadd.f32 0.0, %v1787
      %v1789 = vpop.f32.mrb[0].mxu0
      %v1790 = vpop.f32.mrb[0].mxu0
      %v1791 = vadd.f32 0.0, %v1790
      %v1792 = vpop.f32.mrb[0].mxu0
      %1793 = vmatprep.mubr.bf16.mxu0 0
      %1794 = vmatmul.mubr.bf16.gmra.mrb[0].mxu0 %v1662
      %v1795 = vpop.f32.mrb[0].mxu0
      %v1796 = vadd.f32 0.0, %v1795
      %v1797 = vpop.f32.mrb[0].mxu0
      %v1798 = vpop.f32.mrb[0].mxu0
      %v1799 = vadd.f32 0.0, %v1798
      %v1800 = vpop.f32.mrb[0].mxu0
      %1801 = vmatprep.mubr.bf16.mxu0 0
      %1802 = vmatmul.mubr.bf16.gmra.mrb[0].mxu0 %v1663
      %v1803 = vpop.f32.mrb[0].mxu0
      %v1804 = vadd.f32 0.0, %v1803
      %v1805 = vpop.f32.mrb[0].mxu0
      %v1806 = vpop.f32.mrb[0].mxu0
      %v1807 = vadd.f32 0.0, %v1806
      %v1808 = vpop.f32.mrb[0].mxu0
      %1809 = vmatprep.mubr.bf16.mxu0 0
      %1810 = vmatmul.mubr.bf16.gmra.mrb[0].mxu0 %v1664
      %v1811 = vpop.f32.mrb[0].mxu0
      %v1812 = vadd.f32 0.0, %v1811
      %v1813 = vpop.f32.mrb[0].mxu0
      %v1814 = vpop.f32.mrb[0].mxu0
      %v1815 = vadd.f32 0.0, %v1814
      %v1816 = vpop.f32.mrb[0].mxu0
      %1817 = vdwg.mxu0
      %v1818 = vadd.f32 %v1343, %v1756
      %v1819 = vadd.f32 %v1346, %v1759
      %v1820 = vadd.f32 %v1351, %v1764
      %v1821 = vadd.f32 %v1354, %v1767
      %v1822 = vadd.f32 %v1359, %v1772
      %v1823 = vadd.f32 %v1362, %v1775
      %v1824 = vadd.f32 %v1367, %v1780
      %v1825 = vadd.f32 %v1370, %v1783
      %v1826 = vadd.f32 %v1375, %v1788
      %v1827 = vadd.f32 %v1378, %v1791
      %v1828 = vadd.f32 %v1383, %v1796
      %v1829 = vadd.f32 %v1386, %v1799
      %v1830 = vadd.f32 %v1391, %v1804
      %v1831 = vadd.f32 %v1394, %v1807
      %v1832 = vadd.f32 %v1399, %v1812
      %v1833 = vadd.f32 %v1402, %v1815
      %v1834 = vld [vmem:[#allocation2] sm:$0xe]
      %v1835 = vld [vmem:[#allocation2 + $0xc] sm:$0xe]
      %v1836 = vld [vmem:[#allocation2 + $0x18] sm:$0xe]
      %v1837 = vld [vmem:[#allocation2 + $0x24] sm:$0xe]
      %v1838 = vld [vmem:[#allocation2 + $0x30] sm:$0xe]
      %v1839 = vld [vmem:[#allocation2 + $0x3c] sm:$0xe]
      %v1840 = vld [vmem:[#allocation2 + $0x48] sm:$0xe]
      %v1841 = vld [vmem:[#allocation2 + $0x54] sm:$0xe]
      %vm1866 = vcmask 1042432
      %vm1867 = vcmask 1046532
      %vm1868 = vmor %vm1866, %vm1867
      %v1869 = vrot.slane %v1834, 5
      %v1870 = vrot.slane %v1869, 4
      %v1871 = vrot.slane %v1406, 5
      %v1872 = vsel %vm1868, %v1870, %v1871
      %v1873 = vrot.slane %v1871, 4
      %v1874 = vrot.slane %v1407, 5
      %v1875 = vsel %vm1868, %v1873, %v1874
      %v1876 = vrot.slane %v1835, 5
      %v1877 = vrot.slane %v1876, 4
      %v1878 = vrot.slane %v1409, 5
      %v1879 = vsel %vm1868, %v1877, %v1878
      %v1880 = vrot.slane %v1878, 4
      %v1881 = vrot.slane %v1410, 5
      %v1882 = vsel %vm1868, %v1880, %v1881
      %v1883 = vrot.slane %v1836, 5
      %v1884 = vrot.slane %v1883, 4
      %v1885 = vrot.slane %v1412, 5
      %v1886 = vsel %vm1868, %v1884, %v1885
      %v1887 = vrot.slane %v1885, 4
      %v1888 = vrot.slane %v1413, 5
      %v1889 = vsel %vm1868, %v1887, %v1888
      %v1890 = vrot.slane %v1837, 5
      %v1891 = vrot.slane %v1890, 4
      %v1892 = vrot.slane %v1415, 5
      %v1893 = vsel %vm1868, %v1891, %v1892
      %v1894 = vrot.slane %v1892, 4
      %v1895 = vrot.slane %v1416, 5
      %v1896 = vsel %vm1868, %v1894, %v1895
      %v1897 = vrot.slane %v1838, 5
      %v1898 = vrot.slane %v1897, 4
      %v1899 = vrot.slane %v1418, 5
      %v1900 = vsel %vm1868, %v1898, %v1899
      %v1901 = vrot.slane %v1899, 4
      %v1902 = vrot.slane %v1419, 5
      %v1903 = vsel %vm1868, %v1901, %v1902
      %v1904 = vrot.slane %v1839, 5
      %v1905 = vrot.slane %v1904, 4
      %v1906 = vrot.slane %v1421, 5
      %v1907 = vsel %vm1868, %v1905, %v1906
      %v1908 = vrot.slane %v1906, 4
      %v1909 = vrot.slane %v1422, 5
      %v1910 = vsel %vm1868, %v1908, %v1909
      %v1911 = vrot.slane %v1840, 5
      %v1912 = vrot.slane %v1911, 4
      %v1913 = vrot.slane %v1424, 5
      %v1914 = vsel %vm1868, %v1912, %v1913
      %v1915 = vrot.slane %v1913, 4
      %v1916 = vrot.slane %v1425, 5
      %v1917 = vsel %vm1868, %v1915, %v1916
      %v1918 = vrot.slane %v1841, 5
      %v1919 = vrot.slane %v1918, 4
      %v1920 = vrot.slane %v1427, 5
      %v1921 = vsel %vm1868, %v1919, %v1920
      %v1922 = vrot.slane %v1920, 4
      %v1923 = vrot.slane %v1428, 5
      %v1924 = vsel %vm1868, %v1922, %v1923
      %s1925 = scalar_lea.vmem %s3, 128
      %v1926 = vld [vmem:[%s1925] sm:$0xf]
      %v1927 = vld [vmem:[%s1925 + $0x4] sm:$0xf]
      %v1928 = vld [vmem:[%s1925 + $0x8] sm:$0xf]
      %v1929 = vld [vmem:[%s1925 + $0xc] sm:$0xf]
      %v1930 = vld [vmem:[%s1925 + $0x10] sm:$0xf]
      %v1931 = vld [vmem:[%s1925 + $0x14] sm:$0xf]
      %v1932 = vld [vmem:[%s1925 + $0x18] sm:$0xf]
      %v1933 = vld [vmem:[%s1925 + $0x1c] sm:$0xf]
      %v1934 = vld [vmem:[%s1925 + $0x20] sm:$0xf]
      %v1935 = vld [vmem:[%s1925 + $0x24] sm:$0xf]
      %v1936 = vld [vmem:[%s1925 + $0x28] sm:$0xf]
      %v1937 = vld [vmem:[%s1925 + $0x2c] sm:$0xf]
      %v1938 = vld [vmem:[%s1925 + $0x30] sm:$0xf]
      %v1939 = vld [vmem:[%s1925 + $0x34] sm:$0xf]
      %v1940 = vld [vmem:[%s1925 + $0x38] sm:$0xf]
      %v1941 = vld [vmem:[%s1925 + $0x3c] sm:$0xf]
      %v1942 = vunpack.c.l.b16 %v1872
      %v1943 = vunpack.c.l.b16 %v1875
      %v1944 = vunpack.c.l.b16 %v1879
      %v1945 = vunpack.c.l.b16 %v1882
      %v1946 = vunpack.c.l.b16 %v1886
      %v1947 = vunpack.c.l.b16 %v1889
      %v1948 = vunpack.c.l.b16 %v1893
      %v1949 = vunpack.c.l.b16 %v1896
      %v1950 = vunpack.c.l.b16 %v1900
      %v1951 = vunpack.c.l.b16 %v1903
      %v1952 = vunpack.c.l.b16 %v1907
      %v1953 = vunpack.c.l.b16 %v1910
      %v1954 = vunpack.c.l.b16 %v1914
      %v1955 = vunpack.c.l.b16 %v1917
      %v1956 = vunpack.c.l.b16 %v1921
      %v1957 = vunpack.c.l.b16 %v1924
      %v1958 = vpack.c.b16 %v1943, %v1942
      %v1959 = vpack.c.b16 %v1945, %v1944
      %v1960 = vpack.c.b16 %v1947, %v1946
      %v1961 = vpack.c.b16 %v1949, %v1948
      %v1962 = vpack.c.b16 %v1951, %v1950
      %v1963 = vpack.c.b16 %v1953, %v1952
      %v1964 = vpack.c.b16 %v1955, %v1954
      %v1965 = vpack.c.b16 %v1957, %v1956
      %v1990 = vunpack.c.l.b16 %v1926
      %v1991 = vunpack.c.l.b16 %v1927
      %v1992 = vunpack.c.l.b16 %v1928
      %v1993 = vunpack.c.l.b16 %v1929
      %v1994 = vunpack.c.l.b16 %v1930
      %v1995 = vunpack.c.l.b16 %v1931
      %v1996 = vunpack.c.l.b16 %v1932
      %v1997 = vunpack.c.l.b16 %v1933
      %v1998 = vunpack.c.l.b16 %v1934
      %v1999 = vunpack.c.l.b16 %v1935
      %v2000 = vunpack.c.l.b16 %v1936
      %v2001 = vunpack.c.l.b16 %v1937
      %v2002 = vunpack.c.l.b16 %v1938
      %v2003 = vunpack.c.l.b16 %v1939
      %v2004 = vunpack.c.l.b16 %v1940
      %v2005 = vunpack.c.l.b16 %v1941
      %v2006 = vpack.c.b16 %v1991, %v1990
      %v2007 = vpack.c.b16 %v1993, %v1992
      %v2008 = vpack.c.b16 %v1995, %v1994
      %v2009 = vpack.c.b16 %v1997, %v1996
      %v2010 = vpack.c.b16 %v1999, %v1998
      %v2011 = vpack.c.b16 %v2001, %v2000
      %v2012 = vpack.c.b16 %v2003, %v2002
      %v2013 = vpack.c.b16 %v2005, %v2004
      %2022 = vmatprep.subr.bf16.mxu0 0
      %2023 = vmatpush1.bf16.msra.mxu0 %v2006
      %2024 = vmatprep.subr.bf16.mxu0 0
      %2025 = vmatpush1.bf16.msra.mxu0 %v2007
      %2026 = vmatprep.subr.bf16.mxu0 0
      %2027 = vmatpush1.bf16.msra.mxu0 %v2008
      %2028 = vmatprep.subr.bf16.mxu0 0
      %2029 = vmatpush1.bf16.msra.mxu0 %v2009
      %2030 = vmatprep.subr.bf16.mxu0 0
      %2031 = vmatpush1.bf16.msra.mxu0 %v2010
      %2032 = vmatprep.subr.bf16.mxu0 0
      %2033 = vmatpush1.bf16.msra.mxu0 %v2011
      %2034 = vmatprep.subr.bf16.mxu0 0
      %2035 = vmatpush1.bf16.msra.mxu0 %v2012
      %2036 = vmatprep.subr.bf16.mxu0 0
      %2037 = vmatpush1.bf16.msra.mxu0 %v2013
      %2038 = vmatprep.subr.bf16.mxu0 0
      %2039 = vmatpush1.bf16.msra.mxu0 0
      %2040 = vmatprep.subr.bf16.mxu0 0
      %2041 = vmatpush1.bf16.msra.mxu0 0
      %2042 = vmatprep.subr.bf16.mxu0 0
      %2043 = vmatpush1.bf16.msra.mxu0 0
      %2044 = vmatprep.subr.bf16.mxu0 0
      %2045 = vmatpush1.bf16.msra.mxu0 0
      %2046 = vmatprep.subr.bf16.mxu0 0
      %2047 = vmatpush1.bf16.msra.mxu0 0
      %2048 = vmatprep.subr.bf16.mxu0 0
      %2049 = vmatpush1.bf16.msra.mxu0 0
      %2050 = vmatprep.subr.bf16.mxu0 0
      %2051 = vmatpush1.bf16.msra.mxu0 0
      %2052 = vmatprep.subr.bf16.mxu0 0
      %2053 = vmatpush1.bf16.msra.mxu0 0
      %2054 = vmatprep.mubr.bf16.mxu0 0
      %2055 = vmatmul.mubr.bf16.gmra.mrb[0].mxu0 %v1958
      %v2056 = vpop.f32.mrb[0].mxu0
      %v2057 = vadd.f32 0.0, %v2056
      %v2058 = vpop.f32.mrb[0].mxu0
      %v2059 = vpop.f32.mrb[0].mxu0
      %v2060 = vadd.f32 0.0, %v2059
      %v2061 = vpop.f32.mrb[0].mxu0
      %2062 = vmatprep.mubr.bf16.mxu0 0
      %2063 = vmatmul.mubr.bf16.gmra.mrb[0].mxu0 %v1959
      %v2064 = vpop.f32.mrb[0].mxu0
      %v2065 = vadd.f32 0.0, %v2064
      %v2066 = vpop.f32.mrb[0].mxu0
      %v2067 = vpop.f32.mrb[0].mxu0
      %v2068 = vadd.f32 0.0, %v2067
      %v2069 = vpop.f32.mrb[0].mxu0
      %2070 = vmatprep.mubr.bf16.mxu0 0
      %2071 = vmatmul.mubr.bf16.gmra.mrb[0].mxu0 %v1960
      %v2072 = vpop.f32.mrb[0].mxu0
      %v2073 = vadd.f32 0.0, %v2072
      %v2074 = vpop.f32.mrb[0].mxu0
      %v2075 = vpop.f32.mrb[0].mxu0
      %v2076 = vadd.f32 0.0, %v2075
      %v2077 = vpop.f32.mrb[0].mxu0
      %2078 = vmatprep.mubr.bf16.mxu0 0
      %2079 = vmatmul.mubr.bf16.gmra.mrb[0].mxu0 %v1961
      %v2080 = vpop.f32.mrb[0].mxu0
      %v2081 = vadd.f32 0.0, %v2080
      %v2082 = vpop.f32.mrb[0].mxu0
      %v2083 = vpop.f32.mrb[0].mxu0
      %v2084 = vadd.f32 0.0, %v2083
      %v2085 = vpop.f32.mrb[0].mxu0
      %2086 = vmatprep.mubr.bf16.mxu0 0
      %2087 = vmatmul.mubr.bf16.gmra.mrb[0].mxu0 %v1962
      %v2088 = vpop.f32.mrb[0].mxu0
      %v2089 = vadd.f32 0.0, %v2088
      %v2090 = vpop.f32.mrb[0].mxu0
      %v2091 = vpop.f32.mrb[0].mxu0
      %v2092 = vadd.f32 0.0, %v2091
      %v2093 = vpop.f32.mrb[0].mxu0
      %2094 = vmatprep.mubr.bf16.mxu0 0
      %2095 = vmatmul.mubr.bf16.gmra.mrb[0].mxu0 %v1963
      %v2096 = vpop.f32.mrb[0].mxu0
      %v2097 = vadd.f32 0.0, %v2096
      %v2098 = vpop.f32.mrb[0].mxu0
      %v2099 = vpop.f32.mrb[0].mxu0
      %v2100 = vadd.f32 0.0, %v2099
      %v2101 = vpop.f32.mrb[0].mxu0
      %2102 = vmatprep.mubr.bf16.mxu0 0
      %2103 = vmatmul.mubr.bf16.gmra.mrb[0].mxu0 %v1964
      %v2104 = vpop.f32.mrb[0].mxu0
      %v2105 = vadd.f32 0.0, %v2104
      %v2106 = vpop.f32.mrb[0].mxu0
      %v2107 = vpop.f32.mrb[0].mxu0
      %v2108 = vadd.f32 0.0, %v2107
      %v2109 = vpop.f32.mrb[0].mxu0
      %2110 = vmatprep.mubr.bf16.mxu0 0
      %2111 = vmatmul.mubr.bf16.gmra.mrb[0].mxu0 %v1965
      %v2112 = vpop.f32.mrb[0].mxu0
      %v2113 = vadd.f32 0.0, %v2112
      %v2114 = vpop.f32.mrb[0].mxu0
      %v2115 = vpop.f32.mrb[0].mxu0
      %v2116 = vadd.f32 0.0, %v2115
      %v2117 = vpop.f32.mrb[0].mxu0
      %2118 = vdwg.mxu0
      %v2119 = vadd.f32 %v1818, %v2057
      %v2120 = vadd.f32 %v1819, %v2060
      %v2121 = vadd.f32 %v1820, %v2065
      %v2122 = vadd.f32 %v1821, %v2068
      %v2123 = vadd.f32 %v1822, %v2073
      %v2124 = vadd.f32 %v1823, %v2076
      %v2125 = vadd.f32 %v1824, %v2081
      %v2126 = vadd.f32 %v1825, %v2084
      %v2127 = vadd.f32 %v1826, %v2089
      %v2128 = vadd.f32 %v1827, %v2092
      %v2129 = vadd.f32 %v1828, %v2097
      %v2130 = vadd.f32 %v1829, %v2100
      %v2131 = vadd.f32 %v1830, %v2105
      %v2132 = vadd.f32 %v1831, %v2108
      %v2133 = vadd.f32 %v1832, %v2113
      %v2134 = vadd.f32 %v1833, %v2116
      %s2135 = scalar_lea.vmem [#allocation2], 12
      %v2136 = vld [vmem:[%s2135] sm:$0xf]
      %v2137 = vld [vmem:[%s2135 + $0x4] sm:$0xf]
      %v2138 = vld [vmem:[%s2135 + $0xc] sm:$0xf]
      %v2139 = vld [vmem:[%s2135 + $0x10] sm:$0xf]
      %v2140 = vld [vmem:[%s2135 + $0x18] sm:$0xf]
      %v2141 = vld [vmem:[%s2135 + $0x1c] sm:$0xf]
      %v2142 = vld [vmem:[%s2135 + $0x24] sm:$0xf]
      %v2143 = vld [vmem:[%s2135 + $0x28] sm:$0xf]
      %v2144 = vld [vmem:[%s2135 + $0x30] sm:$0xf]
      %v2145 = vld [vmem:[%s2135 + $0x34] sm:$0xf]
      %v2146 = vld [vmem:[%s2135 + $0x3c] sm:$0xf]
      %v2147 = vld [vmem:[%s2135 + $0x40] sm:$0xf]
      %v2148 = vld [vmem:[%s2135 + $0x48] sm:$0xf]
      %v2149 = vld [vmem:[%s2135 + $0x4c] sm:$0xf]
      %v2150 = vld [vmem:[%s2135 + $0x54] sm:$0xf]
      %v2151 = vld [vmem:[%s2135 + $0x58] sm:$0xf]
      %s2152 = scalar_lea.vmem %s3, 192
      %v2153 = vld [vmem:[%s2152] sm:$0xf]
      %v2154 = vld [vmem:[%s2152 + $0x4] sm:$0xf]
      %v2155 = vld [vmem:[%s2152 + $0x8] sm:$0xf]
      %v2156 = vld [vmem:[%s2152 + $0xc] sm:$0xf]
      %v2157 = vld [vmem:[%s2152 + $0x10] sm:$0xf]
      %v2158 = vld [vmem:[%s2152 + $0x14] sm:$0xf]
      %v2159 = vld [vmem:[%s2152 + $0x18] sm:$0xf]
      %v2160 = vld [vmem:[%s2152 + $0x1c] sm:$0xf]
      %v2161 = vld [vmem:[%s2152 + $0x20] sm:$0xf]
      %v2162 = vld [vmem:[%s2152 + $0x24] sm:$0xf]
      %v2163 = vld [vmem:[%s2152 + $0x28] sm:$0xf]
      %v2164 = vld [vmem:[%s2152 + $0x2c] sm:$0xf]
      %v2165 = vld [vmem:[%s2152 + $0x30] sm:$0xf]
      %v2166 = vld [vmem:[%s2152 + $0x34] sm:$0xf]
      %v2167 = vld [vmem:[%s2152 + $0x38] sm:$0xf]
      %v2168 = vld [vmem:[%s2152 + $0x3c] sm:$0xf]
      %v2185 = vunpack.c.l.b16 %v2136
      %v2186 = vunpack.c.l.b16 %v2137
      %v2187 = vunpack.c.l.b16 %v2138
      %v2188 = vunpack.c.l.b16 %v2139
      %v2189 = vunpack.c.l.b16 %v2140
      %v2190 = vunpack.c.l.b16 %v2141
      %v2191 = vunpack.c.l.b16 %v2142
      %v2192 = vunpack.c.l.b16 %v2143
      %v2193 = vunpack.c.l.b16 %v2144
      %v2194 = vunpack.c.l.b16 %v2145
      %v2195 = vunpack.c.l.b16 %v2146
      %v2196 = vunpack.c.l.b16 %v2147
      %v2197 = vunpack.c.l.b16 %v2148
      %v2198 = vunpack.c.l.b16 %v2149
      %v2199 = vunpack.c.l.b16 %v2150
      %v2200 = vunpack.c.l.b16 %v2151
      %v2201 = vpack.c.b16 %v2186, %v2185
      %v2202 = vpack.c.b16 %v2188, %v2187
      %v2203 = vpack.c.b16 %v2190, %v2189
      %v2204 = vpack.c.b16 %v2192, %v2191
      %v2205 = vpack.c.b16 %v2194, %v2193
      %v2206 = vpack.c.b16 %v2196, %v2195
      %v2207 = vpack.c.b16 %v2198, %v2197
      %v2208 = vpack.c.b16 %v2200, %v2199
      %v2233 = vunpack.c.l.b16 %v2153
      %v2234 = vunpack.c.l.b16 %v2154
      %v2235 = vunpack.c.l.b16 %v2155
      %v2236 = vunpack.c.l.b16 %v2156
      %v2237 = vunpack.c.l.b16 %v2157
      %v2238 = vunpack.c.l.b16 %v2158
      %v2239 = vunpack.c.l.b16 %v2159
      %v2240 = vunpack.c.l.b16 %v2160
      %v2241 = vunpack.c.l.b16 %v2161
      %v2242 = vunpack.c.l.b16 %v2162
      %v2243 = vunpack.c.l.b16 %v2163
      %v2244 = vunpack.c.l.b16 %v2164
      %v2245 = vunpack.c.l.b16 %v2165
      %v2246 = vunpack.c.l.b16 %v2166
      %v2247 = vunpack.c.l.b16 %v2167
      %v2248 = vunpack.c.l.b16 %v2168
      %v2249 = vpack.c.b16 %v2234, %v2233
      %v2250 = vpack.c.b16 %v2236, %v2235
      %v2251 = vpack.c.b16 %v2238, %v2237
      %v2252 = vpack.c.b16 %v2240, %v2239
      %v2253 = vpack.c.b16 %v2242, %v2241
      %v2254 = vpack.c.b16 %v2244, %v2243
      %v2255 = vpack.c.b16 %v2246, %v2245
      %v2256 = vpack.c.b16 %v2248, %v2247
      %2265 = vmatprep.subr.bf16.mxu0 0
      %2266 = vmatpush1.bf16.msra.mxu0 %v2249
      %2267 = vmatprep.subr.bf16.mxu0 0
      %2268 = vmatpush1.bf16.msra.mxu0 %v2250
      %2269 = vmatprep.subr.bf16.mxu0 0
      %2270 = vmatpush1.bf16.msra.mxu0 %v2251
      %2271 = vmatprep.subr.bf16.mxu0 0
      %2272 = vmatpush1.bf16.msra.mxu0 %v2252
      %2273 = vmatprep.subr.bf16.mxu0 0
      %2274 = vmatpush1.bf16.msra.mxu0 %v2253
      %2275 = vmatprep.subr.bf16.mxu0 0
      %2276 = vmatpush1.bf16.msra.mxu0 %v2254
      %2277 = vmatprep.subr.bf16.mxu0 0
      %2278 = vmatpush1.bf16.msra.mxu0 %v2255
      %2279 = vmatprep.subr.bf16.mxu0 0
      %2280 = vmatpush1.bf16.msra.mxu0 %v2256
      %2281 = vmatprep.subr.bf16.mxu0 0
      %2282 = vmatpush1.bf16.msra.mxu0 0
      %2283 = vmatprep.subr.bf16.mxu0 0
      %2284 = vmatpush1.bf16.msra.mxu0 0
      %2285 = vmatprep.subr.bf16.mxu0 0
      %2286 = vmatpush1.bf16.msra.mxu0 0
      %2287 = vmatprep.subr.bf16.mxu0 0
      %2288 = vmatpush1.bf16.msra.mxu0 0
      %2289 = vmatprep.subr.bf16.mxu0 0
      %2290 = vmatpush1.bf16.msra.mxu0 0
      %2291 = vmatprep.subr.bf16.mxu0 0
      %2292 = vmatpush1.bf16.msra.mxu0 0
      %2293 = vmatprep.subr.bf16.mxu0 0
      %2294 = vmatpush1.bf16.msra.mxu0 0
      %2295 = vmatprep.subr.bf16.mxu0 0
      %2296 = vmatpush1.bf16.msra.mxu0 0
      %2297 = vmatprep.mubr.bf16.mxu0 0
      %2298 = vmatmul.mubr.bf16.gmra.mrb[0].mxu0 %v2201
      %v2299 = vpop.f32.mrb[0].mxu0
      %v2300 = vadd.f32 0.0, %v2299
      %v2301 = vpop.f32.mrb[0].mxu0
      %v2302 = vpop.f32.mrb[0].mxu0
      %v2303 = vadd.f32 0.0, %v2302
      %v2304 = vpop.f32.mrb[0].mxu0
      %2305 = vmatprep.mubr.bf16.mxu0 0
      %2306 = vmatmul.mubr.bf16.gmra.mrb[0].mxu0 %v2202
      %v2307 = vpop.f32.mrb[0].mxu0
      %v2308 = vadd.f32 0.0, %v2307
      %v2309 = vpop.f32.mrb[0].mxu0
      %v2310 = vpop.f32.mrb[0].mxu0
      %v2311 = vadd.f32 0.0, %v2310
      %v2312 = vpop.f32.mrb[0].mxu0
      %2313 = vmatprep.mubr.bf16.mxu0 0
      %2314 = vmatmul.mubr.bf16.gmra.mrb[0].mxu0 %v2203
      %v2315 = vpop.f32.mrb[0].mxu0
      %v2316 = vadd.f32 0.0, %v2315
      %v2317 = vpop.f32.mrb[0].mxu0
      %v2318 = vpop.f32.mrb[0].mxu0
      %v2319 = vadd.f32 0.0, %v2318
      %v2320 = vpop.f32.mrb[0].mxu0
      %2321 = vmatprep.mubr.bf16.mxu0 0
      %2322 = vmatmul.mubr.bf16.gmra.mrb[0].mxu0 %v2204
      %v2323 = vpop.f32.mrb[0].mxu0
      %v2324 = vadd.f32 0.0, %v2323
      %v2325 = vpop.f32.mrb[0].mxu0
      %v2326 = vpop.f32.mrb[0].mxu0
      %v2327 = vadd.f32 0.0, %v2326
      %v2328 = vpop.f32.mrb[0].mxu0
      %2329 = vmatprep.mubr.bf16.mxu0 0
      %2330 = vmatmul.mubr.bf16.gmra.mrb[0].mxu0 %v2205
      %v2331 = vpop.f32.mrb[0].mxu0
      %v2332 = vadd.f32 0.0, %v2331
      %v2333 = vpop.f32.mrb[0].mxu0
      %v2334 = vpop.f32.mrb[0].mxu0
      %v2335 = vadd.f32 0.0, %v2334
      %v2336 = vpop.f32.mrb[0].mxu0
      %2337 = vmatprep.mubr.bf16.mxu0 0
      %2338 = vmatmul.mubr.bf16.gmra.mrb[0].mxu0 %v2206
      %v2339 = vpop.f32.mrb[0].mxu0
      %v2340 = vadd.f32 0.0, %v2339
      %v2341 = vpop.f32.mrb[0].mxu0
      %v2342 = vpop.f32.mrb[0].mxu0
      %v2343 = vadd.f32 0.0, %v2342
      %v2344 = vpop.f32.mrb[0].mxu0
      %2345 = vmatprep.mubr.bf16.mxu0 0
      %2346 = vmatmul.mubr.bf16.gmra.mrb[0].mxu0 %v2207
      %v2347 = vpop.f32.mrb[0].mxu0
      %v2348 = vadd.f32 0.0, %v2347
      %v2349 = vpop.f32.mrb[0].mxu0
      %v2350 = vpop.f32.mrb[0].mxu0
      %v2351 = vadd.f32 0.0, %v2350
      %v2352 = vpop.f32.mrb[0].mxu0
      %2353 = vmatprep.mubr.bf16.mxu0 0
      %2354 = vmatmul.mubr.bf16.gmra.mrb[0].mxu0 %v2208
      %v2355 = vpop.f32.mrb[0].mxu0
      %v2356 = vadd.f32 0.0, %v2355
      %v2357 = vpop.f32.mrb[0].mxu0
      %v2358 = vpop.f32.mrb[0].mxu0
      %v2359 = vadd.f32 0.0, %v2358
      %v2360 = vpop.f32.mrb[0].mxu0
      %2361 = vdwg.mxu0
      %v2362 = vadd.f32 %v2119, %v2300
      %v2363 = vadd.f32 %v2120, %v2303
      %v2364 = vadd.f32 %v2121, %v2308
      %v2365 = vadd.f32 %v2122, %v2311
      %v2366 = vadd.f32 %v2123, %v2316
      %v2367 = vadd.f32 %v2124, %v2319
      %v2368 = vadd.f32 %v2125, %v2324
      %v2369 = vadd.f32 %v2126, %v2327
      %v2370 = vadd.f32 %v2127, %v2332
      %v2371 = vadd.f32 %v2128, %v2335
      %v2372 = vadd.f32 %v2129, %v2340
      %v2373 = vadd.f32 %v2130, %v2343
      %v2374 = vadd.f32 %v2131, %v2348
      %v2375 = vadd.f32 %v2132, %v2351
      %v2376 = vadd.f32 %v2133, %v2356
      %v2377 = vadd.f32 %v2134, %v2359
      %v2378 = vld [vmem:[%s2135] sm:$0xf]
      %v2379 = vld [vmem:[%s2135 + $0x4] sm:$0xf]
      %v2380 = vld [vmem:[%s2135 + $0x8] sm:$0x1]
      %v2381 = vld [vmem:[%s2135 + $0xc] sm:$0xf]
      %v2382 = vld [vmem:[%s2135 + $0x10] sm:$0xf]
      %v2383 = vld [vmem:[%s2135 + $0x14] sm:$0x1]
      %v2384 = vld [vmem:[%s2135 + $0x18] sm:$0xf]
      %v2385 = vld [vmem:[%s2135 + $0x1c] sm:$0xf]
      %v2386 = vld [vmem:[%s2135 + $0x20] sm:$0x1]
      %v2387 = vld [vmem:[%s2135 + $0x24] sm:$0xf]
      %v2388 = vld [vmem:[%s2135 + $0x28] sm:$0xf]
      %v2389 = vld [vmem:[%s2135 + $0x2c] sm:$0x1]
      %v2390 = vld [vmem:[%s2135 + $0x30] sm:$0xf]
      %v2391 = vld [vmem:[%s2135 + $0x34] sm:$0xf]
      %v2392 = vld [vmem:[%s2135 + $0x38] sm:$0x1]
      %v2393 = vld [vmem:[%s2135 + $0x3c] sm:$0xf]
      %v2394 = vld [vmem:[%s2135 + $0x40] sm:$0xf]
      %v2395 = vld [vmem:[%s2135 + $0x44] sm:$0x1]
      %v2396 = vld [vmem:[%s2135 + $0x48] sm:$0xf]
      %v2397 = vld [vmem:[%s2135 + $0x4c] sm:$0xf]
      %v2398 = vld [vmem:[%s2135 + $0x50] sm:$0x1]
      %v2399 = vld [vmem:[%s2135 + $0x54] sm:$0xf]
      %v2400 = vld [vmem:[%s2135 + $0x58] sm:$0xf]
      %v2401 = vld [vmem:[%s2135 + $0x5c] sm:$0x1]
      %v2403 = vshrl.u32 %v2378, 16
      %v2405 = vrot.slane %v2403, 4
      %v2406 = vshll.u32 %v2378, 16
      %v2408 = vrot.slane %v2406, 5
      %v2409 = vor.u32 %v2405, %v2408
      %v2410 = vrot.slane %v2409, 4
      %v2412 = vshll.u32 %v2379, 16
      %v2414 = vrot.slane %v2412, 5
      %v2415 = vsel %vm1431, %v2410, %v2414
      %v2416 = vshrl.u32 %v2379, 16
      %v2418 = vrot.slane %v2416, 4
      %v2419 = vor.u32 %v2418, %v2414
      %v2420 = vrot.slane %v2419, 4
      %v2422 = vshll.u32 %v2380, 16
      %v2424 = vrot.slane %v2422, 5
      %v2425 = vsel %vm1431, %v2420, %v2424
      %v2427 = vshrl.u32 %v2381, 16
      %v2429 = vrot.slane %v2427, 4
      %v2430 = vshll.u32 %v2381, 16
      %v2432 = vrot.slane %v2430, 5
      %v2433 = vor.u32 %v2429, %v2432
      %v2434 = vrot.slane %v2433, 4
      %v2436 = vshll.u32 %v2382, 16
      %v2438 = vrot.slane %v2436, 5
      %v2439 = vsel %vm1431, %v2434, %v2438
      %v2440 = vshrl.u32 %v2382, 16
      %v2442 = vrot.slane %v2440, 4
      %v2443 = vor.u32 %v2442, %v2438
      %v2444 = vrot.slane %v2443, 4
      %v2446 = vshll.u32 %v2383, 16
      %v2448 = vrot.slane %v2446, 5
      %v2449 = vsel %vm1431, %v2444, %v2448
      %v2451 = vshrl.u32 %v2384, 16
      %v2453 = vrot.slane %v2451, 4
      %v2454 = vshll.u32 %v2384, 16
      %v2456 = vrot.slane %v2454, 5
      %v2457 = vor.u32 %v2453, %v2456
      %v2458 = vrot.slane %v2457, 4
      %v2460 = vshll.u32 %v2385, 16
      %v2462 = vrot.slane %v2460, 5
      %v2463 = vsel %vm1431, %v2458, %v2462
      %v2464 = vshrl.u32 %v2385, 16
      %v2466 = vrot.slane %v2464, 4
      %v2467 = vor.u32 %v2466, %v2462
      %v2468 = vrot.slane %v2467, 4
      %v2470 = vshll.u32 %v2386, 16
      %v2472 = vrot.slane %v2470, 5
      %v2473 = vsel %vm1431, %v2468, %v2472
      %v2475 = vshrl.u32 %v2387, 16
      %v2477 = vrot.slane %v2475, 4
      %v2478 = vshll.u32 %v2387, 16
      %v2480 = vrot.slane %v2478, 5
      %v2481 = vor.u32 %v2477, %v2480
      %v2482 = vrot.slane %v2481, 4
      %v2484 = vshll.u32 %v2388, 16
      %v2486 = vrot.slane %v2484, 5
      %v2487 = vsel %vm1431, %v2482, %v2486
      %v2488 = vshrl.u32 %v2388, 16
      %v2490 = vrot.slane %v2488, 4
      %v2491 = vor.u32 %v2490, %v2486
      %v2492 = vrot.slane %v2491, 4
      %v2494 = vshll.u32 %v2389, 16
      %v2496 = vrot.slane %v2494, 5
      %v2497 = vsel %vm1431, %v2492, %v2496
      %v2499 = vshrl.u32 %v2390, 16
      %v2501 = vrot.slane %v2499, 4
      %v2502 = vshll.u32 %v2390, 16
      %v2504 = vrot.slane %v2502, 5
      %v2505 = vor.u32 %v2501, %v2504
      %v2506 = vrot.slane %v2505, 4
      %v2508 = vshll.u32 %v2391, 16
      %v2510 = vrot.slane %v2508, 5
      %v2511 = vsel %vm1431, %v2506, %v2510
      %v2512 = vshrl.u32 %v2391, 16
      %v2514 = vrot.slane %v2512, 4
      %v2515 = vor.u32 %v2514, %v2510
      %v2516 = vrot.slane %v2515, 4
      %v2518 = vshll.u32 %v2392, 16
      %v2520 = vrot.slane %v2518, 5
      %v2521 = vsel %vm1431, %v2516, %v2520
      %v2523 = vshrl.u32 %v2393, 16
      %v2525 = vrot.slane %v2523, 4
      %v2526 = vshll.u32 %v2393, 16
      %v2528 = vrot.slane %v2526, 5
      %v2529 = vor.u32 %v2525, %v2528
      %v2530 = vrot.slane %v2529, 4
      %v2532 = vshll.u32 %v2394, 16
      %v2534 = vrot.slane %v2532, 5
      %v2535 = vsel %vm1431, %v2530, %v2534
      %v2536 = vshrl.u32 %v2394, 16
      %v2538 = vrot.slane %v2536, 4
      %v2539 = vor.u32 %v2538, %v2534
      %v2540 = vrot.slane %v2539, 4
      %v2542 = vshll.u32 %v2395, 16
      %v2544 = vrot.slane %v2542, 5
      %v2545 = vsel %vm1431, %v2540, %v2544
      %v2547 = vshrl.u32 %v2396, 16
      %v2549 = vrot.slane %v2547, 4
      %v2550 = vshll.u32 %v2396, 16
      %v2552 = vrot.slane %v2550, 5
      %v2553 = vor.u32 %v2549, %v2552
      %v2554 = vrot.slane %v2553, 4
      %v2556 = vshll.u32 %v2397, 16
      %v2558 = vrot.slane %v2556, 5
      %v2559 = vsel %vm1431, %v2554, %v2558
      %v2560 = vshrl.u32 %v2397, 16
      %v2562 = vrot.slane %v2560, 4
      %v2563 = vor.u32 %v2562, %v2558
      %v2564 = vrot.slane %v2563, 4
      %v2566 = vshll.u32 %v2398, 16
      %v2568 = vrot.slane %v2566, 5
      %v2569 = vsel %vm1431, %v2564, %v2568
      %v2571 = vshrl.u32 %v2399, 16
      %v2573 = vrot.slane %v2571, 4
      %v2574 = vshll.u32 %v2399, 16
      %v2576 = vrot.slane %v2574, 5
      %v2577 = vor.u32 %v2573, %v2576
      %v2578 = vrot.slane %v2577, 4
      %v2580 = vshll.u32 %v2400, 16
      %v2582 = vrot.slane %v2580, 5
      %v2583 = vsel %vm1431, %v2578, %v2582
      %v2584 = vshrl.u32 %v2400, 16
      %v2586 = vrot.slane %v2584, 4
      %v2587 = vor.u32 %v2586, %v2582
      %v2588 = vrot.slane %v2587, 4
      %v2590 = vshll.u32 %v2401, 16
      %v2592 = vrot.slane %v2590, 5
      %v2593 = vsel %vm1431, %v2588, %v2592
      %s2594 = scalar_lea.vmem %s3, 256
      %v2595 = vld [vmem:[%s2594] sm:$0xf]
      %v2596 = vld [vmem:[%s2594 + $0x4] sm:$0xf]
      %v2597 = vld [vmem:[%s2594 + $0x8] sm:$0xf]
      %v2598 = vld [vmem:[%s2594 + $0xc] sm:$0xf]
      %v2599 = vld [vmem:[%s2594 + $0x10] sm:$0xf]
      %v2600 = vld [vmem:[%s2594 + $0x14] sm:$0xf]
      %v2601 = vld [vmem:[%s2594 + $0x18] sm:$0xf]
      %v2602 = vld [vmem:[%s2594 + $0x1c] sm:$0xf]
      %v2603 = vld [vmem:[%s2594 + $0x20] sm:$0xf]
      %v2604 = vld [vmem:[%s2594 + $0x24] sm:$0xf]
      %v2605 = vld [vmem:[%s2594 + $0x28] sm:$0xf]
      %v2606 = vld [vmem:[%s2594 + $0x2c] sm:$0xf]
      %v2607 = vld [vmem:[%s2594 + $0x30] sm:$0xf]
      %v2608 = vld [vmem:[%s2594 + $0x34] sm:$0xf]
      %v2609 = vld [vmem:[%s2594 + $0x38] sm:$0xf]
      %v2610 = vld [vmem:[%s2594 + $0x3c] sm:$0xf]
      %v2611 = vunpack.c.l.b16 %v2415
      %v2612 = vunpack.c.l.b16 %v2425
      %v2613 = vunpack.c.l.b16 %v2439
      %v2614 = vunpack.c.l.b16 %v2449
      %v2615 = vunpack.c.l.b16 %v2463
      %v2616 = vunpack.c.l.b16 %v2473
      %v2617 = vunpack.c.l.b16 %v2487
      %v2618 = vunpack.c.l.b16 %v2497
      %v2619 = vunpack.c.l.b16 %v2511
      %v2620 = vunpack.c.l.b16 %v2521
      %v2621 = vunpack.c.l.b16 %v2535
      %v2622 = vunpack.c.l.b16 %v2545
      %v2623 = vunpack.c.l.b16 %v2559
      %v2624 = vunpack.c.l.b16 %v2569
      %v2625 = vunpack.c.l.b16 %v2583
      %v2626 = vunpack.c.l.b16 %v2593
      %v2627 = vpack.c.b16 %v2612, %v2611
      %v2628 = vpack.c.b16 %v2614, %v2613
      %v2629 = vpack.c.b16 %v2616, %v2615
      %v2630 = vpack.c.b16 %v2618, %v2617
      %v2631 = vpack.c.b16 %v2620, %v2619
      %v2632 = vpack.c.b16 %v2622, %v2621
      %v2633 = vpack.c.b16 %v2624, %v2623
      %v2634 = vpack.c.b16 %v2626, %v2625
      %v2659 = vunpack.c.l.b16 %v2595
      %v2660 = vunpack.c.l.b16 %v2596
      %v2661 = vunpack.c.l.b16 %v2597
      %v2662 = vunpack.c.l.b16 %v2598
      %v2663 = vunpack.c.l.b16 %v2599
      %v2664 = vunpack.c.l.b16 %v2600
      %v2665 = vunpack.c.l.b16 %v2601
      %v2666 = vunpack.c.l.b16 %v2602
      %v2667 = vunpack.c.l.b16 %v2603
      %v2668 = vunpack.c.l.b16 %v2604
      %v2669 = vunpack.c.l.b16 %v2605
      %v2670 = vunpack.c.l.b16 %v2606
      %v2671 = vunpack.c.l.b16 %v2607
      %v2672 = vunpack.c.l.b16 %v2608
      %v2673 = vunpack.c.l.b16 %v2609
      %v2674 = vunpack.c.l.b16 %v2610
      %v2675 = vpack.c.b16 %v2660, %v2659
      %v2676 = vpack.c.b16 %v2662, %v2661
      %v2677 = vpack.c.b16 %v2664, %v2663
      %v2678 = vpack.c.b16 %v2666, %v2665
      %v2679 = vpack.c.b16 %v2668, %v2667
      %v2680 = vpack.c.b16 %v2670, %v2669
      %v2681 = vpack.c.b16 %v2672, %v2671
      %v2682 = vpack.c.b16 %v2674, %v2673
      %2691 = vmatprep.subr.bf16.mxu0 0
      %2692 = vmatpush1.bf16.msra.mxu0 %v2675
      %2693 = vmatprep.subr.bf16.mxu0 0
      %2694 = vmatpush1.bf16.msra.mxu0 %v2676
      %2695 = vmatprep.subr.bf16.mxu0 0
      %2696 = vmatpush1.bf16.msra.mxu0 %v2677
      %2697 = vmatprep.subr.bf16.mxu0 0
      %2698 = vmatpush1.bf16.msra.mxu0 %v2678
      %2699 = vmatprep.subr.bf16.mxu0 0
      %2700 = vmatpush1.bf16.msra.mxu0 %v2679
      %2701 = vmatprep.subr.bf16.mxu0 0
      %2702 = vmatpush1.bf16.msra.mxu0 %v2680
      %2703 = vmatprep.subr.bf16.mxu0 0
      %2704 = vmatpush1.bf16.msra.mxu0 %v2681
      %2705 = vmatprep.subr.bf16.mxu0 0
      %2706 = vmatpush1.bf16.msra.mxu0 %v2682
      %2707 = vmatprep.subr.bf16.mxu0 0
      %2708 = vmatpush1.bf16.msra.mxu0 0
      %2709 = vmatprep.subr.bf16.mxu0 0
      %2710 = vmatpush1.bf16.msra.mxu0 0
      %2711 = vmatprep.subr.bf16.mxu0 0
      %2712 = vmatpush1.bf16.msra.mxu0 0
      %2713 = vmatprep.subr.bf16.mxu0 0
      %2714 = vmatpush1.bf16.msra.mxu0 0
      %2715 = vmatprep.subr.bf16.mxu0 0
      %2716 = vmatpush1.bf16.msra.mxu0 0
      %2717 = vmatprep.subr.bf16.mxu0 0
      %2718 = vmatpush1.bf16.msra.mxu0 0
      %2719 = vmatprep.subr.bf16.mxu0 0
      %2720 = vmatpush1.bf16.msra.mxu0 0
      %2721 = vmatprep.subr.bf16.mxu0 0
      %2722 = vmatpush1.bf16.msra.mxu0 0
      %2723 = vmatprep.mubr.bf16.mxu0 0
      %2724 = vmatmul.mubr.bf16.gmra.mrb[0].mxu0 %v2627
      %v2725 = vpop.f32.mrb[0].mxu0
      %v2726 = vadd.f32 0.0, %v2725
      %v2727 = vpop.f32.mrb[0].mxu0
      %v2728 = vpop.f32.mrb[0].mxu0
      %v2729 = vadd.f32 0.0, %v2728
      %v2730 = vpop.f32.mrb[0].mxu0
      %2731 = vmatprep.mubr.bf16.mxu0 0
      %2732 = vmatmul.mubr.bf16.gmra.mrb[0].mxu0 %v2628
      %v2733 = vpop.f32.mrb[0].mxu0
      %v2734 = vadd.f32 0.0, %v2733
      %v2735 = vpop.f32.mrb[0].mxu0
      %v2736 = vpop.f32.mrb[0].mxu0
      %v2737 = vadd.f32 0.0, %v2736
      %v2738 = vpop.f32.mrb[0].mxu0
      %2739 = vmatprep.mubr.bf16.mxu0 0
      %2740 = vmatmul.mubr.bf16.gmra.mrb[0].mxu0 %v2629
      %v2741 = vpop.f32.mrb[0].mxu0
      %v2742 = vadd.f32 0.0, %v2741
      %v2743 = vpop.f32.mrb[0].mxu0
      %v2744 = vpop.f32.mrb[0].mxu0
      %v2745 = vadd.f32 0.0, %v2744
      %v2746 = vpop.f32.mrb[0].mxu0
      %2747 = vmatprep.mubr.bf16.mxu0 0
      %2748 = vmatmul.mubr.bf16.gmra.mrb[0].mxu0 %v2630
      %v2749 = vpop.f32.mrb[0].mxu0
      %v2750 = vadd.f32 0.0, %v2749
      %v2751 = vpop.f32.mrb[0].mxu0
      %v2752 = vpop.f32.mrb[0].mxu0
      %v2753 = vadd.f32 0.0, %v2752
      %v2754 = vpop.f32.mrb[0].mxu0
      %2755 = vmatprep.mubr.bf16.mxu0 0
      %2756 = vmatmul.mubr.bf16.gmra.mrb[0].mxu0 %v2631
      %v2757 = vpop.f32.mrb[0].mxu0
      %v2758 = vadd.f32 0.0, %v2757
      %v2759 = vpop.f32.mrb[0].mxu0
      %v2760 = vpop.f32.mrb[0].mxu0
      %v2761 = vadd.f32 0.0, %v2760
      %v2762 = vpop.f32.mrb[0].mxu0
      %2763 = vmatprep.mubr.bf16.mxu0 0
      %2764 = vmatmul.mubr.bf16.gmra.mrb[0].mxu0 %v2632
      %v2765 = vpop.f32.mrb[0].mxu0
      %v2766 = vadd.f32 0.0, %v2765
      %v2767 = vpop.f32.mrb[0].mxu0
      %v2768 = vpop.f32.mrb[0].mxu0
      %v2769 = vadd.f32 0.0, %v2768
      %v2770 = vpop.f32.mrb[0].mxu0
      %2771 = vmatprep.mubr.bf16.mxu0 0
      %2772 = vmatmul.mubr.bf16.gmra.mrb[0].mxu0 %v2633
      %v2773 = vpop.f32.mrb[0].mxu0
      %v2774 = vadd.f32 0.0, %v2773
      %v2775 = vpop.f32.mrb[0].mxu0
      %v2776 = vpop.f32.mrb[0].mxu0
      %v2777 = vadd.f32 0.0, %v2776
      %v2778 = vpop.f32.mrb[0].mxu0
      %2779 = vmatprep.mubr.bf16.mxu0 0
      %2780 = vmatmul.mubr.bf16.gmra.mrb[0].mxu0 %v2634
      %v2781 = vpop.f32.mrb[0].mxu0
      %v2782 = vadd.f32 0.0, %v2781
      %v2783 = vpop.f32.mrb[0].mxu0
      %v2784 = vpop.f32.mrb[0].mxu0
      %v2785 = vadd.f32 0.0, %v2784
      %v2786 = vpop.f32.mrb[0].mxu0
      %2787 = vdwg.mxu0
      %v2788 = vadd.f32 %v2362, %v2726
      %v2789 = vadd.f32 %v2363, %v2729
      %v2790 = vadd.f32 %v2364, %v2734
      %v2791 = vadd.f32 %v2365, %v2737
      %v2792 = vadd.f32 %v2366, %v2742
      %v2793 = vadd.f32 %v2367, %v2745
      %v2794 = vadd.f32 %v2368, %v2750
      %v2795 = vadd.f32 %v2369, %v2753
      %v2796 = vadd.f32 %v2370, %v2758
      %v2797 = vadd.f32 %v2371, %v2761
      %v2798 = vadd.f32 %v2372, %v2766
      %v2799 = vadd.f32 %v2373, %v2769
      %v2800 = vadd.f32 %v2374, %v2774
      %v2801 = vadd.f32 %v2375, %v2777
      %v2802 = vadd.f32 %v2376, %v2782
      %v2803 = vadd.f32 %v2377, %v2785
      %v2804 = vld [vmem:[%s2135] sm:$0xe]
      %v2805 = vld [vmem:[%s2135 + $0xc] sm:$0xe]
      %v2806 = vld [vmem:[%s2135 + $0x18] sm:$0xe]
      %v2807 = vld [vmem:[%s2135 + $0x24] sm:$0xe]
      %v2808 = vld [vmem:[%s2135 + $0x30] sm:$0xe]
      %v2809 = vld [vmem:[%s2135 + $0x3c] sm:$0xe]
      %v2810 = vld [vmem:[%s2135 + $0x48] sm:$0xe]
      %v2811 = vld [vmem:[%s2135 + $0x54] sm:$0xe]
      %v2836 = vrot.slane %v2804, 5
      %v2837 = vrot.slane %v2836, 4
      %v2838 = vrot.slane %v2379, 5
      %v2839 = vsel %vm1868, %v2837, %v2838
      %v2840 = vrot.slane %v2838, 4
      %v2841 = vrot.slane %v2380, 5
      %v2842 = vsel %vm1868, %v2840, %v2841
      %v2843 = vrot.slane %v2805, 5
      %v2844 = vrot.slane %v2843, 4
      %v2845 = vrot.slane %v2382, 5
      %v2846 = vsel %vm1868, %v2844, %v2845
      %v2847 = vrot.slane %v2845, 4
      %v2848 = vrot.slane %v2383, 5
      %v2849 = vsel %vm1868, %v2847, %v2848
      %v2850 = vrot.slane %v2806, 5
      %v2851 = vrot.slane %v2850, 4
      %v2852 = vrot.slane %v2385, 5
      %v2853 = vsel %vm1868, %v2851, %v2852
      %v2854 = vrot.slane %v2852, 4
      %v2855 = vrot.slane %v2386, 5
      %v2856 = vsel %vm1868, %v2854, %v2855
      %v2857 = vrot.slane %v2807, 5
      %v2858 = vrot.slane %v2857, 4
      %v2859 = vrot.slane %v2388, 5
      %v2860 = vsel %vm1868, %v2858, %v2859
      %v2861 = vrot.slane %v2859, 4
      %v2862 = vrot.slane %v2389, 5
      %v2863 = vsel %vm1868, %v2861, %v2862
      %v2864 = vrot.slane %v2808, 5
      %v2865 = vrot.slane %v2864, 4
      %v2866 = vrot.slane %v2391, 5
      %v2867 = vsel %vm1868, %v2865, %v2866
      %v2868 = vrot.slane %v2866, 4
      %v2869 = vrot.slane %v2392, 5
      %v2870 = vsel %vm1868, %v2868, %v2869
      %v2871 = vrot.slane %v2809, 5
      %v2872 = vrot.slane %v2871, 4
      %v2873 = vrot.slane %v2394, 5
      %v2874 = vsel %vm1868, %v2872, %v2873
      %v2875 = vrot.slane %v2873, 4
      %v2876 = vrot.slane %v2395, 5
      %v2877 = vsel %vm1868, %v2875, %v2876
      %v2878 = vrot.slane %v2810, 5
      %v2879 = vrot.slane %v2878, 4
      %v2880 = vrot.slane %v2397, 5
      %v2881 = vsel %vm1868, %v2879, %v2880
      %v2882 = vrot.slane %v2880, 4
      %v2883 = vrot.slane %v2398, 5
      %v2884 = vsel %vm1868, %v2882, %v2883
      %v2885 = vrot.slane %v2811, 5
      %v2886 = vrot.slane %v2885, 4
      %v2887 = vrot.slane %v2400, 5
      %v2888 = vsel %vm1868, %v2886, %v2887
      %v2889 = vrot.slane %v2887, 4
      %v2890 = vrot.slane %v2401, 5
      %v2891 = vsel %vm1868, %v2889, %v2890
      %s2892 = scalar_lea.vmem %s3, 320
      %v2893 = vld [vmem:[%s2892] sm:$0xf]
      %v2894 = vld [vmem:[%s2892 + $0x4] sm:$0xf]
      %v2895 = vld [vmem:[%s2892 + $0x8] sm:$0xf]
      %v2896 = vld [vmem:[%s2892 + $0xc] sm:$0xf]
      %v2897 = vld [vmem:[%s2892 + $0x10] sm:$0xf]
      %v2898 = vld [vmem:[%s2892 + $0x14] sm:$0xf]
      %v2899 = vld [vmem:[%s2892 + $0x18] sm:$0xf]
      %v2900 = vld [vmem:[%s2892 + $0x1c] sm:$0xf]
      %v2901 = vld [vmem:[%s2892 + $0x20] sm:$0xf]
      %v2902 = vld [vmem:[%s2892 + $0x24] sm:$0xf]
      %v2903 = vld [vmem:[%s2892 + $0x28] sm:$0xf]
      %v2904 = vld [vmem:[%s2892 + $0x2c] sm:$0xf]
      %v2905 = vld [vmem:[%s2892 + $0x30] sm:$0xf]
      %v2906 = vld [vmem:[%s2892 + $0x34] sm:$0xf]
      %v2907 = vld [vmem:[%s2892 + $0x38] sm:$0xf]
      %v2908 = vld [vmem:[%s2892 + $0x3c] sm:$0xf]
      %v2909 = vunpack.c.l.b16 %v2839
      %v2910 = vunpack.c.l.b16 %v2842
      %v2911 = vunpack.c.l.b16 %v2846
      %v2912 = vunpack.c.l.b16 %v2849
      %v2913 = vunpack.c.l.b16 %v2853
      %v2914 = vunpack.c.l.b16 %v2856
      %v2915 = vunpack.c.l.b16 %v2860
      %v2916 = vunpack.c.l.b16 %v2863
      %v2917 = vunpack.c.l.b16 %v2867
      %v2918 = vunpack.c.l.b16 %v2870
      %v2919 = vunpack.c.l.b16 %v2874
      %v2920 = vunpack.c.l.b16 %v2877
      %v2921 = vunpack.c.l.b16 %v2881
      %v2922 = vunpack.c.l.b16 %v2884
      %v2923 = vunpack.c.l.b16 %v2888
      %v2924 = vunpack.c.l.b16 %v2891
      %v2925 = vpack.c.b16 %v2910, %v2909
      %v2926 = vpack.c.b16 %v2912, %v2911
      %v2927 = vpack.c.b16 %v2914, %v2913
      %v2928 = vpack.c.b16 %v2916, %v2915
      %v2929 = vpack.c.b16 %v2918, %v2917
      %v2930 = vpack.c.b16 %v2920, %v2919
      %v2931 = vpack.c.b16 %v2922, %v2921
      %v2932 = vpack.c.b16 %v2924, %v2923
      %v2957 = vunpack.c.l.b16 %v2893
      %v2958 = vunpack.c.l.b16 %v2894
      %v2959 = vunpack.c.l.b16 %v2895
      %v2960 = vunpack.c.l.b16 %v2896
      %v2961 = vunpack.c.l.b16 %v2897
      %v2962 = vunpack.c.l.b16 %v2898
      %v2963 = vunpack.c.l.b16 %v2899
      %v2964 = vunpack.c.l.b16 %v2900
      %v2965 = vunpack.c.l.b16 %v2901
      %v2966 = vunpack.c.l.b16 %v2902
      %v2967 = vunpack.c.l.b16 %v2903
      %v2968 = vunpack.c.l.b16 %v2904
      %v2969 = vunpack.c.l.b16 %v2905
      %v2970 = vunpack.c.l.b16 %v2906
      %v2971 = vunpack.c.l.b16 %v2907
      %v2972 = vunpack.c.l.b16 %v2908
      %v2973 = vpack.c.b16 %v2958, %v2957
      %v2974 = vpack.c.b16 %v2960, %v2959
      %v2975 = vpack.c.b16 %v2962, %v2961
      %v2976 = vpack.c.b16 %v2964, %v2963
      %v2977 = vpack.c.b16 %v2966, %v2965
      %v2978 = vpack.c.b16 %v2968, %v2967
      %v2979 = vpack.c.b16 %v2970, %v2969
      %v2980 = vpack.c.b16 %v2972, %v2971
      %2989 = vmatprep.subr.bf16.mxu0 0
      %2990 = vmatpush1.bf16.msra.mxu0 %v2973
      %2991 = vmatprep.subr.bf16.mxu0 0
      %2992 = vmatpush1.bf16.msra.mxu0 %v2974
      %2993 = vmatprep.subr.bf16.mxu0 0
      %2994 = vmatpush1.bf16.msra.mxu0 %v2975
      %2995 = vmatprep.subr.bf16.mxu0 0
      %2996 = vmatpush1.bf16.msra.mxu0 %v2976
      %2997 = vmatprep.subr.bf16.mxu0 0
      %2998 = vmatpush1.bf16.msra.mxu0 %v2977
      %2999 = vmatprep.subr.bf16.mxu0 0
      %3000 = vmatpush1.bf16.msra.mxu0 %v2978
      %3001 = vmatprep.subr.bf16.mxu0 0
      %3002 = vmatpush1.bf16.msra.mxu0 %v2979
      %3003 = vmatprep.subr.bf16.mxu0 0
      %3004 = vmatpush1.bf16.msra.mxu0 %v2980
      %3005 = vmatprep.subr.bf16.mxu0 0
      %3006 = vmatpush1.bf16.msra.mxu0 0
      %3007 = vmatprep.subr.bf16.mxu0 0
      %3008 = vmatpush1.bf16.msra.mxu0 0
      %3009 = vmatprep.subr.bf16.mxu0 0
      %3010 = vmatpush1.bf16.msra.mxu0 0
      %3011 = vmatprep.subr.bf16.mxu0 0
      %3012 = vmatpush1.bf16.msra.mxu0 0
      %3013 = vmatprep.subr.bf16.mxu0 0
      %3014 = vmatpush1.bf16.msra.mxu0 0
      %3015 = vmatprep.subr.bf16.mxu0 0
      %3016 = vmatpush1.bf16.msra.mxu0 0
      %3017 = vmatprep.subr.bf16.mxu0 0
      %3018 = vmatpush1.bf16.msra.mxu0 0
      %3019 = vmatprep.subr.bf16.mxu0 0
      %3020 = vmatpush1.bf16.msra.mxu0 0
      %3021 = vmatprep.mubr.bf16.mxu0 0
      %3022 = vmatmul.mubr.bf16.gmra.mrb[0].mxu0 %v2925
      %v3023 = vpop.f32.mrb[0].mxu0
      %v3024 = vadd.f32 0.0, %v3023
      %v3025 = vpop.f32.mrb[0].mxu0
      %v3026 = vpop.f32.mrb[0].mxu0
      %v3027 = vadd.f32 0.0, %v3026
      %v3028 = vpop.f32.mrb[0].mxu0
      %3029 = vmatprep.mubr.bf16.mxu0 0
      %3030 = vmatmul.mubr.bf16.gmra.mrb[0].mxu0 %v2926
      %v3031 = vpop.f32.mrb[0].mxu0
      %v3032 = vadd.f32 0.0, %v3031
      %v3033 = vpop.f32.mrb[0].mxu0
      %v3034 = vpop.f32.mrb[0].mxu0
      %v3035 = vadd.f32 0.0, %v3034
      %v3036 = vpop.f32.mrb[0].mxu0
      %3037 = vmatprep.mubr.bf16.mxu0 0
      %3038 = vmatmul.mubr.bf16.gmra.mrb[0].mxu0 %v2927
      %v3039 = vpop.f32.mrb[0].mxu0
      %v3040 = vadd.f32 0.0, %v3039
      %v3041 = vpop.f32.mrb[0].mxu0
      %v3042 = vpop.f32.mrb[0].mxu0
      %v3043 = vadd.f32 0.0, %v3042
      %v3044 = vpop.f32.mrb[0].mxu0
      %3045 = vmatprep.mubr.bf16.mxu0 0
      %3046 = vmatmul.mubr.bf16.gmra.mrb[0].mxu0 %v2928
      %v3047 = vpop.f32.mrb[0].mxu0
      %v3048 = vadd.f32 0.0, %v3047
      %v3049 = vpop.f32.mrb[0].mxu0
      %v3050 = vpop.f32.mrb[0].mxu0
      %v3051 = vadd.f32 0.0, %v3050
      %v3052 = vpop.f32.mrb[0].mxu0
      %3053 = vmatprep.mubr.bf16.mxu0 0
      %3054 = vmatmul.mubr.bf16.gmra.mrb[0].mxu0 %v2929
      %v3055 = vpop.f32.mrb[0].mxu0
      %v3056 = vadd.f32 0.0, %v3055
      %v3057 = vpop.f32.mrb[0].mxu0
      %v3058 = vpop.f32.mrb[0].mxu0
      %v3059 = vadd.f32 0.0, %v3058
      %v3060 = vpop.f32.mrb[0].mxu0
      %3061 = vmatprep.mubr.bf16.mxu0 0
      %3062 = vmatmul.mubr.bf16.gmra.mrb[0].mxu0 %v2930
      %v3063 = vpop.f32.mrb[0].mxu0
      %v3064 = vadd.f32 0.0, %v3063
      %v3065 = vpop.f32.mrb[0].mxu0
      %v3066 = vpop.f32.mrb[0].mxu0
      %v3067 = vadd.f32 0.0, %v3066
      %v3068 = vpop.f32.mrb[0].mxu0
      %3069 = vmatprep.mubr.bf16.mxu0 0
      %3070 = vmatmul.mubr.bf16.gmra.mrb[0].mxu0 %v2931
      %v3071 = vpop.f32.mrb[0].mxu0
      %v3072 = vadd.f32 0.0, %v3071
      %v3073 = vpop.f32.mrb[0].mxu0
      %v3074 = vpop.f32.mrb[0].mxu0
      %v3075 = vadd.f32 0.0, %v3074
      %v3076 = vpop.f32.mrb[0].mxu0
      %3077 = vmatprep.mubr.bf16.mxu0 0
      %3078 = vmatmul.mubr.bf16.gmra.mrb[0].mxu0 %v2932
      %v3079 = vpop.f32.mrb[0].mxu0
      %v3080 = vadd.f32 0.0, %v3079
      %v3081 = vpop.f32.mrb[0].mxu0
      %v3082 = vpop.f32.mrb[0].mxu0
      %v3083 = vadd.f32 0.0, %v3082
      %v3084 = vpop.f32.mrb[0].mxu0
      %3085 = vdwg.mxu0
      %v3086 = vadd.f32 %v2788, %v3024
      %v3087 = vadd.f32 %v2789, %v3027
      %v3088 = vadd.f32 %v2790, %v3032
      %v3089 = vadd.f32 %v2791, %v3035
      %v3090 = vadd.f32 %v2792, %v3040
      %v3091 = vadd.f32 %v2793, %v3043
      %v3092 = vadd.f32 %v2794, %v3048
      %v3093 = vadd.f32 %v2795, %v3051
      %v3094 = vadd.f32 %v2796, %v3056
      %v3095 = vadd.f32 %v2797, %v3059
      %v3096 = vadd.f32 %v2798, %v3064
      %v3097 = vadd.f32 %v2799, %v3067
      %v3098 = vadd.f32 %v2800, %v3072
      %v3099 = vadd.f32 %v2801, %v3075
      %v3100 = vadd.f32 %v2802, %v3080
      %v3101 = vadd.f32 %v2803, %v3083
      %s3102 = scalar_lea.vmem [#allocation2], 24
      %v3103 = vld [vmem:[%s3102] sm:$0xf]
      %v3104 = vld [vmem:[%s3102 + $0x4] sm:$0xf]
      %v3105 = vld [vmem:[%s3102 + $0xc] sm:$0xf]
      %v3106 = vld [vmem:[%s3102 + $0x10] sm:$0xf]
      %v3107 = vld [vmem:[%s3102 + $0x18] sm:$0xf]
      %v3108 = vld [vmem:[%s3102 + $0x1c] sm:$0xf]
      %v3109 = vld [vmem:[%s3102 + $0x24] sm:$0xf]
      %v3110 = vld [vmem:[%s3102 + $0x28] sm:$0xf]
      %v3111 = vld [vmem:[%s3102 + $0x30] sm:$0xf]
      %v3112 = vld [vmem:[%s3102 + $0x34] sm:$0xf]
      %v3113 = vld [vmem:[%s3102 + $0x3c] sm:$0xf]
      %v3114 = vld [vmem:[%s3102 + $0x40] sm:$0xf]
      %v3115 = vld [vmem:[%s3102 + $0x48] sm:$0xf]
      %v3116 = vld [vmem:[%s3102 + $0x4c] sm:$0xf]
      %v3117 = vld [vmem:[%s3102 + $0x54] sm:$0xf]
      %v3118 = vld [vmem:[%s3102 + $0x58] sm:$0xf]
      %s3119 = scalar_lea.vmem %s3, 384
      %v3120 = vld [vmem:[%s3119] sm:$0xf]
      %v3121 = vld [vmem:[%s3119 + $0x4] sm:$0xf]
      %v3122 = vld [vmem:[%s3119 + $0x8] sm:$0xf]
      %v3123 = vld [vmem:[%s3119 + $0xc] sm:$0xf]
      %v3124 = vld [vmem:[%s3119 + $0x10] sm:$0xf]
      %v3125 = vld [vmem:[%s3119 + $0x14] sm:$0xf]
      %v3126 = vld [vmem:[%s3119 + $0x18] sm:$0xf]
      %v3127 = vld [vmem:[%s3119 + $0x1c] sm:$0xf]
      %v3128 = vld [vmem:[%s3119 + $0x20] sm:$0xf]
      %v3129 = vld [vmem:[%s3119 + $0x24] sm:$0xf]
      %v3130 = vld [vmem:[%s3119 + $0x28] sm:$0xf]
      %v3131 = vld [vmem:[%s3119 + $0x2c] sm:$0xf]
      %v3132 = vld [vmem:[%s3119 + $0x30] sm:$0xf]
      %v3133 = vld [vmem:[%s3119 + $0x34] sm:$0xf]
      %v3134 = vld [vmem:[%s3119 + $0x38] sm:$0xf]
      %v3135 = vld [vmem:[%s3119 + $0x3c] sm:$0xf]
      %v3152 = vunpack.c.l.b16 %v3103
      %v3153 = vunpack.c.l.b16 %v3104
      %v3154 = vunpack.c.l.b16 %v3105
      %v3155 = vunpack.c.l.b16 %v3106
      %v3156 = vunpack.c.l.b16 %v3107
      %v3157 = vunpack.c.l.b16 %v3108
      %v3158 = vunpack.c.l.b16 %v3109
      %v3159 = vunpack.c.l.b16 %v3110
      %v3160 = vunpack.c.l.b16 %v3111
      %v3161 = vunpack.c.l.b16 %v3112
      %v3162 = vunpack.c.l.b16 %v3113
      %v3163 = vunpack.c.l.b16 %v3114
      %v3164 = vunpack.c.l.b16 %v3115
      %v3165 = vunpack.c.l.b16 %v3116
      %v3166 = vunpack.c.l.b16 %v3117
      %v3167 = vunpack.c.l.b16 %v3118
      %v3168 = vpack.c.b16 %v3153, %v3152
      %v3169 = vpack.c.b16 %v3155, %v3154
      %v3170 = vpack.c.b16 %v3157, %v3156
      %v3171 = vpack.c.b16 %v3159, %v3158
      %v3172 = vpack.c.b16 %v3161, %v3160
      %v3173 = vpack.c.b16 %v3163, %v3162
      %v3174 = vpack.c.b16 %v3165, %v3164
      %v3175 = vpack.c.b16 %v3167, %v3166
      %v3200 = vunpack.c.l.b16 %v3120
      %v3201 = vunpack.c.l.b16 %v3121
      %v3202 = vunpack.c.l.b16 %v3122
      %v3203 = vunpack.c.l.b16 %v3123
      %v3204 = vunpack.c.l.b16 %v3124
      %v3205 = vunpack.c.l.b16 %v3125
      %v3206 = vunpack.c.l.b16 %v3126
      %v3207 = vunpack.c.l.b16 %v3127
      %v3208 = vunpack.c.l.b16 %v3128
      %v3209 = vunpack.c.l.b16 %v3129
      %v3210 = vunpack.c.l.b16 %v3130
      %v3211 = vunpack.c.l.b16 %v3131
      %v3212 = vunpack.c.l.b16 %v3132
      %v3213 = vunpack.c.l.b16 %v3133
      %v3214 = vunpack.c.l.b16 %v3134
      %v3215 = vunpack.c.l.b16 %v3135
      %v3216 = vpack.c.b16 %v3201, %v3200
      %v3217 = vpack.c.b16 %v3203, %v3202
      %v3218 = vpack.c.b16 %v3205, %v3204
      %v3219 = vpack.c.b16 %v3207, %v3206
      %v3220 = vpack.c.b16 %v3209, %v3208
      %v3221 = vpack.c.b16 %v3211, %v3210
      %v3222 = vpack.c.b16 %v3213, %v3212
      %v3223 = vpack.c.b16 %v3215, %v3214
      %3232 = vmatprep.subr.bf16.mxu0 0
      %3233 = vmatpush1.bf16.msra.mxu0 %v3216
      %3234 = vmatprep.subr.bf16.mxu0 0
      %3235 = vmatpush1.bf16.msra.mxu0 %v3217
      %3236 = vmatprep.subr.bf16.mxu0 0
      %3237 = vmatpush1.bf16.msra.mxu0 %v3218
      %3238 = vmatprep.subr.bf16.mxu0 0
      %3239 = vmatpush1.bf16.msra.mxu0 %v3219
      %3240 = vmatprep.subr.bf16.mxu0 0
      %3241 = vmatpush1.bf16.msra.mxu0 %v3220
      %3242 = vmatprep.subr.bf16.mxu0 0
      %3243 = vmatpush1.bf16.msra.mxu0 %v3221
      %3244 = vmatprep.subr.bf16.mxu0 0
      %3245 = vmatpush1.bf16.msra.mxu0 %v3222
      %3246 = vmatprep.subr.bf16.mxu0 0
      %3247 = vmatpush1.bf16.msra.mxu0 %v3223
      %3248 = vmatprep.subr.bf16.mxu0 0
      %3249 = vmatpush1.bf16.msra.mxu0 0
      %3250 = vmatprep.subr.bf16.mxu0 0
      %3251 = vmatpush1.bf16.msra.mxu0 0
      %3252 = vmatprep.subr.bf16.mxu0 0
      %3253 = vmatpush1.bf16.msra.mxu0 0
      %3254 = vmatprep.subr.bf16.mxu0 0
      %3255 = vmatpush1.bf16.msra.mxu0 0
      %3256 = vmatprep.subr.bf16.mxu0 0
      %3257 = vmatpush1.bf16.msra.mxu0 0
      %3258 = vmatprep.subr.bf16.mxu0 0
      %3259 = vmatpush1.bf16.msra.mxu0 0
      %3260 = vmatprep.subr.bf16.mxu0 0
      %3261 = vmatpush1.bf16.msra.mxu0 0
      %3262 = vmatprep.subr.bf16.mxu0 0
      %3263 = vmatpush1.bf16.msra.mxu0 0
      %3264 = vmatprep.mubr.bf16.mxu0 0
      %3265 = vmatmul.mubr.bf16.gmra.mrb[0].mxu0 %v3168
      %v3266 = vpop.f32.mrb[0].mxu0
      %v3267 = vadd.f32 0.0, %v3266
      %v3268 = vpop.f32.mrb[0].mxu0
      %v3269 = vpop.f32.mrb[0].mxu0
      %v3270 = vadd.f32 0.0, %v3269
      %v3271 = vpop.f32.mrb[0].mxu0
      %3272 = vmatprep.mubr.bf16.mxu0 0
      %3273 = vmatmul.mubr.bf16.gmra.mrb[0].mxu0 %v3169
      %v3274 = vpop.f32.mrb[0].mxu0
      %v3275 = vadd.f32 0.0, %v3274
      %v3276 = vpop.f32.mrb[0].mxu0
      %v3277 = vpop.f32.mrb[0].mxu0
      %v3278 = vadd.f32 0.0, %v3277
      %v3279 = vpop.f32.mrb[0].mxu0
      %3280 = vmatprep.mubr.bf16.mxu0 0
      %3281 = vmatmul.mubr.bf16.gmra.mrb[0].mxu0 %v3170
      %v3282 = vpop.f32.mrb[0].mxu0
      %v3283 = vadd.f32 0.0, %v3282
      %v3284 = vpop.f32.mrb[0].mxu0
      %v3285 = vpop.f32.mrb[0].mxu0
      %v3286 = vadd.f32 0.0, %v3285
      %v3287 = vpop.f32.mrb[0].mxu0
      %3288 = vmatprep.mubr.bf16.mxu0 0
      %3289 = vmatmul.mubr.bf16.gmra.mrb[0].mxu0 %v3171
      %v3290 = vpop.f32.mrb[0].mxu0
      %v3291 = vadd.f32 0.0, %v3290
      %v3292 = vpop.f32.mrb[0].mxu0
      %v3293 = vpop.f32.mrb[0].mxu0
      %v3294 = vadd.f32 0.0, %v3293
      %v3295 = vpop.f32.mrb[0].mxu0
      %3296 = vmatprep.mubr.bf16.mxu0 0
      %3297 = vmatmul.mubr.bf16.gmra.mrb[0].mxu0 %v3172
      %v3298 = vpop.f32.mrb[0].mxu0
      %v3299 = vadd.f32 0.0, %v3298
      %v3300 = vpop.f32.mrb[0].mxu0
      %v3301 = vpop.f32.mrb[0].mxu0
      %v3302 = vadd.f32 0.0, %v3301
      %v3303 = vpop.f32.mrb[0].mxu0
      %3304 = vmatprep.mubr.bf16.mxu0 0
      %3305 = vmatmul.mubr.bf16.gmra.mrb[0].mxu0 %v3173
      %v3306 = vpop.f32.mrb[0].mxu0
      %v3307 = vadd.f32 0.0, %v3306
      %v3308 = vpop.f32.mrb[0].mxu0
      %v3309 = vpop.f32.mrb[0].mxu0
      %v3310 = vadd.f32 0.0, %v3309
      %v3311 = vpop.f32.mrb[0].mxu0
      %3312 = vmatprep.mubr.bf16.mxu0 0
      %3313 = vmatmul.mubr.bf16.gmra.mrb[0].mxu0 %v3174
      %v3314 = vpop.f32.mrb[0].mxu0
      %v3315 = vadd.f32 0.0, %v3314
      %v3316 = vpop.f32.mrb[0].mxu0
      %v3317 = vpop.f32.mrb[0].mxu0
      %v3318 = vadd.f32 0.0, %v3317
      %v3319 = vpop.f32.mrb[0].mxu0
      %3320 = vmatprep.mubr.bf16.mxu0 0
      %3321 = vmatmul.mubr.bf16.gmra.mrb[0].mxu0 %v3175
      %v3322 = vpop.f32.mrb[0].mxu0
      %v3323 = vadd.f32 0.0, %v3322
      %v3324 = vpop.f32.mrb[0].mxu0
      %v3325 = vpop.f32.mrb[0].mxu0
      %v3326 = vadd.f32 0.0, %v3325
      %v3327 = vpop.f32.mrb[0].mxu0
      %3328 = vdwg.mxu0
      %v3329 = vadd.f32 %v3086, %v3267
      %v3330 = vadd.f32 %v3087, %v3270
      %v3331 = vadd.f32 %v3088, %v3275
      %v3332 = vadd.f32 %v3089, %v3278
      %v3333 = vadd.f32 %v3090, %v3283
      %v3334 = vadd.f32 %v3091, %v3286
      %v3335 = vadd.f32 %v3092, %v3291
      %v3336 = vadd.f32 %v3093, %v3294
      %v3337 = vadd.f32 %v3094, %v3299
      %v3338 = vadd.f32 %v3095, %v3302
      %v3339 = vadd.f32 %v3096, %v3307
      %v3340 = vadd.f32 %v3097, %v3310
      %v3341 = vadd.f32 %v3098, %v3315
      %v3342 = vadd.f32 %v3099, %v3318
      %v3343 = vadd.f32 %v3100, %v3323
      %v3344 = vadd.f32 %v3101, %v3326
      %v3345 = vld [vmem:[%s3102] sm:$0xf]
      %v3346 = vld [vmem:[%s3102 + $0x4] sm:$0xf]
      %v3347 = vld [vmem:[%s3102 + $0x8] sm:$0x1]
      %v3348 = vld [vmem:[%s3102 + $0xc] sm:$0xf]
      %v3349 = vld [vmem:[%s3102 + $0x10] sm:$0xf]
      %v3350 = vld [vmem:[%s3102 + $0x14] sm:$0x1]
      %v3351 = vld [vmem:[%s3102 + $0x18] sm:$0xf]
      %v3352 = vld [vmem:[%s3102 + $0x1c] sm:$0xf]
      %v3353 = vld [vmem:[%s3102 + $0x20] sm:$0x1]
      %v3354 = vld [vmem:[%s3102 + $0x24] sm:$0xf]
      %v3355 = vld [vmem:[%s3102 + $0x28] sm:$0xf]
      %v3356 = vld [vmem:[%s3102 + $0x2c] sm:$0x1]
      %v3357 = vld [vmem:[%s3102 + $0x30] sm:$0xf]
      %v3358 = vld [vmem:[%s3102 + $0x34] sm:$0xf]
      %v3359 = vld [vmem:[%s3102 + $0x38] sm:$0x1]
      %v3360 = vld [vmem:[%s3102 + $0x3c] sm:$0xf]
      %v3361 = vld [vmem:[%s3102 + $0x40] sm:$0xf]
      %v3362 = vld [vmem:[%s3102 + $0x44] sm:$0x1]
      %v3363 = vld [vmem:[%s3102 + $0x48] sm:$0xf]
      %v3364 = vld [vmem:[%s3102 + $0x4c] sm:$0xf]
      %v3365 = vld [vmem:[%s3102 + $0x50] sm:$0x1]
      %v3366 = vld [vmem:[%s3102 + $0x54] sm:$0xf]
      %v3367 = vld [vmem:[%s3102 + $0x58] sm:$0xf]
      %v3368 = vld [vmem:[%s3102 + $0x5c] sm:$0x1]
      %v3370 = vshrl.u32 %v3345, 16
      %v3372 = vrot.slane %v3370, 4
      %v3373 = vshll.u32 %v3345, 16
      %v3375 = vrot.slane %v3373, 5
      %v3376 = vor.u32 %v3372, %v3375
      %v3377 = vrot.slane %v3376, 4
      %v3379 = vshll.u32 %v3346, 16
      %v3381 = vrot.slane %v3379, 5
      %v3382 = vsel %vm1431, %v3377, %v3381
      %v3383 = vshrl.u32 %v3346, 16
      %v3385 = vrot.slane %v3383, 4
      %v3386 = vor.u32 %v3385, %v3381
      %v3387 = vrot.slane %v3386, 4
      %v3389 = vshll.u32 %v3347, 16
      %v3391 = vrot.slane %v3389, 5
      %v3392 = vsel %vm1431, %v3387, %v3391
      %v3394 = vshrl.u32 %v3348, 16
      %v3396 = vrot.slane %v3394, 4
      %v3397 = vshll.u32 %v3348, 16
      %v3399 = vrot.slane %v3397, 5
      %v3400 = vor.u32 %v3396, %v3399
      %v3401 = vrot.slane %v3400, 4
      %v3403 = vshll.u32 %v3349, 16
      %v3405 = vrot.slane %v3403, 5
      %v3406 = vsel %vm1431, %v3401, %v3405
      %v3407 = vshrl.u32 %v3349, 16
      %v3409 = vrot.slane %v3407, 4
      %v3410 = vor.u32 %v3409, %v3405
      %v3411 = vrot.slane %v3410, 4
      %v3413 = vshll.u32 %v3350, 16
      %v3415 = vrot.slane %v3413, 5
      %v3416 = vsel %vm1431, %v3411, %v3415
      %v3418 = vshrl.u32 %v3351, 16
      %v3420 = vrot.slane %v3418, 4
      %v3421 = vshll.u32 %v3351, 16
      %v3423 = vrot.slane %v3421, 5
      %v3424 = vor.u32 %v3420, %v3423
      %v3425 = vrot.slane %v3424, 4
      %v3427 = vshll.u32 %v3352, 16
      %v3429 = vrot.slane %v3427, 5
      %v3430 = vsel %vm1431, %v3425, %v3429
      %v3431 = vshrl.u32 %v3352, 16
      %v3433 = vrot.slane %v3431, 4
      %v3434 = vor.u32 %v3433, %v3429
      %v3435 = vrot.slane %v3434, 4
      %v3437 = vshll.u32 %v3353, 16
      %v3439 = vrot.slane %v3437, 5
      %v3440 = vsel %vm1431, %v3435, %v3439
      %v3442 = vshrl.u32 %v3354, 16
      %v3444 = vrot.slane %v3442, 4
      %v3445 = vshll.u32 %v3354, 16
      %v3447 = vrot.slane %v3445, 5
      %v3448 = vor.u32 %v3444, %v3447
      %v3449 = vrot.slane %v3448, 4
      %v3451 = vshll.u32 %v3355, 16
      %v3453 = vrot.slane %v3451, 5
      %v3454 = vsel %vm1431, %v3449, %v3453
      %v3455 = vshrl.u32 %v3355, 16
      %v3457 = vrot.slane %v3455, 4
      %v3458 = vor.u32 %v3457, %v3453
      %v3459 = vrot.slane %v3458, 4
      %v3461 = vshll.u32 %v3356, 16
      %v3463 = vrot.slane %v3461, 5
      %v3464 = vsel %vm1431, %v3459, %v3463
      %v3466 = vshrl.u32 %v3357, 16
      %v3468 = vrot.slane %v3466, 4
      %v3469 = vshll.u32 %v3357, 16
      %v3471 = vrot.slane %v3469, 5
      %v3472 = vor.u32 %v3468, %v3471
      %v3473 = vrot.slane %v3472, 4
      %v3475 = vshll.u32 %v3358, 16
      %v3477 = vrot.slane %v3475, 5
      %v3478 = vsel %vm1431, %v3473, %v3477
      %v3479 = vshrl.u32 %v3358, 16
      %v3481 = vrot.slane %v3479, 4
      %v3482 = vor.u32 %v3481, %v3477
      %v3483 = vrot.slane %v3482, 4
      %v3485 = vshll.u32 %v3359, 16
      %v3487 = vrot.slane %v3485, 5
      %v3488 = vsel %vm1431, %v3483, %v3487
      %v3490 = vshrl.u32 %v3360, 16
      %v3492 = vrot.slane %v3490, 4
      %v3493 = vshll.u32 %v3360, 16
      %v3495 = vrot.slane %v3493, 5
      %v3496 = vor.u32 %v3492, %v3495
      %v3497 = vrot.slane %v3496, 4
      %v3499 = vshll.u32 %v3361, 16
      %v3501 = vrot.slane %v3499, 5
      %v3502 = vsel %vm1431, %v3497, %v3501
      %v3503 = vshrl.u32 %v3361, 16
      %v3505 = vrot.slane %v3503, 4
      %v3506 = vor.u32 %v3505, %v3501
      %v3507 = vrot.slane %v3506, 4
      %v3509 = vshll.u32 %v3362, 16
      %v3511 = vrot.slane %v3509, 5
      %v3512 = vsel %vm1431, %v3507, %v3511
      %v3514 = vshrl.u32 %v3363, 16
      %v3516 = vrot.slane %v3514, 4
      %v3517 = vshll.u32 %v3363, 16
      %v3519 = vrot.slane %v3517, 5
      %v3520 = vor.u32 %v3516, %v3519
      %v3521 = vrot.slane %v3520, 4
      %v3523 = vshll.u32 %v3364, 16
      %v3525 = vrot.slane %v3523, 5
      %v3526 = vsel %vm1431, %v3521, %v3525
      %v3527 = vshrl.u32 %v3364, 16
      %v3529 = vrot.slane %v3527, 4
      %v3530 = vor.u32 %v3529, %v3525
      %v3531 = vrot.slane %v3530, 4
      %v3533 = vshll.u32 %v3365, 16
      %v3535 = vrot.slane %v3533, 5
      %v3536 = vsel %vm1431, %v3531, %v3535
      %v3538 = vshrl.u32 %v3366, 16
      %v3540 = vrot.slane %v3538, 4
      %v3541 = vshll.u32 %v3366, 16
      %v3543 = vrot.slane %v3541, 5
      %v3544 = vor.u32 %v3540, %v3543
      %v3545 = vrot.slane %v3544, 4
      %v3547 = vshll.u32 %v3367, 16
      %v3549 = vrot.slane %v3547, 5
      %v3550 = vsel %vm1431, %v3545, %v3549
      %v3551 = vshrl.u32 %v3367, 16
      %v3553 = vrot.slane %v3551, 4
      %v3554 = vor.u32 %v3553, %v3549
      %v3555 = vrot.slane %v3554, 4
      %v3557 = vshll.u32 %v3368, 16
      %v3559 = vrot.slane %v3557, 5
      %v3560 = vsel %vm1431, %v3555, %v3559
      %s3561 = scalar_lea.vmem %s3, 448
      %v3562 = vld [vmem:[%s3561] sm:$0xf]
      %v3563 = vld [vmem:[%s3561 + $0x4] sm:$0xf]
      %v3564 = vld [vmem:[%s3561 + $0x8] sm:$0xf]
      %v3565 = vld [vmem:[%s3561 + $0xc] sm:$0xf]
      %v3566 = vld [vmem:[%s3561 + $0x10] sm:$0xf]
      %v3567 = vld [vmem:[%s3561 + $0x14] sm:$0xf]
      %v3568 = vld [vmem:[%s3561 + $0x18] sm:$0xf]
      %v3569 = vld [vmem:[%s3561 + $0x1c] sm:$0xf]
      %v3570 = vld [vmem:[%s3561 + $0x20] sm:$0xf]
      %v3571 = vld [vmem:[%s3561 + $0x24] sm:$0xf]
      %v3572 = vld [vmem:[%s3561 + $0x28] sm:$0xf]
      %v3573 = vld [vmem:[%s3561 + $0x2c] sm:$0xf]
      %v3574 = vld [vmem:[%s3561 + $0x30] sm:$0xf]
      %v3575 = vld [vmem:[%s3561 + $0x34] sm:$0xf]
      %v3576 = vld [vmem:[%s3561 + $0x38] sm:$0xf]
      %v3577 = vld [vmem:[%s3561 + $0x3c] sm:$0xf]
      %v3578 = vunpack.c.l.b16 %v3382
      %v3579 = vunpack.c.l.b16 %v3392
      %v3580 = vunpack.c.l.b16 %v3406
      %v3581 = vunpack.c.l.b16 %v3416
      %v3582 = vunpack.c.l.b16 %v3430
      %v3583 = vunpack.c.l.b16 %v3440
      %v3584 = vunpack.c.l.b16 %v3454
      %v3585 = vunpack.c.l.b16 %v3464
      %v3586 = vunpack.c.l.b16 %v3478
      %v3587 = vunpack.c.l.b16 %v3488
      %v3588 = vunpack.c.l.b16 %v3502
      %v3589 = vunpack.c.l.b16 %v3512
      %v3590 = vunpack.c.l.b16 %v3526
      %v3591 = vunpack.c.l.b16 %v3536
      %v3592 = vunpack.c.l.b16 %v3550
      %v3593 = vunpack.c.l.b16 %v3560
      %v3594 = vpack.c.b16 %v3579, %v3578
      %v3595 = vpack.c.b16 %v3581, %v3580
      %v3596 = vpack.c.b16 %v3583, %v3582
      %v3597 = vpack.c.b16 %v3585, %v3584
      %v3598 = vpack.c.b16 %v3587, %v3586
      %v3599 = vpack.c.b16 %v3589, %v3588
      %v3600 = vpack.c.b16 %v3591, %v3590
      %v3601 = vpack.c.b16 %v3593, %v3592
      %v3626 = vunpack.c.l.b16 %v3562
      %v3627 = vunpack.c.l.b16 %v3563
      %v3628 = vunpack.c.l.b16 %v3564
      %v3629 = vunpack.c.l.b16 %v3565
      %v3630 = vunpack.c.l.b16 %v3566
      %v3631 = vunpack.c.l.b16 %v3567
      %v3632 = vunpack.c.l.b16 %v3568
      %v3633 = vunpack.c.l.b16 %v3569
      %v3634 = vunpack.c.l.b16 %v3570
      %v3635 = vunpack.c.l.b16 %v3571
      %v3636 = vunpack.c.l.b16 %v3572
      %v3637 = vunpack.c.l.b16 %v3573
      %v3638 = vunpack.c.l.b16 %v3574
      %v3639 = vunpack.c.l.b16 %v3575
      %v3640 = vunpack.c.l.b16 %v3576
      %v3641 = vunpack.c.l.b16 %v3577
      %v3642 = vpack.c.b16 %v3627, %v3626
      %v3643 = vpack.c.b16 %v3629, %v3628
      %v3644 = vpack.c.b16 %v3631, %v3630
      %v3645 = vpack.c.b16 %v3633, %v3632
      %v3646 = vpack.c.b16 %v3635, %v3634
      %v3647 = vpack.c.b16 %v3637, %v3636
      %v3648 = vpack.c.b16 %v3639, %v3638
      %v3649 = vpack.c.b16 %v3641, %v3640
      %3658 = vmatprep.subr.bf16.mxu0 0
      %3659 = vmatpush1.bf16.msra.mxu0 %v3642
      %3660 = vmatprep.subr.bf16.mxu0 0
      %3661 = vmatpush1.bf16.msra.mxu0 %v3643
      %3662 = vmatprep.subr.bf16.mxu0 0
      %3663 = vmatpush1.bf16.msra.mxu0 %v3644
      %3664 = vmatprep.subr.bf16.mxu0 0
      %3665 = vmatpush1.bf16.msra.mxu0 %v3645
      %3666 = vmatprep.subr.bf16.mxu0 0
      %3667 = vmatpush1.bf16.msra.mxu0 %v3646
      %3668 = vmatprep.subr.bf16.mxu0 0
      %3669 = vmatpush1.bf16.msra.mxu0 %v3647
      %3670 = vmatprep.subr.bf16.mxu0 0
      %3671 = vmatpush1.bf16.msra.mxu0 %v3648
      %3672 = vmatprep.subr.bf16.mxu0 0
      %3673 = vmatpush1.bf16.msra.mxu0 %v3649
      %3674 = vmatprep.subr.bf16.mxu0 0
      %3675 = vmatpush1.bf16.msra.mxu0 0
      %3676 = vmatprep.subr.bf16.mxu0 0
      %3677 = vmatpush1.bf16.msra.mxu0 0
      %3678 = vmatprep.subr.bf16.mxu0 0
      %3679 = vmatpush1.bf16.msra.mxu0 0
      %3680 = vmatprep.subr.bf16.mxu0 0
      %3681 = vmatpush1.bf16.msra.mxu0 0
      %3682 = vmatprep.subr.bf16.mxu0 0
      %3683 = vmatpush1.bf16.msra.mxu0 0
      %3684 = vmatprep.subr.bf16.mxu0 0
      %3685 = vmatpush1.bf16.msra.mxu0 0
      %3686 = vmatprep.subr.bf16.mxu0 0
      %3687 = vmatpush1.bf16.msra.mxu0 0
      %3688 = vmatprep.subr.bf16.mxu0 0
      %3689 = vmatpush1.bf16.msra.mxu0 0
      %3690 = vmatprep.mubr.bf16.mxu0 0
      %3691 = vmatmul.mubr.bf16.gmra.mrb[0].mxu0 %v3594
      %v3692 = vpop.f32.mrb[0].mxu0
      %v3693 = vadd.f32 0.0, %v3692
      %v3694 = vpop.f32.mrb[0].mxu0
      %v3695 = vpop.f32.mrb[0].mxu0
      %v3696 = vadd.f32 0.0, %v3695
      %v3697 = vpop.f32.mrb[0].mxu0
      %3698 = vmatprep.mubr.bf16.mxu0 0
      %3699 = vmatmul.mubr.bf16.gmra.mrb[0].mxu0 %v3595
      %v3700 = vpop.f32.mrb[0].mxu0
      %v3701 = vadd.f32 0.0, %v3700
      %v3702 = vpop.f32.mrb[0].mxu0
      %v3703 = vpop.f32.mrb[0].mxu0
      %v3704 = vadd.f32 0.0, %v3703
      %v3705 = vpop.f32.mrb[0].mxu0
      %3706 = vmatprep.mubr.bf16.mxu0 0
      %3707 = vmatmul.mubr.bf16.gmra.mrb[0].mxu0 %v3596
      %v3708 = vpop.f32.mrb[0].mxu0
      %v3709 = vadd.f32 0.0, %v3708
      %v3710 = vpop.f32.mrb[0].mxu0
      %v3711 = vpop.f32.mrb[0].mxu0
      %v3712 = vadd.f32 0.0, %v3711
      %v3713 = vpop.f32.mrb[0].mxu0
      %3714 = vmatprep.mubr.bf16.mxu0 0
      %3715 = vmatmul.mubr.bf16.gmra.mrb[0].mxu0 %v3597
      %v3716 = vpop.f32.mrb[0].mxu0
      %v3717 = vadd.f32 0.0, %v3716
      %v3718 = vpop.f32.mrb[0].mxu0
      %v3719 = vpop.f32.mrb[0].mxu0
      %v3720 = vadd.f32 0.0, %v3719
      %v3721 = vpop.f32.mrb[0].mxu0
      %3722 = vmatprep.mubr.bf16.mxu0 0
      %3723 = vmatmul.mubr.bf16.gmra.mrb[0].mxu0 %v3598
      %v3724 = vpop.f32.mrb[0].mxu0
      %v3725 = vadd.f32 0.0, %v3724
      %v3726 = vpop.f32.mrb[0].mxu0
      %v3727 = vpop.f32.mrb[0].mxu0
      %v3728 = vadd.f32 0.0, %v3727
      %v3729 = vpop.f32.mrb[0].mxu0
      %3730 = vmatprep.mubr.bf16.mxu0 0
      %3731 = vmatmul.mubr.bf16.gmra.mrb[0].mxu0 %v3599
      %v3732 = vpop.f32.mrb[0].mxu0
      %v3733 = vadd.f32 0.0, %v3732
      %v3734 = vpop.f32.mrb[0].mxu0
      %v3735 = vpop.f32.mrb[0].mxu0
      %v3736 = vadd.f32 0.0, %v3735
      %v3737 = vpop.f32.mrb[0].mxu0
      %3738 = vmatprep.mubr.bf16.mxu0 0
      %3739 = vmatmul.mubr.bf16.gmra.mrb[0].mxu0 %v3600
      %v3740 = vpop.f32.mrb[0].mxu0
      %v3741 = vadd.f32 0.0, %v3740
      %v3742 = vpop.f32.mrb[0].mxu0
      %v3743 = vpop.f32.mrb[0].mxu0
      %v3744 = vadd.f32 0.0, %v3743
      %v3745 = vpop.f32.mrb[0].mxu0
      %3746 = vmatprep.mubr.bf16.mxu0 0
      %3747 = vmatmul.mubr.bf16.gmra.mrb[0].mxu0 %v3601
      %v3748 = vpop.f32.mrb[0].mxu0
      %v3749 = vadd.f32 0.0, %v3748
      %v3750 = vpop.f32.mrb[0].mxu0
      %v3751 = vpop.f32.mrb[0].mxu0
      %v3752 = vadd.f32 0.0, %v3751
      %v3753 = vpop.f32.mrb[0].mxu0
      %3754 = vdwg.mxu0
      %v3755 = vadd.f32 %v3329, %v3693
      %v3756 = vadd.f32 %v3330, %v3696
      %v3757 = vadd.f32 %v3331, %v3701
      %v3758 = vadd.f32 %v3332, %v3704
      %v3759 = vadd.f32 %v3333, %v3709
      %v3760 = vadd.f32 %v3334, %v3712
      %v3761 = vadd.f32 %v3335, %v3717
      %v3762 = vadd.f32 %v3336, %v3720
      %v3763 = vadd.f32 %v3337, %v3725
      %v3764 = vadd.f32 %v3338, %v3728
      %v3765 = vadd.f32 %v3339, %v3733
      %v3766 = vadd.f32 %v3340, %v3736
      %v3767 = vadd.f32 %v3341, %v3741
      %v3768 = vadd.f32 %v3342, %v3744
      %v3769 = vadd.f32 %v3343, %v3749
      %v3770 = vadd.f32 %v3344, %v3752
      %v3771 = vld [vmem:[%s3102] sm:$0xe]
      %v3772 = vld [vmem:[%s3102 + $0xc] sm:$0xe]
      %v3773 = vld [vmem:[%s3102 + $0x18] sm:$0xe]
      %v3774 = vld [vmem:[%s3102 + $0x24] sm:$0xe]
      %v3775 = vld [vmem:[%s3102 + $0x30] sm:$0xe]
      %v3776 = vld [vmem:[%s3102 + $0x3c] sm:$0xe]
      %v3777 = vld [vmem:[%s3102 + $0x48] sm:$0xe]
      %v3778 = vld [vmem:[%s3102 + $0x54] sm:$0xe]
      %v3803 = vrot.slane %v3771, 5
      %v3804 = vrot.slane %v3803, 4
      %v3805 = vrot.slane %v3346, 5
      %v3806 = vsel %vm1868, %v3804, %v3805
      %v3807 = vrot.slane %v3805, 4
      %v3808 = vrot.slane %v3347, 5
      %v3809 = vsel %vm1868, %v3807, %v3808
      %v3810 = vrot.slane %v3772, 5
      %v3811 = vrot.slane %v3810, 4
      %v3812 = vrot.slane %v3349, 5
      %v3813 = vsel %vm1868, %v3811, %v3812
      %v3814 = vrot.slane %v3812, 4
      %v3815 = vrot.slane %v3350, 5
      %v3816 = vsel %vm1868, %v3814, %v3815
      %v3817 = vrot.slane %v3773, 5
      %v3818 = vrot.slane %v3817, 4
      %v3819 = vrot.slane %v3352, 5
      %v3820 = vsel %vm1868, %v3818, %v3819
      %v3821 = vrot.slane %v3819, 4
      %v3822 = vrot.slane %v3353, 5
      %v3823 = vsel %vm1868, %v3821, %v3822
      %v3824 = vrot.slane %v3774, 5
      %v3825 = vrot.slane %v3824, 4
      %v3826 = vrot.slane %v3355, 5
      %v3827 = vsel %vm1868, %v3825, %v3826
      %v3828 = vrot.slane %v3826, 4
      %v3829 = vrot.slane %v3356, 5
      %v3830 = vsel %vm1868, %v3828, %v3829
      %v3831 = vrot.slane %v3775, 5
      %v3832 = vrot.slane %v3831, 4
      %v3833 = vrot.slane %v3358, 5
      %v3834 = vsel %vm1868, %v3832, %v3833
      %v3835 = vrot.slane %v3833, 4
      %v3836 = vrot.slane %v3359, 5
      %v3837 = vsel %vm1868, %v3835, %v3836
      %v3838 = vrot.slane %v3776, 5
      %v3839 = vrot.slane %v3838, 4
      %v3840 = vrot.slane %v3361, 5
      %v3841 = vsel %vm1868, %v3839, %v3840
      %v3842 = vrot.slane %v3840, 4
      %v3843 = vrot.slane %v3362, 5
      %v3844 = vsel %vm1868, %v3842, %v3843
      %v3845 = vrot.slane %v3777, 5
      %v3846 = vrot.slane %v3845, 4
      %v3847 = vrot.slane %v3364, 5
      %v3848 = vsel %vm1868, %v3846, %v3847
      %v3849 = vrot.slane %v3847, 4
      %v3850 = vrot.slane %v3365, 5
      %v3851 = vsel %vm1868, %v3849, %v3850
      %v3852 = vrot.slane %v3778, 5
      %v3853 = vrot.slane %v3852, 4
      %v3854 = vrot.slane %v3367, 5
      %v3855 = vsel %vm1868, %v3853, %v3854
      %v3856 = vrot.slane %v3854, 4
      %v3857 = vrot.slane %v3368, 5
      %v3858 = vsel %vm1868, %v3856, %v3857
      %s3859 = scalar_lea.vmem %s3, 512
      %v3860 = vld [vmem:[%s3859] sm:$0xf]
      %v3861 = vld [vmem:[%s3859 + $0x4] sm:$0xf]
      %v3862 = vld [vmem:[%s3859 + $0x8] sm:$0xf]
      %v3863 = vld [vmem:[%s3859 + $0xc] sm:$0xf]
      %v3864 = vld [vmem:[%s3859 + $0x10] sm:$0xf]
      %v3865 = vld [vmem:[%s3859 + $0x14] sm:$0xf]
      %v3866 = vld [vmem:[%s3859 + $0x18] sm:$0xf]
      %v3867 = vld [vmem:[%s3859 + $0x1c] sm:$0xf]
      %v3868 = vld [vmem:[%s3859 + $0x20] sm:$0xf]
      %v3869 = vld [vmem:[%s3859 + $0x24] sm:$0xf]
      %v3870 = vld [vmem:[%s3859 + $0x28] sm:$0xf]
      %v3871 = vld [vmem:[%s3859 + $0x2c] sm:$0xf]
      %v3872 = vld [vmem:[%s3859 + $0x30] sm:$0xf]
      %v3873 = vld [vmem:[%s3859 + $0x34] sm:$0xf]
      %v3874 = vld [vmem:[%s3859 + $0x38] sm:$0xf]
      %v3875 = vld [vmem:[%s3859 + $0x3c] sm:$0xf]
      %v3876 = vunpack.c.l.b16 %v3806
      %v3877 = vunpack.c.l.b16 %v3809
      %v3878 = vunpack.c.l.b16 %v3813
      %v3879 = vunpack.c.l.b16 %v3816
      %v3880 = vunpack.c.l.b16 %v3820
      %v3881 = vunpack.c.l.b16 %v3823
      %v3882 = vunpack.c.l.b16 %v3827
      %v3883 = vunpack.c.l.b16 %v3830
      %v3884 = vunpack.c.l.b16 %v3834
      %v3885 = vunpack.c.l.b16 %v3837
      %v3886 = vunpack.c.l.b16 %v3841
      %v3887 = vunpack.c.l.b16 %v3844
      %v3888 = vunpack.c.l.b16 %v3848
      %v3889 = vunpack.c.l.b16 %v3851
      %v3890 = vunpack.c.l.b16 %v3855
      %v3891 = vunpack.c.l.b16 %v3858
      %v3892 = vpack.c.b16 %v3877, %v3876
      %v3893 = vpack.c.b16 %v3879, %v3878
      %v3894 = vpack.c.b16 %v3881, %v3880
      %v3895 = vpack.c.b16 %v3883, %v3882
      %v3896 = vpack.c.b16 %v3885, %v3884
      %v3897 = vpack.c.b16 %v3887, %v3886
      %v3898 = vpack.c.b16 %v3889, %v3888
      %v3899 = vpack.c.b16 %v3891, %v3890
      %v3924 = vunpack.c.l.b16 %v3860
      %v3925 = vunpack.c.l.b16 %v3861
      %v3926 = vunpack.c.l.b16 %v3862
      %v3927 = vunpack.c.l.b16 %v3863
      %v3928 = vunpack.c.l.b16 %v3864
      %v3929 = vunpack.c.l.b16 %v3865
      %v3930 = vunpack.c.l.b16 %v3866
      %v3931 = vunpack.c.l.b16 %v3867
      %v3932 = vunpack.c.l.b16 %v3868
      %v3933 = vunpack.c.l.b16 %v3869
      %v3934 = vunpack.c.l.b16 %v3870
      %v3935 = vunpack.c.l.b16 %v3871
      %v3936 = vunpack.c.l.b16 %v3872
      %v3937 = vunpack.c.l.b16 %v3873
      %v3938 = vunpack.c.l.b16 %v3874
      %v3939 = vunpack.c.l.b16 %v3875
      %v3940 = vpack.c.b16 %v3925, %v3924
      %v3941 = vpack.c.b16 %v3927, %v3926
      %v3942 = vpack.c.b16 %v3929, %v3928
      %v3943 = vpack.c.b16 %v3931, %v3930
      %v3944 = vpack.c.b16 %v3933, %v3932
      %v3945 = vpack.c.b16 %v3935, %v3934
      %v3946 = vpack.c.b16 %v3937, %v3936
      %v3947 = vpack.c.b16 %v3939, %v3938
      %3956 = vmatprep.subr.bf16.mxu0 0
      %3957 = vmatpush1.bf16.msra.mxu0 %v3940
      %3958 = vmatprep.subr.bf16.mxu0 0
      %3959 = vmatpush1.bf16.msra.mxu0 %v3941
      %3960 = vmatprep.subr.bf16.mxu0 0
      %3961 = vmatpush1.bf16.msra.mxu0 %v3942
      %3962 = vmatprep.subr.bf16.mxu0 0
      %3963 = vmatpush1.bf16.msra.mxu0 %v3943
      %3964 = vmatprep.subr.bf16.mxu0 0
      %3965 = vmatpush1.bf16.msra.mxu0 %v3944
      %3966 = vmatprep.subr.bf16.mxu0 0
      %3967 = vmatpush1.bf16.msra.mxu0 %v3945
      %3968 = vmatprep.subr.bf16.mxu0 0
      %3969 = vmatpush1.bf16.msra.mxu0 %v3946
      %3970 = vmatprep.subr.bf16.mxu0 0
      %3971 = vmatpush1.bf16.msra.mxu0 %v3947
      %3972 = vmatprep.subr.bf16.mxu0 0
      %3973 = vmatpush1.bf16.msra.mxu0 0
      %3974 = vmatprep.subr.bf16.mxu0 0
      %3975 = vmatpush1.bf16.msra.mxu0 0
      %3976 = vmatprep.subr.bf16.mxu0 0
      %3977 = vmatpush1.bf16.msra.mxu0 0
      %3978 = vmatprep.subr.bf16.mxu0 0
      %3979 = vmatpush1.bf16.msra.mxu0 0
      %3980 = vmatprep.subr.bf16.mxu0 0
      %3981 = vmatpush1.bf16.msra.mxu0 0
      %3982 = vmatprep.subr.bf16.mxu0 0
      %3983 = vmatpush1.bf16.msra.mxu0 0
      %3984 = vmatprep.subr.bf16.mxu0 0
      %3985 = vmatpush1.bf16.msra.mxu0 0
      %3986 = vmatprep.subr.bf16.mxu0 0
      %3987 = vmatpush1.bf16.msra.mxu0 0
      %3988 = vmatprep.mubr.bf16.mxu0 0
      %3989 = vmatmul.mubr.bf16.gmra.mrb[0].mxu0 %v3892
      %v3990 = vpop.f32.mrb[0].mxu0
      %v3991 = vadd.f32 0.0, %v3990
      %v3992 = vpop.f32.mrb[0].mxu0
      %v3993 = vpop.f32.mrb[0].mxu0
      %v3994 = vadd.f32 0.0, %v3993
      %v3995 = vpop.f32.mrb[0].mxu0
      %3996 = vmatprep.mubr.bf16.mxu0 0
      %3997 = vmatmul.mubr.bf16.gmra.mrb[0].mxu0 %v3893
      %v3998 = vpop.f32.mrb[0].mxu0
      %v3999 = vadd.f32 0.0, %v3998
      %v4000 = vpop.f32.mrb[0].mxu0
      %v4001 = vpop.f32.mrb[0].mxu0
      %v4002 = vadd.f32 0.0, %v4001
      %v4003 = vpop.f32.mrb[0].mxu0
      %4004 = vmatprep.mubr.bf16.mxu0 0
      %4005 = vmatmul.mubr.bf16.gmra.mrb[0].mxu0 %v3894
      %v4006 = vpop.f32.mrb[0].mxu0
      %v4007 = vadd.f32 0.0, %v4006
      %v4008 = vpop.f32.mrb[0].mxu0
      %v4009 = vpop.f32.mrb[0].mxu0
      %v4010 = vadd.f32 0.0, %v4009
      %v4011 = vpop.f32.mrb[0].mxu0
      %4012 = vmatprep.mubr.bf16.mxu0 0
      %4013 = vmatmul.mubr.bf16.gmra.mrb[0].mxu0 %v3895
      %v4014 = vpop.f32.mrb[0].mxu0
      %v4015 = vadd.f32 0.0, %v4014
      %v4016 = vpop.f32.mrb[0].mxu0
      %v4017 = vpop.f32.mrb[0].mxu0
      %v4018 = vadd.f32 0.0, %v4017
      %v4019 = vpop.f32.mrb[0].mxu0
      %4020 = vmatprep.mubr.bf16.mxu0 0
      %4021 = vmatmul.mubr.bf16.gmra.mrb[0].mxu0 %v3896
      %v4022 = vpop.f32.mrb[0].mxu0
      %v4023 = vadd.f32 0.0, %v4022
      %v4024 = vpop.f32.mrb[0].mxu0
      %v4025 = vpop.f32.mrb[0].mxu0
      %v4026 = vadd.f32 0.0, %v4025
      %v4027 = vpop.f32.mrb[0].mxu0
      %4028 = vmatprep.mubr.bf16.mxu0 0
      %4029 = vmatmul.mubr.bf16.gmra.mrb[0].mxu0 %v3897
      %v4030 = vpop.f32.mrb[0].mxu0
      %v4031 = vadd.f32 0.0, %v4030
      %v4032 = vpop.f32.mrb[0].mxu0
      %v4033 = vpop.f32.mrb[0].mxu0
      %v4034 = vadd.f32 0.0, %v4033
      %v4035 = vpop.f32.mrb[0].mxu0
      %4036 = vmatprep.mubr.bf16.mxu0 0
      %4037 = vmatmul.mubr.bf16.gmra.mrb[0].mxu0 %v3898
      %v4038 = vpop.f32.mrb[0].mxu0
      %v4039 = vadd.f32 0.0, %v4038
      %v4040 = vpop.f32.mrb[0].mxu0
      %v4041 = vpop.f32.mrb[0].mxu0
      %v4042 = vadd.f32 0.0, %v4041
      %v4043 = vpop.f32.mrb[0].mxu0
      %4044 = vmatprep.mubr.bf16.mxu0 0
      %4045 = vmatmul.mubr.bf16.gmra.mrb[0].mxu0 %v3899
      %v4046 = vpop.f32.mrb[0].mxu0
      %v4047 = vadd.f32 0.0, %v4046
      %v4048 = vpop.f32.mrb[0].mxu0
      %v4049 = vpop.f32.mrb[0].mxu0
      %v4050 = vadd.f32 0.0, %v4049
      %v4051 = vpop.f32.mrb[0].mxu0
      %4052 = vdwg.mxu0
      %v4053 = vadd.f32 %v3755, %v3991
      %v4054 = vadd.f32 %v3756, %v3994
      %v4055 = vadd.f32 %v3757, %v3999
      %v4056 = vadd.f32 %v3758, %v4002
      %v4057 = vadd.f32 %v3759, %v4007
      %v4058 = vadd.f32 %v3760, %v4010
      %v4059 = vadd.f32 %v3761, %v4015
      %v4060 = vadd.f32 %v3762, %v4018
      %v4061 = vadd.f32 %v3763, %v4023
      %v4062 = vadd.f32 %v3764, %v4026
      %v4063 = vadd.f32 %v3765, %v4031
      %v4064 = vadd.f32 %v3766, %v4034
      %v4065 = vadd.f32 %v3767, %v4039
      %v4066 = vadd.f32 %v3768, %v4042
      %v4067 = vadd.f32 %v3769, %v4047
      %v4068 = vadd.f32 %v3770, %v4050
      %v4069 = vpack.c.bf16 %v4054, %v4053
      %v4070 = vpack.c.bf16 %v4056, %v4055
      %v4071 = vpack.c.bf16 %v4058, %v4057
      %v4072 = vpack.c.bf16 %v4060, %v4059
      %v4073 = vpack.c.bf16 %v4062, %v4061
      %v4074 = vpack.c.bf16 %v4064, %v4063
      %v4075 = vpack.c.bf16 %v4066, %v4065
      %v4076 = vpack.c.bf16 %v4068, %v4067
      %v4085 = vunpack.c.l.b16 %v4069
      %v4086 = vunpack.c.h.b16 %v4069
      %v4087 = vunpack.c.l.b16 %v4070
      %v4088 = vunpack.c.h.b16 %v4070
      %v4089 = vunpack.c.l.b16 %v4071
      %v4090 = vunpack.c.h.b16 %v4071
      %v4091 = vunpack.c.l.b16 %v4072
      %v4092 = vunpack.c.h.b16 %v4072
      %v4093 = vunpack.c.l.b16 %v4073
      %v4094 = vunpack.c.h.b16 %v4073
      %v4095 = vunpack.c.l.b16 %v4074
      %v4096 = vunpack.c.h.b16 %v4074
      %v4097 = vunpack.c.l.b16 %v4075
      %v4098 = vunpack.c.h.b16 %v4075
      %v4099 = vunpack.c.l.b16 %v4076
      %v4100 = vunpack.c.h.b16 %v4076
      %v4101 = vpack.c.b16 %v4085, %v4085
      %v4102 = vpack.c.b16 %v4086, %v4086
      %v4103 = vpack.c.b16 %v4087, %v4087
      %v4104 = vpack.c.b16 %v4088, %v4088
      %v4105 = vpack.c.b16 %v4089, %v4089
      %v4106 = vpack.c.b16 %v4090, %v4090
      %v4107 = vpack.c.b16 %v4091, %v4091
      %v4108 = vpack.c.b16 %v4092, %v4092
      %v4109 = vpack.c.b16 %v4093, %v4093
      %v4110 = vpack.c.b16 %v4094, %v4094
      %v4111 = vpack.c.b16 %v4095, %v4095
      %v4112 = vpack.c.b16 %v4096, %v4096
      %v4113 = vpack.c.b16 %v4097, %v4097
      %v4114 = vpack.c.b16 %v4098, %v4098
      %v4115 = vpack.c.b16 %v4099, %v4099
      %v4116 = vpack.c.b16 %v4100, %v4100
      %4133 = vst [vmem:[%s368] sm:$0xf] %v4101
      %4134 = vst [vmem:[%s368 + $0x4] sm:$0xf] %v4102
      %4135 = vst [vmem:[%s368 + $0x8] sm:$0xf] %v4103
      %4136 = vst [vmem:[%s368 + $0xc] sm:$0xf] %v4104
      %4137 = vst [vmem:[%s368 + $0x10] sm:$0xf] %v4105
      %4138 = vst [vmem:[%s368 + $0x14] sm:$0xf] %v4106
      %4139 = vst [vmem:[%s368 + $0x18] sm:$0xf] %v4107
      %4140 = vst [vmem:[%s368 + $0x1c] sm:$0xf] %v4108
      %4141 = vst [vmem:[%s368 + $0x20] sm:$0xf] %v4109
      %4142 = vst [vmem:[%s368 + $0x24] sm:$0xf] %v4110
      %4143 = vst [vmem:[%s368 + $0x28] sm:$0xf] %v4111
      %4144 = vst [vmem:[%s368 + $0x2c] sm:$0xf] %v4112
      %4145 = vst [vmem:[%s368 + $0x30] sm:$0xf] %v4113
      %4146 = vst [vmem:[%s368 + $0x34] sm:$0xf] %v4114
      %4147 = vst [vmem:[%s368 + $0x38] sm:$0xf] %v4115
      %4148 = vst [vmem:[%s368 + $0x3c] sm:$0xf] %v4116
      %v4149 = vadd.f32 %v4053, %v4054
      %v4150 = vadd.f32 %v4149, %v4055
      %v4151 = vadd.f32 %v4150, %v4056
      %v4152 = vadd.f32 %v4151, %v4057
      %v4153 = vadd.f32 %v4152, %v4058
      %v4154 = vadd.f32 %v4153, %v4059
      %v4155 = vadd.f32 %v4154, %v4060
      %v4156 = vadd.f32 %v4155, %v4061
      %v4157 = vadd.f32 %v4156, %v4062
      %v4158 = vadd.f32 %v4157, %v4063
      %v4159 = vadd.f32 %v4158, %v4064
      %v4160 = vadd.f32 %v4159, %v4065
      %v4161 = vadd.f32 %v4160, %v4066
      %v4162 = vadd.f32 %v4161, %v4067
      %v4163 = vadd.f32 %v4162, %v4068
      %v4164 = vrot.slane %v4163, 4
      %v4165 = vadd.f32 %v4163, %v4164
      %v4166 = vrot.slane %v4165, 2
      %v4167 = vadd.f32 %v4165, %v4166
      %v4168 = vrot.slane %v4167, 1
      %v4169 = vadd.f32 %v4167, %v4168
      %4170 = vst [vmem:[%s377] sm:$0x1] %v4169
      %v4171 = vmul.f32 %v4053, %v4053
      %v4172 = vmul.f32 %v4054, %v4054
      %v4173 = vmul.f32 %v4055, %v4055
      %v4174 = vmul.f32 %v4056, %v4056
      %v4175 = vmul.f32 %v4057, %v4057
      %v4176 = vmul.f32 %v4058, %v4058
      %v4177 = vmul.f32 %v4059, %v4059
      %v4178 = vmul.f32 %v4060, %v4060
      %v4179 = vmul.f32 %v4061, %v4061
      %v4180 = vmul.f32 %v4062, %v4062
      %v4181 = vmul.f32 %v4063, %v4063
      %v4182 = vmul.f32 %v4064, %v4064
      %v4183 = vmul.f32 %v4065, %v4065
      %v4184 = vmul.f32 %v4066, %v4066
      %v4185 = vmul.f32 %v4067, %v4067
      %v4186 = vmul.f32 %v4068, %v4068
      %v4187 = vadd.f32 %v4171, %v4172
      %v4188 = vadd.f32 %v4187, %v4173
      %v4189 = vadd.f32 %v4188, %v4174
      %v4190 = vadd.f32 %v4189, %v4175
      %v4191 = vadd.f32 %v4190, %v4176
      %v4192 = vadd.f32 %v4191, %v4177
      %v4193 = vadd.f32 %v4192, %v4178
      %v4194 = vadd.f32 %v4193, %v4179
      %v4195 = vadd.f32 %v4194, %v4180
      %v4196 = vadd.f32 %v4195, %v4181
      %v4197 = vadd.f32 %v4196, %v4182
      %v4198 = vadd.f32 %v4197, %v4183
      %v4199 = vadd.f32 %v4198, %v4184
      %v4200 = vadd.f32 %v4199, %v4185
      %v4201 = vadd.f32 %v4200, %v4186
      %v4202 = vrot.slane %v4201, 4
      %v4203 = vadd.f32 %v4201, %v4202
      %v4204 = vrot.slane %v4203, 2
      %v4205 = vadd.f32 %v4203, %v4204
      %v4206 = vrot.slane %v4205, 1
      %v4207 = vadd.f32 %v4205, %v4206
      %4208 = vst [vmem:[%s377 + $0x1] sm:$0x1] %v4207
      %s4209 = smul.u32 8, %s24
      %p4210 = scmp.lt.s32.totalorder %s23, 1
      %s4211 = scalar_select %p4210, %s23, 1
      %p4212 = scmp.lt.s32.totalorder %s4209, 15
      %s4213 = scalar_select %p4212, %s4209, 15
      %s4214 = smul.addr %s4213, 2
      %s4215 = smul.addr %s4211, 32
      %s4216 = sadd.s32 %s4214, %s4215
      %s4217 = smul.addr %s4216, 4
      %s4218 = scalar_lea.vmem %s6, %s4217
      %p4219 = scmp.lt.s32.totalorder %s23, 1
      %s4220 = scalar_select %p4219, %s23, 1
      %p4221 = scmp.lt.s32.totalorder %s24, 1
      %s4222 = scalar_select %p4221, %s24, 1
      %s4223 = smul.addr %s4220, 2
      %s4224 = sadd.s32 %s4222, %s4223
      %s4225 = smul.addr %s4224, 2
      %s4226 = scalar_lea.vmem %s7, %s4225
      // Predicated region
      $region53: #{residual_block_forward.4} parent=43 // pred_check
        %p4227 = pneg %p191
      $region54: #{residual_block_forward.4} parent=43 // pred_check_branch
        %4229 = sbr.rel (%p4227) target = $region56
      $region55: #{residual_block_forward.4} parent=43 // pred_region
        %s4230 = smul.u32 8, %s24
      $region56: #{residual_block_forward.4} parent=43 // pred_fallthru
        _
      // Predicated region
      $region57: #{residual_block_forward.4} parent=43 // pred_check
        %p4231 = pneg %p219
      $region58: #{residual_block_forward.4} parent=43 // pred_check_branch
        %4233 = sbr.rel (%p4231) target = $region60
      $region59: #{residual_block_forward.4} parent=43 // pred_region
        _
      $region60: #{residual_block_forward.4} parent=43 // pred_fallthru
        _
    $region44: #{residual_block_forward.4} parent=5 // pred_fallthru
      _
    %p4234 = scmp.le.s32.totalorder 2, %s14
    // Predicated region
    $region61: #{residual_block_forward.4} parent=5 // pred_check
      %p4235 = pneg %p4234
    $region62: #{residual_block_forward.4} parent=5 // pred_check_branch
      %4237 = sbr.rel (%p4235) target = $region64
    $region63: #{residual_block_forward.4} parent=5 // pred_region
      %s4238 = ssub.s32 %s14, 2
      // Predicated region
      $region65: #{residual_block_forward.4} parent=63 // pred_check
        %p4239 = pneg %p197
      $region66: #{residual_block_forward.4} parent=63 // pred_check_branch
        %4241 = sbr.rel (%p4239) target = $region68
      $region67: #{residual_block_forward.4} parent=63 // pred_region
        %s4242 = smul.u32 8, %s26
        %p4243 = scmp.lt.s32.totalorder %s25, 1
        %s4244 = scalar_select %p4243, %s25, 1
        %p4245 = scmp.lt.s32.totalorder %s4242, 15
        %s4246 = scalar_select %p4245, %s4242, 15
        %s4247 = smul.addr %s4246, 2
        %s4248 = smul.addr %s4244, 32
        %s4249 = sadd.s32 %s4247, %s4248
        %s4250 = smul.addr %s4249, 4
        %s4251 = scalar_lea.vmem %s6, %s4250
      $region68: #{residual_block_forward.4} parent=63 // pred_fallthru
        _
      // Predicated region
      $region69: #{residual_block_forward.4} parent=63 // pred_check
        %p4252 = pneg %p225
      $region70: #{residual_block_forward.4} parent=63 // pred_check_branch
        %4254 = sbr.rel (%p4252) target = $region72
      $region71: #{residual_block_forward.4} parent=63 // pred_region
        %p4255 = scmp.lt.s32.totalorder %s25, 1
        %s4256 = scalar_select %p4255, %s25, 1
        %p4257 = scmp.lt.s32.totalorder %s26, 1
        %s4258 = scalar_select %p4257, %s26, 1
        %s4259 = smul.addr %s4256, 2
        %s4260 = sadd.s32 %s4258, %s4259
        %s4261 = smul.addr %s4260, 2
        %s4262 = scalar_lea.vmem %s7, %s4261
      $region72: #{residual_block_forward.4} parent=63 // pred_fallthru
        _
    $region64: #{residual_block_forward.4} parent=5 // pred_fallthru
      _
  $region6: #{residual_block_forward.4} parent=0 // loop_footer
    %s18 = sadd.s32 1, %s14
  $region7: #{residual_block_forward.4} parent=0 // loop_footer_branch
    %13 = sbr.rel target = $region3
  $region8: #{residual_block_forward.4} parent=0 // loop_exit
    _

</llo_original>
